<compile_context>
chip_gen: v7x
topology: tpu7x:2x2x1
jax: 0.10.0
libtpu: 0.0.40
codegen_flags: <defaults>
</compile_context>

<pallas_src>
import numpy as np
import jax
import jax.numpy as jnp
from jax.experimental import pallas as pl
from jax.experimental.pallas import tpu as pltpu

THRESH = 0.3
DECAY = 0.2
TIME_WINDOW = 20

LANES1 = 28 * 32        # conv1 lane space: (width, channel) = 896 (lane dense)
LANES2 = 14 * 32        # conv2 lane space: 448
NFC = 128


# ---------------------------------------------------------------------------
# Fused SNN kernel: one grid step = one (batch-tile, time-step)
# ---------------------------------------------------------------------------
def _make_kernel(bt):
    def kernel(spk_ref, b1w_ref, b1b_ref, p1h_ref, p1w_ref,
               b2w_ref, b2b_ref, lsel_ref, rfc_ref, bfc_ref,
               out_ref, mem1, mem2, mem3):
        t = pl.program_id(1)
        nt = pl.num_programs(1)
        f32, bf16 = jnp.float32, jnp.bfloat16
        dot = lambda a, b: jnp.dot(a, b, preferred_element_type=f32)

        @pl.when(t == 0)
        def _init():
            mem1[...] = jnp.zeros_like(mem1)
            mem2[...] = jnp.zeros_like(mem2)
            mem3[...] = jnp.zeros_like(mem3)
            out_ref[...] = jnp.zeros_like(out_ref)

        sin = spk_ref[...]                       # [bt*32, 32] bf16 Bernoulli spikes

        def taps(x):
            # 3 conv height taps via zero-padded row shifts, fused along K.
            # Cross-sample contamination only ever lands in / comes from
            # all-zero padding rows, so valid rows are exact.
            z = jnp.zeros((1, x.shape[1]), x.dtype)
            down = jnp.concatenate([z, x[:-1, :]], axis=0)   # row h <- row h-1
            up = jnp.concatenate([x[1:, :], z], axis=0)      # row h <- row h+1
            return jnp.concatenate([down, x, up], axis=1)

        # ---- conv1 (1->32, 3x3, pad 1): single K=96 MXU matmul + LIF ----------
        z1 = dot(taps(sin), b1w_ref[...]) + b1b_ref[...]
        s1p = (mem1[...] > THRESH).astype(f32)   # previous spikes, recomputed
        m1 = mem1[...] * (DECAY * (1.0 - s1p)) + z1
        mem1[...] = m1
        s1 = (m1 > THRESH).astype(bf16)

        # ---- 2x2 average pool (values are multiples of 0.25 -> exact in bf16) --
        p1 = dot(dot(p1h_ref[...], s1).astype(bf16), p1w_ref[...]).astype(bf16)

        # ---- conv2 (32->32, 3x3, pad 1): single K=1344 MXU matmul + LIF --------
        z2 = dot(taps(p1), b2w_ref[...]) + b2b_ref[...]
        s2p = (mem2[...] > THRESH).astype(f32)
        m2 = mem2[...] * (DECAY * (1.0 - s2p)) + z2
        mem2[...] = m2
        s2 = (m2 > THRESH).astype(bf16)

        # ---- avg-pool + NCHW flatten + fc1: 1 H-pool matmul + 7 slab matmuls ---
        y = dot(lsel_ref[...], s2).astype(bf16)              # [7*bt, LANES2]
        z3 = bfc_ref[...]
        for i in range(7):
            z3 = z3 + dot(y[i * bt:(i + 1) * bt, :], rfc_ref[i])
        s3p = (mem3[...] > THRESH).astype(f32)
        m3 = mem3[...] * (DECAY * (1.0 - s3p)) + z3
        mem3[...] = m3
        out_ref[...] = out_ref[...] + (m3 > THRESH).astype(f32)   # h1_sumspike
        # fc2 / h2 of the reference never affect the returned embedding -> dropped.

        @pl.when(t == nt - 1)
        def _finalize():
            o = out_ref[...] * (1.0 / TIME_WINDOW)
            ss = jnp.sum(o * o, axis=1, keepdims=True)
            # rsqrt on the EUP; eps clamp matches F.normalize-style behavior and
            # avoids NaN for all-silent (e.g. zero-padded) samples.
            out_ref[...] = o * jax.lax.rsqrt(jnp.maximum(ss, 1e-24))

    return kernel


# ---------------------------------------------------------------------------
# pallas_call wrapper
# ---------------------------------------------------------------------------
def _embedding_pallas(packed, p1h, lsel, spk, bt, num_bt):
    rows1, rows2 = bt * 32, bt * 16
    consts = [packed["B1"], packed["b1"], p1h, packed["P1W"],
              packed["B2"], packed["b2"], lsel, packed["R"], packed["bf"]]

    # TODO(synk): pipeline_mode=pl.Buffered(1) on the constant specs would halve
    # their resident VMEM (constant index_map); omitted for portability across
    # jax versions / interpret mode.
    def cspec(a):
        nd = a.ndim
        return pl.BlockSpec(a.shape, lambda i, t, _n=nd: (0,) * _n)

    in_specs = [pl.BlockSpec((None, rows1, 32), lambda i, t: (t, i, 0))]  # spikes
    in_specs += [cspec(a) for a in consts]                                # weights

    grid_spec = pltpu.PrefetchScalarGridSpec(
        num_scalar_prefetch=0,
        grid=(num_bt, TIME_WINDOW),
        in_specs=in_specs,
        out_specs=pl.BlockSpec((None, bt, NFC), lambda i, t: (i, 0, 0)),
        scratch_shapes=[
            pltpu.VMEM((rows1, LANES1), jnp.float32),   # conv1 membrane
            pltpu.VMEM((rows2, LANES2), jnp.float32),   # conv2 membrane
            pltpu.VMEM((bt, NFC), jnp.float32),         # fc1 membrane
        ],
    )
    return pl.pallas_call(
        _make_kernel(bt),
        grid_spec=grid_spec,
        out_shape=jax.ShapeDtypeStruct((num_bt, bt, NFC), jnp.float32),
        compiler_params=pltpu.CompilerParams(
            dimension_semantics=("parallel", "arbitrary"),
            # bf16 weights (~4.3 MiB at bt=32, double-buffered) + f32 LIF state
            # (~4.5 MiB) stay well under v7x's 64 MiB physical VMEM per core.
            vmem_limit_bytes=40 * 1024 * 1024,
        ),
    )(spk, *consts)


def _choose_bt(n):
    # Largest tile that still leaves >= 2 batch tiles, so the "parallel" grid
    # axis can engage both v7x TensorCores; big batches get bt=32 for MXU rows.
    for bt in (32, 16, 8, 4):
        if n > bt:
            return bt
    return 4


@jax.jit
def _forward_jit(packed, p1h, lsel, x, key):
    n = x.shape[0]
    bt = p1h.shape[0] // 16
    num_bt = -(-n // bt)
    n_pad = num_bt * bt
    # rows = (sample, image row) padded 28->32; lanes = image col padded 28->32
    xp = jnp.pad(x[:, 0, :, :], ((0, n_pad - n), (0, 4), (0, 4)))
    # Bernoulli spikes per time step (torch.rand semantics, jax.random bits).
    u = jax.random.uniform(key, (TIME_WINDOW, n_pad, 32, 32), jnp.float32)
    spk = (xp[None] > u).astype(jnp.bfloat16).reshape(TIME_WINDOW, n_pad * 32, 32)
    out = _embedding_pallas(packed, p1h, lsel, spk, bt, num_bt)
    return out.reshape(n_pad, NFC)[:n]


def triplet_net_forward(packed, x1, x2, x3, key):
    """TripletNet.forward: the embedding net applied to x1, x2, x3 (one launch)."""
    b = x1.shape[0]
    n = 3 * b
    bt = _choose_bt(n)
    p1h, lsel = _bt_consts(bt)
    x = jnp.concatenate([x1, x2, x3], axis=0)                 # [3B, 1, 28, 28]
    emb = _forward_jit(packed, p1h, lsel, x, key)
    return emb[:b], emb[b:2 * b], emb[2 * b:3 * b]


# ---------------------------------------------------------------------------
# Parameters: torch-layout synthetic init + host-side packing into the constant
# band / pool / flatten matrices consumed by the kernel (done once).
# ---------------------------------------------------------------------------
def init_raw_params(key):
    k1, k2, k3 = jax.random.split(key, 3)

    def uni(k, shape, fan_in):
        bound = 1.0 / np.sqrt(fan_in)
        return np.asarray(jax.random.uniform(k, shape, jnp.float32, -bound, bound))

    return {
        "conv1_w": uni(k1, (32, 1, 3, 3), 1 * 9),         # [Cout, Cin, kh, kw]
        "conv1_b": np.full((32,), 0.10, np.float32),
        "conv2_w": uni(k2, (32, 32, 3, 3), 32 * 9),
        "conv2_b": np.full((32,), 0.10, np.float32),
        "fc1_w": uni(k3, (128, 7 * 7 * 32), 7 * 7 * 32),  # [out, in], NCHW flatten
        "fc1_b": np.full((128,), 0.35, np.float32),
        # fc2 (128 -> 10) exists in the reference module but is dead w.r.t. the
        # returned embedding, so it is neither packed nor computed.
    }


def pack_params(raw):
    w1, b1 = raw["conv1_w"], raw["conv1_b"]
    w2, b2 = raw["conv2_w"], raw["conv2_b"]
    wf, bf = raw["fc1_w"], raw["fc1_b"]

    # W-tap band matrices, stacked along K for the fused 3-tap conv matmuls.
    band1 = np.zeros((3, 32, LANES1), np.float32)
    for ki in range(3):
        for wo in range(28):
            for kj in range(3):
                wi = wo + kj - 1
                if 0 <= wi < 28:
                    band1[ki, wi, wo * 32:(wo + 1) * 32] = w1[:, 0, ki, kj]
    b1w = band1.reshape(3 * 32, LANES1)                      # [96, 896]

    band2 = np.zeros((3, LANES2, LANES2), np.float32)
    for ki in range(3):
        for wo in range(14):
            for kj in range(3):
                wi = wo + kj - 1
                if 0 <= wi < 14:
                    band2[ki, wi * 32:(wi + 1) * 32, wo * 32:(wo + 1) * 32] = \
                        w2[:, :, ki, kj].T                   # [ci, co]
    b2w = band2.reshape(3 * LANES2, LANES2)                  # [1344, 448]

    # 2x2 average pool after conv1: right matrix pools W (lanes).
    p1w = np.zeros((LANES1, LANES2), np.float32)
    for j in range(14):
        for c in range(32):
            p1w[(2 * j) * 32 + c, j * 32 + c] = 0.5
            p1w[(2 * j + 1) * 32 + c, j * 32 + c] = 0.5

    # Pool after conv2 + NCHW flatten + fc1, folded into 7 right matrices:
    #   z3 = sum_i  (Lstack @ s2)[i-th slab] @ R[i]
    rfc = np.zeros((7, LANES2, NFC), np.float32)
    for i in range(7):
        for w in range(14):
            j = w // 2
            for c in range(32):
                rfc[i, w * 32 + c, :] = 0.5 * wf[:, c * 49 + i * 7 + j]

    jb = lambda a: jnp.asarray(a, jnp.bfloat16)   # MXU operands -> bf16
    jf = lambda a: jnp.asarray(a, jnp.float32)    # biases stay f32
    return {
        "B1": jb(b1w), "b1": jf(np.tile(b1, 28)[None, :]),
        "P1W": jb(p1w),
        "B2": jb(b2w), "b2": jf(np.tile(b2, 14)[None, :]),
        "R": jb(rfc), "bf": jf(bf[None, :]),
    }


_BT_CACHE = {}


def _bt_consts(bt):
    """Batch-tile-dependent constants: H-pool after conv1 and the fc H-pool stack."""
    if bt in _BT_CACHE:
        return _BT_CACHE[bt]
    rows1, rows2 = bt * 32, bt * 16
    p1h = np.zeros((rows2, rows1), np.float32)
    for s in range(bt):
        for i in range(14):
            p1h[s * 16 + i, s * 32 + 2 * i] = 0.5
            p1h[s * 16 + i, s * 32 + 2 * i + 1] = 0.5
    lsel = np.zeros((7 * bt, rows2), np.float32)
    for i in range(7):
        for s in range(bt):
            lsel[i * bt + s, s * 16 + 2 * i] = 0.5
            lsel[i * bt + s, s * 16 + 2 * i + 1] = 0.5
    out = (jnp.asarray(p1h, jnp.bfloat16), jnp.asarray(lsel, jnp.bfloat16))
    _BT_CACHE[bt] = out
    return out


if __name__ == "__main__":
    root = jax.random.PRNGKey(0)
    k_params, k1, k2, k3, k_spk = jax.random.split(root, 5)

    packed = pack_params(init_raw_params(k_params))

    B = 2   # spatial/channel dims are fixed by the module (28x28 -> fc1 in = 1568)
    x1 = jax.random.uniform(k1, (B, 1, 28, 28), jnp.float32)
    x2 = jax.random.uniform(k2, (B, 1, 28, 28), jnp.float32)
    x3 = jax.random.uniform(k3, (B, 1, 28, 28), jnp.float32)

    o1, o2, o3 = triplet_net_forward(packed, x1, x2, x3, k_spk)
    jax.block_until_ready((o1, o2, o3))
    assert o1.shape == (B, 128) and o2.shape == (B, 128) and o3.shape == (B, 128)
    assert bool(jnp.all(jnp.isfinite(o1)))
    assert bool(jnp.all(jnp.isfinite(o2)))
    assert bool(jnp.all(jnp.isfinite(o3)))
    print("KERNEL_OK")
</pallas_src>

<mosaic_0001>
module attributes {stable_mosaic.version = 11 : i64} {
  func.func @kernel(%arg0: i32, %arg1: i32, %arg2: memref<1x128x32xbf16, #tpu.memory_space<vmem>>, %arg3: memref<96x896xbf16, #tpu.memory_space<vmem>>, %arg4: memref<1x896xf32, #tpu.memory_space<vmem>>, %arg5: memref<64x128xbf16, #tpu.memory_space<vmem>>, %arg6: memref<896x448xbf16, #tpu.memory_space<vmem>>, %arg7: memref<1344x448xbf16, #tpu.memory_space<vmem>>, %arg8: memref<1x448xf32, #tpu.memory_space<vmem>>, %arg9: memref<28x64xbf16, #tpu.memory_space<vmem>>, %arg10: memref<7x448x128xbf16, #tpu.memory_space<vmem>>, %arg11: memref<1x128xf32, #tpu.memory_space<vmem>>, %arg12: memref<1x4x128xf32, #tpu.memory_space<vmem>>, %arg13: memref<128x896xf32, #tpu.memory_space<vmem>>, %arg14: memref<64x448xf32, #tpu.memory_space<vmem>>, %arg15: memref<4x128xf32, #tpu.memory_space<vmem>>) attributes {dimension_semantics = [#tpu.dimension_semantics<parallel>, #tpu.dimension_semantics<arbitrary>], iteration_bounds = array<i64: 2, 20>, scalar_prefetch = 0 : i64, scratch_operands = 3 : i64, tpu.core_type = #tpu.core_type<tc>, window_params = [{transform_indices = @transform_0, window_bounds = array<i64: 1, 128, 32>}, {pipeline_mode = #tpu.pipeline_mode<synchronous>, transform_indices = @transform_1, window_bounds = array<i64: 96, 896>}, {pipeline_mode = #tpu.pipeline_mode<synchronous>, transform_indices = @transform_2, window_bounds = array<i64: 1, 896>}, {pipeline_mode = #tpu.pipeline_mode<synchronous>, transform_indices = @transform_3, window_bounds = array<i64: 64, 128>}, {pipeline_mode = #tpu.pipeline_mode<synchronous>, transform_indices = @transform_4, window_bounds = array<i64: 896, 448>}, {pipeline_mode = #tpu.pipeline_mode<synchronous>, transform_indices = @transform_5, window_bounds = array<i64: 1344, 448>}, {pipeline_mode = #tpu.pipeline_mode<synchronous>, transform_indices = @transform_6, window_bounds = array<i64: 1, 448>}, {pipeline_mode = #tpu.pipeline_mode<synchronous>, transform_indices = @transform_7, window_bounds = array<i64: 28, 64>}, {pipeline_mode = #tpu.pipeline_mode<synchronous>, transform_indices = @transform_8, window_bounds = array<i64: 7, 448, 128>}, {pipeline_mode = #tpu.pipeline_mode<synchronous>, transform_indices = @transform_9, window_bounds = array<i64: 1, 128>}, {transform_indices = @transform_10, window_bounds = array<i64: 1, 4, 128>}]} {
    %c0_i32 = arith.constant 0 : i32
    %0 = arith.cmpi eq, %arg1, %c0_i32 : i32
    %1 = arith.extui %0 : i1 to i32
    %c0_i32_0 = arith.constant 0 : i32
    %2 = arith.cmpi ne, %1, %c0_i32_0 : i32
    scf.if %2 {
      %cst_84 = arith.constant 0.000000e+00 : f32
      %135 = vector.broadcast %cst_84 : f32 to vector<128x896xf32>
      %c0_85 = arith.constant 0 : index
      %c0_86 = arith.constant 0 : index
      %136 = vector.load %arg13[%c0_85, %c0_86] : memref<128x896xf32, #tpu.memory_space<vmem>>, vector<128x896xf32>
      tpu.vector_store %arg13[%c0_85, %c0_86], %135 {strides = array<i32>} : memref<128x896xf32, #tpu.memory_space<vmem>>, vector<128x896xf32>,
      %cst_87 = arith.constant 0.000000e+00 : f32
      %137 = vector.broadcast %cst_87 : f32 to vector<64x448xf32>
      %c0_88 = arith.constant 0 : index
      %c0_89 = arith.constant 0 : index
      %138 = vector.load %arg14[%c0_88, %c0_89] : memref<64x448xf32, #tpu.memory_space<vmem>>, vector<64x448xf32>
      tpu.vector_store %arg14[%c0_88, %c0_89], %137 {strides = array<i32>} : memref<64x448xf32, #tpu.memory_space<vmem>>, vector<64x448xf32>,
      %cst_90 = arith.constant 0.000000e+00 : f32
      %139 = vector.broadcast %cst_90 : f32 to vector<4x128xf32>
      %c0_91 = arith.constant 0 : index
      %c0_92 = arith.constant 0 : index
      %140 = vector.load %arg15[%c0_91, %c0_92] : memref<4x128xf32, #tpu.memory_space<vmem>>, vector<4x128xf32>
      tpu.vector_store %arg15[%c0_91, %c0_92], %139 {strides = array<i32>} : memref<4x128xf32, #tpu.memory_space<vmem>>, vector<4x128xf32>,
      %cst_93 = arith.constant 0.000000e+00 : f32
      %141 = vector.broadcast %cst_93 : f32 to vector<4x128xf32>
      %c0_94 = arith.constant 0 : index
      %c0_95 = arith.constant 0 : index
      %c0_96 = arith.constant 0 : index
      %142 = vector.load %arg12[%c0_94, %c0_95, %c0_96] : memref<1x4x128xf32, #tpu.memory_space<vmem>>, vector<1x4x128xf32>
      %143 = vector.shape_cast %142 : vector<1x4x128xf32> to vector<4x128xf32>
      %144 = vector.shape_cast %141 : vector<4x128xf32> to vector<1x4x128xf32>
      tpu.vector_store %arg12[%c0_94, %c0_95, %c0_96], %144 {strides = array<i32>} : memref<1x4x128xf32, #tpu.memory_space<vmem>>, vector<1x4x128xf32>,
    } else {
    }
    %c0 = arith.constant 0 : index
    %c0_1 = arith.constant 0 : index
    %c0_2 = arith.constant 0 : index
    %3 = vector.load %arg2[%c0, %c0_1, %c0_2] : memref<1x128x32xbf16, #tpu.memory_space<vmem>>, vector<1x128x32xbf16>
    %4 = vector.shape_cast %3 : vector<1x128x32xbf16> to vector<128x32xbf16>
    %cst = arith.constant 0.000000e+00 : bf16
    %5 = vector.broadcast %cst : bf16 to vector<1x32xbf16>
    %6 = vector.extract_strided_slice %4 {offsets = [0, 0], sizes = [127, 32], strides = [1, 1]} : vector<128x32xbf16> to vector<127x32xbf16>
    %7 = tpu.concatenate %5, %6 in 0 : vector<1x32xbf16>, vector<127x32xbf16> -> vector<128x32xbf16>
    %8 = vector.extract_strided_slice %4 {offsets = [1, 0], sizes = [127, 32], strides = [1, 1]} : vector<128x32xbf16> to vector<127x32xbf16>
    %9 = tpu.concatenate %8, %5 in 0 : vector<127x32xbf16>, vector<1x32xbf16> -> vector<128x32xbf16>
    %10 = tpu.concatenate %7, %4, %9 in 1 : vector<128x32xbf16>, vector<128x32xbf16>, vector<128x32xbf16> -> vector<128x96xbf16>
    %c0_3 = arith.constant 0 : index
    %c0_4 = arith.constant 0 : index
    %11 = vector.load %arg3[%c0_3, %c0_4] : memref<96x896xbf16, #tpu.memory_space<vmem>>, vector<96x896xbf16>
    %cst_5 = arith.constant dense<0.000000e+00> : vector<128x896xf32>
    %12 = tpu.matmul %10, %11, %cst_5 {dimension_numbers = #tpu.dot_dimension_numbers<[1], [0], [0], [1], [0, 0, 1, 1], [], []>} : vector<128x96xbf16>, vector<96x896xbf16>, vector<128x896xf32> -> vector<128x896xf32>
    %c0_6 = arith.constant 0 : index
    %c0_7 = arith.constant 0 : index
    %13 = vector.load %arg4[%c0_6, %c0_7] : memref<1x896xf32, #tpu.memory_space<vmem>>, vector<1x896xf32>
    %14 = vector.broadcast %13 : vector<1x896xf32> to vector<128x896xf32>
    %15 = arith.addf %12, %14 : vector<128x896xf32>
    %c0_8 = arith.constant 0 : index
    %c0_9 = arith.constant 0 : index
    %16 = vector.load %arg13[%c0_8, %c0_9] : memref<128x896xf32, #tpu.memory_space<vmem>>, vector<128x896xf32>
    %cst_10 = arith.constant 3.000000e-01 : f32
    %17 = vector.broadcast %cst_10 : f32 to vector<128x896xf32>
    %18 = arith.cmpf ogt, %16, %17 : vector<128x896xf32>
    %19 = arith.extui %18 : vector<128x896xi1> to vector<128x896xi32>
    %20 = arith.sitofp %19 : vector<128x896xi32> to vector<128x896xf32>
    %c0_11 = arith.constant 0 : index
    %c0_12 = arith.constant 0 : index
    %21 = vector.load %arg13[%c0_11, %c0_12] : memref<128x896xf32, #tpu.memory_space<vmem>>, vector<128x896xf32>
    %cst_13 = arith.constant 1.000000e+00 : f32
    %22 = vector.broadcast %cst_13 : f32 to vector<128x896xf32>
    %23 = arith.subf %22, %20 : vector<128x896xf32>
    %cst_14 = arith.constant 2.000000e-01 : f32
    %24 = vector.broadcast %cst_14 : f32 to vector<128x896xf32>
    %25 = arith.mulf %24, %23 : vector<128x896xf32>
    %26 = arith.mulf %21, %25 : vector<128x896xf32>
    %27 = arith.addf %26, %15 : vector<128x896xf32>
    %c0_15 = arith.constant 0 : index
    %c0_16 = arith.constant 0 : index
    %28 = vector.load %arg13[%c0_15, %c0_16] : memref<128x896xf32, #tpu.memory_space<vmem>>, vector<128x896xf32>
    tpu.vector_store %arg13[%c0_15, %c0_16], %27 {strides = array<i32>} : memref<128x896xf32, #tpu.memory_space<vmem>>, vector<128x896xf32>,
    %cst_17 = arith.constant 3.000000e-01 : f32
    %29 = vector.broadcast %cst_17 : f32 to vector<128x896xf32>
    %30 = arith.cmpf ogt, %27, %29 : vector<128x896xf32>
    %31 = arith.extui %30 : vector<128x896xi1> to vector<128x896xi32>
    %32 = arith.sitofp %31 : vector<128x896xi32> to vector<128x896xf32>
    %33 = arith.truncf %32 : vector<128x896xf32> to vector<128x896xbf16>
    %c0_18 = arith.constant 0 : index
    %c0_19 = arith.constant 0 : index
    %34 = vector.load %arg5[%c0_18, %c0_19] : memref<64x128xbf16, #tpu.memory_space<vmem>>, vector<64x128xbf16>
    %cst_20 = arith.constant dense<0.000000e+00> : vector<64x896xf32>
    %35 = tpu.matmul %34, %33, %cst_20 {dimension_numbers = #tpu.dot_dimension_numbers<[1], [0], [0], [1], [0, 0, 1, 1], [], []>} : vector<64x128xbf16>, vector<128x896xbf16>, vector<64x896xf32> -> vector<64x896xf32>
    %36 = arith.truncf %35 : vector<64x896xf32> to vector<64x896xbf16>
    %c0_21 = arith.constant 0 : index
    %c0_22 = arith.constant 0 : index
    %37 = vector.load %arg6[%c0_21, %c0_22] : memref<896x448xbf16, #tpu.memory_space<vmem>>, vector<896x448xbf16>
    %cst_23 = arith.constant dense<0.000000e+00> : vector<64x448xf32>
    %38 = tpu.matmul %36, %37, %cst_23 {dimension_numbers = #tpu.dot_dimension_numbers<[1], [0], [0], [1], [0, 0, 1, 1], [], []>} : vector<64x896xbf16>, vector<896x448xbf16>, vector<64x448xf32> -> vector<64x448xf32>
    %39 = arith.truncf %38 : vector<64x448xf32> to vector<64x448xbf16>
    %cst_24 = arith.constant 0.000000e+00 : bf16
    %40 = vector.broadcast %cst_24 : bf16 to vector<1x448xbf16>
    %41 = vector.extract_strided_slice %39 {offsets = [0, 0], sizes = [63, 448], strides = [1, 1]} : vector<64x448xbf16> to vector<63x448xbf16>
    %42 = tpu.concatenate %40, %41 in 0 : vector<1x448xbf16>, vector<63x448xbf16> -> vector<64x448xbf16>
    %43 = vector.extract_strided_slice %39 {offsets = [1, 0], sizes = [63, 448], strides = [1, 1]} : vector<64x448xbf16> to vector<63x448xbf16>
    %44 = tpu.concatenate %43, %40 in 0 : vector<63x448xbf16>, vector<1x448xbf16> -> vector<64x448xbf16>
    %45 = tpu.concatenate %42, %39, %44 in 1 : vector<64x448xbf16>, vector<64x448xbf16>, vector<64x448xbf16> -> vector<64x1344xbf16>
    %c0_25 = arith.constant 0 : index
    %c0_26 = arith.constant 0 : index
    %46 = vector.load %arg7[%c0_25, %c0_26] : memref<1344x448xbf16, #tpu.memory_space<vmem>>, vector<1344x448xbf16>
    %cst_27 = arith.constant dense<0.000000e+00> : vector<64x448xf32>
    %47 = tpu.matmul %45, %46, %cst_27 {dimension_numbers = #tpu.dot_dimension_numbers<[1], [0], [0], [1], [0, 0, 1, 1], [], []>} : vector<64x1344xbf16>, vector<1344x448xbf16>, vector<64x448xf32> -> vector<64x448xf32>
    %c0_28 = arith.constant 0 : index
    %c0_29 = arith.constant 0 : index
    %48 = vector.load %arg8[%c0_28, %c0_29] : memref<1x448xf32, #tpu.memory_space<vmem>>, vector<1x448xf32>
    %49 = vector.broadcast %48 : vector<1x448xf32> to vector<64x448xf32>
    %50 = arith.addf %47, %49 : vector<64x448xf32>
    %c0_30 = arith.constant 0 : index
    %c0_31 = arith.constant 0 : index
    %51 = vector.load %arg14[%c0_30, %c0_31] : memref<64x448xf32, #tpu.memory_space<vmem>>, vector<64x448xf32>
    %cst_32 = arith.constant 3.000000e-01 : f32
    %52 = vector.broadcast %cst_32 : f32 to vector<64x448xf32>
    %53 = arith.cmpf ogt, %51, %52 : vector<64x448xf32>
    %54 = arith.extui %53 : vector<64x448xi1> to vector<64x448xi32>
    %55 = arith.sitofp %54 : vector<64x448xi32> to vector<64x448xf32>
    %c0_33 = arith.constant 0 : index
    %c0_34 = arith.constant 0 : index
    %56 = vector.load %arg14[%c0_33, %c0_34] : memref<64x448xf32, #tpu.memory_space<vmem>>, vector<64x448xf32>
    %cst_35 = arith.constant 1.000000e+00 : f32
    %57 = vector.broadcast %cst_35 : f32 to vector<64x448xf32>
    %58 = arith.subf %57, %55 : vector<64x448xf32>
    %cst_36 = arith.constant 2.000000e-01 : f32
    %59 = vector.broadcast %cst_36 : f32 to vector<64x448xf32>
    %60 = arith.mulf %59, %58 : vector<64x448xf32>
    %61 = arith.mulf %56, %60 : vector<64x448xf32>
    %62 = arith.addf %61, %50 : vector<64x448xf32>
    %c0_37 = arith.constant 0 : index
    %c0_38 = arith.constant 0 : index
    %63 = vector.load %arg14[%c0_37, %c0_38] : memref<64x448xf32, #tpu.memory_space<vmem>>, vector<64x448xf32>
    tpu.vector_store %arg14[%c0_37, %c0_38], %62 {strides = array<i32>} : memref<64x448xf32, #tpu.memory_space<vmem>>, vector<64x448xf32>,
    %cst_39 = arith.constant 3.000000e-01 : f32
    %64 = vector.broadcast %cst_39 : f32 to vector<64x448xf32>
    %65 = arith.cmpf ogt, %62, %64 : vector<64x448xf32>
    %66 = arith.extui %65 : vector<64x448xi1> to vector<64x448xi32>
    %67 = arith.sitofp %66 : vector<64x448xi32> to vector<64x448xf32>
    %68 = arith.truncf %67 : vector<64x448xf32> to vector<64x448xbf16>
    %c0_40 = arith.constant 0 : index
    %c0_41 = arith.constant 0 : index
    %69 = vector.load %arg9[%c0_40, %c0_41] : memref<28x64xbf16, #tpu.memory_space<vmem>>, vector<28x64xbf16>
    %cst_42 = arith.constant dense<0.000000e+00> : vector<28x448xf32>
    %70 = tpu.matmul %69, %68, %cst_42 {dimension_numbers = #tpu.dot_dimension_numbers<[1], [0], [0], [1], [0, 0, 1, 1], [], []>} : vector<28x64xbf16>, vector<64x448xbf16>, vector<28x448xf32> -> vector<28x448xf32>
    %71 = arith.truncf %70 : vector<28x448xf32> to vector<28x448xbf16>
    %c0_43 = arith.constant 0 : index
    %c0_44 = arith.constant 0 : index
    %72 = vector.load %arg11[%c0_43, %c0_44] : memref<1x128xf32, #tpu.memory_space<vmem>>, vector<1x128xf32>
    %73 = vector.extract_strided_slice %71 {offsets = [0, 0], sizes = [4, 448], strides = [1, 1]} : vector<28x448xbf16> to vector<4x448xbf16>
    %c0_45 = arith.constant 0 : index
    %c0_46 = arith.constant 0 : index
    %c0_47 = arith.constant 0 : index
    %74 = vector.load %arg10[%c0_45, %c0_46, %c0_47] : memref<7x448x128xbf16, #tpu.memory_space<vmem>>, vector<1x448x128xbf16>
    %75 = vector.shape_cast %74 : vector<1x448x128xbf16> to vector<448x128xbf16>
    %cst_48 = arith.constant dense<0.000000e+00> : vector<4x128xf32>
    %76 = tpu.matmul %73, %75, %cst_48 {dimension_numbers = #tpu.dot_dimension_numbers<[1], [0], [0], [1], [0, 0, 1, 1], [], []>} : vector<4x448xbf16>, vector<448x128xbf16>, vector<4x128xf32> -> vector<4x128xf32>
    %77 = vector.broadcast %72 : vector<1x128xf32> to vector<4x128xf32>
    %78 = arith.addf %77, %76 : vector<4x128xf32>
    %79 = vector.extract_strided_slice %71 {offsets = [4, 0], sizes = [4, 448], strides = [1, 1]} : vector<28x448xbf16> to vector<4x448xbf16>
    %c1 = arith.constant 1 : index
    %c0_49 = arith.constant 0 : index
    %c0_50 = arith.constant 0 : index
    %80 = vector.load %arg10[%c1, %c0_49, %c0_50] : memref<7x448x128xbf16, #tpu.memory_space<vmem>>, vector<1x448x128xbf16>
    %81 = vector.shape_cast %80 : vector<1x448x128xbf16> to vector<448x128xbf16>
    %cst_51 = arith.constant dense<0.000000e+00> : vector<4x128xf32>
    %82 = tpu.matmul %79, %81, %cst_51 {dimension_numbers = #tpu.dot_dimension_numbers<[1], [0], [0], [1], [0, 0, 1, 1], [], []>} : vector<4x448xbf16>, vector<448x128xbf16>, vector<4x128xf32> -> vector<4x128xf32>
    %83 = arith.addf %78, %82 : vector<4x128xf32>
    %84 = vector.extract_strided_slice %71 {offsets = [8, 0], sizes = [4, 448], strides = [1, 1]} : vector<28x448xbf16> to vector<4x448xbf16>
    %c2 = arith.constant 2 : index
    %c0_52 = arith.constant 0 : index
    %c0_53 = arith.constant 0 : index
    %85 = vector.load %arg10[%c2, %c0_52, %c0_53] : memref<7x448x128xbf16, #tpu.memory_space<vmem>>, vector<1x448x128xbf16>
    %86 = vector.shape_cast %85 : vector<1x448x128xbf16> to vector<448x128xbf16>
    %cst_54 = arith.constant dense<0.000000e+00> : vector<4x128xf32>
    %87 = tpu.matmul %84, %86, %cst_54 {dimension_numbers = #tpu.dot_dimension_numbers<[1], [0], [0], [1], [0, 0, 1, 1], [], []>} : vector<4x448xbf16>, vector<448x128xbf16>, vector<4x128xf32> -> vector<4x128xf32>
    %88 = arith.addf %83, %87 : vector<4x128xf32>
    %89 = vector.extract_strided_slice %71 {offsets = [12, 0], sizes = [4, 448], strides = [1, 1]} : vector<28x448xbf16> to vector<4x448xbf16>
    %c3 = arith.constant 3 : index
    %c0_55 = arith.constant 0 : index
    %c0_56 = arith.constant 0 : index
    %90 = vector.load %arg10[%c3, %c0_55, %c0_56] : memref<7x448x128xbf16, #tpu.memory_space<vmem>>, vector<1x448x128xbf16>
    %91 = vector.shape_cast %90 : vector<1x448x128xbf16> to vector<448x128xbf16>
    %cst_57 = arith.constant dense<0.000000e+00> : vector<4x128xf32>
    %92 = tpu.matmul %89, %91, %cst_57 {dimension_numbers = #tpu.dot_dimension_numbers<[1], [0], [0], [1], [0, 0, 1, 1], [], []>} : vector<4x448xbf16>, vector<448x128xbf16>, vector<4x128xf32> -> vector<4x128xf32>
    %93 = arith.addf %88, %92 : vector<4x128xf32>
    %94 = vector.extract_strided_slice %71 {offsets = [16, 0], sizes = [4, 448], strides = [1, 1]} : vector<28x448xbf16> to vector<4x448xbf16>
    %c4 = arith.constant 4 : index
    %c0_58 = arith.constant 0 : index
    %c0_59 = arith.constant 0 : index
    %95 = vector.load %arg10[%c4, %c0_58, %c0_59] : memref<7x448x128xbf16, #tpu.memory_space<vmem>>, vector<1x448x128xbf16>
    %96 = vector.shape_cast %95 : vector<1x448x128xbf16> to vector<448x128xbf16>
    %cst_60 = arith.constant dense<0.000000e+00> : vector<4x128xf32>
    %97 = tpu.matmul %94, %96, %cst_60 {dimension_numbers = #tpu.dot_dimension_numbers<[1], [0], [0], [1], [0, 0, 1, 1], [], []>} : vector<4x448xbf16>, vector<448x128xbf16>, vector<4x128xf32> -> vector<4x128xf32>
    %98 = arith.addf %93, %97 : vector<4x128xf32>
    %99 = vector.extract_strided_slice %71 {offsets = [20, 0], sizes = [4, 448], strides = [1, 1]} : vector<28x448xbf16> to vector<4x448xbf16>
    %c5 = arith.constant 5 : index
    %c0_61 = arith.constant 0 : index
    %c0_62 = arith.constant 0 : index
    %100 = vector.load %arg10[%c5, %c0_61, %c0_62] : memref<7x448x128xbf16, #tpu.memory_space<vmem>>, vector<1x448x128xbf16>
    %101 = vector.shape_cast %100 : vector<1x448x128xbf16> to vector<448x128xbf16>
    %cst_63 = arith.constant dense<0.000000e+00> : vector<4x128xf32>
    %102 = tpu.matmul %99, %101, %cst_63 {dimension_numbers = #tpu.dot_dimension_numbers<[1], [0], [0], [1], [0, 0, 1, 1], [], []>} : vector<4x448xbf16>, vector<448x128xbf16>, vector<4x128xf32> -> vector<4x128xf32>
    %103 = arith.addf %98, %102 : vector<4x128xf32>
    %104 = vector.extract_strided_slice %71 {offsets = [24, 0], sizes = [4, 448], strides = [1, 1]} : vector<28x448xbf16> to vector<4x448xbf16>
    %c6 = arith.constant 6 : index
    %c0_64 = arith.constant 0 : index
    %c0_65 = arith.constant 0 : index
    %105 = vector.load %arg10[%c6, %c0_64, %c0_65] : memref<7x448x128xbf16, #tpu.memory_space<vmem>>, vector<1x448x128xbf16>
    %106 = vector.shape_cast %105 : vector<1x448x128xbf16> to vector<448x128xbf16>
    %cst_66 = arith.constant dense<0.000000e+00> : vector<4x128xf32>
    %107 = tpu.matmul %104, %106, %cst_66 {dimension_numbers = #tpu.dot_dimension_numbers<[1], [0], [0], [1], [0, 0, 1, 1], [], []>} : vector<4x448xbf16>, vector<448x128xbf16>, vector<4x128xf32> -> vector<4x128xf32>
    %108 = arith.addf %103, %107 : vector<4x128xf32>
    %c0_67 = arith.constant 0 : index
    %c0_68 = arith.constant 0 : index
    %109 = vector.load %arg15[%c0_67, %c0_68] : memref<4x128xf32, #tpu.memory_space<vmem>>, vector<4x128xf32>
    %cst_69 = arith.constant 3.000000e-01 : f32
    %110 = vector.broadcast %cst_69 : f32 to vector<4x128xf32>
    %111 = arith.cmpf ogt, %109, %110 : vector<4x128xf32>
    %112 = arith.extui %111 : vector<4x128xi1> to vector<4x128xi32>
    %113 = arith.sitofp %112 : vector<4x128xi32> to vector<4x128xf32>
    %c0_70 = arith.constant 0 : index
    %c0_71 = arith.constant 0 : index
    %114 = vector.load %arg15[%c0_70, %c0_71] : memref<4x128xf32, #tpu.memory_space<vmem>>, vector<4x128xf32>
    %cst_72 = arith.constant 1.000000e+00 : f32
    %115 = vector.broadcast %cst_72 : f32 to vector<4x128xf32>
    %116 = arith.subf %115, %113 : vector<4x128xf32>
    %cst_73 = arith.constant 2.000000e-01 : f32
    %117 = vector.broadcast %cst_73 : f32 to vector<4x128xf32>
    %118 = arith.mulf %117, %116 : vector<4x128xf32>
    %119 = arith.mulf %114, %118 : vector<4x128xf32>
    %120 = arith.addf %119, %108 : vector<4x128xf32>
    %c0_74 = arith.constant 0 : index
    %c0_75 = arith.constant 0 : index
    %121 = vector.load %arg15[%c0_74, %c0_75] : memref<4x128xf32, #tpu.memory_space<vmem>>, vector<4x128xf32>
    tpu.vector_store %arg15[%c0_74, %c0_75], %120 {strides = array<i32>} : memref<4x128xf32, #tpu.memory_space<vmem>>, vector<4x128xf32>,
    %c0_76 = arith.constant 0 : index
    %c0_77 = arith.constant 0 : index
    %c0_78 = arith.constant 0 : index
    %122 = vector.load %arg12[%c0_76, %c0_77, %c0_78] : memref<1x4x128xf32, #tpu.memory_space<vmem>>, vector<1x4x128xf32>
    %123 = vector.shape_cast %122 : vector<1x4x128xf32> to vector<4x128xf32>
    %cst_79 = arith.constant 3.000000e-01 : f32
    %124 = vector.broadcast %cst_79 : f32 to vector<4x128xf32>
    %125 = arith.cmpf ogt, %120, %124 : vector<4x128xf32>
    %126 = arith.extui %125 : vector<4x128xi1> to vector<4x128xi32>
    %127 = arith.sitofp %126 : vector<4x128xi32> to vector<4x128xf32>
    %128 = arith.addf %123, %127 : vector<4x128xf32>
    %c0_80 = arith.constant 0 : index
    %c0_81 = arith.constant 0 : index
    %c0_82 = arith.constant 0 : index
    %129 = vector.load %arg12[%c0_80, %c0_81, %c0_82] : memref<1x4x128xf32, #tpu.memory_space<vmem>>, vector<1x4x128xf32>
    %130 = vector.shape_cast %129 : vector<1x4x128xf32> to vector<4x128xf32>
    %131 = vector.shape_cast %128 : vector<4x128xf32> to vector<1x4x128xf32>
    tpu.vector_store %arg12[%c0_80, %c0_81, %c0_82], %131 {strides = array<i32>} : memref<1x4x128xf32, #tpu.memory_space<vmem>>, vector<1x4x128xf32>,
    %c19_i32 = arith.constant 19 : i32
    %132 = arith.cmpi eq, %arg1, %c19_i32 : i32
    %133 = arith.extui %132 : i1 to i32
    %c0_i32_83 = arith.constant 0 : i32
    %134 = arith.cmpi ne, %133, %c0_i32_83 : i32
    scf.if %134 {
      %c0_84 = arith.constant 0 : index
      %c0_85 = arith.constant 0 : index
      %c0_86 = arith.constant 0 : index
      %135 = vector.load %arg12[%c0_84, %c0_85, %c0_86] : memref<1x4x128xf32, #tpu.memory_space<vmem>>, vector<1x4x128xf32>
      %136 = vector.shape_cast %135 : vector<1x4x128xf32> to vector<4x128xf32>
      %cst_87 = arith.constant 5.000000e-02 : f32
      %137 = vector.broadcast %cst_87 : f32 to vector<4x128xf32>
      %138 = arith.mulf %136, %137 : vector<4x128xf32>
      %139 = arith.mulf %138, %138 : vector<4x128xf32>
      %cst_88 = arith.constant dense<0.000000e+00> : vector<4xf32>
      %140 = vector.multi_reduction <add>, %139, %cst_88 [1] : vector<4x128xf32> to vector<4xf32>
      %141 = vector.shape_cast %140 : vector<4xf32> to vector<4x1xf32>
      %cst_89 = arith.constant 1.000000e-24 : f32
      %142 = vector.broadcast %cst_89 : f32 to vector<4x1xf32>
      %143 = arith.maximumf %141, %142 : vector<4x1xf32>
      %144 = math.rsqrt %143 : vector<4x1xf32>
      %145 = vector.broadcast %144 : vector<4x1xf32> to vector<4x128xf32>
      %146 = arith.mulf %138, %145 : vector<4x128xf32>
      %c0_90 = arith.constant 0 : index
      %c0_91 = arith.constant 0 : index
      %c0_92 = arith.constant 0 : index
      %147 = vector.load %arg12[%c0_90, %c0_91, %c0_92] : memref<1x4x128xf32, #tpu.memory_space<vmem>>, vector<1x4x128xf32>
      %148 = vector.shape_cast %147 : vector<1x4x128xf32> to vector<4x128xf32>
      %149 = vector.shape_cast %146 : vector<4x128xf32> to vector<1x4x128xf32>
      tpu.vector_store %arg12[%c0_90, %c0_91, %c0_92], %149 {strides = array<i32>} : memref<1x4x128xf32, #tpu.memory_space<vmem>>, vector<1x4x128xf32>,
    } else {
    }
    return
  }
  func.func @transform_0(%arg0: i32, %arg1: i32) -> (i32, i32, i32) {
    %c0_i32 = arith.constant 0 : i32
    %c0_i32_0 = arith.constant 0 : i32
    return %arg1, %arg0, %c0_i32 : i32, i32, i32
  }
  func.func @transform_1(%arg0: i32, %arg1: i32) -> (i32, i32) {
    %c0_i32 = arith.constant 0 : i32
    %c0_i32_0 = arith.constant 0 : i32
    %c0_i32_1 = arith.constant 0 : i32
    return %c0_i32, %c0_i32_0 : i32, i32
  }
  func.func @transform_2(%arg0: i32, %arg1: i32) -> (i32, i32) {
    %c0_i32 = arith.constant 0 : i32
    %c0_i32_0 = arith.constant 0 : i32
    %c0_i32_1 = arith.constant 0 : i32
    return %c0_i32, %c0_i32_0 : i32, i32
  }
  func.func @transform_3(%arg0: i32, %arg1: i32) -> (i32, i32) {
    %c0_i32 = arith.constant 0 : i32
    %c0_i32_0 = arith.constant 0 : i32
    %c0_i32_1 = arith.constant 0 : i32
    return %c0_i32, %c0_i32_0 : i32, i32
  }
  func.func @transform_4(%arg0: i32, %arg1: i32) -> (i32, i32) {
    %c0_i32 = arith.constant 0 : i32
    %c0_i32_0 = arith.constant 0 : i32
    %c0_i32_1 = arith.constant 0 : i32
    return %c0_i32, %c0_i32_0 : i32, i32
  }
  func.func @transform_5(%arg0: i32, %arg1: i32) -> (i32, i32) {
    %c0_i32 = arith.constant 0 : i32
    %c0_i32_0 = arith.constant 0 : i32
    %c0_i32_1 = arith.constant 0 : i32
    return %c0_i32, %c0_i32_0 : i32, i32
  }
  func.func @transform_6(%arg0: i32, %arg1: i32) -> (i32, i32) {
    %c0_i32 = arith.constant 0 : i32
    %c0_i32_0 = arith.constant 0 : i32
    %c0_i32_1 = arith.constant 0 : i32
    return %c0_i32, %c0_i32_0 : i32, i32
  }
  func.func @transform_7(%arg0: i32, %arg1: i32) -> (i32, i32) {
    %c0_i32 = arith.constant 0 : i32
    %c0_i32_0 = arith.constant 0 : i32
    %c0_i32_1 = arith.constant 0 : i32
    return %c0_i32, %c0_i32_0 : i32, i32
  }
  func.func @transform_8(%arg0: i32, %arg1: i32) -> (i32, i32, i32) {
    %c0_i32 = arith.constant 0 : i32
    %c0_i32_0 = arith.constant 0 : i32
    %c0_i32_1 = arith.constant 0 : i32
    %c0_i32_2 = arith.constant 0 : i32
    return %c0_i32, %c0_i32_0, %c0_i32_1 : i32, i32, i32
  }
  func.func @transform_9(%arg0: i32, %arg1: i32) -> (i32, i32) {
    %c0_i32 = arith.constant 0 : i32
    %c0_i32_0 = arith.constant 0 : i32
    %c0_i32_1 = arith.constant 0 : i32
    return %c0_i32, %c0_i32_0 : i32, i32
  }
  func.func @transform_10(%arg0: i32, %arg1: i32) -> (i32, i32, i32) {
    %c0_i32 = arith.constant 0 : i32
    %c0_i32_0 = arith.constant 0 : i32
    %c0_i32_1 = arith.constant 0 : i32
    return %arg0, %c0_i32, %c0_i32_0 : i32, i32, i32
  }
}

</mosaic_0001>

<llo_original>
// kernel: _forward_jit.1
$region0: #{_forward_jit.1}
  #allocation0 [shape = 'u32[]', space=smem, size = 0x4, offset = 0x4, fixed_abs, tag = 'smem constant byte address 0x4 - core index']
  #allocation1 [shape = 'u32[144,128]{1,0:T(1,128)}', space=vmem, size = 0x12000, scoped, tag = 'internal scratch']
  #allocation2 [shape = 'f32[128,896]{1,0:T(8,128)}', space=vmem, size = 0x70000, scoped, tag = 'scratch operand']
  #allocation3 [shape = 'f32[64,448]{1,0:T(8,128)}', space=vmem, size = 0x20000, scoped, tag = 'scratch operand']
  #allocation4 [shape = 'f32[4,128]{1,0:T(4,128)}', space=vmem, size = 0x800, scoped, tag = 'scratch operand']
  %s0 = inlined_call_operand.vmem [shape: bf16[20,256,32], index: 0, kind: input, shape index: {}]
  %s1 = inlined_call_operand.vmem [shape: bf16[96,896], index: 1, kind: input, shape index: {}]
  %s2 = inlined_call_operand.vmem [shape: f32[1,896], index: 2, kind: input, shape index: {}]
  %s3 = inlined_call_operand.vmem [shape: bf16[64,128], index: 3, kind: input, shape index: {}]
  %s4 = inlined_call_operand.vmem [shape: bf16[896,448], index: 4, kind: input, shape index: {}]
  %s5 = inlined_call_operand.vmem [shape: bf16[1344,448], index: 5, kind: input, shape index: {}]
  %s6 = inlined_call_operand.vmem [shape: f32[1,448], index: 6, kind: input, shape index: {}]
  %s7 = inlined_call_operand.vmem [shape: bf16[28,64], index: 7, kind: input, shape index: {}]
  %s8 = inlined_call_operand.vmem [shape: bf16[7,448,128], index: 8, kind: input, shape index: {}]
  %s9 = inlined_call_operand.vmem [shape: f32[1,128], index: 9, kind: input, shape index: {}]
  %s10 = inlined_call_operand.hbm [shape: f32[2,4,128], index: 10, kind: output, shape index: {}]
  %s11 = sld [smem:[#allocation0]]
  $region81: #{_forward_jit.1} parent=0
    _
  %s13 = ssub.s32 1, %s11
  %s14 = scalar_select 0, %s13, %s11
  $region1: #{_forward_jit.1} parent=0
    #allocation5 [shape = 'u8[4096]{0}', space=vmem, size = 0x1000, scoped, tag = 'output window, operand 0']
    #allocation6 [shape = 's32[2]{0}', space=sflag, size = 0x8, scoped, tag = 'scoped memory for _forward_jit.1']
    %15 = vsyncpa [#allocation6], 0
    %s16 = scalar_lea.sflag [#allocation6], 1
    %17 = vsyncpa %s16, 0
    loop: start=0, step=1, limit=42
    $region2: #{_forward_jit.1} parent=1 // loop_pre_header
      _
    $region3: #{_forward_jit.1} parent=1 // loop_header
      %s19 = sphi 0, %s23
      %p20 = scmp.ge.s32.totalorder %s19, 42
      %s26 = sphi 0, %s38
      %s27 = sphi 0, %s34
      %s28 = sphi 0, %s26
      %s29 = sphi 0, %s27
      %s30 = sphi 0, %s28
      %s31 = sphi 0, %s29
      %s43 = sphi 0, %s45
      %s46 = sphi 0, %s43
      %s47 = sphi 0, %s46
      %s63 = sphi 0, %s47
      %s67 = sphi 0, %s67
      %s69 = sphi 0, %s67
      %s70 = sphi 0, %s69
      %s84 = sphi 0, %s70
      %s88 = sphi 0, %s88
      %s90 = sphi 0, %s88
      %s91 = sphi 0, %s90
      %s105 = sphi 0, %s91
      %s109 = sphi 0, %s109
      %s111 = sphi 0, %s109
      %s112 = sphi 0, %s111
      %s126 = sphi 0, %s112
      %s130 = sphi 0, %s130
      %s132 = sphi 0, %s130
      %s133 = sphi 0, %s132
      %s147 = sphi 0, %s133
      %s151 = sphi 0, %s151
      %s153 = sphi 0, %s151
      %s154 = sphi 0, %s153
      %s168 = sphi 0, %s154
      %s172 = sphi 0, %s172
      %s174 = sphi 0, %s172
      %s175 = sphi 0, %s174
      %s189 = sphi 0, %s175
      %s193 = sphi 0, %s193
      %s195 = sphi 0, %s193
      %s196 = sphi 0, %s195
      %s210 = sphi 0, %s196
      %s214 = sphi 0, %s214
      %s216 = sphi 0, %s214
      %s217 = sphi 0, %s216
      %s231 = sphi 0, %s217
      %s235 = sphi 0, %s235
      %s237 = sphi 0, %s235
      %s238 = sphi 0, %s237
      %s252 = sphi 0, %s238
      %s258 = sphi 0, %s260
      %s261 = sphi 0, %s258
      %s262 = sphi 0, %s261
      %s278 = sphi 0, %s262
    $region4: #{_forward_jit.1} parent=1 // loop_header_branch
      %22 = sbr.rel (%p20) target = $region8
    $region5: #{_forward_jit.1} parent=1 // loop_body
      %s24 = ssub.s32 %s19, 1
      %s25 = ssub.s32 %s19, 2
      %s32 = sadd.s32 1, %s27
      %p33 = scmp.ge.s32.totalorder %s32, 20
      %s34 = scalar_select %p33, 0, %s32
      %s35 = sadd.s32 1, %s26
      %s36 = scalar_select %p33, %s35, %s26
      %p37 = scmp.ge.s32.totalorder %s36, 2
      %s38 = scalar_select %p37, 0, %s36
      %s39 = ssub.s32 %s27, %s34
      %s40 = ssub.s32 %s26, %s38
      %s41 = sor.u32 %s39, %s40
      %p42 = scmp.eq.s32.totalorder %s41, 0
      %s44 = sadd.s32 %s43, 1
      %s45 = scalar_select %p42, %s43, %s44
      %p48 = pneg %p42
      %p49 = scmp.eq.s32.totalorder %s19, 39
      %p50 = por %p48, %p49
      %p51 = scmp.ne.s32.totalorder %s43, %s46
      %p52 = scmp.eq.s32.totalorder %s19, 0
      %p53 = por %p51, %p52
      %p54 = scmp.ne.s32.totalorder %s43, %s46
      %p55 = scmp.eq.s32.totalorder %s24, 39
      %p56 = por %p54, %p55
      %p57 = scmp.ne.s32.totalorder %s46, %s47
      %p58 = scmp.eq.s32.totalorder %s24, 0
      %p59 = por %p57, %p58
      %p60 = scmp.ne.s32.totalorder %s46, %s47
      %p61 = scmp.eq.s32.totalorder %s25, 39
      %p62 = por %p60, %p61
      %p64 = scmp.ne.s32.totalorder %s47, %s63
      %p65 = scmp.eq.s32.totalorder %s25, 0
      %p66 = por %p64, %p65
      %s68 = sadd.s32 %s67, 1
      %p71 = scmp.eq.s32.totalorder %s19, 39
      %p72 = scmp.ne.s32.totalorder %s67, %s69
      %p73 = scmp.eq.s32.totalorder %s19, 0
      %p74 = por %p72, %p73
      %p75 = scmp.ne.s32.totalorder %s67, %s69
      %p76 = scmp.eq.s32.totalorder %s24, 39
      %p77 = por %p75, %p76
      %p78 = scmp.ne.s32.totalorder %s69, %s70
      %p79 = scmp.eq.s32.totalorder %s24, 0
      %p80 = por %p78, %p79
      %p81 = scmp.ne.s32.totalorder %s69, %s70
      %p82 = scmp.eq.s32.totalorder %s25, 39
      %p83 = por %p81, %p82
      %p85 = scmp.ne.s32.totalorder %s70, %s84
      %p86 = scmp.eq.s32.totalorder %s25, 0
      %p87 = por %p85, %p86
      %s89 = sadd.s32 %s88, 1
      %p92 = scmp.eq.s32.totalorder %s19, 39
      %p93 = scmp.ne.s32.totalorder %s88, %s90
      %p94 = scmp.eq.s32.totalorder %s19, 0
      %p95 = por %p93, %p94
      %p96 = scmp.ne.s32.totalorder %s88, %s90
      %p97 = scmp.eq.s32.totalorder %s24, 39
      %p98 = por %p96, %p97
      %p99 = scmp.ne.s32.totalorder %s90, %s91
      %p100 = scmp.eq.s32.totalorder %s24, 0
      %p101 = por %p99, %p100
      %p102 = scmp.ne.s32.totalorder %s90, %s91
      %p103 = scmp.eq.s32.totalorder %s25, 39
      %p104 = por %p102, %p103
      %p106 = scmp.ne.s32.totalorder %s91, %s105
      %p107 = scmp.eq.s32.totalorder %s25, 0
      %p108 = por %p106, %p107
      %s110 = sadd.s32 %s109, 1
      %p113 = scmp.eq.s32.totalorder %s19, 39
      %p114 = scmp.ne.s32.totalorder %s109, %s111
      %p115 = scmp.eq.s32.totalorder %s19, 0
      %p116 = por %p114, %p115
      %p117 = scmp.ne.s32.totalorder %s109, %s111
      %p118 = scmp.eq.s32.totalorder %s24, 39
      %p119 = por %p117, %p118
      %p120 = scmp.ne.s32.totalorder %s111, %s112
      %p121 = scmp.eq.s32.totalorder %s24, 0
      %p122 = por %p120, %p121
      %p123 = scmp.ne.s32.totalorder %s111, %s112
      %p124 = scmp.eq.s32.totalorder %s25, 39
      %p125 = por %p123, %p124
      %p127 = scmp.ne.s32.totalorder %s112, %s126
      %p128 = scmp.eq.s32.totalorder %s25, 0
      %p129 = por %p127, %p128
      %s131 = sadd.s32 %s130, 1
      %p134 = scmp.eq.s32.totalorder %s19, 39
      %p135 = scmp.ne.s32.totalorder %s130, %s132
      %p136 = scmp.eq.s32.totalorder %s19, 0
      %p137 = por %p135, %p136
      %p138 = scmp.ne.s32.totalorder %s130, %s132
      %p139 = scmp.eq.s32.totalorder %s24, 39
      %p140 = por %p138, %p139
      %p141 = scmp.ne.s32.totalorder %s132, %s133
      %p142 = scmp.eq.s32.totalorder %s24, 0
      %p143 = por %p141, %p142
      %p144 = scmp.ne.s32.totalorder %s132, %s133
      %p145 = scmp.eq.s32.totalorder %s25, 39
      %p146 = por %p144, %p145
      %p148 = scmp.ne.s32.totalorder %s133, %s147
      %p149 = scmp.eq.s32.totalorder %s25, 0
      %p150 = por %p148, %p149
      %s152 = sadd.s32 %s151, 1
      %p155 = scmp.eq.s32.totalorder %s19, 39
      %p156 = scmp.ne.s32.totalorder %s151, %s153
      %p157 = scmp.eq.s32.totalorder %s19, 0
      %p158 = por %p156, %p157
      %p159 = scmp.ne.s32.totalorder %s151, %s153
      %p160 = scmp.eq.s32.totalorder %s24, 39
      %p161 = por %p159, %p160
      %p162 = scmp.ne.s32.totalorder %s153, %s154
      %p163 = scmp.eq.s32.totalorder %s24, 0
      %p164 = por %p162, %p163
      %p165 = scmp.ne.s32.totalorder %s153, %s154
      %p166 = scmp.eq.s32.totalorder %s25, 39
      %p167 = por %p165, %p166
      %p169 = scmp.ne.s32.totalorder %s154, %s168
      %p170 = scmp.eq.s32.totalorder %s25, 0
      %p171 = por %p169, %p170
      %s173 = sadd.s32 %s172, 1
      %p176 = scmp.eq.s32.totalorder %s19, 39
      %p177 = scmp.ne.s32.totalorder %s172, %s174
      %p178 = scmp.eq.s32.totalorder %s19, 0
      %p179 = por %p177, %p178
      %p180 = scmp.ne.s32.totalorder %s172, %s174
      %p181 = scmp.eq.s32.totalorder %s24, 39
      %p182 = por %p180, %p181
      %p183 = scmp.ne.s32.totalorder %s174, %s175
      %p184 = scmp.eq.s32.totalorder %s24, 0
      %p185 = por %p183, %p184
      %p186 = scmp.ne.s32.totalorder %s174, %s175
      %p187 = scmp.eq.s32.totalorder %s25, 39
      %p188 = por %p186, %p187
      %p190 = scmp.ne.s32.totalorder %s175, %s189
      %p191 = scmp.eq.s32.totalorder %s25, 0
      %p192 = por %p190, %p191
      %s194 = sadd.s32 %s193, 1
      %p197 = scmp.eq.s32.totalorder %s19, 39
      %p198 = scmp.ne.s32.totalorder %s193, %s195
      %p199 = scmp.eq.s32.totalorder %s19, 0
      %p200 = por %p198, %p199
      %p201 = scmp.ne.s32.totalorder %s193, %s195
      %p202 = scmp.eq.s32.totalorder %s24, 39
      %p203 = por %p201, %p202
      %p204 = scmp.ne.s32.totalorder %s195, %s196
      %p205 = scmp.eq.s32.totalorder %s24, 0
      %p206 = por %p204, %p205
      %p207 = scmp.ne.s32.totalorder %s195, %s196
      %p208 = scmp.eq.s32.totalorder %s25, 39
      %p209 = por %p207, %p208
      %p211 = scmp.ne.s32.totalorder %s196, %s210
      %p212 = scmp.eq.s32.totalorder %s25, 0
      %p213 = por %p211, %p212
      %s215 = sadd.s32 %s214, 1
      %p218 = scmp.eq.s32.totalorder %s19, 39
      %p219 = scmp.ne.s32.totalorder %s214, %s216
      %p220 = scmp.eq.s32.totalorder %s19, 0
      %p221 = por %p219, %p220
      %p222 = scmp.ne.s32.totalorder %s214, %s216
      %p223 = scmp.eq.s32.totalorder %s24, 39
      %p224 = por %p222, %p223
      %p225 = scmp.ne.s32.totalorder %s216, %s217
      %p226 = scmp.eq.s32.totalorder %s24, 0
      %p227 = por %p225, %p226
      %p228 = scmp.ne.s32.totalorder %s216, %s217
      %p229 = scmp.eq.s32.totalorder %s25, 39
      %p230 = por %p228, %p229
      %p232 = scmp.ne.s32.totalorder %s217, %s231
      %p233 = scmp.eq.s32.totalorder %s25, 0
      %p234 = por %p232, %p233
      %s236 = sadd.s32 %s235, 1
      %p239 = scmp.eq.s32.totalorder %s19, 39
      %p240 = scmp.ne.s32.totalorder %s235, %s237
      %p241 = scmp.eq.s32.totalorder %s19, 0
      %p242 = por %p240, %p241
      %p243 = scmp.ne.s32.totalorder %s235, %s237
      %p244 = scmp.eq.s32.totalorder %s24, 39
      %p245 = por %p243, %p244
      %p246 = scmp.ne.s32.totalorder %s237, %s238
      %p247 = scmp.eq.s32.totalorder %s24, 0
      %p248 = por %p246, %p247
      %p249 = scmp.ne.s32.totalorder %s237, %s238
      %p250 = scmp.eq.s32.totalorder %s25, 39
      %p251 = por %p249, %p250
      %p253 = scmp.ne.s32.totalorder %s238, %s252
      %p254 = scmp.eq.s32.totalorder %s25, 0
      %p255 = por %p253, %p254
      %s256 = ssub.s32 %s26, %s38
      %p257 = scmp.eq.s32.totalorder %s256, 0
      %s259 = sadd.s32 %s258, 1
      %s260 = scalar_select %p257, %s258, %s259
      %p263 = pneg %p257
      %p264 = scmp.eq.s32.totalorder %s19, 39
      %p265 = por %p263, %p264
      %p266 = scmp.ne.s32.totalorder %s258, %s261
      %p267 = scmp.eq.s32.totalorder %s19, 0
      %p268 = por %p266, %p267
      %p269 = scmp.ne.s32.totalorder %s258, %s261
      %p270 = scmp.eq.s32.totalorder %s24, 39
      %p271 = por %p269, %p270
      %p272 = scmp.ne.s32.totalorder %s261, %s262
      %p273 = scmp.eq.s32.totalorder %s24, 0
      %p274 = por %p272, %p273
      %p275 = scmp.ne.s32.totalorder %s261, %s262
      %p276 = scmp.eq.s32.totalorder %s25, 39
      %p277 = por %p275, %p276
      %p279 = scmp.ne.s32.totalorder %s262, %s278
      %p280 = scmp.eq.s32.totalorder %s25, 0
      %p281 = por %p279, %p280
      %p282 = scmp.le.s32.totalorder 1, %s19
      %p283 = scmp.lt.s32.totalorder %s19, 41
      %p284 = pnand %p282, %p283
      %p285 = pneg %p284
      // Predicated region
      $region9: #{_forward_jit.1} parent=5 // pred_check
        _
      $region10: #{_forward_jit.1} parent=5 // pred_check_branch
        %287 = sbr.rel (%p284) target = $region12
      $region11: #{_forward_jit.1} parent=5 // pred_region
        %s288 = ssub.s32 %s19, 1
        // Predicated region
        $region13: #{_forward_jit.1} parent=11 // pred_check
          %p289 = pneg %p80
        $region14: #{_forward_jit.1} parent=11 // pred_check_branch
          %291 = sbr.rel (%p289) target = $region16
        $region15: #{_forward_jit.1} parent=11 // pred_region
          _
        $region16: #{_forward_jit.1} parent=11 // pred_fallthru
          _
        // Predicated region
        $region17: #{_forward_jit.1} parent=11 // pred_check
          %p292 = pneg %p101
        $region18: #{_forward_jit.1} parent=11 // pred_check_branch
          %294 = sbr.rel (%p292) target = $region20
        $region19: #{_forward_jit.1} parent=11 // pred_region
          _
        $region20: #{_forward_jit.1} parent=11 // pred_fallthru
          _
        // Predicated region
        $region21: #{_forward_jit.1} parent=11 // pred_check
          %p295 = pneg %p122
        $region22: #{_forward_jit.1} parent=11 // pred_check_branch
          %297 = sbr.rel (%p295) target = $region24
        $region23: #{_forward_jit.1} parent=11 // pred_region
          _
        $region24: #{_forward_jit.1} parent=11 // pred_fallthru
          _
        // Predicated region
        $region25: #{_forward_jit.1} parent=11 // pred_check
          %p298 = pneg %p143
        $region26: #{_forward_jit.1} parent=11 // pred_check_branch
          %300 = sbr.rel (%p298) target = $region28
        $region27: #{_forward_jit.1} parent=11 // pred_region
          _
        $region28: #{_forward_jit.1} parent=11 // pred_fallthru
          _
        // Predicated region
        $region29: #{_forward_jit.1} parent=11 // pred_check
          %p301 = pneg %p164
        $region30: #{_forward_jit.1} parent=11 // pred_check_branch
          %303 = sbr.rel (%p301) target = $region32
        $region31: #{_forward_jit.1} parent=11 // pred_region
          _
        $region32: #{_forward_jit.1} parent=11 // pred_fallthru
          _
        // Predicated region
        $region33: #{_forward_jit.1} parent=11 // pred_check
          %p304 = pneg %p185
        $region34: #{_forward_jit.1} parent=11 // pred_check_branch
          %306 = sbr.rel (%p304) target = $region36
        $region35: #{_forward_jit.1} parent=11 // pred_region
          _
        $region36: #{_forward_jit.1} parent=11 // pred_fallthru
          _
        // Predicated region
        $region37: #{_forward_jit.1} parent=11 // pred_check
          %p307 = pneg %p206
        $region38: #{_forward_jit.1} parent=11 // pred_check_branch
          %309 = sbr.rel (%p307) target = $region40
        $region39: #{_forward_jit.1} parent=11 // pred_region
          _
        $region40: #{_forward_jit.1} parent=11 // pred_fallthru
          _
        // Predicated region
        $region41: #{_forward_jit.1} parent=11 // pred_check
          %p310 = pneg %p227
        $region42: #{_forward_jit.1} parent=11 // pred_check_branch
          %312 = sbr.rel (%p310) target = $region44
        $region43: #{_forward_jit.1} parent=11 // pred_region
          _
        $region44: #{_forward_jit.1} parent=11 // pred_fallthru
          _
        // Predicated region
        $region45: #{_forward_jit.1} parent=11 // pred_check
          %p313 = pneg %p248
        $region46: #{_forward_jit.1} parent=11 // pred_check_branch
          %315 = sbr.rel (%p313) target = $region48
        $region47: #{_forward_jit.1} parent=11 // pred_region
          _
        $region48: #{_forward_jit.1} parent=11 // pred_fallthru
          _
      $region12: #{_forward_jit.1} parent=5 // pred_fallthru
        _
      %p316 = scmp.lt.s32.totalorder %s19, 40
      // Predicated region
      $region49: #{_forward_jit.1} parent=5 // pred_check
        %p317 = pneg %p316
      $region50: #{_forward_jit.1} parent=5 // pred_check_branch
        %319 = sbr.rel (%p317) target = $region52
      $region51: #{_forward_jit.1} parent=5 // pred_region
        // Predicated region
        $region53: #{_forward_jit.1} parent=51 // pred_check
          %p320 = pneg %p53
        $region54: #{_forward_jit.1} parent=51 // pred_check_branch
          %322 = sbr.rel (%p320) target = $region56
        $region55: #{_forward_jit.1} parent=51 // pred_region
          %s323 = smul.u32 16, %s26
          %p324 = scmp.lt.s32.totalorder %s27, 19
          %s325 = scalar_select %p324, %s27, 19
          %p326 = scmp.lt.s32.totalorder %s323, 31
          %s327 = scalar_select %p326, %s323, 31
          %s328 = smul.addr %s325, 32
          %s329 = sadd.s32 %s327, %s328
          %s330 = smul.addr %s329, 4
          %s331 = scalar_lea.vmem %s0, %s330
          %s332 = smul.u32 16, %s26
        $region56: #{_forward_jit.1} parent=51 // pred_fallthru
          _
      $region52: #{_forward_jit.1} parent=5 // pred_fallthru
        _
      %p333 = scmp.le.s32.totalorder 1, %s19
      %p334 = scmp.lt.s32.totalorder %s19, 41
      %p335 = pnand %p333, %p334
      %p336 = pneg %p335
      // Predicated region
      $region57: #{_forward_jit.1} parent=5 // pred_check
        _
      $region58: #{_forward_jit.1} parent=5 // pred_check_branch
        %338 = sbr.rel (%p335) target = $region60
      $region59: #{_forward_jit.1} parent=5 // pred_region
        %s339 = ssub.s32 %s19, 1
        %s340 = smul.u32 16, %s28
        %p341 = scmp.lt.s32.totalorder %s29, 19
        %s342 = scalar_select %p341, %s29, 19
        %p343 = scmp.lt.s32.totalorder %s340, 31
        %s344 = scalar_select %p343, %s340, 31
        %s345 = smul.addr %s342, 32
        %s346 = sadd.s32 %s344, %s345
        %s347 = smul.addr %s346, 4
        %s348 = scalar_lea.vmem %s0, %s347
        %p349 = pneg %p59
        %p350 = pneg %p56
        %p351 = pneg %p80
        %p352 = pneg %p77
        %p353 = pneg %p101
        %p354 = pneg %p98
        %p355 = pneg %p122
        %p356 = pneg %p119
        %p357 = pneg %p143
        %p358 = pneg %p140
        %p359 = pneg %p164
        %p360 = pneg %p161
        %p361 = pneg %p185
        %p362 = pneg %p182
        %p363 = pneg %p206
        %p364 = pneg %p203
        %p365 = pneg %p227
        %p366 = pneg %p224
        %p367 = pneg %p248
        %p368 = pneg %p245
        %p369 = pneg %p274
        %p370 = pneg %p271
        %s371 = sand.u32 %s261, 1
        %s372 = scalar_lea.sflag [#allocation6], %s371
        %s373 = sand.u32 %s261, 1
        %s374 = smul.addr %s373, 4
        %s375 = scalar_lea.vmem [#allocation5], %s374
        %s376 = smul.u32 16, %s28
        %p377 = scmp.lt.s32.totalorder %s29, 19
        %s378 = scalar_select %p377, %s29, 19
        %p379 = scmp.lt.s32.totalorder %s376, 31
        %s380 = scalar_select %p379, %s376, 31
        %s381 = smul.addr %s378, 32
        %s382 = sadd.s32 %s380, %s381
        %s383 = smul.addr %s382, 4
        %s384 = scalar_lea.vmem %s0, %s383
        %s385 = smul.u32 16, %s28
        %p387 = scmp.eq.s32.totalorder %s29, 0
        // Predicated region
        $region61: #{_forward_jit.1} parent=59 // pred_check
          %p388 = pneg %p387
        $region62: #{_forward_jit.1} parent=59 // pred_check_branch
          %390 = sbr.rel (%p388) target = $region64
        $region63: #{_forward_jit.1} parent=59 // pred_region
          %391 = vst [vmem:[#allocation2] sm:$0xff] 0.0
          %392 = vst [vmem:[#allocation2 + $0x8] sm:$0xff] 0.0
          %393 = vst [vmem:[#allocation2 + $0x10] sm:$0xff] 0.0
          %394 = vst [vmem:[#allocation2 + $0x18] sm:$0xff] 0.0
          %395 = vst [vmem:[#allocation2 + $0x20] sm:$0xff] 0.0
          %396 = vst [vmem:[#allocation2 + $0x28] sm:$0xff] 0.0
          %397 = vst [vmem:[#allocation2 + $0x30] sm:$0xff] 0.0
          %398 = vst [vmem:[#allocation2 + $0x38] sm:$0xff] 0.0
          %399 = vst [vmem:[#allocation2 + $0x40] sm:$0xff] 0.0
          %400 = vst [vmem:[#allocation2 + $0x48] sm:$0xff] 0.0
          %401 = vst [vmem:[#allocation2 + $0x50] sm:$0xff] 0.0
          %402 = vst [vmem:[#allocation2 + $0x58] sm:$0xff] 0.0
          %403 = vst [vmem:[#allocation2 + $0x60] sm:$0xff] 0.0
          %404 = vst [vmem:[#allocation2 + $0x68] sm:$0xff] 0.0
          %405 = vst [vmem:[#allocation2 + $0x70] sm:$0xff] 0.0
          %406 = vst [vmem:[#allocation2 + $0x78] sm:$0xff] 0.0
          %407 = vst [vmem:[#allocation2 + $0x80] sm:$0xff] 0.0
          %408 = vst [vmem:[#allocation2 + $0x88] sm:$0xff] 0.0
          %409 = vst [vmem:[#allocation2 + $0x90] sm:$0xff] 0.0
          %410 = vst [vmem:[#allocation2 + $0x98] sm:$0xff] 0.0
          %411 = vst [vmem:[#allocation2 + $0xa0] sm:$0xff] 0.0
          %412 = vst [vmem:[#allocation2 + $0xa8] sm:$0xff] 0.0
          %413 = vst [vmem:[#allocation2 + $0xb0] sm:$0xff] 0.0
          %414 = vst [vmem:[#allocation2 + $0xb8] sm:$0xff] 0.0
          %415 = vst [vmem:[#allocation2 + $0xc0] sm:$0xff] 0.0
          %416 = vst [vmem:[#allocation2 + $0xc8] sm:$0xff] 0.0
          %417 = vst [vmem:[#allocation2 + $0xd0] sm:$0xff] 0.0
          %418 = vst [vmem:[#allocation2 + $0xd8] sm:$0xff] 0.0
          %419 = vst [vmem:[#allocation2 + $0xe0] sm:$0xff] 0.0
          %420 = vst [vmem:[#allocation2 + $0xe8] sm:$0xff] 0.0
          %421 = vst [vmem:[#allocation2 + $0xf0] sm:$0xff] 0.0
          %422 = vst [vmem:[#allocation2 + $0xf8] sm:$0xff] 0.0
          %423 = vst [vmem:[#allocation2 + $0x100] sm:$0xff] 0.0
          %424 = vst [vmem:[#allocation2 + $0x108] sm:$0xff] 0.0
          %425 = vst [vmem:[#allocation2 + $0x110] sm:$0xff] 0.0
          %426 = vst [vmem:[#allocation2 + $0x118] sm:$0xff] 0.0
          %427 = vst [vmem:[#allocation2 + $0x120] sm:$0xff] 0.0
          %428 = vst [vmem:[#allocation2 + $0x128] sm:$0xff] 0.0
          %429 = vst [vmem:[#allocation2 + $0x130] sm:$0xff] 0.0
          %430 = vst [vmem:[#allocation2 + $0x138] sm:$0xff] 0.0
          %431 = vst [vmem:[#allocation2 + $0x140] sm:$0xff] 0.0
          %432 = vst [vmem:[#allocation2 + $0x148] sm:$0xff] 0.0
          %433 = vst [vmem:[#allocation2 + $0x150] sm:$0xff] 0.0
          %434 = vst [vmem:[#allocation2 + $0x158] sm:$0xff] 0.0
          %435 = vst [vmem:[#allocation2 + $0x160] sm:$0xff] 0.0
          %436 = vst [vmem:[#allocation2 + $0x168] sm:$0xff] 0.0
          %437 = vst [vmem:[#allocation2 + $0x170] sm:$0xff] 0.0
          %438 = vst [vmem:[#allocation2 + $0x178] sm:$0xff] 0.0
          %439 = vst [vmem:[#allocation2 + $0x180] sm:$0xff] 0.0
          %440 = vst [vmem:[#allocation2 + $0x188] sm:$0xff] 0.0
          %441 = vst [vmem:[#allocation2 + $0x190] sm:$0xff] 0.0
          %442 = vst [vmem:[#allocation2 + $0x198] sm:$0xff] 0.0
          %443 = vst [vmem:[#allocation2 + $0x1a0] sm:$0xff] 0.0
          %444 = vst [vmem:[#allocation2 + $0x1a8] sm:$0xff] 0.0
          %445 = vst [vmem:[#allocation2 + $0x1b0] sm:$0xff] 0.0
          %446 = vst [vmem:[#allocation2 + $0x1b8] sm:$0xff] 0.0
          %447 = vst [vmem:[#allocation2 + $0x1c0] sm:$0xff] 0.0
          %448 = vst [vmem:[#allocation2 + $0x1c8] sm:$0xff] 0.0
          %449 = vst [vmem:[#allocation2 + $0x1d0] sm:$0xff] 0.0
          %450 = vst [vmem:[#allocation2 + $0x1d8] sm:$0xff] 0.0
          %451 = vst [vmem:[#allocation2 + $0x1e0] sm:$0xff] 0.0
          %452 = vst [vmem:[#allocation2 + $0x1e8] sm:$0xff] 0.0
          %453 = vst [vmem:[#allocation2 + $0x1f0] sm:$0xff] 0.0
          %454 = vst [vmem:[#allocation2 + $0x1f8] sm:$0xff] 0.0
          %455 = vst [vmem:[#allocation2 + $0x200] sm:$0xff] 0.0
          %456 = vst [vmem:[#allocation2 + $0x208] sm:$0xff] 0.0
          %457 = vst [vmem:[#allocation2 + $0x210] sm:$0xff] 0.0
          %458 = vst [vmem:[#allocation2 + $0x218] sm:$0xff] 0.0
          %459 = vst [vmem:[#allocation2 + $0x220] sm:$0xff] 0.0
          %460 = vst [vmem:[#allocation2 + $0x228] sm:$0xff] 0.0
          %461 = vst [vmem:[#allocation2 + $0x230] sm:$0xff] 0.0
          %462 = vst [vmem:[#allocation2 + $0x238] sm:$0xff] 0.0
          %463 = vst [vmem:[#allocation2 + $0x240] sm:$0xff] 0.0
          %464 = vst [vmem:[#allocation2 + $0x248] sm:$0xff] 0.0
          %465 = vst [vmem:[#allocation2 + $0x250] sm:$0xff] 0.0
          %466 = vst [vmem:[#allocation2 + $0x258] sm:$0xff] 0.0
          %467 = vst [vmem:[#allocation2 + $0x260] sm:$0xff] 0.0
          %468 = vst [vmem:[#allocation2 + $0x268] sm:$0xff] 0.0
          %469 = vst [vmem:[#allocation2 + $0x270] sm:$0xff] 0.0
          %470 = vst [vmem:[#allocation2 + $0x278] sm:$0xff] 0.0
          %471 = vst [vmem:[#allocation2 + $0x280] sm:$0xff] 0.0
          %472 = vst [vmem:[#allocation2 + $0x288] sm:$0xff] 0.0
          %473 = vst [vmem:[#allocation2 + $0x290] sm:$0xff] 0.0
          %474 = vst [vmem:[#allocation2 + $0x298] sm:$0xff] 0.0
          %475 = vst [vmem:[#allocation2 + $0x2a0] sm:$0xff] 0.0
          %476 = vst [vmem:[#allocation2 + $0x2a8] sm:$0xff] 0.0
          %477 = vst [vmem:[#allocation2 + $0x2b0] sm:$0xff] 0.0
          %478 = vst [vmem:[#allocation2 + $0x2b8] sm:$0xff] 0.0
          %479 = vst [vmem:[#allocation2 + $0x2c0] sm:$0xff] 0.0
          %480 = vst [vmem:[#allocation2 + $0x2c8] sm:$0xff] 0.0
          %481 = vst [vmem:[#allocation2 + $0x2d0] sm:$0xff] 0.0
          %482 = vst [vmem:[#allocation2 + $0x2d8] sm:$0xff] 0.0
          %483 = vst [vmem:[#allocation2 + $0x2e0] sm:$0xff] 0.0
          %484 = vst [vmem:[#allocation2 + $0x2e8] sm:$0xff] 0.0
          %485 = vst [vmem:[#allocation2 + $0x2f0] sm:$0xff] 0.0
          %486 = vst [vmem:[#allocation2 + $0x2f8] sm:$0xff] 0.0
          %487 = vst [vmem:[#allocation2 + $0x300] sm:$0xff] 0.0
          %488 = vst [vmem:[#allocation2 + $0x308] sm:$0xff] 0.0
          %489 = vst [vmem:[#allocation2 + $0x310] sm:$0xff] 0.0
          %490 = vst [vmem:[#allocation2 + $0x318] sm:$0xff] 0.0
          %491 = vst [vmem:[#allocation2 + $0x320] sm:$0xff] 0.0
          %492 = vst [vmem:[#allocation2 + $0x328] sm:$0xff] 0.0
          %493 = vst [vmem:[#allocation2 + $0x330] sm:$0xff] 0.0
          %494 = vst [vmem:[#allocation2 + $0x338] sm:$0xff] 0.0
          %495 = vst [vmem:[#allocation2 + $0x340] sm:$0xff] 0.0
          %496 = vst [vmem:[#allocation2 + $0x348] sm:$0xff] 0.0
          %497 = vst [vmem:[#allocation2 + $0x350] sm:$0xff] 0.0
          %498 = vst [vmem:[#allocation2 + $0x358] sm:$0xff] 0.0
          %499 = vst [vmem:[#allocation2 + $0x360] sm:$0xff] 0.0
          %500 = vst [vmem:[#allocation2 + $0x368] sm:$0xff] 0.0
          %501 = vst [vmem:[#allocation2 + $0x370] sm:$0xff] 0.0
          %502 = vst [vmem:[#allocation2 + $0x378] sm:$0xff] 0.0
          %503 = vst [vmem:[#allocation3] sm:$0xff] 0.0
          %504 = vst [vmem:[#allocation3 + $0x8] sm:$0xff] 0.0
          %505 = vst [vmem:[#allocation3 + $0x10] sm:$0xff] 0.0
          %vm506 = vcmask 523264
          %507 = vst.msk [vmem:[#allocation3 + $0x18] sm:$0xff] %vm506, 0.0
          %508 = vst [vmem:[#allocation3 + $0x20] sm:$0xff] 0.0
          %509 = vst [vmem:[#allocation3 + $0x28] sm:$0xff] 0.0
          %510 = vst [vmem:[#allocation3 + $0x30] sm:$0xff] 0.0
          %511 = vst.msk [vmem:[#allocation3 + $0x38] sm:$0xff] %vm506, 0.0
          %512 = vst [vmem:[#allocation3 + $0x40] sm:$0xff] 0.0
          %513 = vst [vmem:[#allocation3 + $0x48] sm:$0xff] 0.0
          %514 = vst [vmem:[#allocation3 + $0x50] sm:$0xff] 0.0
          %515 = vst.msk [vmem:[#allocation3 + $0x58] sm:$0xff] %vm506, 0.0
          %516 = vst [vmem:[#allocation3 + $0x60] sm:$0xff] 0.0
          %517 = vst [vmem:[#allocation3 + $0x68] sm:$0xff] 0.0
          %518 = vst [vmem:[#allocation3 + $0x70] sm:$0xff] 0.0
          %519 = vst.msk [vmem:[#allocation3 + $0x78] sm:$0xff] %vm506, 0.0
          %520 = vst [vmem:[#allocation3 + $0x80] sm:$0xff] 0.0
          %521 = vst [vmem:[#allocation3 + $0x88] sm:$0xff] 0.0
          %522 = vst [vmem:[#allocation3 + $0x90] sm:$0xff] 0.0
          %523 = vst.msk [vmem:[#allocation3 + $0x98] sm:$0xff] %vm506, 0.0
          %524 = vst [vmem:[#allocation3 + $0xa0] sm:$0xff] 0.0
          %525 = vst [vmem:[#allocation3 + $0xa8] sm:$0xff] 0.0
          %526 = vst [vmem:[#allocation3 + $0xb0] sm:$0xff] 0.0
          %527 = vst.msk [vmem:[#allocation3 + $0xb8] sm:$0xff] %vm506, 0.0
          %528 = vst [vmem:[#allocation3 + $0xc0] sm:$0xff] 0.0
          %529 = vst [vmem:[#allocation3 + $0xc8] sm:$0xff] 0.0
          %530 = vst [vmem:[#allocation3 + $0xd0] sm:$0xff] 0.0
          %531 = vst.msk [vmem:[#allocation3 + $0xd8] sm:$0xff] %vm506, 0.0
          %532 = vst [vmem:[#allocation3 + $0xe0] sm:$0xff] 0.0
          %533 = vst [vmem:[#allocation3 + $0xe8] sm:$0xff] 0.0
          %534 = vst [vmem:[#allocation3 + $0xf0] sm:$0xff] 0.0
          %535 = vst.msk [vmem:[#allocation3 + $0xf8] sm:$0xff] %vm506, 0.0
          %536 = vst [vmem:[#allocation4] sm:$0xf] 0.0
          %537 = vst [vmem:[%s375] sm:$0xf] 0.0
        $region64: #{_forward_jit.1} parent=59 // pred_fallthru
          _
        %v538 = vld [vmem:[%s384] sm:$0xf]
        %v539 = vld [vmem:[%s384 + $0x4] sm:$0xf]
        %v540 = vld [vmem:[%s384 + $0x8] sm:$0xf]
        %v541 = vld [vmem:[%s384 + $0xc] sm:$0xf]
        %v542 = vld [vmem:[%s384 + $0x10] sm:$0xf]
        %v543 = vld [vmem:[%s384 + $0x14] sm:$0xf]
        %v544 = vld [vmem:[%s384 + $0x18] sm:$0xf]
        %v545 = vld [vmem:[%s384 + $0x1c] sm:$0xf]
        %v546 = vld [vmem:[%s384 + $0x20] sm:$0xf]
        %v547 = vld [vmem:[%s384 + $0x24] sm:$0xf]
        %v548 = vld [vmem:[%s384 + $0x28] sm:$0xf]
        %v549 = vld [vmem:[%s384 + $0x2c] sm:$0xf]
        %v550 = vld [vmem:[%s384 + $0x30] sm:$0xf]
        %v551 = vld [vmem:[%s384 + $0x34] sm:$0xf]
        %v552 = vld [vmem:[%s384 + $0x38] sm:$0xf]
        %v553 = vld [vmem:[%s384 + $0x3c] sm:$0xf]
        %v570 = vunpack.c.l.b16 %v538
        %v571 = vunpack.c.l.b16 %v539
        %v572 = vunpack.c.l.b16 %v540
        %v573 = vunpack.c.l.b16 %v541
        %v574 = vunpack.c.l.b16 %v542
        %v575 = vunpack.c.l.b16 %v543
        %v576 = vunpack.c.l.b16 %v544
        %v577 = vunpack.c.l.b16 %v545
        %v578 = vunpack.c.l.b16 %v546
        %v579 = vunpack.c.l.b16 %v547
        %v580 = vunpack.c.l.b16 %v548
        %v581 = vunpack.c.l.b16 %v549
        %v582 = vunpack.c.l.b16 %v550
        %v583 = vunpack.c.l.b16 %v551
        %v584 = vunpack.c.l.b16 %v552
        %v585 = vunpack.c.l.b16 %v553
        %v586 = vpack.c.b16 %v571, %v570
        %v587 = vpack.c.b16 %v573, %v572
        %v588 = vpack.c.b16 %v575, %v574
        %v589 = vpack.c.b16 %v577, %v576
        %v590 = vpack.c.b16 %v579, %v578
        %v591 = vpack.c.b16 %v581, %v580
        %v592 = vpack.c.b16 %v583, %v582
        %v593 = vpack.c.b16 %v585, %v584
        %vm594 = vsmask.f32 256
        %v596 = vshrl.u32 %v586, 16
        %v598 = vrot.slane %v596, 7
        %v599 = vshll.u32 %v586, 16
        %v601 = vor.u32 %v598, %v599
        %v603 = vshrl.u32 %v587, 16
        %v605 = vrot.slane %v603, 7
        %v606 = vshll.u32 %v587, 16
        %v608 = vor.u32 %v605, %v606
        %v609 = vsel %vm594, %v598, %v608
        %v611 = vshrl.u32 %v588, 16
        %v613 = vrot.slane %v611, 7
        %v614 = vshll.u32 %v588, 16
        %v616 = vor.u32 %v613, %v614
        %v617 = vsel %vm594, %v605, %v616
        %v619 = vshrl.u32 %v589, 16
        %v621 = vrot.slane %v619, 7
        %v622 = vshll.u32 %v589, 16
        %v624 = vor.u32 %v621, %v622
        %v625 = vsel %vm594, %v613, %v624
        %v627 = vshrl.u32 %v590, 16
        %v629 = vrot.slane %v627, 7
        %v630 = vshll.u32 %v590, 16
        %v632 = vor.u32 %v629, %v630
        %v633 = vsel %vm594, %v621, %v632
        %v635 = vshrl.u32 %v591, 16
        %v637 = vrot.slane %v635, 7
        %v638 = vshll.u32 %v591, 16
        %v640 = vor.u32 %v637, %v638
        %v641 = vsel %vm594, %v629, %v640
        %v643 = vshrl.u32 %v592, 16
        %v645 = vrot.slane %v643, 7
        %v646 = vshll.u32 %v592, 16
        %v648 = vor.u32 %v645, %v646
        %v649 = vsel %vm594, %v637, %v648
        %v651 = vshrl.u32 %v593, 16
        %v653 = vrot.slane %v651, 7
        %v654 = vshll.u32 %v593, 16
        %v656 = vor.u32 %v653, %v654
        %v657 = vsel %vm594, %v645, %v656
        %vm659 = vcmask 1040384
        %vm660 = vmand %vm659, %vm594
        %v661 = vsel %vm660, 0, %v601
        %vm662 = vsmask.f32 7424
        %v663 = vrot.slane %v599, 1
        %v664 = vor.u32 %v596, %v663
        %v665 = vrot.slane %v606, 1
        %v666 = vsel %vm662, %v664, %v665
        %v667 = vor.u32 %v603, %v665
        %v668 = vrot.slane %v614, 1
        %v669 = vsel %vm662, %v667, %v668
        %v670 = vor.u32 %v611, %v668
        %v671 = vrot.slane %v622, 1
        %v672 = vsel %vm662, %v670, %v671
        %v673 = vor.u32 %v619, %v671
        %v674 = vrot.slane %v630, 1
        %v675 = vsel %vm662, %v673, %v674
        %v676 = vor.u32 %v627, %v674
        %v677 = vrot.slane %v638, 1
        %v678 = vsel %vm662, %v676, %v677
        %v679 = vor.u32 %v635, %v677
        %v680 = vrot.slane %v646, 1
        %v681 = vsel %vm662, %v679, %v680
        %v682 = vor.u32 %v643, %v680
        %v683 = vrot.slane %v654, 1
        %v684 = vsel %vm662, %v682, %v683
        %v685 = vor.u32 %v651, %v683
        %vm687 = vcmask 1047552
        %vm688 = vmand %vm687, %vm662
        %v689 = vsel %vm688, %v685, 0
        %690 = vrot.lane.b32.xlu0 %v586, 32
        %v691 = vpop.permute.xlu0 %690
        %692 = vrot.lane.b32.xlu0 %v587, 32
        %v693 = vpop.permute.xlu0 %692
        %694 = vrot.lane.b32.xlu0 %v588, 32
        %v695 = vpop.permute.xlu0 %694
        %696 = vrot.lane.b32.xlu0 %v589, 32
        %v697 = vpop.permute.xlu0 %696
        %698 = vrot.lane.b32.xlu0 %v590, 32
        %v699 = vpop.permute.xlu0 %698
        %700 = vrot.lane.b32.xlu0 %v591, 32
        %v701 = vpop.permute.xlu0 %700
        %702 = vrot.lane.b32.xlu0 %v592, 32
        %v703 = vpop.permute.xlu0 %702
        %704 = vrot.lane.b32.xlu0 %v593, 32
        %v705 = vpop.permute.xlu0 %704
        %707 = vrot.lane.b32.xlu0 %v666, 64
        %v708 = vpop.permute.xlu0 %707
        %709 = vrot.lane.b32.xlu0 %v669, 64
        %v710 = vpop.permute.xlu0 %709
        %711 = vrot.lane.b32.xlu0 %v672, 64
        %v712 = vpop.permute.xlu0 %711
        %713 = vrot.lane.b32.xlu0 %v675, 64
        %v714 = vpop.permute.xlu0 %713
        %715 = vrot.lane.b32.xlu0 %v678, 64
        %v716 = vpop.permute.xlu0 %715
        %717 = vrot.lane.b32.xlu0 %v681, 64
        %v718 = vpop.permute.xlu0 %717
        %719 = vrot.lane.b32.xlu0 %v684, 64
        %v720 = vpop.permute.xlu0 %719
        %721 = vrot.lane.b32.xlu0 %v689, 64
        %v722 = vpop.permute.xlu0 %721
        %vm723 = vcmask 261120
        %v726 = vsel %vm723, %v661, %v691
        %v729 = vsel %vm723, %v609, %v693
        %v732 = vsel %vm723, %v617, %v695
        %v735 = vsel %vm723, %v625, %v697
        %v738 = vsel %vm723, %v633, %v699
        %v741 = vsel %vm723, %v641, %v701
        %v744 = vsel %vm723, %v649, %v703
        %v747 = vsel %vm723, %v657, %v705
        %vm748 = vcmask 523264
        %v750 = vsel %vm748, %v726, %v708
        %v752 = vsel %vm748, %v729, %v710
        %v754 = vsel %vm748, %v732, %v712
        %v756 = vsel %vm748, %v735, %v714
        %v758 = vsel %vm748, %v738, %v716
        %v760 = vsel %vm748, %v741, %v718
        %v762 = vsel %vm748, %v744, %v720
        %v764 = vsel %vm748, %v747, %v722
        %v765 = vld [vmem:[%s1] sm:$0xff]
        %v766 = vld [vmem:[%s1 + $0x8] sm:$0xff]
        %v767 = vld [vmem:[%s1 + $0x10] sm:$0xff]
        %v768 = vld [vmem:[%s1 + $0x18] sm:$0xf]
        %v769 = vld [vmem:[%s1 + $0x1c] sm:$0xff]
        %v770 = vld [vmem:[%s1 + $0x24] sm:$0xff]
        %v771 = vld [vmem:[%s1 + $0x2c] sm:$0xff]
        %v772 = vld [vmem:[%s1 + $0x34] sm:$0xf]
        %v773 = vld [vmem:[%s1 + $0x38] sm:$0xff]
        %v774 = vld [vmem:[%s1 + $0x40] sm:$0xff]
        %v775 = vld [vmem:[%s1 + $0x48] sm:$0xff]
        %v776 = vld [vmem:[%s1 + $0x50] sm:$0xf]
        %v777 = vld [vmem:[%s1 + $0x54] sm:$0xff]
        %v778 = vld [vmem:[%s1 + $0x5c] sm:$0xff]
        %v779 = vld [vmem:[%s1 + $0x64] sm:$0xff]
        %v780 = vld [vmem:[%s1 + $0x6c] sm:$0xf]
        %v781 = vld [vmem:[%s1 + $0x70] sm:$0xff]
        %v782 = vld [vmem:[%s1 + $0x78] sm:$0xff]
        %v783 = vld [vmem:[%s1 + $0x80] sm:$0xff]
        %v784 = vld [vmem:[%s1 + $0x88] sm:$0xf]
        %v785 = vld [vmem:[%s1 + $0x8c] sm:$0xff]
        %v786 = vld [vmem:[%s1 + $0x94] sm:$0xff]
        %v787 = vld [vmem:[%s1 + $0x9c] sm:$0xff]
        %v788 = vld [vmem:[%s1 + $0xa4] sm:$0xf]
        %v789 = vld [vmem:[%s1 + $0xa8] sm:$0xff]
        %v790 = vld [vmem:[%s1 + $0xb0] sm:$0xff]
        %v791 = vld [vmem:[%s1 + $0xb8] sm:$0xff]
        %v792 = vld [vmem:[%s1 + $0xc0] sm:$0xf]
        %v793 = vld [vmem:[%s1 + $0xc4] sm:$0xff]
        %v794 = vld [vmem:[%s1 + $0xcc] sm:$0xff]
        %v795 = vld [vmem:[%s1 + $0xd4] sm:$0xff]
        %v796 = vld [vmem:[%s1 + $0xdc] sm:$0xf]
        %v797 = vld [vmem:[%s1 + $0xe0] sm:$0xff]
        %v798 = vld [vmem:[%s1 + $0xe8] sm:$0xff]
        %v799 = vld [vmem:[%s1 + $0xf0] sm:$0xff]
        %v800 = vld [vmem:[%s1 + $0xf8] sm:$0xf]
        %v801 = vld [vmem:[%s1 + $0xfc] sm:$0xff]
        %v802 = vld [vmem:[%s1 + $0x104] sm:$0xff]
        %v803 = vld [vmem:[%s1 + $0x10c] sm:$0xff]
        %v804 = vld [vmem:[%s1 + $0x114] sm:$0xf]
        %v805 = vld [vmem:[%s1 + $0x118] sm:$0xff]
        %v806 = vld [vmem:[%s1 + $0x120] sm:$0xff]
        %v807 = vld [vmem:[%s1 + $0x128] sm:$0xff]
        %v808 = vld [vmem:[%s1 + $0x130] sm:$0xf]
        %v809 = vld [vmem:[%s1 + $0x134] sm:$0xff]
        %v810 = vld [vmem:[%s1 + $0x13c] sm:$0xff]
        %v811 = vld [vmem:[%s1 + $0x144] sm:$0xff]
        %v812 = vld [vmem:[%s1 + $0x14c] sm:$0xf]
        %v813 = vld [vmem:[%s2] sm:$0xff]
        %v815 = vlaneseq
        %v816 = vshrl.u32 %v815, 7
        %v817 = vsub.s32 0, %v816
        %v818 = vrot.slane %v813, %v817
        %v819 = vlaneseq
        %v820 = vshrl.u32 %v819, 7
        %v821 = vsub.s32 1, %v820
        %v822 = vrot.slane %v813, %v821
        %v823 = vlaneseq
        %v824 = vshrl.u32 %v823, 7
        %v825 = vsub.s32 2, %v824
        %v826 = vrot.slane %v813, %v825
        %v827 = vlaneseq
        %v828 = vshrl.u32 %v827, 7
        %v829 = vsub.s32 3, %v828
        %v830 = vrot.slane %v813, %v829
        %v831 = vlaneseq
        %v832 = vshrl.u32 %v831, 7
        %v833 = vsub.s32 4, %v832
        %v834 = vrot.slane %v813, %v833
        %v835 = vlaneseq
        %v836 = vshrl.u32 %v835, 7
        %v837 = vsub.s32 5, %v836
        %v838 = vrot.slane %v813, %v837
        %v839 = vlaneseq
        %v840 = vshrl.u32 %v839, 7
        %v841 = vsub.s32 6, %v840
        %v842 = vrot.slane %v813, %v841
        %v898 = vunpack.c.l.b16 %v765
        %v899 = vunpack.c.h.b16 %v765
        %v900 = vunpack.c.l.b16 %v766
        %v901 = vunpack.c.h.b16 %v766
        %v902 = vunpack.c.l.b16 %v767
        %v903 = vunpack.c.h.b16 %v767
        %v904 = vunpack.c.l.b16 %v768
        %v905 = vunpack.c.l.b16 %v769
        %v906 = vunpack.c.h.b16 %v769
        %v907 = vunpack.c.l.b16 %v770
        %v908 = vunpack.c.h.b16 %v770
        %v909 = vunpack.c.l.b16 %v771
        %v910 = vunpack.c.h.b16 %v771
        %v911 = vunpack.c.l.b16 %v772
        %v912 = vunpack.c.l.b16 %v773
        %v913 = vunpack.c.h.b16 %v773
        %v914 = vunpack.c.l.b16 %v774
        %v915 = vunpack.c.h.b16 %v774
        %v916 = vunpack.c.l.b16 %v775
        %v917 = vunpack.c.h.b16 %v775
        %v918 = vunpack.c.l.b16 %v776
        %v919 = vunpack.c.l.b16 %v777
        %v920 = vunpack.c.h.b16 %v777
        %v921 = vunpack.c.l.b16 %v778
        %v922 = vunpack.c.h.b16 %v778
        %v923 = vunpack.c.l.b16 %v779
        %v924 = vunpack.c.h.b16 %v779
        %v925 = vunpack.c.l.b16 %v780
        %v926 = vunpack.c.l.b16 %v781
        %v927 = vunpack.c.h.b16 %v781
        %v928 = vunpack.c.l.b16 %v782
        %v929 = vunpack.c.h.b16 %v782
        %v930 = vunpack.c.l.b16 %v783
        %v931 = vunpack.c.h.b16 %v783
        %v932 = vunpack.c.l.b16 %v784
        %v933 = vunpack.c.l.b16 %v785
        %v934 = vunpack.c.h.b16 %v785
        %v935 = vunpack.c.l.b16 %v786
        %v936 = vunpack.c.h.b16 %v786
        %v937 = vunpack.c.l.b16 %v787
        %v938 = vunpack.c.h.b16 %v787
        %v939 = vunpack.c.l.b16 %v788
        %v940 = vunpack.c.l.b16 %v789
        %v941 = vunpack.c.h.b16 %v789
        %v942 = vunpack.c.l.b16 %v790
        %v943 = vunpack.c.h.b16 %v790
        %v944 = vunpack.c.l.b16 %v791
        %v945 = vunpack.c.h.b16 %v791
        %v946 = vunpack.c.l.b16 %v792
        %v947 = vunpack.c.l.b16 %v793
        %v948 = vunpack.c.h.b16 %v793
        %v949 = vunpack.c.l.b16 %v794
        %v950 = vunpack.c.h.b16 %v794
        %v951 = vunpack.c.l.b16 %v795
        %v952 = vunpack.c.h.b16 %v795
        %v953 = vunpack.c.l.b16 %v796
        %v954 = vunpack.c.l.b16 %v797
        %v955 = vunpack.c.h.b16 %v797
        %v956 = vunpack.c.l.b16 %v798
        %v957 = vunpack.c.h.b16 %v798
        %v958 = vunpack.c.l.b16 %v799
        %v959 = vunpack.c.h.b16 %v799
        %v960 = vunpack.c.l.b16 %v800
        %v961 = vunpack.c.l.b16 %v801
        %v962 = vunpack.c.h.b16 %v801
        %v963 = vunpack.c.l.b16 %v802
        %v964 = vunpack.c.h.b16 %v802
        %v965 = vunpack.c.l.b16 %v803
        %v966 = vunpack.c.h.b16 %v803
        %v967 = vunpack.c.l.b16 %v804
        %v968 = vunpack.c.l.b16 %v805
        %v969 = vunpack.c.h.b16 %v805
        %v970 = vunpack.c.l.b16 %v806
        %v971 = vunpack.c.h.b16 %v806
        %v972 = vunpack.c.l.b16 %v807
        %v973 = vunpack.c.h.b16 %v807
        %v974 = vunpack.c.l.b16 %v808
        %v975 = vunpack.c.l.b16 %v809
        %v976 = vunpack.c.h.b16 %v809
        %v977 = vunpack.c.l.b16 %v810
        %v978 = vunpack.c.h.b16 %v810
        %v979 = vunpack.c.l.b16 %v811
        %v980 = vunpack.c.h.b16 %v811
        %v981 = vunpack.c.l.b16 %v812
        %v982 = vpack.c.b16 %v905, %v898
        %v983 = vpack.c.b16 %v906, %v899
        %v984 = vpack.c.b16 %v907, %v900
        %v985 = vpack.c.b16 %v908, %v901
        %v986 = vpack.c.b16 %v909, %v902
        %v987 = vpack.c.b16 %v910, %v903
        %v988 = vpack.c.b16 %v911, %v904
        %v989 = vpack.c.b16 %v919, %v912
        %v990 = vpack.c.b16 %v920, %v913
        %v991 = vpack.c.b16 %v921, %v914
        %v992 = vpack.c.b16 %v922, %v915
        %v993 = vpack.c.b16 %v923, %v916
        %v994 = vpack.c.b16 %v924, %v917
        %v995 = vpack.c.b16 %v925, %v918
        %v996 = vpack.c.b16 %v933, %v926
        %v997 = vpack.c.b16 %v934, %v927
        %v998 = vpack.c.b16 %v935, %v928
        %v999 = vpack.c.b16 %v936, %v929
        %v1000 = vpack.c.b16 %v937, %v930
        %v1001 = vpack.c.b16 %v938, %v931
        %v1002 = vpack.c.b16 %v939, %v932
        %v1003 = vpack.c.b16 %v947, %v940
        %v1004 = vpack.c.b16 %v948, %v941
        %v1005 = vpack.c.b16 %v949, %v942
        %v1006 = vpack.c.b16 %v950, %v943
        %v1007 = vpack.c.b16 %v951, %v944
        %v1008 = vpack.c.b16 %v952, %v945
        %v1009 = vpack.c.b16 %v953, %v946
        %v1010 = vpack.c.b16 %v961, %v954
        %v1011 = vpack.c.b16 %v962, %v955
        %v1012 = vpack.c.b16 %v963, %v956
        %v1013 = vpack.c.b16 %v964, %v957
        %v1014 = vpack.c.b16 %v965, %v958
        %v1015 = vpack.c.b16 %v966, %v959
        %v1016 = vpack.c.b16 %v967, %v960
        %v1017 = vpack.c.b16 %v975, %v968
        %v1018 = vpack.c.b16 %v976, %v969
        %v1019 = vpack.c.b16 %v977, %v970
        %v1020 = vpack.c.b16 %v978, %v971
        %v1021 = vpack.c.b16 %v979, %v972
        %v1022 = vpack.c.b16 %v980, %v973
        %v1023 = vpack.c.b16 %v981, %v974
        %vm1066 = vcmask 785408
        %v1067 = vsel %vm1066, %v750, 0
        %v1069 = vsel %vm1066, %v752, 0
        %v1071 = vsel %vm1066, %v754, 0
        %v1073 = vsel %vm1066, %v756, 0
        %v1075 = vsel %vm1066, %v758, 0
        %v1077 = vsel %vm1066, %v760, 0
        %v1079 = vsel %vm1066, %v762, 0
        %v1081 = vsel %vm1066, %v764, 0
        %1083 = vmatprep.subr.bf16.mxu0 %v983
        %1084 = vmatpush1.bf16.msra.mxu0 %v982
        %1085 = vmatprep.subr.bf16.mxu0 %v990
        %1086 = vmatpush1.bf16.msra.mxu0 %v989
        %1087 = vmatprep.subr.bf16.mxu0 %v997
        %1088 = vmatpush1.bf16.msra.mxu0 %v996
        %1089 = vmatprep.subr.bf16.mxu0 %v1004
        %1090 = vmatpush1.bf16.msra.mxu0 %v1003
        %1091 = vmatprep.subr.bf16.mxu0 %v1011
        %1092 = vmatpush1.bf16.msra.mxu0 %v1010
        %1093 = vmatprep.subr.bf16.mxu0 %v1018
        %1094 = vmatpush1.bf16.msra.mxu0 %v1017
        %1095 = vmatprep.subr.bf16.mxu0 0
        %1096 = vmatpush1.bf16.msra.mxu0 0
        %1097 = vmatprep.subr.bf16.mxu0 0
        %1098 = vmatpush1.bf16.msra.mxu0 0
        %1099 = vmatprep.subr.bf16.mxu0 0
        %1100 = vmatpush1.bf16.msra.mxu0 0
        %1101 = vmatprep.subr.bf16.mxu0 0
        %1102 = vmatpush1.bf16.msra.mxu0 0
        %1103 = vmatprep.subr.bf16.mxu0 0
        %1104 = vmatpush1.bf16.msra.mxu0 0
        %1105 = vmatprep.subr.bf16.mxu0 0
        %1106 = vmatpush1.bf16.msra.mxu0 0
        %1107 = vmatprep.subr.bf16.mxu0 0
        %1108 = vmatpush1.bf16.msra.mxu0 0
        %1109 = vmatprep.subr.bf16.mxu0 0
        %1110 = vmatpush1.bf16.msra.mxu0 0
        %1111 = vmatprep.subr.bf16.mxu0 0
        %1112 = vmatpush1.bf16.msra.mxu0 0
        %1113 = vmatprep.subr.bf16.mxu0 0
        %1114 = vmatpush1.bf16.msra.mxu0 0
        %1115 = vmatprep.mubr.bf16.mxu0 0
        %1116 = vmatmul.mubr.bf16.gmra.mrb[0].mxu0 %v1067
        %v1117 = vpop.f32.mrb[0].mxu0
        %v1118 = vadd.f32 %v818, %v1117
        %v1119 = vpop.f32.mrb[0].mxu0
        %v1120 = vadd.f32 %v822, %v1119
        %v1121 = vpop.f32.mrb[0].mxu0
        %v1122 = vadd.f32 %v818, %v1121
        %v1123 = vpop.f32.mrb[0].mxu0
        %v1124 = vadd.f32 %v822, %v1123
        %1125 = vmatprep.mubr.bf16.mxu0 0
        %1126 = vmatmul.mubr.bf16.gmra.mrb[0].mxu0 %v1069
        %v1127 = vpop.f32.mrb[0].mxu0
        %v1128 = vadd.f32 %v818, %v1127
        %v1129 = vpop.f32.mrb[0].mxu0
        %v1130 = vadd.f32 %v822, %v1129
        %v1131 = vpop.f32.mrb[0].mxu0
        %v1132 = vadd.f32 %v818, %v1131
        %v1133 = vpop.f32.mrb[0].mxu0
        %v1134 = vadd.f32 %v822, %v1133
        %1135 = vmatprep.mubr.bf16.mxu0 0
        %1136 = vmatmul.mubr.bf16.gmra.mrb[0].mxu0 %v1071
        %v1137 = vpop.f32.mrb[0].mxu0
        %v1138 = vadd.f32 %v818, %v1137
        %v1139 = vpop.f32.mrb[0].mxu0
        %v1140 = vadd.f32 %v822, %v1139
        %v1141 = vpop.f32.mrb[0].mxu0
        %v1142 = vadd.f32 %v818, %v1141
        %v1143 = vpop.f32.mrb[0].mxu0
        %v1144 = vadd.f32 %v822, %v1143
        %1145 = vmatprep.mubr.bf16.mxu0 0
        %1146 = vmatmul.mubr.bf16.gmra.mrb[0].mxu0 %v1073
        %v1147 = vpop.f32.mrb[0].mxu0
        %v1148 = vadd.f32 %v818, %v1147
        %v1149 = vpop.f32.mrb[0].mxu0
        %v1150 = vadd.f32 %v822, %v1149
        %v1151 = vpop.f32.mrb[0].mxu0
        %v1152 = vadd.f32 %v818, %v1151
        %v1153 = vpop.f32.mrb[0].mxu0
        %v1154 = vadd.f32 %v822, %v1153
        %1155 = vmatprep.mubr.bf16.mxu0 0
        %1156 = vmatmul.mubr.bf16.gmra.mrb[0].mxu0 %v1075
        %v1157 = vpop.f32.mrb[0].mxu0
        %v1158 = vadd.f32 %v818, %v1157
        %v1159 = vpop.f32.mrb[0].mxu0
        %v1160 = vadd.f32 %v822, %v1159
        %v1161 = vpop.f32.mrb[0].mxu0
        %v1162 = vadd.f32 %v818, %v1161
        %v1163 = vpop.f32.mrb[0].mxu0
        %v1164 = vadd.f32 %v822, %v1163
        %1165 = vmatprep.mubr.bf16.mxu0 0
        %1166 = vmatmul.mubr.bf16.gmra.mrb[0].mxu0 %v1077
        %v1167 = vpop.f32.mrb[0].mxu0
        %v1168 = vadd.f32 %v818, %v1167
        %v1169 = vpop.f32.mrb[0].mxu0
        %v1170 = vadd.f32 %v822, %v1169
        %v1171 = vpop.f32.mrb[0].mxu0
        %v1172 = vadd.f32 %v818, %v1171
        %v1173 = vpop.f32.mrb[0].mxu0
        %v1174 = vadd.f32 %v822, %v1173
        %1175 = vmatprep.mubr.bf16.mxu0 0
        %1176 = vmatmul.mubr.bf16.gmra.mrb[0].mxu0 %v1079
        %v1177 = vpop.f32.mrb[0].mxu0
        %v1178 = vadd.f32 %v818, %v1177
        %v1179 = vpop.f32.mrb[0].mxu0
        %v1180 = vadd.f32 %v822, %v1179
        %v1181 = vpop.f32.mrb[0].mxu0
        %v1182 = vadd.f32 %v818, %v1181
        %v1183 = vpop.f32.mrb[0].mxu0
        %v1184 = vadd.f32 %v822, %v1183
        %1185 = vmatprep.mubr.bf16.mxu0 0
        %1186 = vmatmul.mubr.bf16.gmra.mrb[0].mxu0 %v1081
        %v1187 = vpop.f32.mrb[0].mxu0
        %v1188 = vadd.f32 %v818, %v1187
        %v1189 = vpop.f32.mrb[0].mxu0
        %v1190 = vadd.f32 %v822, %v1189
        %v1191 = vpop.f32.mrb[0].mxu0
        %v1192 = vadd.f32 %v818, %v1191
        %v1193 = vpop.f32.mrb[0].mxu0
        %v1194 = vadd.f32 %v822, %v1193
        %1195 = vdwg.mxu0
        %1196 = vmatprep.subr.bf16.mxu0 %v985
        %1197 = vmatpush1.bf16.msra.mxu0 %v984
        %1198 = vmatprep.subr.bf16.mxu0 %v992
        %1199 = vmatpush1.bf16.msra.mxu0 %v991
        %1200 = vmatprep.subr.bf16.mxu0 %v999
        %1201 = vmatpush1.bf16.msra.mxu0 %v998
        %1202 = vmatprep.subr.bf16.mxu0 %v1006
        %1203 = vmatpush1.bf16.msra.mxu0 %v1005
        %1204 = vmatprep.subr.bf16.mxu0 %v1013
        %1205 = vmatpush1.bf16.msra.mxu0 %v1012
        %1206 = vmatprep.subr.bf16.mxu0 %v1020
        %1207 = vmatpush1.bf16.msra.mxu0 %v1019
        %1208 = vmatprep.subr.bf16.mxu0 0
        %1209 = vmatpush1.bf16.msra.mxu0 0
        %1210 = vmatprep.subr.bf16.mxu0 0
        %1211 = vmatpush1.bf16.msra.mxu0 0
        %1212 = vmatprep.subr.bf16.mxu0 0
        %1213 = vmatpush1.bf16.msra.mxu0 0
        %1214 = vmatprep.subr.bf16.mxu0 0
        %1215 = vmatpush1.bf16.msra.mxu0 0
        %1216 = vmatprep.subr.bf16.mxu0 0
        %1217 = vmatpush1.bf16.msra.mxu0 0
        %1218 = vmatprep.subr.bf16.mxu0 0
        %1219 = vmatpush1.bf16.msra.mxu0 0
        %1220 = vmatprep.subr.bf16.mxu0 0
        %1221 = vmatpush1.bf16.msra.mxu0 0
        %1222 = vmatprep.subr.bf16.mxu0 0
        %1223 = vmatpush1.bf16.msra.mxu0 0
        %1224 = vmatprep.subr.bf16.mxu0 0
        %1225 = vmatpush1.bf16.msra.mxu0 0
        %1226 = vmatprep.subr.bf16.mxu0 0
        %1227 = vmatpush1.bf16.msra.mxu0 0
        %1228 = vmatprep.mubr.bf16.mxu0 0
        %1229 = vmatmul.mubr.bf16.gmra.mrb[0].mxu0 %v1067
        %v1230 = vpop.f32.mrb[0].mxu0
        %v1231 = vadd.f32 %v826, %v1230
        %v1232 = vpop.f32.mrb[0].mxu0
        %v1233 = vadd.f32 %v830, %v1232
        %v1234 = vpop.f32.mrb[0].mxu0
        %v1235 = vadd.f32 %v826, %v1234
        %v1236 = vpop.f32.mrb[0].mxu0
        %v1237 = vadd.f32 %v830, %v1236
        %1238 = vmatprep.mubr.bf16.mxu0 0
        %1239 = vmatmul.mubr.bf16.gmra.mrb[0].mxu0 %v1069
        %v1240 = vpop.f32.mrb[0].mxu0
        %v1241 = vadd.f32 %v826, %v1240
        %v1242 = vpop.f32.mrb[0].mxu0
        %v1243 = vadd.f32 %v830, %v1242
        %v1244 = vpop.f32.mrb[0].mxu0
        %v1245 = vadd.f32 %v826, %v1244
        %v1246 = vpop.f32.mrb[0].mxu0
        %v1247 = vadd.f32 %v830, %v1246
        %1248 = vmatprep.mubr.bf16.mxu0 0
        %1249 = vmatmul.mubr.bf16.gmra.mrb[0].mxu0 %v1071
        %v1250 = vpop.f32.mrb[0].mxu0
        %v1251 = vadd.f32 %v826, %v1250
        %v1252 = vpop.f32.mrb[0].mxu0
        %v1253 = vadd.f32 %v830, %v1252
        %v1254 = vpop.f32.mrb[0].mxu0
        %v1255 = vadd.f32 %v826, %v1254
        %v1256 = vpop.f32.mrb[0].mxu0
        %v1257 = vadd.f32 %v830, %v1256
        %1258 = vmatprep.mubr.bf16.mxu0 0
        %1259 = vmatmul.mubr.bf16.gmra.mrb[0].mxu0 %v1073
        %v1260 = vpop.f32.mrb[0].mxu0
        %v1261 = vadd.f32 %v826, %v1260
        %v1262 = vpop.f32.mrb[0].mxu0
        %v1263 = vadd.f32 %v830, %v1262
        %v1264 = vpop.f32.mrb[0].mxu0
        %v1265 = vadd.f32 %v826, %v1264
        %v1266 = vpop.f32.mrb[0].mxu0
        %v1267 = vadd.f32 %v830, %v1266
        %1268 = vmatprep.mubr.bf16.mxu0 0
        %1269 = vmatmul.mubr.bf16.gmra.mrb[0].mxu0 %v1075
        %v1270 = vpop.f32.mrb[0].mxu0
        %v1271 = vadd.f32 %v826, %v1270
        %v1272 = vpop.f32.mrb[0].mxu0
        %v1273 = vadd.f32 %v830, %v1272
        %v1274 = vpop.f32.mrb[0].mxu0
        %v1275 = vadd.f32 %v826, %v1274
        %v1276 = vpop.f32.mrb[0].mxu0
        %v1277 = vadd.f32 %v830, %v1276
        %1278 = vmatprep.mubr.bf16.mxu0 0
        %1279 = vmatmul.mubr.bf16.gmra.mrb[0].mxu0 %v1077
        %v1280 = vpop.f32.mrb[0].mxu0
        %v1281 = vadd.f32 %v826, %v1280
        %v1282 = vpop.f32.mrb[0].mxu0
        %v1283 = vadd.f32 %v830, %v1282
        %v1284 = vpop.f32.mrb[0].mxu0
        %v1285 = vadd.f32 %v826, %v1284
        %v1286 = vpop.f32.mrb[0].mxu0
        %v1287 = vadd.f32 %v830, %v1286
        %1288 = vmatprep.mubr.bf16.mxu0 0
        %1289 = vmatmul.mubr.bf16.gmra.mrb[0].mxu0 %v1079
        %v1290 = vpop.f32.mrb[0].mxu0
        %v1291 = vadd.f32 %v826, %v1290
        %v1292 = vpop.f32.mrb[0].mxu0
        %v1293 = vadd.f32 %v830, %v1292
        %v1294 = vpop.f32.mrb[0].mxu0
        %v1295 = vadd.f32 %v826, %v1294
        %v1296 = vpop.f32.mrb[0].mxu0
        %v1297 = vadd.f32 %v830, %v1296
        %1298 = vmatprep.mubr.bf16.mxu0 0
        %1299 = vmatmul.mubr.bf16.gmra.mrb[0].mxu0 %v1081
        %v1300 = vpop.f32.mrb[0].mxu0
        %v1301 = vadd.f32 %v826, %v1300
        %v1302 = vpop.f32.mrb[0].mxu0
        %v1303 = vadd.f32 %v830, %v1302
        %v1304 = vpop.f32.mrb[0].mxu0
        %v1305 = vadd.f32 %v826, %v1304
        %v1306 = vpop.f32.mrb[0].mxu0
        %v1307 = vadd.f32 %v830, %v1306
        %1308 = vdwg.mxu0
        %1309 = vmatprep.subr.bf16.mxu0 %v987
        %1310 = vmatpush1.bf16.msra.mxu0 %v986
        %1311 = vmatprep.subr.bf16.mxu0 %v994
        %1312 = vmatpush1.bf16.msra.mxu0 %v993
        %1313 = vmatprep.subr.bf16.mxu0 %v1001
        %1314 = vmatpush1.bf16.msra.mxu0 %v1000
        %1315 = vmatprep.subr.bf16.mxu0 %v1008
        %1316 = vmatpush1.bf16.msra.mxu0 %v1007
        %1317 = vmatprep.subr.bf16.mxu0 %v1015
        %1318 = vmatpush1.bf16.msra.mxu0 %v1014
        %1319 = vmatprep.subr.bf16.mxu0 %v1022
        %1320 = vmatpush1.bf16.msra.mxu0 %v1021
        %1321 = vmatprep.subr.bf16.mxu0 0
        %1322 = vmatpush1.bf16.msra.mxu0 0
        %1323 = vmatprep.subr.bf16.mxu0 0
        %1324 = vmatpush1.bf16.msra.mxu0 0
        %1325 = vmatprep.subr.bf16.mxu0 0
        %1326 = vmatpush1.bf16.msra.mxu0 0
        %1327 = vmatprep.subr.bf16.mxu0 0
        %1328 = vmatpush1.bf16.msra.mxu0 0
        %1329 = vmatprep.subr.bf16.mxu0 0
        %1330 = vmatpush1.bf16.msra.mxu0 0
        %1331 = vmatprep.subr.bf16.mxu0 0
        %1332 = vmatpush1.bf16.msra.mxu0 0
        %1333 = vmatprep.subr.bf16.mxu0 0
        %1334 = vmatpush1.bf16.msra.mxu0 0
        %1335 = vmatprep.subr.bf16.mxu0 0
        %1336 = vmatpush1.bf16.msra.mxu0 0
        %1337 = vmatprep.subr.bf16.mxu0 0
        %1338 = vmatpush1.bf16.msra.mxu0 0
        %1339 = vmatprep.subr.bf16.mxu0 0
        %1340 = vmatpush1.bf16.msra.mxu0 0
        %1341 = vmatprep.mubr.bf16.mxu0 0
        %1342 = vmatmul.mubr.bf16.gmra.mrb[0].mxu0 %v1067
        %v1343 = vpop.f32.mrb[0].mxu0
        %v1344 = vadd.f32 %v834, %v1343
        %v1345 = vpop.f32.mrb[0].mxu0
        %v1346 = vadd.f32 %v838, %v1345
        %v1347 = vpop.f32.mrb[0].mxu0
        %v1348 = vadd.f32 %v834, %v1347
        %v1349 = vpop.f32.mrb[0].mxu0
        %v1350 = vadd.f32 %v838, %v1349
        %1351 = vmatprep.mubr.bf16.mxu0 0
        %1352 = vmatmul.mubr.bf16.gmra.mrb[0].mxu0 %v1069
        %v1353 = vpop.f32.mrb[0].mxu0
        %v1354 = vadd.f32 %v834, %v1353
        %v1355 = vpop.f32.mrb[0].mxu0
        %v1356 = vadd.f32 %v838, %v1355
        %v1357 = vpop.f32.mrb[0].mxu0
        %v1358 = vadd.f32 %v834, %v1357
        %v1359 = vpop.f32.mrb[0].mxu0
        %v1360 = vadd.f32 %v838, %v1359
        %1361 = vmatprep.mubr.bf16.mxu0 0
        %1362 = vmatmul.mubr.bf16.gmra.mrb[0].mxu0 %v1071
        %v1363 = vpop.f32.mrb[0].mxu0
        %v1364 = vadd.f32 %v834, %v1363
        %v1365 = vpop.f32.mrb[0].mxu0
        %v1366 = vadd.f32 %v838, %v1365
        %v1367 = vpop.f32.mrb[0].mxu0
        %v1368 = vadd.f32 %v834, %v1367
        %v1369 = vpop.f32.mrb[0].mxu0
        %v1370 = vadd.f32 %v838, %v1369
        %1371 = vmatprep.mubr.bf16.mxu0 0
        %1372 = vmatmul.mubr.bf16.gmra.mrb[0].mxu0 %v1073
        %v1373 = vpop.f32.mrb[0].mxu0
        %v1374 = vadd.f32 %v834, %v1373
        %v1375 = vpop.f32.mrb[0].mxu0
        %v1376 = vadd.f32 %v838, %v1375
        %v1377 = vpop.f32.mrb[0].mxu0
        %v1378 = vadd.f32 %v834, %v1377
        %v1379 = vpop.f32.mrb[0].mxu0
        %v1380 = vadd.f32 %v838, %v1379
        %1381 = vmatprep.mubr.bf16.mxu0 0
        %1382 = vmatmul.mubr.bf16.gmra.mrb[0].mxu0 %v1075
        %v1383 = vpop.f32.mrb[0].mxu0
        %v1384 = vadd.f32 %v834, %v1383
        %v1385 = vpop.f32.mrb[0].mxu0
        %v1386 = vadd.f32 %v838, %v1385
        %v1387 = vpop.f32.mrb[0].mxu0
        %v1388 = vadd.f32 %v834, %v1387
        %v1389 = vpop.f32.mrb[0].mxu0
        %v1390 = vadd.f32 %v838, %v1389
        %1391 = vmatprep.mubr.bf16.mxu0 0
        %1392 = vmatmul.mubr.bf16.gmra.mrb[0].mxu0 %v1077
        %v1393 = vpop.f32.mrb[0].mxu0
        %v1394 = vadd.f32 %v834, %v1393
        %v1395 = vpop.f32.mrb[0].mxu0
        %v1396 = vadd.f32 %v838, %v1395
        %v1397 = vpop.f32.mrb[0].mxu0
        %v1398 = vadd.f32 %v834, %v1397
        %v1399 = vpop.f32.mrb[0].mxu0
        %v1400 = vadd.f32 %v838, %v1399
        %1401 = vmatprep.mubr.bf16.mxu0 0
        %1402 = vmatmul.mubr.bf16.gmra.mrb[0].mxu0 %v1079
        %v1403 = vpop.f32.mrb[0].mxu0
        %v1404 = vadd.f32 %v834, %v1403
        %v1405 = vpop.f32.mrb[0].mxu0
        %v1406 = vadd.f32 %v838, %v1405
        %v1407 = vpop.f32.mrb[0].mxu0
        %v1408 = vadd.f32 %v834, %v1407
        %v1409 = vpop.f32.mrb[0].mxu0
        %v1410 = vadd.f32 %v838, %v1409
        %1411 = vmatprep.mubr.bf16.mxu0 0
        %1412 = vmatmul.mubr.bf16.gmra.mrb[0].mxu0 %v1081
        %v1413 = vpop.f32.mrb[0].mxu0
        %v1414 = vadd.f32 %v834, %v1413
        %v1415 = vpop.f32.mrb[0].mxu0
        %v1416 = vadd.f32 %v838, %v1415
        %v1417 = vpop.f32.mrb[0].mxu0
        %v1418 = vadd.f32 %v834, %v1417
        %v1419 = vpop.f32.mrb[0].mxu0
        %v1420 = vadd.f32 %v838, %v1419
        %1421 = vdwg.mxu0
        %1422 = vmatprep.subr.bf16.mxu0 0
        %1423 = vmatpush1.bf16.msra.mxu0 %v988
        %1424 = vmatprep.subr.bf16.mxu0 0
        %1425 = vmatpush1.bf16.msra.mxu0 %v995
        %1426 = vmatprep.subr.bf16.mxu0 0
        %1427 = vmatpush1.bf16.msra.mxu0 %v1002
        %1428 = vmatprep.subr.bf16.mxu0 0
        %1429 = vmatpush1.bf16.msra.mxu0 %v1009
        %1430 = vmatprep.subr.bf16.mxu0 0
        %1431 = vmatpush1.bf16.msra.mxu0 %v1016
        %1432 = vmatprep.subr.bf16.mxu0 0
        %1433 = vmatpush1.bf16.msra.mxu0 %v1023
        %1434 = vmatprep.subr.bf16.mxu0 0
        %1435 = vmatpush1.bf16.msra.mxu0 0
        %1436 = vmatprep.subr.bf16.mxu0 0
        %1437 = vmatpush1.bf16.msra.mxu0 0
        %1438 = vmatprep.subr.bf16.mxu0 0
        %1439 = vmatpush1.bf16.msra.mxu0 0
        %1440 = vmatprep.subr.bf16.mxu0 0
        %1441 = vmatpush1.bf16.msra.mxu0 0
        %1442 = vmatprep.subr.bf16.mxu0 0
        %1443 = vmatpush1.bf16.msra.mxu0 0
        %1444 = vmatprep.subr.bf16.mxu0 0
        %1445 = vmatpush1.bf16.msra.mxu0 0
        %1446 = vmatprep.subr.bf16.mxu0 0
        %1447 = vmatpush1.bf16.msra.mxu0 0
        %1448 = vmatprep.subr.bf16.mxu0 0
        %1449 = vmatpush1.bf16.msra.mxu0 0
        %1450 = vmatprep.subr.bf16.mxu0 0
        %1451 = vmatpush1.bf16.msra.mxu0 0
        %1452 = vmatprep.subr.bf16.mxu0 0
        %1453 = vmatpush1.bf16.msra.mxu0 0
        %1454 = vmatprep.mubr.bf16.mxu0 0
        %1455 = vmatmul.mubr.bf16.gmra.mrb[0].mxu0 %v1067
        %v1456 = vpop.f32.mrb[0].mxu0
        %v1457 = vadd.f32 %v842, %v1456
        %v1458 = vpop.f32.mrb[0].mxu0
        %v1459 = vpop.f32.mrb[0].mxu0
        %v1460 = vadd.f32 %v842, %v1459
        %v1461 = vpop.f32.mrb[0].mxu0
        %1462 = vmatprep.mubr.bf16.mxu0 0
        %1463 = vmatmul.mubr.bf16.gmra.mrb[0].mxu0 %v1069
        %v1464 = vpop.f32.mrb[0].mxu0
        %v1465 = vadd.f32 %v842, %v1464
        %v1466 = vpop.f32.mrb[0].mxu0
        %v1467 = vpop.f32.mrb[0].mxu0
        %v1468 = vadd.f32 %v842, %v1467
        %v1469 = vpop.f32.mrb[0].mxu0
        %1470 = vmatprep.mubr.bf16.mxu0 0
        %1471 = vmatmul.mubr.bf16.gmra.mrb[0].mxu0 %v1071
        %v1472 = vpop.f32.mrb[0].mxu0
        %v1473 = vadd.f32 %v842, %v1472
        %v1474 = vpop.f32.mrb[0].mxu0
        %v1475 = vpop.f32.mrb[0].mxu0
        %v1476 = vadd.f32 %v842, %v1475
        %v1477 = vpop.f32.mrb[0].mxu0
        %1478 = vmatprep.mubr.bf16.mxu0 0
        %1479 = vmatmul.mubr.bf16.gmra.mrb[0].mxu0 %v1073
        %v1480 = vpop.f32.mrb[0].mxu0
        %v1481 = vadd.f32 %v842, %v1480
        %v1482 = vpop.f32.mrb[0].mxu0
        %v1483 = vpop.f32.mrb[0].mxu0
        %v1484 = vadd.f32 %v842, %v1483
        %v1485 = vpop.f32.mrb[0].mxu0
        %1486 = vmatprep.mubr.bf16.mxu0 0
        %1487 = vmatmul.mubr.bf16.gmra.mrb[0].mxu0 %v1075
        %v1488 = vpop.f32.mrb[0].mxu0
        %v1489 = vadd.f32 %v842, %v1488
        %v1490 = vpop.f32.mrb[0].mxu0
        %v1491 = vpop.f32.mrb[0].mxu0
        %v1492 = vadd.f32 %v842, %v1491
        %v1493 = vpop.f32.mrb[0].mxu0
        %1494 = vmatprep.mubr.bf16.mxu0 0
        %1495 = vmatmul.mubr.bf16.gmra.mrb[0].mxu0 %v1077
        %v1496 = vpop.f32.mrb[0].mxu0
        %v1497 = vadd.f32 %v842, %v1496
        %v1498 = vpop.f32.mrb[0].mxu0
        %v1499 = vpop.f32.mrb[0].mxu0
        %v1500 = vadd.f32 %v842, %v1499
        %v1501 = vpop.f32.mrb[0].mxu0
        %1502 = vmatprep.mubr.bf16.mxu0 0
        %1503 = vmatmul.mubr.bf16.gmra.mrb[0].mxu0 %v1079
        %v1504 = vpop.f32.mrb[0].mxu0
        %v1505 = vadd.f32 %v842, %v1504
        %v1506 = vpop.f32.mrb[0].mxu0
        %v1507 = vpop.f32.mrb[0].mxu0
        %v1508 = vadd.f32 %v842, %v1507
        %v1509 = vpop.f32.mrb[0].mxu0
        %1510 = vmatprep.mubr.bf16.mxu0 0
        %1511 = vmatmul.mubr.bf16.gmra.mrb[0].mxu0 %v1081
        %v1512 = vpop.f32.mrb[0].mxu0
        %v1513 = vadd.f32 %v842, %v1512
        %v1514 = vpop.f32.mrb[0].mxu0
        %v1515 = vpop.f32.mrb[0].mxu0
        %v1516 = vadd.f32 %v842, %v1515
        %v1517 = vpop.f32.mrb[0].mxu0
        %1518 = vdwg.mxu0
        %v1519 = vld [vmem:[#allocation2] sm:$0xff]
        %v1520 = vld [vmem:[#allocation2 + $0x8] sm:$0xff]
        %v1521 = vld [vmem:[#allocation2 + $0x10] sm:$0xff]
        %v1522 = vld [vmem:[#allocation2 + $0x18] sm:$0xff]
        %v1523 = vld [vmem:[#allocation2 + $0x20] sm:$0xff]
        %v1524 = vld [vmem:[#allocation2 + $0x28] sm:$0xff]
        %v1525 = vld [vmem:[#allocation2 + $0x30] sm:$0xff]
        %v1526 = vld [vmem:[#allocation2 + $0x38] sm:$0xff]
        %v1527 = vld [vmem:[#allocation2 + $0x40] sm:$0xff]
        %v1528 = vld [vmem:[#allocation2 + $0x48] sm:$0xff]
        %v1529 = vld [vmem:[#allocation2 + $0x50] sm:$0xff]
        %v1530 = vld [vmem:[#allocation2 + $0x58] sm:$0xff]
        %v1531 = vld [vmem:[#allocation2 + $0x60] sm:$0xff]
        %v1532 = vld [vmem:[#allocation2 + $0x68] sm:$0xff]
        %v1533 = vld [vmem:[#allocation2 + $0x70] sm:$0xff]
        %v1534 = vld [vmem:[#allocation2 + $0x78] sm:$0xff]
        %v1535 = vld [vmem:[#allocation2 + $0x80] sm:$0xff]
        %v1536 = vld [vmem:[#allocation2 + $0x88] sm:$0xff]
        %v1537 = vld [vmem:[#allocation2 + $0x90] sm:$0xff]
        %v1538 = vld [vmem:[#allocation2 + $0x98] sm:$0xff]
        %v1539 = vld [vmem:[#allocation2 + $0xa0] sm:$0xff]
        %v1540 = vld [vmem:[#allocation2 + $0xa8] sm:$0xff]
        %v1541 = vld [vmem:[#allocation2 + $0xb0] sm:$0xff]
        %v1542 = vld [vmem:[#allocation2 + $0xb8] sm:$0xff]
        %v1543 = vld [vmem:[#allocation2 + $0xc0] sm:$0xff]
        %v1544 = vld [vmem:[#allocation2 + $0xc8] sm:$0xff]
        %v1545 = vld [vmem:[#allocation2 + $0xd0] sm:$0xff]
        %v1546 = vld [vmem:[#allocation2 + $0xd8] sm:$0xff]
        %v1547 = vld [vmem:[#allocation2 + $0xe0] sm:$0xff]
        %v1548 = vld [vmem:[#allocation2 + $0xe8] sm:$0xff]
        %v1549 = vld [vmem:[#allocation2 + $0xf0] sm:$0xff]
        %v1550 = vld [vmem:[#allocation2 + $0xf8] sm:$0xff]
        %v1551 = vld [vmem:[#allocation2 + $0x100] sm:$0xff]
        %v1552 = vld [vmem:[#allocation2 + $0x108] sm:$0xff]
        %v1553 = vld [vmem:[#allocation2 + $0x110] sm:$0xff]
        %v1554 = vld [vmem:[#allocation2 + $0x118] sm:$0xff]
        %v1555 = vld [vmem:[#allocation2 + $0x120] sm:$0xff]
        %v1556 = vld [vmem:[#allocation2 + $0x128] sm:$0xff]
        %v1557 = vld [vmem:[#allocation2 + $0x130] sm:$0xff]
        %v1558 = vld [vmem:[#allocation2 + $0x138] sm:$0xff]
        %v1559 = vld [vmem:[#allocation2 + $0x140] sm:$0xff]
        %v1560 = vld [vmem:[#allocation2 + $0x148] sm:$0xff]
        %v1561 = vld [vmem:[#allocation2 + $0x150] sm:$0xff]
        %v1562 = vld [vmem:[#allocation2 + $0x158] sm:$0xff]
        %v1563 = vld [vmem:[#allocation2 + $0x160] sm:$0xff]
        %v1564 = vld [vmem:[#allocation2 + $0x168] sm:$0xff]
        %v1565 = vld [vmem:[#allocation2 + $0x170] sm:$0xff]
        %v1566 = vld [vmem:[#allocation2 + $0x178] sm:$0xff]
        %v1567 = vld [vmem:[#allocation2 + $0x180] sm:$0xff]
        %v1568 = vld [vmem:[#allocation2 + $0x188] sm:$0xff]
        %v1569 = vld [vmem:[#allocation2 + $0x190] sm:$0xff]
        %v1570 = vld [vmem:[#allocation2 + $0x198] sm:$0xff]
        %v1571 = vld [vmem:[#allocation2 + $0x1a0] sm:$0xff]
        %v1572 = vld [vmem:[#allocation2 + $0x1a8] sm:$0xff]
        %v1573 = vld [vmem:[#allocation2 + $0x1b0] sm:$0xff]
        %v1574 = vld [vmem:[#allocation2 + $0x1b8] sm:$0xff]
        %v1575 = vld [vmem:[#allocation2 + $0x1c0] sm:$0xff]
        %v1576 = vld [vmem:[#allocation2 + $0x1c8] sm:$0xff]
        %v1577 = vld [vmem:[#allocation2 + $0x1d0] sm:$0xff]
        %v1578 = vld [vmem:[#allocation2 + $0x1d8] sm:$0xff]
        %v1579 = vld [vmem:[#allocation2 + $0x1e0] sm:$0xff]
        %v1580 = vld [vmem:[#allocation2 + $0x1e8] sm:$0xff]
        %v1581 = vld [vmem:[#allocation2 + $0x1f0] sm:$0xff]
        %v1582 = vld [vmem:[#allocation2 + $0x1f8] sm:$0xff]
        %v1583 = vld [vmem:[#allocation2 + $0x200] sm:$0xff]
        %v1584 = vld [vmem:[#allocation2 + $0x208] sm:$0xff]
        %v1585 = vld [vmem:[#allocation2 + $0x210] sm:$0xff]
        %v1586 = vld [vmem:[#allocation2 + $0x218] sm:$0xff]
        %v1587 = vld [vmem:[#allocation2 + $0x220] sm:$0xff]
        %v1588 = vld [vmem:[#allocation2 + $0x228] sm:$0xff]
        %v1589 = vld [vmem:[#allocation2 + $0x230] sm:$0xff]
        %v1590 = vld [vmem:[#allocation2 + $0x238] sm:$0xff]
        %v1591 = vld [vmem:[#allocation2 + $0x240] sm:$0xff]
        %v1592 = vld [vmem:[#allocation2 + $0x248] sm:$0xff]
        %v1593 = vld [vmem:[#allocation2 + $0x250] sm:$0xff]
        %v1594 = vld [vmem:[#allocation2 + $0x258] sm:$0xff]
        %v1595 = vld [vmem:[#allocation2 + $0x260] sm:$0xff]
        %v1596 = vld [vmem:[#allocation2 + $0x268] sm:$0xff]
        %v1597 = vld [vmem:[#allocation2 + $0x270] sm:$0xff]
        %v1598 = vld [vmem:[#allocation2 + $0x278] sm:$0xff]
        %v1599 = vld [vmem:[#allocation2 + $0x280] sm:$0xff]
        %v1600 = vld [vmem:[#allocation2 + $0x288] sm:$0xff]
        %v1601 = vld [vmem:[#allocation2 + $0x290] sm:$0xff]
        %v1602 = vld [vmem:[#allocation2 + $0x298] sm:$0xff]
        %v1603 = vld [vmem:[#allocation2 + $0x2a0] sm:$0xff]
        %v1604 = vld [vmem:[#allocation2 + $0x2a8] sm:$0xff]
        %v1605 = vld [vmem:[#allocation2 + $0x2b0] sm:$0xff]
        %v1606 = vld [vmem:[#allocation2 + $0x2b8] sm:$0xff]
        %v1607 = vld [vmem:[#allocation2 + $0x2c0] sm:$0xff]
        %v1608 = vld [vmem:[#allocation2 + $0x2c8] sm:$0xff]
        %v1609 = vld [vmem:[#allocation2 + $0x2d0] sm:$0xff]
        %v1610 = vld [vmem:[#allocation2 + $0x2d8] sm:$0xff]
        %v1611 = vld [vmem:[#allocation2 + $0x2e0] sm:$0xff]
        %v1612 = vld [vmem:[#allocation2 + $0x2e8] sm:$0xff]
        %v1613 = vld [vmem:[#allocation2 + $0x2f0] sm:$0xff]
        %v1614 = vld [vmem:[#allocation2 + $0x2f8] sm:$0xff]
        %v1615 = vld [vmem:[#allocation2 + $0x300] sm:$0xff]
        %v1616 = vld [vmem:[#allocation2 + $0x308] sm:$0xff]
        %v1617 = vld [vmem:[#allocation2 + $0x310] sm:$0xff]
        %v1618 = vld [vmem:[#allocation2 + $0x318] sm:$0xff]
        %v1619 = vld [vmem:[#allocation2 + $0x320] sm:$0xff]
        %v1620 = vld [vmem:[#allocation2 + $0x328] sm:$0xff]
        %v1621 = vld [vmem:[#allocation2 + $0x330] sm:$0xff]
        %v1622 = vld [vmem:[#allocation2 + $0x338] sm:$0xff]
        %v1623 = vld [vmem:[#allocation2 + $0x340] sm:$0xff]
        %v1624 = vld [vmem:[#allocation2 + $0x348] sm:$0xff]
        %v1625 = vld [vmem:[#allocation2 + $0x350] sm:$0xff]
        %v1626 = vld [vmem:[#allocation2 + $0x358] sm:$0xff]
        %v1627 = vld [vmem:[#allocation2 + $0x360] sm:$0xff]
        %v1628 = vld [vmem:[#allocation2 + $0x368] sm:$0xff]
        %v1629 = vld [vmem:[#allocation2 + $0x370] sm:$0xff]
        %v1630 = vld [vmem:[#allocation2 + $0x378] sm:$0xff]
        %vm1631 = vcmp.gt.f32.partialorder %v1519, 0.3
        %vm1632 = vcmp.gt.f32.partialorder %v1520, 0.3
        %vm1633 = vcmp.gt.f32.partialorder %v1521, 0.3
        %vm1634 = vcmp.gt.f32.partialorder %v1522, 0.3
        %vm1635 = vcmp.gt.f32.partialorder %v1523, 0.3
        %vm1636 = vcmp.gt.f32.partialorder %v1524, 0.3
        %vm1637 = vcmp.gt.f32.partialorder %v1525, 0.3
        %vm1638 = vcmp.gt.f32.partialorder %v1526, 0.3
        %vm1639 = vcmp.gt.f32.partialorder %v1527, 0.3
        %vm1640 = vcmp.gt.f32.partialorder %v1528, 0.3
        %vm1641 = vcmp.gt.f32.partialorder %v1529, 0.3
        %vm1642 = vcmp.gt.f32.partialorder %v1530, 0.3
        %vm1643 = vcmp.gt.f32.partialorder %v1531, 0.3
        %vm1644 = vcmp.gt.f32.partialorder %v1532, 0.3
        %vm1645 = vcmp.gt.f32.partialorder %v1533, 0.3
        %vm1646 = vcmp.gt.f32.partialorder %v1534, 0.3
        %vm1647 = vcmp.gt.f32.partialorder %v1535, 0.3
        %vm1648 = vcmp.gt.f32.partialorder %v1536, 0.3
        %vm1649 = vcmp.gt.f32.partialorder %v1537, 0.3
        %vm1650 = vcmp.gt.f32.partialorder %v1538, 0.3
        %vm1651 = vcmp.gt.f32.partialorder %v1539, 0.3
        %vm1652 = vcmp.gt.f32.partialorder %v1540, 0.3
        %vm1653 = vcmp.gt.f32.partialorder %v1541, 0.3
        %vm1654 = vcmp.gt.f32.partialorder %v1542, 0.3
        %vm1655 = vcmp.gt.f32.partialorder %v1543, 0.3
        %vm1656 = vcmp.gt.f32.partialorder %v1544, 0.3
        %vm1657 = vcmp.gt.f32.partialorder %v1545, 0.3
        %vm1658 = vcmp.gt.f32.partialorder %v1546, 0.3
        %vm1659 = vcmp.gt.f32.partialorder %v1547, 0.3
        %vm1660 = vcmp.gt.f32.partialorder %v1548, 0.3
        %vm1661 = vcmp.gt.f32.partialorder %v1549, 0.3
        %vm1662 = vcmp.gt.f32.partialorder %v1550, 0.3
        %vm1663 = vcmp.gt.f32.partialorder %v1551, 0.3
        %vm1664 = vcmp.gt.f32.partialorder %v1552, 0.3
        %vm1665 = vcmp.gt.f32.partialorder %v1553, 0.3
        %vm1666 = vcmp.gt.f32.partialorder %v1554, 0.3
        %vm1667 = vcmp.gt.f32.partialorder %v1555, 0.3
        %vm1668 = vcmp.gt.f32.partialorder %v1556, 0.3
        %vm1669 = vcmp.gt.f32.partialorder %v1557, 0.3
        %vm1670 = vcmp.gt.f32.partialorder %v1558, 0.3
        %vm1671 = vcmp.gt.f32.partialorder %v1559, 0.3
        %vm1672 = vcmp.gt.f32.partialorder %v1560, 0.3
        %vm1673 = vcmp.gt.f32.partialorder %v1561, 0.3
        %vm1674 = vcmp.gt.f32.partialorder %v1562, 0.3
        %vm1675 = vcmp.gt.f32.partialorder %v1563, 0.3
        %vm1676 = vcmp.gt.f32.partialorder %v1564, 0.3
        %vm1677 = vcmp.gt.f32.partialorder %v1565, 0.3
        %vm1678 = vcmp.gt.f32.partialorder %v1566, 0.3
        %vm1679 = vcmp.gt.f32.partialorder %v1567, 0.3
        %vm1680 = vcmp.gt.f32.partialorder %v1568, 0.3
        %vm1681 = vcmp.gt.f32.partialorder %v1569, 0.3
        %vm1682 = vcmp.gt.f32.partialorder %v1570, 0.3
        %vm1683 = vcmp.gt.f32.partialorder %v1571, 0.3
        %vm1684 = vcmp.gt.f32.partialorder %v1572, 0.3
        %vm1685 = vcmp.gt.f32.partialorder %v1573, 0.3
        %vm1686 = vcmp.gt.f32.partialorder %v1574, 0.3
        %vm1687 = vcmp.gt.f32.partialorder %v1575, 0.3
        %vm1688 = vcmp.gt.f32.partialorder %v1576, 0.3
        %vm1689 = vcmp.gt.f32.partialorder %v1577, 0.3
        %vm1690 = vcmp.gt.f32.partialorder %v1578, 0.3
        %vm1691 = vcmp.gt.f32.partialorder %v1579, 0.3
        %vm1692 = vcmp.gt.f32.partialorder %v1580, 0.3
        %vm1693 = vcmp.gt.f32.partialorder %v1581, 0.3
        %vm1694 = vcmp.gt.f32.partialorder %v1582, 0.3
        %vm1695 = vcmp.gt.f32.partialorder %v1583, 0.3
        %vm1696 = vcmp.gt.f32.partialorder %v1584, 0.3
        %vm1697 = vcmp.gt.f32.partialorder %v1585, 0.3
        %vm1698 = vcmp.gt.f32.partialorder %v1586, 0.3
        %vm1699 = vcmp.gt.f32.partialorder %v1587, 0.3
        %vm1700 = vcmp.gt.f32.partialorder %v1588, 0.3
        %vm1701 = vcmp.gt.f32.partialorder %v1589, 0.3
        %vm1702 = vcmp.gt.f32.partialorder %v1590, 0.3
        %vm1703 = vcmp.gt.f32.partialorder %v1591, 0.3
        %vm1704 = vcmp.gt.f32.partialorder %v1592, 0.3
        %vm1705 = vcmp.gt.f32.partialorder %v1593, 0.3
        %vm1706 = vcmp.gt.f32.partialorder %v1594, 0.3
        %vm1707 = vcmp.gt.f32.partialorder %v1595, 0.3
        %vm1708 = vcmp.gt.f32.partialorder %v1596, 0.3
        %vm1709 = vcmp.gt.f32.partialorder %v1597, 0.3
        %vm1710 = vcmp.gt.f32.partialorder %v1598, 0.3
        %vm1711 = vcmp.gt.f32.partialorder %v1599, 0.3
        %vm1712 = vcmp.gt.f32.partialorder %v1600, 0.3
        %vm1713 = vcmp.gt.f32.partialorder %v1601, 0.3
        %vm1714 = vcmp.gt.f32.partialorder %v1602, 0.3
        %vm1715 = vcmp.gt.f32.partialorder %v1603, 0.3
        %vm1716 = vcmp.gt.f32.partialorder %v1604, 0.3
        %vm1717 = vcmp.gt.f32.partialorder %v1605, 0.3
        %vm1718 = vcmp.gt.f32.partialorder %v1606, 0.3
        %vm1719 = vcmp.gt.f32.partialorder %v1607, 0.3
        %vm1720 = vcmp.gt.f32.partialorder %v1608, 0.3
        %vm1721 = vcmp.gt.f32.partialorder %v1609, 0.3
        %vm1722 = vcmp.gt.f32.partialorder %v1610, 0.3
        %vm1723 = vcmp.gt.f32.partialorder %v1611, 0.3
        %vm1724 = vcmp.gt.f32.partialorder %v1612, 0.3
        %vm1725 = vcmp.gt.f32.partialorder %v1613, 0.3
        %vm1726 = vcmp.gt.f32.partialorder %v1614, 0.3
        %vm1727 = vcmp.gt.f32.partialorder %v1615, 0.3
        %vm1728 = vcmp.gt.f32.partialorder %v1616, 0.3
        %vm1729 = vcmp.gt.f32.partialorder %v1617, 0.3
        %vm1730 = vcmp.gt.f32.partialorder %v1618, 0.3
        %vm1731 = vcmp.gt.f32.partialorder %v1619, 0.3
        %vm1732 = vcmp.gt.f32.partialorder %v1620, 0.3
        %vm1733 = vcmp.gt.f32.partialorder %v1621, 0.3
        %vm1734 = vcmp.gt.f32.partialorder %v1622, 0.3
        %vm1735 = vcmp.gt.f32.partialorder %v1623, 0.3
        %vm1736 = vcmp.gt.f32.partialorder %v1624, 0.3
        %vm1737 = vcmp.gt.f32.partialorder %v1625, 0.3
        %vm1738 = vcmp.gt.f32.partialorder %v1626, 0.3
        %vm1739 = vcmp.gt.f32.partialorder %v1627, 0.3
        %vm1740 = vcmp.gt.f32.partialorder %v1628, 0.3
        %vm1741 = vcmp.gt.f32.partialorder %v1629, 0.3
        %vm1742 = vcmp.gt.f32.partialorder %v1630, 0.3
        %v1743 = vsel %vm1631, 1, 0
        %v1744 = vsel %vm1632, 1, 0
        %v1745 = vsel %vm1633, 1, 0
        %v1746 = vsel %vm1634, 1, 0
        %v1747 = vsel %vm1635, 1, 0
        %v1748 = vsel %vm1636, 1, 0
        %v1749 = vsel %vm1637, 1, 0
        %v1750 = vsel %vm1638, 1, 0
        %v1751 = vsel %vm1639, 1, 0
        %v1752 = vsel %vm1640, 1, 0
        %v1753 = vsel %vm1641, 1, 0
        %v1754 = vsel %vm1642, 1, 0
        %v1755 = vsel %vm1643, 1, 0
        %v1756 = vsel %vm1644, 1, 0
        %v1757 = vsel %vm1645, 1, 0
        %v1758 = vsel %vm1646, 1, 0
        %v1759 = vsel %vm1647, 1, 0
        %v1760 = vsel %vm1648, 1, 0
        %v1761 = vsel %vm1649, 1, 0
        %v1762 = vsel %vm1650, 1, 0
        %v1763 = vsel %vm1651, 1, 0
        %v1764 = vsel %vm1652, 1, 0
        %v1765 = vsel %vm1653, 1, 0
        %v1766 = vsel %vm1654, 1, 0
        %v1767 = vsel %vm1655, 1, 0
        %v1768 = vsel %vm1656, 1, 0
        %v1769 = vsel %vm1657, 1, 0
        %v1770 = vsel %vm1658, 1, 0
        %v1771 = vsel %vm1659, 1, 0
        %v1772 = vsel %vm1660, 1, 0
        %v1773 = vsel %vm1661, 1, 0
        %v1774 = vsel %vm1662, 1, 0
        %v1775 = vsel %vm1663, 1, 0
        %v1776 = vsel %vm1664, 1, 0
        %v1777 = vsel %vm1665, 1, 0
        %v1778 = vsel %vm1666, 1, 0
        %v1779 = vsel %vm1667, 1, 0
        %v1780 = vsel %vm1668, 1, 0
        %v1781 = vsel %vm1669, 1, 0
        %v1782 = vsel %vm1670, 1, 0
        %v1783 = vsel %vm1671, 1, 0
        %v1784 = vsel %vm1672, 1, 0
        %v1785 = vsel %vm1673, 1, 0
        %v1786 = vsel %vm1674, 1, 0
        %v1787 = vsel %vm1675, 1, 0
        %v1788 = vsel %vm1676, 1, 0
        %v1789 = vsel %vm1677, 1, 0
        %v1790 = vsel %vm1678, 1, 0
        %v1791 = vsel %vm1679, 1, 0
        %v1792 = vsel %vm1680, 1, 0
        %v1793 = vsel %vm1681, 1, 0
        %v1794 = vsel %vm1682, 1, 0
        %v1795 = vsel %vm1683, 1, 0
        %v1796 = vsel %vm1684, 1, 0
        %v1797 = vsel %vm1685, 1, 0
        %v1798 = vsel %vm1686, 1, 0
        %v1799 = vsel %vm1687, 1, 0
        %v1800 = vsel %vm1688, 1, 0
        %v1801 = vsel %vm1689, 1, 0
        %v1802 = vsel %vm1690, 1, 0
        %v1803 = vsel %vm1691, 1, 0
        %v1804 = vsel %vm1692, 1, 0
        %v1805 = vsel %vm1693, 1, 0
        %v1806 = vsel %vm1694, 1, 0
        %v1807 = vsel %vm1695, 1, 0
        %v1808 = vsel %vm1696, 1, 0
        %v1809 = vsel %vm1697, 1, 0
        %v1810 = vsel %vm1698, 1, 0
        %v1811 = vsel %vm1699, 1, 0
        %v1812 = vsel %vm1700, 1, 0
        %v1813 = vsel %vm1701, 1, 0
        %v1814 = vsel %vm1702, 1, 0
        %v1815 = vsel %vm1703, 1, 0
        %v1816 = vsel %vm1704, 1, 0
        %v1817 = vsel %vm1705, 1, 0
        %v1818 = vsel %vm1706, 1, 0
        %v1819 = vsel %vm1707, 1, 0
        %v1820 = vsel %vm1708, 1, 0
        %v1821 = vsel %vm1709, 1, 0
        %v1822 = vsel %vm1710, 1, 0
        %v1823 = vsel %vm1711, 1, 0
        %v1824 = vsel %vm1712, 1, 0
        %v1825 = vsel %vm1713, 1, 0
        %v1826 = vsel %vm1714, 1, 0
        %v1827 = vsel %vm1715, 1, 0
        %v1828 = vsel %vm1716, 1, 0
        %v1829 = vsel %vm1717, 1, 0
        %v1830 = vsel %vm1718, 1, 0
        %v1831 = vsel %vm1719, 1, 0
        %v1832 = vsel %vm1720, 1, 0
        %v1833 = vsel %vm1721, 1, 0
        %v1834 = vsel %vm1722, 1, 0
        %v1835 = vsel %vm1723, 1, 0
        %v1836 = vsel %vm1724, 1, 0
        %v1837 = vsel %vm1725, 1, 0
        %v1838 = vsel %vm1726, 1, 0
        %v1839 = vsel %vm1727, 1, 0
        %v1840 = vsel %vm1728, 1, 0
        %v1841 = vsel %vm1729, 1, 0
        %v1842 = vsel %vm1730, 1, 0
        %v1843 = vsel %vm1731, 1, 0
        %v1844 = vsel %vm1732, 1, 0
        %v1845 = vsel %vm1733, 1, 0
        %v1846 = vsel %vm1734, 1, 0
        %v1847 = vsel %vm1735, 1, 0
        %v1848 = vsel %vm1736, 1, 0
        %v1849 = vsel %vm1737, 1, 0
        %v1850 = vsel %vm1738, 1, 0
        %v1851 = vsel %vm1739, 1, 0
        %v1852 = vsel %vm1740, 1, 0
        %v1853 = vsel %vm1741, 1, 0
        %v1854 = vsel %vm1742, 1, 0
        %v1855 = vcvt.s32.f32 %v1743
        %v1856 = vcvt.s32.f32 %v1744
        %v1857 = vcvt.s32.f32 %v1745
        %v1858 = vcvt.s32.f32 %v1746
        %v1859 = vcvt.s32.f32 %v1747
        %v1860 = vcvt.s32.f32 %v1748
        %v1861 = vcvt.s32.f32 %v1749
        %v1862 = vcvt.s32.f32 %v1750
        %v1863 = vcvt.s32.f32 %v1751
        %v1864 = vcvt.s32.f32 %v1752
        %v1865 = vcvt.s32.f32 %v1753
        %v1866 = vcvt.s32.f32 %v1754
        %v1867 = vcvt.s32.f32 %v1755
        %v1868 = vcvt.s32.f32 %v1756
        %v1869 = vcvt.s32.f32 %v1757
        %v1870 = vcvt.s32.f32 %v1758
        %v1871 = vcvt.s32.f32 %v1759
        %v1872 = vcvt.s32.f32 %v1760
        %v1873 = vcvt.s32.f32 %v1761
        %v1874 = vcvt.s32.f32 %v1762
        %v1875 = vcvt.s32.f32 %v1763
        %v1876 = vcvt.s32.f32 %v1764
        %v1877 = vcvt.s32.f32 %v1765
        %v1878 = vcvt.s32.f32 %v1766
        %v1879 = vcvt.s32.f32 %v1767
        %v1880 = vcvt.s32.f32 %v1768
        %v1881 = vcvt.s32.f32 %v1769
        %v1882 = vcvt.s32.f32 %v1770
        %v1883 = vcvt.s32.f32 %v1771
        %v1884 = vcvt.s32.f32 %v1772
        %v1885 = vcvt.s32.f32 %v1773
        %v1886 = vcvt.s32.f32 %v1774
        %v1887 = vcvt.s32.f32 %v1775
        %v1888 = vcvt.s32.f32 %v1776
        %v1889 = vcvt.s32.f32 %v1777
        %v1890 = vcvt.s32.f32 %v1778
        %v1891 = vcvt.s32.f32 %v1779
        %v1892 = vcvt.s32.f32 %v1780
        %v1893 = vcvt.s32.f32 %v1781
        %v1894 = vcvt.s32.f32 %v1782
        %v1895 = vcvt.s32.f32 %v1783
        %v1896 = vcvt.s32.f32 %v1784
        %v1897 = vcvt.s32.f32 %v1785
        %v1898 = vcvt.s32.f32 %v1786
        %v1899 = vcvt.s32.f32 %v1787
        %v1900 = vcvt.s32.f32 %v1788
        %v1901 = vcvt.s32.f32 %v1789
        %v1902 = vcvt.s32.f32 %v1790
        %v1903 = vcvt.s32.f32 %v1791
        %v1904 = vcvt.s32.f32 %v1792
        %v1905 = vcvt.s32.f32 %v1793
        %v1906 = vcvt.s32.f32 %v1794
        %v1907 = vcvt.s32.f32 %v1795
        %v1908 = vcvt.s32.f32 %v1796
        %v1909 = vcvt.s32.f32 %v1797
        %v1910 = vcvt.s32.f32 %v1798
        %v1911 = vcvt.s32.f32 %v1799
        %v1912 = vcvt.s32.f32 %v1800
        %v1913 = vcvt.s32.f32 %v1801
        %v1914 = vcvt.s32.f32 %v1802
        %v1915 = vcvt.s32.f32 %v1803
        %v1916 = vcvt.s32.f32 %v1804
        %v1917 = vcvt.s32.f32 %v1805
        %v1918 = vcvt.s32.f32 %v1806
        %v1919 = vcvt.s32.f32 %v1807
        %v1920 = vcvt.s32.f32 %v1808
        %v1921 = vcvt.s32.f32 %v1809
        %v1922 = vcvt.s32.f32 %v1810
        %v1923 = vcvt.s32.f32 %v1811
        %v1924 = vcvt.s32.f32 %v1812
        %v1925 = vcvt.s32.f32 %v1813
        %v1926 = vcvt.s32.f32 %v1814
        %v1927 = vcvt.s32.f32 %v1815
        %v1928 = vcvt.s32.f32 %v1816
        %v1929 = vcvt.s32.f32 %v1817
        %v1930 = vcvt.s32.f32 %v1818
        %v1931 = vcvt.s32.f32 %v1819
        %v1932 = vcvt.s32.f32 %v1820
        %v1933 = vcvt.s32.f32 %v1821
        %v1934 = vcvt.s32.f32 %v1822
        %v1935 = vcvt.s32.f32 %v1823
        %v1936 = vcvt.s32.f32 %v1824
        %v1937 = vcvt.s32.f32 %v1825
        %v1938 = vcvt.s32.f32 %v1826
        %v1939 = vcvt.s32.f32 %v1827
        %v1940 = vcvt.s32.f32 %v1828
        %v1941 = vcvt.s32.f32 %v1829
        %v1942 = vcvt.s32.f32 %v1830
        %v1943 = vcvt.s32.f32 %v1831
        %v1944 = vcvt.s32.f32 %v1832
        %v1945 = vcvt.s32.f32 %v1833
        %v1946 = vcvt.s32.f32 %v1834
        %v1947 = vcvt.s32.f32 %v1835
        %v1948 = vcvt.s32.f32 %v1836
        %v1949 = vcvt.s32.f32 %v1837
        %v1950 = vcvt.s32.f32 %v1838
        %v1951 = vcvt.s32.f32 %v1839
        %v1952 = vcvt.s32.f32 %v1840
        %v1953 = vcvt.s32.f32 %v1841
        %v1954 = vcvt.s32.f32 %v1842
        %v1955 = vcvt.s32.f32 %v1843
        %v1956 = vcvt.s32.f32 %v1844
        %v1957 = vcvt.s32.f32 %v1845
        %v1958 = vcvt.s32.f32 %v1846
        %v1959 = vcvt.s32.f32 %v1847
        %v1960 = vcvt.s32.f32 %v1848
        %v1961 = vcvt.s32.f32 %v1849
        %v1962 = vcvt.s32.f32 %v1850
        %v1963 = vcvt.s32.f32 %v1851
        %v1964 = vcvt.s32.f32 %v1852
        %v1965 = vcvt.s32.f32 %v1853
        %v1966 = vcvt.s32.f32 %v1854
        %v1967 = vsub.f32 1.0, %v1855
        %v1968 = vsub.f32 1.0, %v1856
        %v1969 = vsub.f32 1.0, %v1857
        %v1970 = vsub.f32 1.0, %v1858
        %v1971 = vsub.f32 1.0, %v1859
        %v1972 = vsub.f32 1.0, %v1860
        %v1973 = vsub.f32 1.0, %v1861
        %v1974 = vsub.f32 1.0, %v1862
        %v1975 = vsub.f32 1.0, %v1863
        %v1976 = vsub.f32 1.0, %v1864
        %v1977 = vsub.f32 1.0, %v1865
        %v1978 = vsub.f32 1.0, %v1866
        %v1979 = vsub.f32 1.0, %v1867
        %v1980 = vsub.f32 1.0, %v1868
        %v1981 = vsub.f32 1.0, %v1869
        %v1982 = vsub.f32 1.0, %v1870
        %v1983 = vsub.f32 1.0, %v1871
        %v1984 = vsub.f32 1.0, %v1872
        %v1985 = vsub.f32 1.0, %v1873
        %v1986 = vsub.f32 1.0, %v1874
        %v1987 = vsub.f32 1.0, %v1875
        %v1988 = vsub.f32 1.0, %v1876
        %v1989 = vsub.f32 1.0, %v1877
        %v1990 = vsub.f32 1.0, %v1878
        %v1991 = vsub.f32 1.0, %v1879
        %v1992 = vsub.f32 1.0, %v1880
        %v1993 = vsub.f32 1.0, %v1881
        %v1994 = vsub.f32 1.0, %v1882
        %v1995 = vsub.f32 1.0, %v1883
        %v1996 = vsub.f32 1.0, %v1884
        %v1997 = vsub.f32 1.0, %v1885
        %v1998 = vsub.f32 1.0, %v1886
        %v1999 = vsub.f32 1.0, %v1887
        %v2000 = vsub.f32 1.0, %v1888
        %v2001 = vsub.f32 1.0, %v1889
        %v2002 = vsub.f32 1.0, %v1890
        %v2003 = vsub.f32 1.0, %v1891
        %v2004 = vsub.f32 1.0, %v1892
        %v2005 = vsub.f32 1.0, %v1893
        %v2006 = vsub.f32 1.0, %v1894
        %v2007 = vsub.f32 1.0, %v1895
        %v2008 = vsub.f32 1.0, %v1896
        %v2009 = vsub.f32 1.0, %v1897
        %v2010 = vsub.f32 1.0, %v1898
        %v2011 = vsub.f32 1.0, %v1899
        %v2012 = vsub.f32 1.0, %v1900
        %v2013 = vsub.f32 1.0, %v1901
        %v2014 = vsub.f32 1.0, %v1902
        %v2015 = vsub.f32 1.0, %v1903
        %v2016 = vsub.f32 1.0, %v1904
        %v2017 = vsub.f32 1.0, %v1905
        %v2018 = vsub.f32 1.0, %v1906
        %v2019 = vsub.f32 1.0, %v1907
        %v2020 = vsub.f32 1.0, %v1908
        %v2021 = vsub.f32 1.0, %v1909
        %v2022 = vsub.f32 1.0, %v1910
        %v2023 = vsub.f32 1.0, %v1911
        %v2024 = vsub.f32 1.0, %v1912
        %v2025 = vsub.f32 1.0, %v1913
        %v2026 = vsub.f32 1.0, %v1914
        %v2027 = vsub.f32 1.0, %v1915
        %v2028 = vsub.f32 1.0, %v1916
        %v2029 = vsub.f32 1.0, %v1917
        %v2030 = vsub.f32 1.0, %v1918
        %v2031 = vsub.f32 1.0, %v1919
        %v2032 = vsub.f32 1.0, %v1920
        %v2033 = vsub.f32 1.0, %v1921
        %v2034 = vsub.f32 1.0, %v1922
        %v2035 = vsub.f32 1.0, %v1923
        %v2036 = vsub.f32 1.0, %v1924
        %v2037 = vsub.f32 1.0, %v1925
        %v2038 = vsub.f32 1.0, %v1926
        %v2039 = vsub.f32 1.0, %v1927
        %v2040 = vsub.f32 1.0, %v1928
        %v2041 = vsub.f32 1.0, %v1929
        %v2042 = vsub.f32 1.0, %v1930
        %v2043 = vsub.f32 1.0, %v1931
        %v2044 = vsub.f32 1.0, %v1932
        %v2045 = vsub.f32 1.0, %v1933
        %v2046 = vsub.f32 1.0, %v1934
        %v2047 = vsub.f32 1.0, %v1935
        %v2048 = vsub.f32 1.0, %v1936
        %v2049 = vsub.f32 1.0, %v1937
        %v2050 = vsub.f32 1.0, %v1938
        %v2051 = vsub.f32 1.0, %v1939
        %v2052 = vsub.f32 1.0, %v1940
        %v2053 = vsub.f32 1.0, %v1941
        %v2054 = vsub.f32 1.0, %v1942
        %v2055 = vsub.f32 1.0, %v1943
        %v2056 = vsub.f32 1.0, %v1944
        %v2057 = vsub.f32 1.0, %v1945
        %v2058 = vsub.f32 1.0, %v1946
        %v2059 = vsub.f32 1.0, %v1947
        %v2060 = vsub.f32 1.0, %v1948
        %v2061 = vsub.f32 1.0, %v1949
        %v2062 = vsub.f32 1.0, %v1950
        %v2063 = vsub.f32 1.0, %v1951
        %v2064 = vsub.f32 1.0, %v1952
        %v2065 = vsub.f32 1.0, %v1953
        %v2066 = vsub.f32 1.0, %v1954
        %v2067 = vsub.f32 1.0, %v1955
        %v2068 = vsub.f32 1.0, %v1956
        %v2069 = vsub.f32 1.0, %v1957
        %v2070 = vsub.f32 1.0, %v1958
        %v2071 = vsub.f32 1.0, %v1959
        %v2072 = vsub.f32 1.0, %v1960
        %v2073 = vsub.f32 1.0, %v1961
        %v2074 = vsub.f32 1.0, %v1962
        %v2075 = vsub.f32 1.0, %v1963
        %v2076 = vsub.f32 1.0, %v1964
        %v2077 = vsub.f32 1.0, %v1965
        %v2078 = vsub.f32 1.0, %v1966
        %v2079 = vmul.f32 %v1967, 0.2
        %v2080 = vmul.f32 %v1968, 0.2
        %v2081 = vmul.f32 %v1969, 0.2
        %v2082 = vmul.f32 %v1970, 0.2
        %v2083 = vmul.f32 %v1971, 0.2
        %v2084 = vmul.f32 %v1972, 0.2
        %v2085 = vmul.f32 %v1973, 0.2
        %v2086 = vmul.f32 %v1974, 0.2
        %v2087 = vmul.f32 %v1975, 0.2
        %v2088 = vmul.f32 %v1976, 0.2
        %v2089 = vmul.f32 %v1977, 0.2
        %v2090 = vmul.f32 %v1978, 0.2
        %v2091 = vmul.f32 %v1979, 0.2
        %v2092 = vmul.f32 %v1980, 0.2
        %v2093 = vmul.f32 %v1981, 0.2
        %v2094 = vmul.f32 %v1982, 0.2
        %v2095 = vmul.f32 %v1983, 0.2
        %v2096 = vmul.f32 %v1984, 0.2
        %v2097 = vmul.f32 %v1985, 0.2
        %v2098 = vmul.f32 %v1986, 0.2
        %v2099 = vmul.f32 %v1987, 0.2
        %v2100 = vmul.f32 %v1988, 0.2
        %v2101 = vmul.f32 %v1989, 0.2
        %v2102 = vmul.f32 %v1990, 0.2
        %v2103 = vmul.f32 %v1991, 0.2
        %v2104 = vmul.f32 %v1992, 0.2
        %v2105 = vmul.f32 %v1993, 0.2
        %v2106 = vmul.f32 %v1994, 0.2
        %v2107 = vmul.f32 %v1995, 0.2
        %v2108 = vmul.f32 %v1996, 0.2
        %v2109 = vmul.f32 %v1997, 0.2
        %v2110 = vmul.f32 %v1998, 0.2
        %v2111 = vmul.f32 %v1999, 0.2
        %v2112 = vmul.f32 %v2000, 0.2
        %v2113 = vmul.f32 %v2001, 0.2
        %v2114 = vmul.f32 %v2002, 0.2
        %v2115 = vmul.f32 %v2003, 0.2
        %v2116 = vmul.f32 %v2004, 0.2
        %v2117 = vmul.f32 %v2005, 0.2
        %v2118 = vmul.f32 %v2006, 0.2
        %v2119 = vmul.f32 %v2007, 0.2
        %v2120 = vmul.f32 %v2008, 0.2
        %v2121 = vmul.f32 %v2009, 0.2
        %v2122 = vmul.f32 %v2010, 0.2
        %v2123 = vmul.f32 %v2011, 0.2
        %v2124 = vmul.f32 %v2012, 0.2
        %v2125 = vmul.f32 %v2013, 0.2
        %v2126 = vmul.f32 %v2014, 0.2
        %v2127 = vmul.f32 %v2015, 0.2
        %v2128 = vmul.f32 %v2016, 0.2
        %v2129 = vmul.f32 %v2017, 0.2
        %v2130 = vmul.f32 %v2018, 0.2
        %v2131 = vmul.f32 %v2019, 0.2
        %v2132 = vmul.f32 %v2020, 0.2
        %v2133 = vmul.f32 %v2021, 0.2
        %v2134 = vmul.f32 %v2022, 0.2
        %v2135 = vmul.f32 %v2023, 0.2
        %v2136 = vmul.f32 %v2024, 0.2
        %v2137 = vmul.f32 %v2025, 0.2
        %v2138 = vmul.f32 %v2026, 0.2
        %v2139 = vmul.f32 %v2027, 0.2
        %v2140 = vmul.f32 %v2028, 0.2
        %v2141 = vmul.f32 %v2029, 0.2
        %v2142 = vmul.f32 %v2030, 0.2
        %v2143 = vmul.f32 %v2031, 0.2
        %v2144 = vmul.f32 %v2032, 0.2
        %v2145 = vmul.f32 %v2033, 0.2
        %v2146 = vmul.f32 %v2034, 0.2
        %v2147 = vmul.f32 %v2035, 0.2
        %v2148 = vmul.f32 %v2036, 0.2
        %v2149 = vmul.f32 %v2037, 0.2
        %v2150 = vmul.f32 %v2038, 0.2
        %v2151 = vmul.f32 %v2039, 0.2
        %v2152 = vmul.f32 %v2040, 0.2
        %v2153 = vmul.f32 %v2041, 0.2
        %v2154 = vmul.f32 %v2042, 0.2
        %v2155 = vmul.f32 %v2043, 0.2
        %v2156 = vmul.f32 %v2044, 0.2
        %v2157 = vmul.f32 %v2045, 0.2
        %v2158 = vmul.f32 %v2046, 0.2
        %v2159 = vmul.f32 %v2047, 0.2
        %v2160 = vmul.f32 %v2048, 0.2
        %v2161 = vmul.f32 %v2049, 0.2
        %v2162 = vmul.f32 %v2050, 0.2
        %v2163 = vmul.f32 %v2051, 0.2
        %v2164 = vmul.f32 %v2052, 0.2
        %v2165 = vmul.f32 %v2053, 0.2
        %v2166 = vmul.f32 %v2054, 0.2
        %v2167 = vmul.f32 %v2055, 0.2
        %v2168 = vmul.f32 %v2056, 0.2
        %v2169 = vmul.f32 %v2057, 0.2
        %v2170 = vmul.f32 %v2058, 0.2
        %v2171 = vmul.f32 %v2059, 0.2
        %v2172 = vmul.f32 %v2060, 0.2
        %v2173 = vmul.f32 %v2061, 0.2
        %v2174 = vmul.f32 %v2062, 0.2
        %v2175 = vmul.f32 %v2063, 0.2
        %v2176 = vmul.f32 %v2064, 0.2
        %v2177 = vmul.f32 %v2065, 0.2
        %v2178 = vmul.f32 %v2066, 0.2
        %v2179 = vmul.f32 %v2067, 0.2
        %v2180 = vmul.f32 %v2068, 0.2
        %v2181 = vmul.f32 %v2069, 0.2
        %v2182 = vmul.f32 %v2070, 0.2
        %v2183 = vmul.f32 %v2071, 0.2
        %v2184 = vmul.f32 %v2072, 0.2
        %v2185 = vmul.f32 %v2073, 0.2
        %v2186 = vmul.f32 %v2074, 0.2
        %v2187 = vmul.f32 %v2075, 0.2
        %v2188 = vmul.f32 %v2076, 0.2
        %v2189 = vmul.f32 %v2077, 0.2
        %v2190 = vmul.f32 %v2078, 0.2
        %v2191 = vmul.f32 %v1519, %v2079
        %v2192 = vmul.f32 %v1520, %v2080
        %v2193 = vmul.f32 %v1521, %v2081
        %v2194 = vmul.f32 %v1522, %v2082
        %v2195 = vmul.f32 %v1523, %v2083
        %v2196 = vmul.f32 %v1524, %v2084
        %v2197 = vmul.f32 %v1525, %v2085
        %v2198 = vmul.f32 %v1526, %v2086
        %v2199 = vmul.f32 %v1527, %v2087
        %v2200 = vmul.f32 %v1528, %v2088
        %v2201 = vmul.f32 %v1529, %v2089
        %v2202 = vmul.f32 %v1530, %v2090
        %v2203 = vmul.f32 %v1531, %v2091
        %v2204 = vmul.f32 %v1532, %v2092
        %v2205 = vmul.f32 %v1533, %v2093
        %v2206 = vmul.f32 %v1534, %v2094
        %v2207 = vmul.f32 %v1535, %v2095
        %v2208 = vmul.f32 %v1536, %v2096
        %v2209 = vmul.f32 %v1537, %v2097
        %v2210 = vmul.f32 %v1538, %v2098
        %v2211 = vmul.f32 %v1539, %v2099
        %v2212 = vmul.f32 %v1540, %v2100
        %v2213 = vmul.f32 %v1541, %v2101
        %v2214 = vmul.f32 %v1542, %v2102
        %v2215 = vmul.f32 %v1543, %v2103
        %v2216 = vmul.f32 %v1544, %v2104
        %v2217 = vmul.f32 %v1545, %v2105
        %v2218 = vmul.f32 %v1546, %v2106
        %v2219 = vmul.f32 %v1547, %v2107
        %v2220 = vmul.f32 %v1548, %v2108
        %v2221 = vmul.f32 %v1549, %v2109
        %v2222 = vmul.f32 %v1550, %v2110
        %v2223 = vmul.f32 %v1551, %v2111
        %v2224 = vmul.f32 %v1552, %v2112
        %v2225 = vmul.f32 %v1553, %v2113
        %v2226 = vmul.f32 %v1554, %v2114
        %v2227 = vmul.f32 %v1555, %v2115
        %v2228 = vmul.f32 %v1556, %v2116
        %v2229 = vmul.f32 %v1557, %v2117
        %v2230 = vmul.f32 %v1558, %v2118
        %v2231 = vmul.f32 %v1559, %v2119
        %v2232 = vmul.f32 %v1560, %v2120
        %v2233 = vmul.f32 %v1561, %v2121
        %v2234 = vmul.f32 %v1562, %v2122
        %v2235 = vmul.f32 %v1563, %v2123
        %v2236 = vmul.f32 %v1564, %v2124
        %v2237 = vmul.f32 %v1565, %v2125
        %v2238 = vmul.f32 %v1566, %v2126
        %v2239 = vmul.f32 %v1567, %v2127
        %v2240 = vmul.f32 %v1568, %v2128
        %v2241 = vmul.f32 %v1569, %v2129
        %v2242 = vmul.f32 %v1570, %v2130
        %v2243 = vmul.f32 %v1571, %v2131
        %v2244 = vmul.f32 %v1572, %v2132
        %v2245 = vmul.f32 %v1573, %v2133
        %v2246 = vmul.f32 %v1574, %v2134
        %v2247 = vmul.f32 %v1575, %v2135
        %v2248 = vmul.f32 %v1576, %v2136
        %v2249 = vmul.f32 %v1577, %v2137
        %v2250 = vmul.f32 %v1578, %v2138
        %v2251 = vmul.f32 %v1579, %v2139
        %v2252 = vmul.f32 %v1580, %v2140
        %v2253 = vmul.f32 %v1581, %v2141
        %v2254 = vmul.f32 %v1582, %v2142
        %v2255 = vmul.f32 %v1583, %v2143
        %v2256 = vmul.f32 %v1584, %v2144
        %v2257 = vmul.f32 %v1585, %v2145
        %v2258 = vmul.f32 %v1586, %v2146
        %v2259 = vmul.f32 %v1587, %v2147
        %v2260 = vmul.f32 %v1588, %v2148
        %v2261 = vmul.f32 %v1589, %v2149
        %v2262 = vmul.f32 %v1590, %v2150
        %v2263 = vmul.f32 %v1591, %v2151
        %v2264 = vmul.f32 %v1592, %v2152
        %v2265 = vmul.f32 %v1593, %v2153
        %v2266 = vmul.f32 %v1594, %v2154
        %v2267 = vmul.f32 %v1595, %v2155
        %v2268 = vmul.f32 %v1596, %v2156
        %v2269 = vmul.f32 %v1597, %v2157
        %v2270 = vmul.f32 %v1598, %v2158
        %v2271 = vmul.f32 %v1599, %v2159
        %v2272 = vmul.f32 %v1600, %v2160
        %v2273 = vmul.f32 %v1601, %v2161
        %v2274 = vmul.f32 %v1602, %v2162
        %v2275 = vmul.f32 %v1603, %v2163
        %v2276 = vmul.f32 %v1604, %v2164
        %v2277 = vmul.f32 %v1605, %v2165
        %v2278 = vmul.f32 %v1606, %v2166
        %v2279 = vmul.f32 %v1607, %v2167
        %v2280 = vmul.f32 %v1608, %v2168
        %v2281 = vmul.f32 %v1609, %v2169
        %v2282 = vmul.f32 %v1610, %v2170
        %v2283 = vmul.f32 %v1611, %v2171
        %v2284 = vmul.f32 %v1612, %v2172
        %v2285 = vmul.f32 %v1613, %v2173
        %v2286 = vmul.f32 %v1614, %v2174
        %v2287 = vmul.f32 %v1615, %v2175
        %v2288 = vmul.f32 %v1616, %v2176
        %v2289 = vmul.f32 %v1617, %v2177
        %v2290 = vmul.f32 %v1618, %v2178
        %v2291 = vmul.f32 %v1619, %v2179
        %v2292 = vmul.f32 %v1620, %v2180
        %v2293 = vmul.f32 %v1621, %v2181
        %v2294 = vmul.f32 %v1622, %v2182
        %v2295 = vmul.f32 %v1623, %v2183
        %v2296 = vmul.f32 %v1624, %v2184
        %v2297 = vmul.f32 %v1625, %v2185
        %v2298 = vmul.f32 %v1626, %v2186
        %v2299 = vmul.f32 %v1627, %v2187
        %v2300 = vmul.f32 %v1628, %v2188
        %v2301 = vmul.f32 %v1629, %v2189
        %v2302 = vmul.f32 %v1630, %v2190
        %v2303 = vadd.f32 %v2191, %v1118
        %v2304 = vadd.f32 %v2192, %v1120
        %v2305 = vadd.f32 %v2193, %v1231
        %v2306 = vadd.f32 %v2194, %v1233
        %v2307 = vadd.f32 %v2195, %v1344
        %v2308 = vadd.f32 %v2196, %v1346
        %v2309 = vadd.f32 %v2197, %v1457
        %v2310 = vadd.f32 %v2198, %v1122
        %v2311 = vadd.f32 %v2199, %v1124
        %v2312 = vadd.f32 %v2200, %v1235
        %v2313 = vadd.f32 %v2201, %v1237
        %v2314 = vadd.f32 %v2202, %v1348
        %v2315 = vadd.f32 %v2203, %v1350
        %v2316 = vadd.f32 %v2204, %v1460
        %v2317 = vadd.f32 %v2205, %v1128
        %v2318 = vadd.f32 %v2206, %v1130
        %v2319 = vadd.f32 %v2207, %v1241
        %v2320 = vadd.f32 %v2208, %v1243
        %v2321 = vadd.f32 %v2209, %v1354
        %v2322 = vadd.f32 %v2210, %v1356
        %v2323 = vadd.f32 %v2211, %v1465
        %v2324 = vadd.f32 %v2212, %v1132
        %v2325 = vadd.f32 %v2213, %v1134
        %v2326 = vadd.f32 %v2214, %v1245
        %v2327 = vadd.f32 %v2215, %v1247
        %v2328 = vadd.f32 %v2216, %v1358
        %v2329 = vadd.f32 %v2217, %v1360
        %v2330 = vadd.f32 %v2218, %v1468
        %v2331 = vadd.f32 %v2219, %v1138
        %v2332 = vadd.f32 %v2220, %v1140
        %v2333 = vadd.f32 %v2221, %v1251
        %v2334 = vadd.f32 %v2222, %v1253
        %v2335 = vadd.f32 %v2223, %v1364
        %v2336 = vadd.f32 %v2224, %v1366
        %v2337 = vadd.f32 %v2225, %v1473
        %v2338 = vadd.f32 %v2226, %v1142
        %v2339 = vadd.f32 %v2227, %v1144
        %v2340 = vadd.f32 %v2228, %v1255
        %v2341 = vadd.f32 %v2229, %v1257
        %v2342 = vadd.f32 %v2230, %v1368
        %v2343 = vadd.f32 %v2231, %v1370
        %v2344 = vadd.f32 %v2232, %v1476
        %v2345 = vadd.f32 %v2233, %v1148
        %v2346 = vadd.f32 %v2234, %v1150
        %v2347 = vadd.f32 %v2235, %v1261
        %v2348 = vadd.f32 %v2236, %v1263
        %v2349 = vadd.f32 %v2237, %v1374
        %v2350 = vadd.f32 %v2238, %v1376
        %v2351 = vadd.f32 %v2239, %v1481
        %v2352 = vadd.f32 %v2240, %v1152
        %v2353 = vadd.f32 %v2241, %v1154
        %v2354 = vadd.f32 %v2242, %v1265
        %v2355 = vadd.f32 %v2243, %v1267
        %v2356 = vadd.f32 %v2244, %v1378
        %v2357 = vadd.f32 %v2245, %v1380
        %v2358 = vadd.f32 %v2246, %v1484
        %v2359 = vadd.f32 %v2247, %v1158
        %v2360 = vadd.f32 %v2248, %v1160
        %v2361 = vadd.f32 %v2249, %v1271
        %v2362 = vadd.f32 %v2250, %v1273
        %v2363 = vadd.f32 %v2251, %v1384
        %v2364 = vadd.f32 %v2252, %v1386
        %v2365 = vadd.f32 %v2253, %v1489
        %v2366 = vadd.f32 %v2254, %v1162
        %v2367 = vadd.f32 %v2255, %v1164
        %v2368 = vadd.f32 %v2256, %v1275
        %v2369 = vadd.f32 %v2257, %v1277
        %v2370 = vadd.f32 %v2258, %v1388
        %v2371 = vadd.f32 %v2259, %v1390
        %v2372 = vadd.f32 %v2260, %v1492
        %v2373 = vadd.f32 %v2261, %v1168
        %v2374 = vadd.f32 %v2262, %v1170
        %v2375 = vadd.f32 %v2263, %v1281
        %v2376 = vadd.f32 %v2264, %v1283
        %v2377 = vadd.f32 %v2265, %v1394
        %v2378 = vadd.f32 %v2266, %v1396
        %v2379 = vadd.f32 %v2267, %v1497
        %v2380 = vadd.f32 %v2268, %v1172
        %v2381 = vadd.f32 %v2269, %v1174
        %v2382 = vadd.f32 %v2270, %v1285
        %v2383 = vadd.f32 %v2271, %v1287
        %v2384 = vadd.f32 %v2272, %v1398
        %v2385 = vadd.f32 %v2273, %v1400
        %v2386 = vadd.f32 %v2274, %v1500
        %v2387 = vadd.f32 %v2275, %v1178
        %v2388 = vadd.f32 %v2276, %v1180
        %v2389 = vadd.f32 %v2277, %v1291
        %v2390 = vadd.f32 %v2278, %v1293
        %v2391 = vadd.f32 %v2279, %v1404
        %v2392 = vadd.f32 %v2280, %v1406
        %v2393 = vadd.f32 %v2281, %v1505
        %v2394 = vadd.f32 %v2282, %v1182
        %v2395 = vadd.f32 %v2283, %v1184
        %v2396 = vadd.f32 %v2284, %v1295
        %v2397 = vadd.f32 %v2285, %v1297
        %v2398 = vadd.f32 %v2286, %v1408
        %v2399 = vadd.f32 %v2287, %v1410
        %v2400 = vadd.f32 %v2288, %v1508
        %v2401 = vadd.f32 %v2289, %v1188
        %v2402 = vadd.f32 %v2290, %v1190
        %v2403 = vadd.f32 %v2291, %v1301
        %v2404 = vadd.f32 %v2292, %v1303
        %v2405 = vadd.f32 %v2293, %v1414
        %v2406 = vadd.f32 %v2294, %v1416
        %v2407 = vadd.f32 %v2295, %v1513
        %v2408 = vadd.f32 %v2296, %v1192
        %v2409 = vadd.f32 %v2297, %v1194
        %v2410 = vadd.f32 %v2298, %v1305
        %v2411 = vadd.f32 %v2299, %v1307
        %v2412 = vadd.f32 %v2300, %v1418
        %v2413 = vadd.f32 %v2301, %v1420
        %v2414 = vadd.f32 %v2302, %v1516
        %2415 = vst [vmem:[#allocation2] sm:$0xff] %v2303
        %2416 = vst [vmem:[#allocation2 + $0x8] sm:$0xff] %v2304
        %2417 = vst [vmem:[#allocation2 + $0x10] sm:$0xff] %v2305
        %2418 = vst [vmem:[#allocation2 + $0x18] sm:$0xff] %v2306
        %2419 = vst [vmem:[#allocation2 + $0x20] sm:$0xff] %v2307
        %2420 = vst [vmem:[#allocation2 + $0x28] sm:$0xff] %v2308
        %2421 = vst [vmem:[#allocation2 + $0x30] sm:$0xff] %v2309
        %2422 = vst [vmem:[#allocation2 + $0x38] sm:$0xff] %v2310
        %2423 = vst [vmem:[#allocation2 + $0x40] sm:$0xff] %v2311
        %2424 = vst [vmem:[#allocation2 + $0x48] sm:$0xff] %v2312
        %2425 = vst [vmem:[#allocation2 + $0x50] sm:$0xff] %v2313
        %2426 = vst [vmem:[#allocation2 + $0x58] sm:$0xff] %v2314
        %2427 = vst [vmem:[#allocation2 + $0x60] sm:$0xff] %v2315
        %2428 = vst [vmem:[#allocation2 + $0x68] sm:$0xff] %v2316
        %2429 = vst [vmem:[#allocation2 + $0x70] sm:$0xff] %v2317
        %2430 = vst [vmem:[#allocation2 + $0x78] sm:$0xff] %v2318
        %2431 = vst [vmem:[#allocation2 + $0x80] sm:$0xff] %v2319
        %2432 = vst [vmem:[#allocation2 + $0x88] sm:$0xff] %v2320
        %2433 = vst [vmem:[#allocation2 + $0x90] sm:$0xff] %v2321
        %2434 = vst [vmem:[#allocation2 + $0x98] sm:$0xff] %v2322
        %2435 = vst [vmem:[#allocation2 + $0xa0] sm:$0xff] %v2323
        %2436 = vst [vmem:[#allocation2 + $0xa8] sm:$0xff] %v2324
        %2437 = vst [vmem:[#allocation2 + $0xb0] sm:$0xff] %v2325
        %2438 = vst [vmem:[#allocation2 + $0xb8] sm:$0xff] %v2326
        %2439 = vst [vmem:[#allocation2 + $0xc0] sm:$0xff] %v2327
        %2440 = vst [vmem:[#allocation2 + $0xc8] sm:$0xff] %v2328
        %2441 = vst [vmem:[#allocation2 + $0xd0] sm:$0xff] %v2329
        %2442 = vst [vmem:[#allocation2 + $0xd8] sm:$0xff] %v2330
        %2443 = vst [vmem:[#allocation2 + $0xe0] sm:$0xff] %v2331
        %2444 = vst [vmem:[#allocation2 + $0xe8] sm:$0xff] %v2332
        %2445 = vst [vmem:[#allocation2 + $0xf0] sm:$0xff] %v2333
        %2446 = vst [vmem:[#allocation2 + $0xf8] sm:$0xff] %v2334
        %2447 = vst [vmem:[#allocation2 + $0x100] sm:$0xff] %v2335
        %2448 = vst [vmem:[#allocation2 + $0x108] sm:$0xff] %v2336
        %2449 = vst [vmem:[#allocation2 + $0x110] sm:$0xff] %v2337
        %2450 = vst [vmem:[#allocation2 + $0x118] sm:$0xff] %v2338
        %2451 = vst [vmem:[#allocation2 + $0x120] sm:$0xff] %v2339
        %2452 = vst [vmem:[#allocation2 + $0x128] sm:$0xff] %v2340
        %2453 = vst [vmem:[#allocation2 + $0x130] sm:$0xff] %v2341
        %2454 = vst [vmem:[#allocation2 + $0x138] sm:$0xff] %v2342
        %2455 = vst [vmem:[#allocation2 + $0x140] sm:$0xff] %v2343
        %2456 = vst [vmem:[#allocation2 + $0x148] sm:$0xff] %v2344
        %2457 = vst [vmem:[#allocation2 + $0x150] sm:$0xff] %v2345
        %2458 = vst [vmem:[#allocation2 + $0x158] sm:$0xff] %v2346
        %2459 = vst [vmem:[#allocation2 + $0x160] sm:$0xff] %v2347
        %2460 = vst [vmem:[#allocation2 + $0x168] sm:$0xff] %v2348
        %2461 = vst [vmem:[#allocation2 + $0x170] sm:$0xff] %v2349
        %2462 = vst [vmem:[#allocation2 + $0x178] sm:$0xff] %v2350
        %2463 = vst [vmem:[#allocation2 + $0x180] sm:$0xff] %v2351
        %2464 = vst [vmem:[#allocation2 + $0x188] sm:$0xff] %v2352
        %2465 = vst [vmem:[#allocation2 + $0x190] sm:$0xff] %v2353
        %2466 = vst [vmem:[#allocation2 + $0x198] sm:$0xff] %v2354
        %2467 = vst [vmem:[#allocation2 + $0x1a0] sm:$0xff] %v2355
        %2468 = vst [vmem:[#allocation2 + $0x1a8] sm:$0xff] %v2356
        %2469 = vst [vmem:[#allocation2 + $0x1b0] sm:$0xff] %v2357
        %2470 = vst [vmem:[#allocation2 + $0x1b8] sm:$0xff] %v2358
        %2471 = vst [vmem:[#allocation2 + $0x1c0] sm:$0xff] %v2359
        %2472 = vst [vmem:[#allocation2 + $0x1c8] sm:$0xff] %v2360
        %2473 = vst [vmem:[#allocation2 + $0x1d0] sm:$0xff] %v2361
        %2474 = vst [vmem:[#allocation2 + $0x1d8] sm:$0xff] %v2362
        %2475 = vst [vmem:[#allocation2 + $0x1e0] sm:$0xff] %v2363
        %2476 = vst [vmem:[#allocation2 + $0x1e8] sm:$0xff] %v2364
        %2477 = vst [vmem:[#allocation2 + $0x1f0] sm:$0xff] %v2365
        %2478 = vst [vmem:[#allocation2 + $0x1f8] sm:$0xff] %v2366
        %2479 = vst [vmem:[#allocation2 + $0x200] sm:$0xff] %v2367
        %2480 = vst [vmem:[#allocation2 + $0x208] sm:$0xff] %v2368
        %2481 = vst [vmem:[#allocation2 + $0x210] sm:$0xff] %v2369
        %2482 = vst [vmem:[#allocation2 + $0x218] sm:$0xff] %v2370
        %2483 = vst [vmem:[#allocation2 + $0x220] sm:$0xff] %v2371
        %2484 = vst [vmem:[#allocation2 + $0x228] sm:$0xff] %v2372
        %2485 = vst [vmem:[#allocation2 + $0x230] sm:$0xff] %v2373
        %2486 = vst [vmem:[#allocation2 + $0x238] sm:$0xff] %v2374
        %2487 = vst [vmem:[#allocation2 + $0x240] sm:$0xff] %v2375
        %2488 = vst [vmem:[#allocation2 + $0x248] sm:$0xff] %v2376
        %2489 = vst [vmem:[#allocation2 + $0x250] sm:$0xff] %v2377
        %2490 = vst [vmem:[#allocation2 + $0x258] sm:$0xff] %v2378
        %2491 = vst [vmem:[#allocation2 + $0x260] sm:$0xff] %v2379
        %2492 = vst [vmem:[#allocation2 + $0x268] sm:$0xff] %v2380
        %2493 = vst [vmem:[#allocation2 + $0x270] sm:$0xff] %v2381
        %2494 = vst [vmem:[#allocation2 + $0x278] sm:$0xff] %v2382
        %2495 = vst [vmem:[#allocation2 + $0x280] sm:$0xff] %v2383
        %2496 = vst [vmem:[#allocation2 + $0x288] sm:$0xff] %v2384
        %2497 = vst [vmem:[#allocation2 + $0x290] sm:$0xff] %v2385
        %2498 = vst [vmem:[#allocation2 + $0x298] sm:$0xff] %v2386
        %2499 = vst [vmem:[#allocation2 + $0x2a0] sm:$0xff] %v2387
        %2500 = vst [vmem:[#allocation2 + $0x2a8] sm:$0xff] %v2388
        %2501 = vst [vmem:[#allocation2 + $0x2b0] sm:$0xff] %v2389
        %2502 = vst [vmem:[#allocation2 + $0x2b8] sm:$0xff] %v2390
        %2503 = vst [vmem:[#allocation2 + $0x2c0] sm:$0xff] %v2391
        %2504 = vst [vmem:[#allocation2 + $0x2c8] sm:$0xff] %v2392
        %2505 = vst [vmem:[#allocation2 + $0x2d0] sm:$0xff] %v2393
        %2506 = vst [vmem:[#allocation2 + $0x2d8] sm:$0xff] %v2394
        %2507 = vst [vmem:[#allocation2 + $0x2e0] sm:$0xff] %v2395
        %2508 = vst [vmem:[#allocation2 + $0x2e8] sm:$0xff] %v2396
        %2509 = vst [vmem:[#allocation2 + $0x2f0] sm:$0xff] %v2397
        %2510 = vst [vmem:[#allocation2 + $0x2f8] sm:$0xff] %v2398
        %2511 = vst [vmem:[#allocation2 + $0x300] sm:$0xff] %v2399
        %2512 = vst [vmem:[#allocation2 + $0x308] sm:$0xff] %v2400
        %2513 = vst [vmem:[#allocation2 + $0x310] sm:$0xff] %v2401
        %2514 = vst [vmem:[#allocation2 + $0x318] sm:$0xff] %v2402
        %2515 = vst [vmem:[#allocation2 + $0x320] sm:$0xff] %v2403
        %2516 = vst [vmem:[#allocation2 + $0x328] sm:$0xff] %v2404
        %2517 = vst [vmem:[#allocation2 + $0x330] sm:$0xff] %v2405
        %2518 = vst [vmem:[#allocation2 + $0x338] sm:$0xff] %v2406
        %2519 = vst [vmem:[#allocation2 + $0x340] sm:$0xff] %v2407
        %2520 = vst [vmem:[#allocation2 + $0x348] sm:$0xff] %v2408
        %2521 = vst [vmem:[#allocation2 + $0x350] sm:$0xff] %v2409
        %2522 = vst [vmem:[#allocation2 + $0x358] sm:$0xff] %v2410
        %2523 = vst [vmem:[#allocation2 + $0x360] sm:$0xff] %v2411
        %2524 = vst [vmem:[#allocation2 + $0x368] sm:$0xff] %v2412
        %2525 = vst [vmem:[#allocation2 + $0x370] sm:$0xff] %v2413
        %2526 = vst [vmem:[#allocation2 + $0x378] sm:$0xff] %v2414
        %vm2527 = vcmp.gt.f32.partialorder %v2303, 0.3
        %vm2528 = vcmp.gt.f32.partialorder %v2304, 0.3
        %vm2529 = vcmp.gt.f32.partialorder %v2305, 0.3
        %vm2530 = vcmp.gt.f32.partialorder %v2306, 0.3
        %vm2531 = vcmp.gt.f32.partialorder %v2307, 0.3
        %vm2532 = vcmp.gt.f32.partialorder %v2308, 0.3
        %vm2533 = vcmp.gt.f32.partialorder %v2309, 0.3
        %vm2534 = vcmp.gt.f32.partialorder %v2310, 0.3
        %vm2535 = vcmp.gt.f32.partialorder %v2311, 0.3
        %vm2536 = vcmp.gt.f32.partialorder %v2312, 0.3
        %vm2537 = vcmp.gt.f32.partialorder %v2313, 0.3
        %vm2538 = vcmp.gt.f32.partialorder %v2314, 0.3
        %vm2539 = vcmp.gt.f32.partialorder %v2315, 0.3
        %vm2540 = vcmp.gt.f32.partialorder %v2316, 0.3
        %vm2541 = vcmp.gt.f32.partialorder %v2317, 0.3
        %vm2542 = vcmp.gt.f32.partialorder %v2318, 0.3
        %vm2543 = vcmp.gt.f32.partialorder %v2319, 0.3
        %vm2544 = vcmp.gt.f32.partialorder %v2320, 0.3
        %vm2545 = vcmp.gt.f32.partialorder %v2321, 0.3
        %vm2546 = vcmp.gt.f32.partialorder %v2322, 0.3
        %vm2547 = vcmp.gt.f32.partialorder %v2323, 0.3
        %vm2548 = vcmp.gt.f32.partialorder %v2324, 0.3
        %vm2549 = vcmp.gt.f32.partialorder %v2325, 0.3
        %vm2550 = vcmp.gt.f32.partialorder %v2326, 0.3
        %vm2551 = vcmp.gt.f32.partialorder %v2327, 0.3
        %vm2552 = vcmp.gt.f32.partialorder %v2328, 0.3
        %vm2553 = vcmp.gt.f32.partialorder %v2329, 0.3
        %vm2554 = vcmp.gt.f32.partialorder %v2330, 0.3
        %vm2555 = vcmp.gt.f32.partialorder %v2331, 0.3
        %vm2556 = vcmp.gt.f32.partialorder %v2332, 0.3
        %vm2557 = vcmp.gt.f32.partialorder %v2333, 0.3
        %vm2558 = vcmp.gt.f32.partialorder %v2334, 0.3
        %vm2559 = vcmp.gt.f32.partialorder %v2335, 0.3
        %vm2560 = vcmp.gt.f32.partialorder %v2336, 0.3
        %vm2561 = vcmp.gt.f32.partialorder %v2337, 0.3
        %vm2562 = vcmp.gt.f32.partialorder %v2338, 0.3
        %vm2563 = vcmp.gt.f32.partialorder %v2339, 0.3
        %vm2564 = vcmp.gt.f32.partialorder %v2340, 0.3
        %vm2565 = vcmp.gt.f32.partialorder %v2341, 0.3
        %vm2566 = vcmp.gt.f32.partialorder %v2342, 0.3
        %vm2567 = vcmp.gt.f32.partialorder %v2343, 0.3
        %vm2568 = vcmp.gt.f32.partialorder %v2344, 0.3
        %vm2569 = vcmp.gt.f32.partialorder %v2345, 0.3
        %vm2570 = vcmp.gt.f32.partialorder %v2346, 0.3
        %vm2571 = vcmp.gt.f32.partialorder %v2347, 0.3
        %vm2572 = vcmp.gt.f32.partialorder %v2348, 0.3
        %vm2573 = vcmp.gt.f32.partialorder %v2349, 0.3
        %vm2574 = vcmp.gt.f32.partialorder %v2350, 0.3
        %vm2575 = vcmp.gt.f32.partialorder %v2351, 0.3
        %vm2576 = vcmp.gt.f32.partialorder %v2352, 0.3
        %vm2577 = vcmp.gt.f32.partialorder %v2353, 0.3
        %vm2578 = vcmp.gt.f32.partialorder %v2354, 0.3
        %vm2579 = vcmp.gt.f32.partialorder %v2355, 0.3
        %vm2580 = vcmp.gt.f32.partialorder %v2356, 0.3
        %vm2581 = vcmp.gt.f32.partialorder %v2357, 0.3
        %vm2582 = vcmp.gt.f32.partialorder %v2358, 0.3
        %vm2583 = vcmp.gt.f32.partialorder %v2359, 0.3
        %vm2584 = vcmp.gt.f32.partialorder %v2360, 0.3
        %vm2585 = vcmp.gt.f32.partialorder %v2361, 0.3
        %vm2586 = vcmp.gt.f32.partialorder %v2362, 0.3
        %vm2587 = vcmp.gt.f32.partialorder %v2363, 0.3
        %vm2588 = vcmp.gt.f32.partialorder %v2364, 0.3
        %vm2589 = vcmp.gt.f32.partialorder %v2365, 0.3
        %vm2590 = vcmp.gt.f32.partialorder %v2366, 0.3
        %vm2591 = vcmp.gt.f32.partialorder %v2367, 0.3
        %vm2592 = vcmp.gt.f32.partialorder %v2368, 0.3
        %vm2593 = vcmp.gt.f32.partialorder %v2369, 0.3
        %vm2594 = vcmp.gt.f32.partialorder %v2370, 0.3
        %vm2595 = vcmp.gt.f32.partialorder %v2371, 0.3
        %vm2596 = vcmp.gt.f32.partialorder %v2372, 0.3
        %vm2597 = vcmp.gt.f32.partialorder %v2373, 0.3
        %vm2598 = vcmp.gt.f32.partialorder %v2374, 0.3
        %vm2599 = vcmp.gt.f32.partialorder %v2375, 0.3
        %vm2600 = vcmp.gt.f32.partialorder %v2376, 0.3
        %vm2601 = vcmp.gt.f32.partialorder %v2377, 0.3
        %vm2602 = vcmp.gt.f32.partialorder %v2378, 0.3
        %vm2603 = vcmp.gt.f32.partialorder %v2379, 0.3
        %vm2604 = vcmp.gt.f32.partialorder %v2380, 0.3
        %vm2605 = vcmp.gt.f32.partialorder %v2381, 0.3
        %vm2606 = vcmp.gt.f32.partialorder %v2382, 0.3
        %vm2607 = vcmp.gt.f32.partialorder %v2383, 0.3
        %vm2608 = vcmp.gt.f32.partialorder %v2384, 0.3
        %vm2609 = vcmp.gt.f32.partialorder %v2385, 0.3
        %vm2610 = vcmp.gt.f32.partialorder %v2386, 0.3
        %vm2611 = vcmp.gt.f32.partialorder %v2387, 0.3
        %vm2612 = vcmp.gt.f32.partialorder %v2388, 0.3
        %vm2613 = vcmp.gt.f32.partialorder %v2389, 0.3
        %vm2614 = vcmp.gt.f32.partialorder %v2390, 0.3
        %vm2615 = vcmp.gt.f32.partialorder %v2391, 0.3
        %vm2616 = vcmp.gt.f32.partialorder %v2392, 0.3
        %vm2617 = vcmp.gt.f32.partialorder %v2393, 0.3
        %vm2618 = vcmp.gt.f32.partialorder %v2394, 0.3
        %vm2619 = vcmp.gt.f32.partialorder %v2395, 0.3
        %vm2620 = vcmp.gt.f32.partialorder %v2396, 0.3
        %vm2621 = vcmp.gt.f32.partialorder %v2397, 0.3
        %vm2622 = vcmp.gt.f32.partialorder %v2398, 0.3
        %vm2623 = vcmp.gt.f32.partialorder %v2399, 0.3
        %vm2624 = vcmp.gt.f32.partialorder %v2400, 0.3
        %vm2625 = vcmp.gt.f32.partialorder %v2401, 0.3
        %vm2626 = vcmp.gt.f32.partialorder %v2402, 0.3
        %vm2627 = vcmp.gt.f32.partialorder %v2403, 0.3
        %vm2628 = vcmp.gt.f32.partialorder %v2404, 0.3
        %vm2629 = vcmp.gt.f32.partialorder %v2405, 0.3
        %vm2630 = vcmp.gt.f32.partialorder %v2406, 0.3
        %vm2631 = vcmp.gt.f32.partialorder %v2407, 0.3
        %vm2632 = vcmp.gt.f32.partialorder %v2408, 0.3
        %vm2633 = vcmp.gt.f32.partialorder %v2409, 0.3
        %vm2634 = vcmp.gt.f32.partialorder %v2410, 0.3
        %vm2635 = vcmp.gt.f32.partialorder %v2411, 0.3
        %vm2636 = vcmp.gt.f32.partialorder %v2412, 0.3
        %vm2637 = vcmp.gt.f32.partialorder %v2413, 0.3
        %vm2638 = vcmp.gt.f32.partialorder %v2414, 0.3
        %v2639 = vsel %vm2527, 1, 0
        %v2640 = vsel %vm2528, 1, 0
        %v2641 = vsel %vm2529, 1, 0
        %v2642 = vsel %vm2530, 1, 0
        %v2643 = vsel %vm2531, 1, 0
        %v2644 = vsel %vm2532, 1, 0
        %v2645 = vsel %vm2533, 1, 0
        %v2646 = vsel %vm2534, 1, 0
        %v2647 = vsel %vm2535, 1, 0
        %v2648 = vsel %vm2536, 1, 0
        %v2649 = vsel %vm2537, 1, 0
        %v2650 = vsel %vm2538, 1, 0
        %v2651 = vsel %vm2539, 1, 0
        %v2652 = vsel %vm2540, 1, 0
        %v2653 = vsel %vm2541, 1, 0
        %v2654 = vsel %vm2542, 1, 0
        %v2655 = vsel %vm2543, 1, 0
        %v2656 = vsel %vm2544, 1, 0
        %v2657 = vsel %vm2545, 1, 0
        %v2658 = vsel %vm2546, 1, 0
        %v2659 = vsel %vm2547, 1, 0
        %v2660 = vsel %vm2548, 1, 0
        %v2661 = vsel %vm2549, 1, 0
        %v2662 = vsel %vm2550, 1, 0
        %v2663 = vsel %vm2551, 1, 0
        %v2664 = vsel %vm2552, 1, 0
        %v2665 = vsel %vm2553, 1, 0
        %v2666 = vsel %vm2554, 1, 0
        %v2667 = vsel %vm2555, 1, 0
        %v2668 = vsel %vm2556, 1, 0
        %v2669 = vsel %vm2557, 1, 0
        %v2670 = vsel %vm2558, 1, 0
        %v2671 = vsel %vm2559, 1, 0
        %v2672 = vsel %vm2560, 1, 0
        %v2673 = vsel %vm2561, 1, 0
        %v2674 = vsel %vm2562, 1, 0
        %v2675 = vsel %vm2563, 1, 0
        %v2676 = vsel %vm2564, 1, 0
        %v2677 = vsel %vm2565, 1, 0
        %v2678 = vsel %vm2566, 1, 0
        %v2679 = vsel %vm2567, 1, 0
        %v2680 = vsel %vm2568, 1, 0
        %v2681 = vsel %vm2569, 1, 0
        %v2682 = vsel %vm2570, 1, 0
        %v2683 = vsel %vm2571, 1, 0
        %v2684 = vsel %vm2572, 1, 0
        %v2685 = vsel %vm2573, 1, 0
        %v2686 = vsel %vm2574, 1, 0
        %v2687 = vsel %vm2575, 1, 0
        %v2688 = vsel %vm2576, 1, 0
        %v2689 = vsel %vm2577, 1, 0
        %v2690 = vsel %vm2578, 1, 0
        %v2691 = vsel %vm2579, 1, 0
        %v2692 = vsel %vm2580, 1, 0
        %v2693 = vsel %vm2581, 1, 0
        %v2694 = vsel %vm2582, 1, 0
        %v2695 = vsel %vm2583, 1, 0
        %v2696 = vsel %vm2584, 1, 0
        %v2697 = vsel %vm2585, 1, 0
        %v2698 = vsel %vm2586, 1, 0
        %v2699 = vsel %vm2587, 1, 0
        %v2700 = vsel %vm2588, 1, 0
        %v2701 = vsel %vm2589, 1, 0
        %v2702 = vsel %vm2590, 1, 0
        %v2703 = vsel %vm2591, 1, 0
        %v2704 = vsel %vm2592, 1, 0
        %v2705 = vsel %vm2593, 1, 0
        %v2706 = vsel %vm2594, 1, 0
        %v2707 = vsel %vm2595, 1, 0
        %v2708 = vsel %vm2596, 1, 0
        %v2709 = vsel %vm2597, 1, 0
        %v2710 = vsel %vm2598, 1, 0
        %v2711 = vsel %vm2599, 1, 0
        %v2712 = vsel %vm2600, 1, 0
        %v2713 = vsel %vm2601, 1, 0
        %v2714 = vsel %vm2602, 1, 0
        %v2715 = vsel %vm2603, 1, 0
        %v2716 = vsel %vm2604, 1, 0
        %v2717 = vsel %vm2605, 1, 0
        %v2718 = vsel %vm2606, 1, 0
        %v2719 = vsel %vm2607, 1, 0
        %v2720 = vsel %vm2608, 1, 0
        %v2721 = vsel %vm2609, 1, 0
        %v2722 = vsel %vm2610, 1, 0
        %v2723 = vsel %vm2611, 1, 0
        %v2724 = vsel %vm2612, 1, 0
        %v2725 = vsel %vm2613, 1, 0
        %v2726 = vsel %vm2614, 1, 0
        %v2727 = vsel %vm2615, 1, 0
        %v2728 = vsel %vm2616, 1, 0
        %v2729 = vsel %vm2617, 1, 0
        %v2730 = vsel %vm2618, 1, 0
        %v2731 = vsel %vm2619, 1, 0
        %v2732 = vsel %vm2620, 1, 0
        %v2733 = vsel %vm2621, 1, 0
        %v2734 = vsel %vm2622, 1, 0
        %v2735 = vsel %vm2623, 1, 0
        %v2736 = vsel %vm2624, 1, 0
        %v2737 = vsel %vm2625, 1, 0
        %v2738 = vsel %vm2626, 1, 0
        %v2739 = vsel %vm2627, 1, 0
        %v2740 = vsel %vm2628, 1, 0
        %v2741 = vsel %vm2629, 1, 0
        %v2742 = vsel %vm2630, 1, 0
        %v2743 = vsel %vm2631, 1, 0
        %v2744 = vsel %vm2632, 1, 0
        %v2745 = vsel %vm2633, 1, 0
        %v2746 = vsel %vm2634, 1, 0
        %v2747 = vsel %vm2635, 1, 0
        %v2748 = vsel %vm2636, 1, 0
        %v2749 = vsel %vm2637, 1, 0
        %v2750 = vsel %vm2638, 1, 0
        %v2751 = vcvt.s32.f32 %v2639
        %v2752 = vcvt.s32.f32 %v2640
        %v2753 = vcvt.s32.f32 %v2641
        %v2754 = vcvt.s32.f32 %v2642
        %v2755 = vcvt.s32.f32 %v2643
        %v2756 = vcvt.s32.f32 %v2644
        %v2757 = vcvt.s32.f32 %v2645
        %v2758 = vcvt.s32.f32 %v2646
        %v2759 = vcvt.s32.f32 %v2647
        %v2760 = vcvt.s32.f32 %v2648
        %v2761 = vcvt.s32.f32 %v2649
        %v2762 = vcvt.s32.f32 %v2650
        %v2763 = vcvt.s32.f32 %v2651
        %v2764 = vcvt.s32.f32 %v2652
        %v2765 = vcvt.s32.f32 %v2653
        %v2766 = vcvt.s32.f32 %v2654
        %v2767 = vcvt.s32.f32 %v2655
        %v2768 = vcvt.s32.f32 %v2656
        %v2769 = vcvt.s32.f32 %v2657
        %v2770 = vcvt.s32.f32 %v2658
        %v2771 = vcvt.s32.f32 %v2659
        %v2772 = vcvt.s32.f32 %v2660
        %v2773 = vcvt.s32.f32 %v2661
        %v2774 = vcvt.s32.f32 %v2662
        %v2775 = vcvt.s32.f32 %v2663
        %v2776 = vcvt.s32.f32 %v2664
        %v2777 = vcvt.s32.f32 %v2665
        %v2778 = vcvt.s32.f32 %v2666
        %v2779 = vcvt.s32.f32 %v2667
        %v2780 = vcvt.s32.f32 %v2668
        %v2781 = vcvt.s32.f32 %v2669
        %v2782 = vcvt.s32.f32 %v2670
        %v2783 = vcvt.s32.f32 %v2671
        %v2784 = vcvt.s32.f32 %v2672
        %v2785 = vcvt.s32.f32 %v2673
        %v2786 = vcvt.s32.f32 %v2674
        %v2787 = vcvt.s32.f32 %v2675
        %v2788 = vcvt.s32.f32 %v2676
        %v2789 = vcvt.s32.f32 %v2677
        %v2790 = vcvt.s32.f32 %v2678
        %v2791 = vcvt.s32.f32 %v2679
        %v2792 = vcvt.s32.f32 %v2680
        %v2793 = vcvt.s32.f32 %v2681
        %v2794 = vcvt.s32.f32 %v2682
        %v2795 = vcvt.s32.f32 %v2683
        %v2796 = vcvt.s32.f32 %v2684
        %v2797 = vcvt.s32.f32 %v2685
        %v2798 = vcvt.s32.f32 %v2686
        %v2799 = vcvt.s32.f32 %v2687
        %v2800 = vcvt.s32.f32 %v2688
        %v2801 = vcvt.s32.f32 %v2689
        %v2802 = vcvt.s32.f32 %v2690
        %v2803 = vcvt.s32.f32 %v2691
        %v2804 = vcvt.s32.f32 %v2692
        %v2805 = vcvt.s32.f32 %v2693
        %v2806 = vcvt.s32.f32 %v2694
        %v2807 = vcvt.s32.f32 %v2695
        %v2808 = vcvt.s32.f32 %v2696
        %v2809 = vcvt.s32.f32 %v2697
        %v2810 = vcvt.s32.f32 %v2698
        %v2811 = vcvt.s32.f32 %v2699
        %v2812 = vcvt.s32.f32 %v2700
        %v2813 = vcvt.s32.f32 %v2701
        %v2814 = vcvt.s32.f32 %v2702
        %v2815 = vcvt.s32.f32 %v2703
        %v2816 = vcvt.s32.f32 %v2704
        %v2817 = vcvt.s32.f32 %v2705
        %v2818 = vcvt.s32.f32 %v2706
        %v2819 = vcvt.s32.f32 %v2707
        %v2820 = vcvt.s32.f32 %v2708
        %v2821 = vcvt.s32.f32 %v2709
        %v2822 = vcvt.s32.f32 %v2710
        %v2823 = vcvt.s32.f32 %v2711
        %v2824 = vcvt.s32.f32 %v2712
        %v2825 = vcvt.s32.f32 %v2713
        %v2826 = vcvt.s32.f32 %v2714
        %v2827 = vcvt.s32.f32 %v2715
        %v2828 = vcvt.s32.f32 %v2716
        %v2829 = vcvt.s32.f32 %v2717
        %v2830 = vcvt.s32.f32 %v2718
        %v2831 = vcvt.s32.f32 %v2719
        %v2832 = vcvt.s32.f32 %v2720
        %v2833 = vcvt.s32.f32 %v2721
        %v2834 = vcvt.s32.f32 %v2722
        %v2835 = vcvt.s32.f32 %v2723
        %v2836 = vcvt.s32.f32 %v2724
        %v2837 = vcvt.s32.f32 %v2725
        %v2838 = vcvt.s32.f32 %v2726
        %v2839 = vcvt.s32.f32 %v2727
        %v2840 = vcvt.s32.f32 %v2728
        %v2841 = vcvt.s32.f32 %v2729
        %v2842 = vcvt.s32.f32 %v2730
        %v2843 = vcvt.s32.f32 %v2731
        %v2844 = vcvt.s32.f32 %v2732
        %v2845 = vcvt.s32.f32 %v2733
        %v2846 = vcvt.s32.f32 %v2734
        %v2847 = vcvt.s32.f32 %v2735
        %v2848 = vcvt.s32.f32 %v2736
        %v2849 = vcvt.s32.f32 %v2737
        %v2850 = vcvt.s32.f32 %v2738
        %v2851 = vcvt.s32.f32 %v2739
        %v2852 = vcvt.s32.f32 %v2740
        %v2853 = vcvt.s32.f32 %v2741
        %v2854 = vcvt.s32.f32 %v2742
        %v2855 = vcvt.s32.f32 %v2743
        %v2856 = vcvt.s32.f32 %v2744
        %v2857 = vcvt.s32.f32 %v2745
        %v2858 = vcvt.s32.f32 %v2746
        %v2859 = vcvt.s32.f32 %v2747
        %v2860 = vcvt.s32.f32 %v2748
        %v2861 = vcvt.s32.f32 %v2749
        %v2862 = vcvt.s32.f32 %v2750
        %v2863 = vpack.c.bf16 %v2758, %v2751
        %v2864 = vpack.c.bf16 %v2759, %v2752
        %v2865 = vpack.c.bf16 %v2760, %v2753
        %v2866 = vpack.c.bf16 %v2761, %v2754
        %v2867 = vpack.c.bf16 %v2762, %v2755
        %v2868 = vpack.c.bf16 %v2763, %v2756
        %v2869 = vpack.c.bf16 %v2764, %v2757
        %v2870 = vpack.c.bf16 %v2772, %v2765
        %v2871 = vpack.c.bf16 %v2773, %v2766
        %v2872 = vpack.c.bf16 %v2774, %v2767
        %v2873 = vpack.c.bf16 %v2775, %v2768
        %v2874 = vpack.c.bf16 %v2776, %v2769
        %v2875 = vpack.c.bf16 %v2777, %v2770
        %v2876 = vpack.c.bf16 %v2778, %v2771
        %v2877 = vpack.c.bf16 %v2786, %v2779
        %v2878 = vpack.c.bf16 %v2787, %v2780
        %v2879 = vpack.c.bf16 %v2788, %v2781
        %v2880 = vpack.c.bf16 %v2789, %v2782
        %v2881 = vpack.c.bf16 %v2790, %v2783
        %v2882 = vpack.c.bf16 %v2791, %v2784
        %v2883 = vpack.c.bf16 %v2792, %v2785
        %v2884 = vpack.c.bf16 %v2800, %v2793
        %v2885 = vpack.c.bf16 %v2801, %v2794
        %v2886 = vpack.c.bf16 %v2802, %v2795
        %v2887 = vpack.c.bf16 %v2803, %v2796
        %v2888 = vpack.c.bf16 %v2804, %v2797
        %v2889 = vpack.c.bf16 %v2805, %v2798
        %v2890 = vpack.c.bf16 %v2806, %v2799
        %v2891 = vpack.c.bf16 %v2814, %v2807
        %v2892 = vpack.c.bf16 %v2815, %v2808
        %v2893 = vpack.c.bf16 %v2816, %v2809
        %v2894 = vpack.c.bf16 %v2817, %v2810
        %v2895 = vpack.c.bf16 %v2818, %v2811
        %v2896 = vpack.c.bf16 %v2819, %v2812
        %v2897 = vpack.c.bf16 %v2820, %v2813
        %v2898 = vpack.c.bf16 %v2828, %v2821
        %v2899 = vpack.c.bf16 %v2829, %v2822
        %v2900 = vpack.c.bf16 %v2830, %v2823
        %v2901 = vpack.c.bf16 %v2831, %v2824
        %v2902 = vpack.c.bf16 %v2832, %v2825
        %v2903 = vpack.c.bf16 %v2833, %v2826
        %v2904 = vpack.c.bf16 %v2834, %v2827
        %v2905 = vpack.c.bf16 %v2842, %v2835
        %v2906 = vpack.c.bf16 %v2843, %v2836
        %v2907 = vpack.c.bf16 %v2844, %v2837
        %v2908 = vpack.c.bf16 %v2845, %v2838
        %v2909 = vpack.c.bf16 %v2846, %v2839
        %v2910 = vpack.c.bf16 %v2847, %v2840
        %v2911 = vpack.c.bf16 %v2848, %v2841
        %v2912 = vpack.c.bf16 %v2856, %v2849
        %v2913 = vpack.c.bf16 %v2857, %v2850
        %v2914 = vpack.c.bf16 %v2858, %v2851
        %v2915 = vpack.c.bf16 %v2859, %v2852
        %v2916 = vpack.c.bf16 %v2860, %v2853
        %v2917 = vpack.c.bf16 %v2861, %v2854
        %v2918 = vpack.c.bf16 %v2862, %v2855
        %v2919 = vld [vmem:[%s3] sm:$0xf]
        %v2920 = vld [vmem:[%s3 + $0x4] sm:$0xf]
        %v2921 = vld [vmem:[%s3 + $0x8] sm:$0xf]
        %v2922 = vld [vmem:[%s3 + $0xc] sm:$0xf]
        %v2923 = vld [vmem:[%s3 + $0x10] sm:$0xf]
        %v2924 = vld [vmem:[%s3 + $0x14] sm:$0xf]
        %v2925 = vld [vmem:[%s3 + $0x18] sm:$0xf]
        %v2926 = vld [vmem:[%s3 + $0x1c] sm:$0xf]
        %v2935 = vunpack.c.l.b16 %v2919
        %v2936 = vunpack.c.l.b16 %v2920
        %v2937 = vunpack.c.l.b16 %v2921
        %v2938 = vunpack.c.l.b16 %v2922
        %v2939 = vunpack.c.l.b16 %v2923
        %v2940 = vunpack.c.l.b16 %v2924
        %v2941 = vunpack.c.l.b16 %v2925
        %v2942 = vunpack.c.l.b16 %v2926
        %v2943 = vpack.c.b16 %v2936, %v2935
        %v2944 = vpack.c.b16 %v2938, %v2937
        %v2945 = vpack.c.b16 %v2940, %v2939
        %v2946 = vpack.c.b16 %v2942, %v2941
        %2951 = vmatprep.subr.bf16.mxu0 %v2864
        %2952 = vmatpush1.bf16.msra.mxu0 %v2863
        %2953 = vmatprep.subr.bf16.mxu0 %v2871
        %2954 = vmatpush1.bf16.msra.mxu0 %v2870
        %2955 = vmatprep.subr.bf16.mxu0 %v2878
        %2956 = vmatpush1.bf16.msra.mxu0 %v2877
        %2957 = vmatprep.subr.bf16.mxu0 %v2885
        %2958 = vmatpush1.bf16.msra.mxu0 %v2884
        %2959 = vmatprep.subr.bf16.mxu0 %v2892
        %2960 = vmatpush1.bf16.msra.mxu0 %v2891
        %2961 = vmatprep.subr.bf16.mxu0 %v2899
        %2962 = vmatpush1.bf16.msra.mxu0 %v2898
        %2963 = vmatprep.subr.bf16.mxu0 %v2906
        %2964 = vmatpush1.bf16.msra.mxu0 %v2905
        %2965 = vmatprep.subr.bf16.mxu0 %v2913
        %2966 = vmatpush1.bf16.msra.mxu0 %v2912
        %2967 = vmatprep.subr.bf16.mxu0 0
        %2968 = vmatpush1.bf16.msra.mxu0 0
        %2969 = vmatprep.subr.bf16.mxu0 0
        %2970 = vmatpush1.bf16.msra.mxu0 0
        %2971 = vmatprep.subr.bf16.mxu0 0
        %2972 = vmatpush1.bf16.msra.mxu0 0
        %2973 = vmatprep.subr.bf16.mxu0 0
        %2974 = vmatpush1.bf16.msra.mxu0 0
        %2975 = vmatprep.subr.bf16.mxu0 0
        %2976 = vmatpush1.bf16.msra.mxu0 0
        %2977 = vmatprep.subr.bf16.mxu0 0
        %2978 = vmatpush1.bf16.msra.mxu0 0
        %2979 = vmatprep.subr.bf16.mxu0 0
        %2980 = vmatpush1.bf16.msra.mxu0 0
        %2981 = vmatprep.subr.bf16.mxu0 0
        %2982 = vmatpush1.bf16.msra.mxu0 0
        %2983 = vmatprep.mubr.bf16.mxu0 0
        %2984 = vmatmul.mubr.bf16.gmra.mrb[0].mxu0 %v2943
        %v2985 = vpop.f32.mrb[0].mxu0
        %v2986 = vadd.f32 0.0, %v2985
        %v2987 = vpop.f32.mrb[0].mxu0
        %v2988 = vadd.f32 0.0, %v2987
        %v2989 = vpop.f32.mrb[0].mxu0
        %v2990 = vadd.f32 0.0, %v2989
        %v2991 = vpop.f32.mrb[0].mxu0
        %v2992 = vadd.f32 0.0, %v2991
        %2993 = vmatprep.mubr.bf16.mxu0 0
        %2994 = vmatmul.mubr.bf16.gmra.mrb[0].mxu0 %v2944
        %v2995 = vpop.f32.mrb[0].mxu0
        %v2996 = vadd.f32 0.0, %v2995
        %v2997 = vpop.f32.mrb[0].mxu0
        %v2998 = vadd.f32 0.0, %v2997
        %v2999 = vpop.f32.mrb[0].mxu0
        %v3000 = vadd.f32 0.0, %v2999
        %v3001 = vpop.f32.mrb[0].mxu0
        %v3002 = vadd.f32 0.0, %v3001
        %3003 = vmatprep.mubr.bf16.mxu0 0
        %3004 = vmatmul.mubr.bf16.gmra.mrb[0].mxu0 %v2945
        %v3005 = vpop.f32.mrb[0].mxu0
        %v3006 = vadd.f32 0.0, %v3005
        %v3007 = vpop.f32.mrb[0].mxu0
        %v3008 = vadd.f32 0.0, %v3007
        %v3009 = vpop.f32.mrb[0].mxu0
        %v3010 = vadd.f32 0.0, %v3009
        %v3011 = vpop.f32.mrb[0].mxu0
        %v3012 = vadd.f32 0.0, %v3011
        %3013 = vmatprep.mubr.bf16.mxu0 0
        %3014 = vmatmul.mubr.bf16.gmra.mrb[0].mxu0 %v2946
        %v3015 = vpop.f32.mrb[0].mxu0
        %v3016 = vadd.f32 0.0, %v3015
        %v3017 = vpop.f32.mrb[0].mxu0
        %v3018 = vadd.f32 0.0, %v3017
        %v3019 = vpop.f32.mrb[0].mxu0
        %v3020 = vadd.f32 0.0, %v3019
        %v3021 = vpop.f32.mrb[0].mxu0
        %v3022 = vadd.f32 0.0, %v3021
        %3023 = vdwg.mxu0
        %3024 = vmatprep.subr.bf16.mxu0 %v2866
        %3025 = vmatpush1.bf16.msra.mxu0 %v2865
        %3026 = vmatprep.subr.bf16.mxu0 %v2873
        %3027 = vmatpush1.bf16.msra.mxu0 %v2872
        %3028 = vmatprep.subr.bf16.mxu0 %v2880
        %3029 = vmatpush1.bf16.msra.mxu0 %v2879
        %3030 = vmatprep.subr.bf16.mxu0 %v2887
        %3031 = vmatpush1.bf16.msra.mxu0 %v2886
        %3032 = vmatprep.subr.bf16.mxu0 %v2894
        %3033 = vmatpush1.bf16.msra.mxu0 %v2893
        %3034 = vmatprep.subr.bf16.mxu0 %v2901
        %3035 = vmatpush1.bf16.msra.mxu0 %v2900
        %3036 = vmatprep.subr.bf16.mxu0 %v2908
        %3037 = vmatpush1.bf16.msra.mxu0 %v2907
        %3038 = vmatprep.subr.bf16.mxu0 %v2915
        %3039 = vmatpush1.bf16.msra.mxu0 %v2914
        %3040 = vmatprep.subr.bf16.mxu0 0
        %3041 = vmatpush1.bf16.msra.mxu0 0
        %3042 = vmatprep.subr.bf16.mxu0 0
        %3043 = vmatpush1.bf16.msra.mxu0 0
        %3044 = vmatprep.subr.bf16.mxu0 0
        %3045 = vmatpush1.bf16.msra.mxu0 0
        %3046 = vmatprep.subr.bf16.mxu0 0
        %3047 = vmatpush1.bf16.msra.mxu0 0
        %3048 = vmatprep.subr.bf16.mxu0 0
        %3049 = vmatpush1.bf16.msra.mxu0 0
        %3050 = vmatprep.subr.bf16.mxu0 0
        %3051 = vmatpush1.bf16.msra.mxu0 0
        %3052 = vmatprep.subr.bf16.mxu0 0
        %3053 = vmatpush1.bf16.msra.mxu0 0
        %3054 = vmatprep.subr.bf16.mxu0 0
        %3055 = vmatpush1.bf16.msra.mxu0 0
        %3056 = vmatprep.mubr.bf16.mxu0 0
        %3057 = vmatmul.mubr.bf16.gmra.mrb[0].mxu0 %v2943
        %v3058 = vpop.f32.mrb[0].mxu0
        %v3059 = vadd.f32 0.0, %v3058
        %v3060 = vpop.f32.mrb[0].mxu0
        %v3061 = vadd.f32 0.0, %v3060
        %v3062 = vpop.f32.mrb[0].mxu0
        %v3063 = vadd.f32 0.0, %v3062
        %v3064 = vpop.f32.mrb[0].mxu0
        %v3065 = vadd.f32 0.0, %v3064
        %3066 = vmatprep.mubr.bf16.mxu0 0
        %3067 = vmatmul.mubr.bf16.gmra.mrb[0].mxu0 %v2944
        %v3068 = vpop.f32.mrb[0].mxu0
        %v3069 = vadd.f32 0.0, %v3068
        %v3070 = vpop.f32.mrb[0].mxu0
        %v3071 = vadd.f32 0.0, %v3070
        %v3072 = vpop.f32.mrb[0].mxu0
        %v3073 = vadd.f32 0.0, %v3072
        %v3074 = vpop.f32.mrb[0].mxu0
        %v3075 = vadd.f32 0.0, %v3074
        %3076 = vmatprep.mubr.bf16.mxu0 0
        %3077 = vmatmul.mubr.bf16.gmra.mrb[0].mxu0 %v2945
        %v3078 = vpop.f32.mrb[0].mxu0
        %v3079 = vadd.f32 0.0, %v3078
        %v3080 = vpop.f32.mrb[0].mxu0
        %v3081 = vadd.f32 0.0, %v3080
        %v3082 = vpop.f32.mrb[0].mxu0
        %v3083 = vadd.f32 0.0, %v3082
        %v3084 = vpop.f32.mrb[0].mxu0
        %v3085 = vadd.f32 0.0, %v3084
        %3086 = vmatprep.mubr.bf16.mxu0 0
        %3087 = vmatmul.mubr.bf16.gmra.mrb[0].mxu0 %v2946
        %v3088 = vpop.f32.mrb[0].mxu0
        %v3089 = vadd.f32 0.0, %v3088
        %v3090 = vpop.f32.mrb[0].mxu0
        %v3091 = vadd.f32 0.0, %v3090
        %v3092 = vpop.f32.mrb[0].mxu0
        %v3093 = vadd.f32 0.0, %v3092
        %v3094 = vpop.f32.mrb[0].mxu0
        %v3095 = vadd.f32 0.0, %v3094
        %3096 = vdwg.mxu0
        %3097 = vmatprep.subr.bf16.mxu0 %v2868
        %3098 = vmatpush1.bf16.msra.mxu0 %v2867
        %3099 = vmatprep.subr.bf16.mxu0 %v2875
        %3100 = vmatpush1.bf16.msra.mxu0 %v2874
        %3101 = vmatprep.subr.bf16.mxu0 %v2882
        %3102 = vmatpush1.bf16.msra.mxu0 %v2881
        %3103 = vmatprep.subr.bf16.mxu0 %v2889
        %3104 = vmatpush1.bf16.msra.mxu0 %v2888
        %3105 = vmatprep.subr.bf16.mxu0 %v2896
        %3106 = vmatpush1.bf16.msra.mxu0 %v2895
        %3107 = vmatprep.subr.bf16.mxu0 %v2903
        %3108 = vmatpush1.bf16.msra.mxu0 %v2902
        %3109 = vmatprep.subr.bf16.mxu0 %v2910
        %3110 = vmatpush1.bf16.msra.mxu0 %v2909
        %3111 = vmatprep.subr.bf16.mxu0 %v2917
        %3112 = vmatpush1.bf16.msra.mxu0 %v2916
        %3113 = vmatprep.subr.bf16.mxu0 0
        %3114 = vmatpush1.bf16.msra.mxu0 0
        %3115 = vmatprep.subr.bf16.mxu0 0
        %3116 = vmatpush1.bf16.msra.mxu0 0
        %3117 = vmatprep.subr.bf16.mxu0 0
        %3118 = vmatpush1.bf16.msra.mxu0 0
        %3119 = vmatprep.subr.bf16.mxu0 0
        %3120 = vmatpush1.bf16.msra.mxu0 0
        %3121 = vmatprep.subr.bf16.mxu0 0
        %3122 = vmatpush1.bf16.msra.mxu0 0
        %3123 = vmatprep.subr.bf16.mxu0 0
        %3124 = vmatpush1.bf16.msra.mxu0 0
        %3125 = vmatprep.subr.bf16.mxu0 0
        %3126 = vmatpush1.bf16.msra.mxu0 0
        %3127 = vmatprep.subr.bf16.mxu0 0
        %3128 = vmatpush1.bf16.msra.mxu0 0
        %3129 = vmatprep.mubr.bf16.mxu0 0
        %3130 = vmatmul.mubr.bf16.gmra.mrb[0].mxu0 %v2943
        %v3131 = vpop.f32.mrb[0].mxu0
        %v3132 = vadd.f32 0.0, %v3131
        %v3133 = vpop.f32.mrb[0].mxu0
        %v3134 = vadd.f32 0.0, %v3133
        %v3135 = vpop.f32.mrb[0].mxu0
        %v3136 = vadd.f32 0.0, %v3135
        %v3137 = vpop.f32.mrb[0].mxu0
        %v3138 = vadd.f32 0.0, %v3137
        %3139 = vmatprep.mubr.bf16.mxu0 0
        %3140 = vmatmul.mubr.bf16.gmra.mrb[0].mxu0 %v2944
        %v3141 = vpop.f32.mrb[0].mxu0
        %v3142 = vadd.f32 0.0, %v3141
        %v3143 = vpop.f32.mrb[0].mxu0
        %v3144 = vadd.f32 0.0, %v3143
        %v3145 = vpop.f32.mrb[0].mxu0
        %v3146 = vadd.f32 0.0, %v3145
        %v3147 = vpop.f32.mrb[0].mxu0
        %v3148 = vadd.f32 0.0, %v3147
        %3149 = vmatprep.mubr.bf16.mxu0 0
        %3150 = vmatmul.mubr.bf16.gmra.mrb[0].mxu0 %v2945
        %v3151 = vpop.f32.mrb[0].mxu0
        %v3152 = vadd.f32 0.0, %v3151
        %v3153 = vpop.f32.mrb[0].mxu0
        %v3154 = vadd.f32 0.0, %v3153
        %v3155 = vpop.f32.mrb[0].mxu0
        %v3156 = vadd.f32 0.0, %v3155
        %v3157 = vpop.f32.mrb[0].mxu0
        %v3158 = vadd.f32 0.0, %v3157
        %3159 = vmatprep.mubr.bf16.mxu0 0
        %3160 = vmatmul.mubr.bf16.gmra.mrb[0].mxu0 %v2946
        %v3161 = vpop.f32.mrb[0].mxu0
        %v3162 = vadd.f32 0.0, %v3161
        %v3163 = vpop.f32.mrb[0].mxu0
        %v3164 = vadd.f32 0.0, %v3163
        %v3165 = vpop.f32.mrb[0].mxu0
        %v3166 = vadd.f32 0.0, %v3165
        %v3167 = vpop.f32.mrb[0].mxu0
        %v3168 = vadd.f32 0.0, %v3167
        %3169 = vdwg.mxu0
        %3170 = vmatprep.subr.bf16.mxu0 0
        %3171 = vmatpush1.bf16.msra.mxu0 %v2869
        %3172 = vmatprep.subr.bf16.mxu0 0
        %3173 = vmatpush1.bf16.msra.mxu0 %v2876
        %3174 = vmatprep.subr.bf16.mxu0 0
        %3175 = vmatpush1.bf16.msra.mxu0 %v2883
        %3176 = vmatprep.subr.bf16.mxu0 0
        %3177 = vmatpush1.bf16.msra.mxu0 %v2890
        %3178 = vmatprep.subr.bf16.mxu0 0
        %3179 = vmatpush1.bf16.msra.mxu0 %v2897
        %3180 = vmatprep.subr.bf16.mxu0 0
        %3181 = vmatpush1.bf16.msra.mxu0 %v2904
        %3182 = vmatprep.subr.bf16.mxu0 0
        %3183 = vmatpush1.bf16.msra.mxu0 %v2911
        %3184 = vmatprep.subr.bf16.mxu0 0
        %3185 = vmatpush1.bf16.msra.mxu0 %v2918
        %3186 = vmatprep.subr.bf16.mxu0 0
        %3187 = vmatpush1.bf16.msra.mxu0 0
        %3188 = vmatprep.subr.bf16.mxu0 0
        %3189 = vmatpush1.bf16.msra.mxu0 0
        %3190 = vmatprep.subr.bf16.mxu0 0
        %3191 = vmatpush1.bf16.msra.mxu0 0
        %3192 = vmatprep.subr.bf16.mxu0 0
        %3193 = vmatpush1.bf16.msra.mxu0 0
        %3194 = vmatprep.subr.bf16.mxu0 0
        %3195 = vmatpush1.bf16.msra.mxu0 0
        %3196 = vmatprep.subr.bf16.mxu0 0
        %3197 = vmatpush1.bf16.msra.mxu0 0
        %3198 = vmatprep.subr.bf16.mxu0 0
        %3199 = vmatpush1.bf16.msra.mxu0 0
        %3200 = vmatprep.subr.bf16.mxu0 0
        %3201 = vmatpush1.bf16.msra.mxu0 0
        %3202 = vmatprep.mubr.bf16.mxu0 0
        %3203 = vmatmul.mubr.bf16.gmra.mrb[0].mxu0 %v2943
        %v3204 = vpop.f32.mrb[0].mxu0
        %v3205 = vadd.f32 0.0, %v3204
        %v3206 = vpop.f32.mrb[0].mxu0
        %v3207 = vpop.f32.mrb[0].mxu0
        %v3208 = vadd.f32 0.0, %v3207
        %v3209 = vpop.f32.mrb[0].mxu0
        %3210 = vmatprep.mubr.bf16.mxu0 0
        %3211 = vmatmul.mubr.bf16.gmra.mrb[0].mxu0 %v2944
        %v3212 = vpop.f32.mrb[0].mxu0
        %v3213 = vadd.f32 0.0, %v3212
        %v3214 = vpop.f32.mrb[0].mxu0
        %v3215 = vpop.f32.mrb[0].mxu0
        %v3216 = vadd.f32 0.0, %v3215
        %v3217 = vpop.f32.mrb[0].mxu0
        %3218 = vmatprep.mubr.bf16.mxu0 0
        %3219 = vmatmul.mubr.bf16.gmra.mrb[0].mxu0 %v2945
        %v3220 = vpop.f32.mrb[0].mxu0
        %v3221 = vadd.f32 0.0, %v3220
        %v3222 = vpop.f32.mrb[0].mxu0
        %v3223 = vpop.f32.mrb[0].mxu0
        %v3224 = vadd.f32 0.0, %v3223
        %v3225 = vpop.f32.mrb[0].mxu0
        %3226 = vmatprep.mubr.bf16.mxu0 0
        %3227 = vmatmul.mubr.bf16.gmra.mrb[0].mxu0 %v2946
        %v3228 = vpop.f32.mrb[0].mxu0
        %v3229 = vadd.f32 0.0, %v3228
        %v3230 = vpop.f32.mrb[0].mxu0
        %v3231 = vpop.f32.mrb[0].mxu0
        %v3232 = vadd.f32 0.0, %v3231
        %v3233 = vpop.f32.mrb[0].mxu0
        %3234 = vdwg.mxu0
        %v3235 = vpack.c.bf16 %v2990, %v2986
        %v3236 = vpack.c.bf16 %v2992, %v2988
        %v3237 = vpack.c.bf16 %v3063, %v3059
        %v3238 = vpack.c.bf16 %v3065, %v3061
        %v3239 = vpack.c.bf16 %v3136, %v3132
        %v3240 = vpack.c.bf16 %v3138, %v3134
        %v3241 = vpack.c.bf16 %v3208, %v3205
        %v3242 = vpack.c.bf16 %v3000, %v2996
        %v3243 = vpack.c.bf16 %v3002, %v2998
        %v3244 = vpack.c.bf16 %v3073, %v3069
        %v3245 = vpack.c.bf16 %v3075, %v3071
        %v3246 = vpack.c.bf16 %v3146, %v3142
        %v3247 = vpack.c.bf16 %v3148, %v3144
        %v3248 = vpack.c.bf16 %v3216, %v3213
        %v3249 = vpack.c.bf16 %v3010, %v3006
        %v3250 = vpack.c.bf16 %v3012, %v3008
        %v3251 = vpack.c.bf16 %v3083, %v3079
        %v3252 = vpack.c.bf16 %v3085, %v3081
        %v3253 = vpack.c.bf16 %v3156, %v3152
        %v3254 = vpack.c.bf16 %v3158, %v3154
        %v3255 = vpack.c.bf16 %v3224, %v3221
        %v3256 = vpack.c.bf16 %v3020, %v3016
        %v3257 = vpack.c.bf16 %v3022, %v3018
        %v3258 = vpack.c.bf16 %v3093, %v3089
        %v3259 = vpack.c.bf16 %v3095, %v3091
        %v3260 = vpack.c.bf16 %v3166, %v3162
        %v3261 = vpack.c.bf16 %v3168, %v3164
        %v3262 = vpack.c.bf16 %v3232, %v3229
        %v3263 = vld [vmem:[%s4] sm:$0xff]
        %v3264 = vld [vmem:[%s4 + $0x8] sm:$0xff]
        %v3265 = vld [vmem:[%s4 + $0x10] sm:$0xff]
        %v3266 = vld [vmem:[%s4 + $0x18] sm:$0xff]
        %v3267 = vld [vmem:[%s4 + $0x20] sm:$0xff]
        %v3268 = vld [vmem:[%s4 + $0x28] sm:$0xff]
        %v3269 = vld [vmem:[%s4 + $0x30] sm:$0xff]
        %v3270 = vld [vmem:[%s4 + $0x38] sm:$0xff]
        %v3271 = vld [vmem:[%s4 + $0x40] sm:$0xff]
        %v3272 = vld [vmem:[%s4 + $0x48] sm:$0xff]
        %v3273 = vld [vmem:[%s4 + $0x50] sm:$0xff]
        %v3274 = vld [vmem:[%s4 + $0x58] sm:$0xff]
        %v3275 = vld [vmem:[%s4 + $0x60] sm:$0xff]
        %v3276 = vld [vmem:[%s4 + $0x68] sm:$0xff]
        %v3277 = vld [vmem:[%s4 + $0x70] sm:$0xff]
        %v3278 = vld [vmem:[%s4 + $0x78] sm:$0xff]
        %v3279 = vld [vmem:[%s4 + $0x80] sm:$0xff]
        %v3280 = vld [vmem:[%s4 + $0x88] sm:$0xff]
        %v3281 = vld [vmem:[%s4 + $0x90] sm:$0xff]
        %v3282 = vld [vmem:[%s4 + $0x98] sm:$0xff]
        %v3283 = vld [vmem:[%s4 + $0xa0] sm:$0xff]
        %v3284 = vld [vmem:[%s4 + $0xa8] sm:$0xff]
        %v3285 = vld [vmem:[%s4 + $0xb0] sm:$0xff]
        %v3286 = vld [vmem:[%s4 + $0xb8] sm:$0xff]
        %v3287 = vld [vmem:[%s4 + $0xc0] sm:$0xff]
        %v3288 = vld [vmem:[%s4 + $0xc8] sm:$0xff]
        %v3289 = vld [vmem:[%s4 + $0xd0] sm:$0xff]
        %v3290 = vld [vmem:[%s4 + $0xd8] sm:$0xff]
        %v3291 = vld [vmem:[%s4 + $0xe0] sm:$0xff]
        %v3292 = vld [vmem:[%s4 + $0xe8] sm:$0xff]
        %v3293 = vld [vmem:[%s4 + $0xf0] sm:$0xff]
        %v3294 = vld [vmem:[%s4 + $0xf8] sm:$0xff]
        %v3295 = vld [vmem:[%s4 + $0x100] sm:$0xff]
        %v3296 = vld [vmem:[%s4 + $0x108] sm:$0xff]
        %v3297 = vld [vmem:[%s4 + $0x110] sm:$0xff]
        %v3298 = vld [vmem:[%s4 + $0x118] sm:$0xff]
        %v3299 = vld [vmem:[%s4 + $0x120] sm:$0xff]
        %v3300 = vld [vmem:[%s4 + $0x128] sm:$0xff]
        %v3301 = vld [vmem:[%s4 + $0x130] sm:$0xff]
        %v3302 = vld [vmem:[%s4 + $0x138] sm:$0xff]
        %v3303 = vld [vmem:[%s4 + $0x140] sm:$0xff]
        %v3304 = vld [vmem:[%s4 + $0x148] sm:$0xff]
        %v3305 = vld [vmem:[%s4 + $0x150] sm:$0xff]
        %v3306 = vld [vmem:[%s4 + $0x158] sm:$0xff]
        %v3307 = vld [vmem:[%s4 + $0x160] sm:$0xff]
        %v3308 = vld [vmem:[%s4 + $0x168] sm:$0xff]
        %v3309 = vld [vmem:[%s4 + $0x170] sm:$0xff]
        %v3310 = vld [vmem:[%s4 + $0x178] sm:$0xff]
        %v3311 = vld [vmem:[%s4 + $0x180] sm:$0xff]
        %v3312 = vld [vmem:[%s4 + $0x188] sm:$0xff]
        %v3313 = vld [vmem:[%s4 + $0x190] sm:$0xff]
        %v3314 = vld [vmem:[%s4 + $0x198] sm:$0xff]
        %v3315 = vld [vmem:[%s4 + $0x1a0] sm:$0xff]
        %v3316 = vld [vmem:[%s4 + $0x1a8] sm:$0xff]
        %v3317 = vld [vmem:[%s4 + $0x1b0] sm:$0xff]
        %v3318 = vld [vmem:[%s4 + $0x1b8] sm:$0xff]
        %v3319 = vld [vmem:[%s4 + $0x1c0] sm:$0xff]
        %v3320 = vld [vmem:[%s4 + $0x1c8] sm:$0xff]
        %v3321 = vld [vmem:[%s4 + $0x1d0] sm:$0xff]
        %v3322 = vld [vmem:[%s4 + $0x1d8] sm:$0xff]
        %v3323 = vld [vmem:[%s4 + $0x1e0] sm:$0xff]
        %v3324 = vld [vmem:[%s4 + $0x1e8] sm:$0xff]
        %v3325 = vld [vmem:[%s4 + $0x1f0] sm:$0xff]
        %v3326 = vld [vmem:[%s4 + $0x1f8] sm:$0xff]
        %v3327 = vld [vmem:[%s4 + $0x200] sm:$0xff]
        %v3328 = vld [vmem:[%s4 + $0x208] sm:$0xff]
        %v3329 = vld [vmem:[%s4 + $0x210] sm:$0xff]
        %v3330 = vld [vmem:[%s4 + $0x218] sm:$0xff]
        %v3331 = vld [vmem:[%s4 + $0x220] sm:$0xff]
        %v3332 = vld [vmem:[%s4 + $0x228] sm:$0xff]
        %v3333 = vld [vmem:[%s4 + $0x230] sm:$0xff]
        %v3334 = vld [vmem:[%s4 + $0x238] sm:$0xff]
        %v3335 = vld [vmem:[%s4 + $0x240] sm:$0xff]
        %v3336 = vld [vmem:[%s4 + $0x248] sm:$0xff]
        %v3337 = vld [vmem:[%s4 + $0x250] sm:$0xff]
        %v3338 = vld [vmem:[%s4 + $0x258] sm:$0xff]
        %v3339 = vld [vmem:[%s4 + $0x260] sm:$0xff]
        %v3340 = vld [vmem:[%s4 + $0x268] sm:$0xff]
        %v3341 = vld [vmem:[%s4 + $0x270] sm:$0xff]
        %v3342 = vld [vmem:[%s4 + $0x278] sm:$0xff]
        %v3343 = vld [vmem:[%s4 + $0x280] sm:$0xff]
        %v3344 = vld [vmem:[%s4 + $0x288] sm:$0xff]
        %v3345 = vld [vmem:[%s4 + $0x290] sm:$0xff]
        %v3346 = vld [vmem:[%s4 + $0x298] sm:$0xff]
        %v3347 = vld [vmem:[%s4 + $0x2a0] sm:$0xff]
        %v3348 = vld [vmem:[%s4 + $0x2a8] sm:$0xff]
        %v3349 = vld [vmem:[%s4 + $0x2b0] sm:$0xff]
        %v3350 = vld [vmem:[%s4 + $0x2b8] sm:$0xff]
        %v3351 = vld [vmem:[%s4 + $0x2c0] sm:$0xff]
        %v3352 = vld [vmem:[%s4 + $0x2c8] sm:$0xff]
        %v3353 = vld [vmem:[%s4 + $0x2d0] sm:$0xff]
        %v3354 = vld [vmem:[%s4 + $0x2d8] sm:$0xff]
        %v3355 = vld [vmem:[%s4 + $0x2e0] sm:$0xff]
        %v3356 = vld [vmem:[%s4 + $0x2e8] sm:$0xff]
        %v3357 = vld [vmem:[%s4 + $0x2f0] sm:$0xff]
        %v3358 = vld [vmem:[%s4 + $0x2f8] sm:$0xff]
        %v3359 = vld [vmem:[%s4 + $0x300] sm:$0xff]
        %v3360 = vld [vmem:[%s4 + $0x308] sm:$0xff]
        %v3361 = vld [vmem:[%s4 + $0x310] sm:$0xff]
        %v3362 = vld [vmem:[%s4 + $0x318] sm:$0xff]
        %v3363 = vld [vmem:[%s4 + $0x320] sm:$0xff]
        %v3364 = vld [vmem:[%s4 + $0x328] sm:$0xff]
        %v3365 = vld [vmem:[%s4 + $0x330] sm:$0xff]
        %v3366 = vld [vmem:[%s4 + $0x338] sm:$0xff]
        %v3367 = vld [vmem:[%s4 + $0x340] sm:$0xff]
        %v3368 = vld [vmem:[%s4 + $0x348] sm:$0xff]
        %v3369 = vld [vmem:[%s4 + $0x350] sm:$0xff]
        %v3370 = vld [vmem:[%s4 + $0x358] sm:$0xff]
        %v3371 = vld [vmem:[%s4 + $0x360] sm:$0xff]
        %v3372 = vld [vmem:[%s4 + $0x368] sm:$0xff]
        %v3373 = vld [vmem:[%s4 + $0x370] sm:$0xff]
        %v3374 = vld [vmem:[%s4 + $0x378] sm:$0xff]
        %v3375 = vld [vmem:[%s4 + $0x380] sm:$0xff]
        %v3376 = vld [vmem:[%s4 + $0x388] sm:$0xff]
        %v3377 = vld [vmem:[%s4 + $0x390] sm:$0xff]
        %v3378 = vld [vmem:[%s4 + $0x398] sm:$0xff]
        %v3379 = vld [vmem:[%s4 + $0x3a0] sm:$0xff]
        %v3380 = vld [vmem:[%s4 + $0x3a8] sm:$0xff]
        %v3381 = vld [vmem:[%s4 + $0x3b0] sm:$0xff]
        %v3382 = vld [vmem:[%s4 + $0x3b8] sm:$0xff]
        %v3383 = vld [vmem:[%s4 + $0x3c0] sm:$0xff]
        %v3384 = vld [vmem:[%s4 + $0x3c8] sm:$0xff]
        %v3385 = vld [vmem:[%s4 + $0x3d0] sm:$0xff]
        %v3386 = vld [vmem:[%s4 + $0x3d8] sm:$0xff]
        %v3387 = vld [vmem:[%s4 + $0x3e0] sm:$0xff]
        %v3388 = vld [vmem:[%s4 + $0x3e8] sm:$0xff]
        %v3389 = vld [vmem:[%s4 + $0x3f0] sm:$0xff]
        %v3390 = vld [vmem:[%s4 + $0x3f8] sm:$0xff]
        %v3391 = vld [vmem:[%s4 + $0x400] sm:$0xff]
        %v3392 = vld [vmem:[%s4 + $0x408] sm:$0xff]
        %v3393 = vld [vmem:[%s4 + $0x410] sm:$0xff]
        %v3394 = vld [vmem:[%s4 + $0x418] sm:$0xff]
        %v3395 = vld [vmem:[%s4 + $0x420] sm:$0xff]
        %v3396 = vld [vmem:[%s4 + $0x428] sm:$0xff]
        %v3397 = vld [vmem:[%s4 + $0x430] sm:$0xff]
        %v3398 = vld [vmem:[%s4 + $0x438] sm:$0xff]
        %v3399 = vld [vmem:[%s4 + $0x440] sm:$0xff]
        %v3400 = vld [vmem:[%s4 + $0x448] sm:$0xff]
        %v3401 = vld [vmem:[%s4 + $0x450] sm:$0xff]
        %v3402 = vld [vmem:[%s4 + $0x458] sm:$0xff]
        %v3403 = vld [vmem:[%s4 + $0x460] sm:$0xff]
        %v3404 = vld [vmem:[%s4 + $0x468] sm:$0xff]
        %v3405 = vld [vmem:[%s4 + $0x470] sm:$0xff]
        %v3406 = vld [vmem:[%s4 + $0x478] sm:$0xff]
        %v3407 = vld [vmem:[%s4 + $0x480] sm:$0xff]
        %v3408 = vld [vmem:[%s4 + $0x488] sm:$0xff]
        %v3409 = vld [vmem:[%s4 + $0x490] sm:$0xff]
        %v3410 = vld [vmem:[%s4 + $0x498] sm:$0xff]
        %v3411 = vld [vmem:[%s4 + $0x4a0] sm:$0xff]
        %v3412 = vld [vmem:[%s4 + $0x4a8] sm:$0xff]
        %v3413 = vld [vmem:[%s4 + $0x4b0] sm:$0xff]
        %v3414 = vld [vmem:[%s4 + $0x4b8] sm:$0xff]
        %v3415 = vld [vmem:[%s4 + $0x4c0] sm:$0xff]
        %v3416 = vld [vmem:[%s4 + $0x4c8] sm:$0xff]
        %v3417 = vld [vmem:[%s4 + $0x4d0] sm:$0xff]
        %v3418 = vld [vmem:[%s4 + $0x4d8] sm:$0xff]
        %v3419 = vld [vmem:[%s4 + $0x4e0] sm:$0xff]
        %v3420 = vld [vmem:[%s4 + $0x4e8] sm:$0xff]
        %v3421 = vld [vmem:[%s4 + $0x4f0] sm:$0xff]
        %v3422 = vld [vmem:[%s4 + $0x4f8] sm:$0xff]
        %v3423 = vld [vmem:[%s4 + $0x500] sm:$0xff]
        %v3424 = vld [vmem:[%s4 + $0x508] sm:$0xff]
        %v3425 = vld [vmem:[%s4 + $0x510] sm:$0xff]
        %v3426 = vld [vmem:[%s4 + $0x518] sm:$0xff]
        %v3427 = vld [vmem:[%s4 + $0x520] sm:$0xff]
        %v3428 = vld [vmem:[%s4 + $0x528] sm:$0xff]
        %v3429 = vld [vmem:[%s4 + $0x530] sm:$0xff]
        %v3430 = vld [vmem:[%s4 + $0x538] sm:$0xff]
        %v3431 = vld [vmem:[%s4 + $0x540] sm:$0xff]
        %v3432 = vld [vmem:[%s4 + $0x548] sm:$0xff]
        %v3433 = vld [vmem:[%s4 + $0x550] sm:$0xff]
        %v3434 = vld [vmem:[%s4 + $0x558] sm:$0xff]
        %v3435 = vld [vmem:[%s4 + $0x560] sm:$0xff]
        %v3436 = vld [vmem:[%s4 + $0x568] sm:$0xff]
        %v3437 = vld [vmem:[%s4 + $0x570] sm:$0xff]
        %v3438 = vld [vmem:[%s4 + $0x578] sm:$0xff]
        %v3439 = vld [vmem:[%s4 + $0x580] sm:$0xff]
        %v3440 = vld [vmem:[%s4 + $0x588] sm:$0xff]
        %v3441 = vld [vmem:[%s4 + $0x590] sm:$0xff]
        %v3442 = vld [vmem:[%s4 + $0x598] sm:$0xff]
        %v3443 = vld [vmem:[%s4 + $0x5a0] sm:$0xff]
        %v3444 = vld [vmem:[%s4 + $0x5a8] sm:$0xff]
        %v3445 = vld [vmem:[%s4 + $0x5b0] sm:$0xff]
        %v3446 = vld [vmem:[%s4 + $0x5b8] sm:$0xff]
        %v3447 = vld [vmem:[%s4 + $0x5c0] sm:$0xff]
        %v3448 = vld [vmem:[%s4 + $0x5c8] sm:$0xff]
        %v3449 = vld [vmem:[%s4 + $0x5d0] sm:$0xff]
        %v3450 = vld [vmem:[%s4 + $0x5d8] sm:$0xff]
        %v3451 = vld [vmem:[%s4 + $0x5e0] sm:$0xff]
        %v3452 = vld [vmem:[%s4 + $0x5e8] sm:$0xff]
        %v3453 = vld [vmem:[%s4 + $0x5f0] sm:$0xff]
        %v3454 = vld [vmem:[%s4 + $0x5f8] sm:$0xff]
        %v3455 = vld [vmem:[%s4 + $0x600] sm:$0xff]
        %v3456 = vld [vmem:[%s4 + $0x608] sm:$0xff]
        %v3457 = vld [vmem:[%s4 + $0x610] sm:$0xff]
        %v3458 = vld [vmem:[%s4 + $0x618] sm:$0xff]
        %v3459 = vld [vmem:[%s4 + $0x620] sm:$0xff]
        %v3460 = vld [vmem:[%s4 + $0x628] sm:$0xff]
        %v3461 = vld [vmem:[%s4 + $0x630] sm:$0xff]
        %v3462 = vld [vmem:[%s4 + $0x638] sm:$0xff]
        %v3463 = vld [vmem:[%s4 + $0x640] sm:$0xff]
        %v3464 = vld [vmem:[%s4 + $0x648] sm:$0xff]
        %v3465 = vld [vmem:[%s4 + $0x650] sm:$0xff]
        %v3466 = vld [vmem:[%s4 + $0x658] sm:$0xff]
        %v3467 = vld [vmem:[%s4 + $0x660] sm:$0xff]
        %v3468 = vld [vmem:[%s4 + $0x668] sm:$0xff]
        %v3469 = vld [vmem:[%s4 + $0x670] sm:$0xff]
        %v3470 = vld [vmem:[%s4 + $0x678] sm:$0xff]
        %v3471 = vld [vmem:[%s4 + $0x680] sm:$0xff]
        %v3472 = vld [vmem:[%s4 + $0x688] sm:$0xff]
        %v3473 = vld [vmem:[%s4 + $0x690] sm:$0xff]
        %v3474 = vld [vmem:[%s4 + $0x698] sm:$0xff]
        %v3475 = vld [vmem:[%s4 + $0x6a0] sm:$0xff]
        %v3476 = vld [vmem:[%s4 + $0x6a8] sm:$0xff]
        %v3477 = vld [vmem:[%s4 + $0x6b0] sm:$0xff]
        %v3478 = vld [vmem:[%s4 + $0x6b8] sm:$0xff]
        %v3479 = vld [vmem:[%s4 + $0x6c0] sm:$0xff]
        %v3480 = vld [vmem:[%s4 + $0x6c8] sm:$0xff]
        %v3481 = vld [vmem:[%s4 + $0x6d0] sm:$0xff]
        %v3482 = vld [vmem:[%s4 + $0x6d8] sm:$0xff]
        %v3483 = vld [vmem:[%s4 + $0x6e0] sm:$0xff]
        %v3484 = vld [vmem:[%s4 + $0x6e8] sm:$0xff]
        %v3485 = vld [vmem:[%s4 + $0x6f0] sm:$0xff]
        %v3486 = vld [vmem:[%s4 + $0x6f8] sm:$0xff]
        %v3711 = vunpack.c.l.b16 %v3263
        %v3712 = vunpack.c.h.b16 %v3263
        %v3713 = vunpack.c.l.b16 %v3264
        %v3714 = vunpack.c.h.b16 %v3264
        %v3715 = vunpack.c.l.b16 %v3265
        %v3716 = vunpack.c.h.b16 %v3265
        %v3717 = vunpack.c.l.b16 %v3266
        %v3718 = vunpack.c.h.b16 %v3266
        %v3719 = vunpack.c.l.b16 %v3267
        %v3720 = vunpack.c.h.b16 %v3267
        %v3721 = vunpack.c.l.b16 %v3268
        %v3722 = vunpack.c.h.b16 %v3268
        %v3723 = vunpack.c.l.b16 %v3269
        %v3724 = vunpack.c.h.b16 %v3269
        %v3725 = vunpack.c.l.b16 %v3270
        %v3726 = vunpack.c.h.b16 %v3270
        %v3727 = vunpack.c.l.b16 %v3271
        %v3728 = vunpack.c.h.b16 %v3271
        %v3729 = vunpack.c.l.b16 %v3272
        %v3730 = vunpack.c.h.b16 %v3272
        %v3731 = vunpack.c.l.b16 %v3273
        %v3732 = vunpack.c.h.b16 %v3273
        %v3733 = vunpack.c.l.b16 %v3274
        %v3734 = vunpack.c.h.b16 %v3274
        %v3735 = vunpack.c.l.b16 %v3275
        %v3736 = vunpack.c.h.b16 %v3275
        %v3737 = vunpack.c.l.b16 %v3276
        %v3738 = vunpack.c.h.b16 %v3276
        %v3739 = vunpack.c.l.b16 %v3277
        %v3740 = vunpack.c.h.b16 %v3277
        %v3741 = vunpack.c.l.b16 %v3278
        %v3742 = vunpack.c.h.b16 %v3278
        %v3743 = vunpack.c.l.b16 %v3279
        %v3744 = vunpack.c.h.b16 %v3279
        %v3745 = vunpack.c.l.b16 %v3280
        %v3746 = vunpack.c.h.b16 %v3280
        %v3747 = vunpack.c.l.b16 %v3281
        %v3748 = vunpack.c.h.b16 %v3281
        %v3749 = vunpack.c.l.b16 %v3282
        %v3750 = vunpack.c.h.b16 %v3282
        %v3751 = vunpack.c.l.b16 %v3283
        %v3752 = vunpack.c.h.b16 %v3283
        %v3753 = vunpack.c.l.b16 %v3284
        %v3754 = vunpack.c.h.b16 %v3284
        %v3755 = vunpack.c.l.b16 %v3285
        %v3756 = vunpack.c.h.b16 %v3285
        %v3757 = vunpack.c.l.b16 %v3286
        %v3758 = vunpack.c.h.b16 %v3286
        %v3759 = vunpack.c.l.b16 %v3287
        %v3760 = vunpack.c.h.b16 %v3287
        %v3761 = vunpack.c.l.b16 %v3288
        %v3762 = vunpack.c.h.b16 %v3288
        %v3763 = vunpack.c.l.b16 %v3289
        %v3764 = vunpack.c.h.b16 %v3289
        %v3765 = vunpack.c.l.b16 %v3290
        %v3766 = vunpack.c.h.b16 %v3290
        %v3767 = vunpack.c.l.b16 %v3291
        %v3768 = vunpack.c.h.b16 %v3291
        %v3769 = vunpack.c.l.b16 %v3292
        %v3770 = vunpack.c.h.b16 %v3292
        %v3771 = vunpack.c.l.b16 %v3293
        %v3772 = vunpack.c.h.b16 %v3293
        %v3773 = vunpack.c.l.b16 %v3294
        %v3774 = vunpack.c.h.b16 %v3294
        %v3775 = vunpack.c.l.b16 %v3295
        %v3776 = vunpack.c.h.b16 %v3295
        %v3777 = vunpack.c.l.b16 %v3296
        %v3778 = vunpack.c.h.b16 %v3296
        %v3779 = vunpack.c.l.b16 %v3297
        %v3780 = vunpack.c.h.b16 %v3297
        %v3781 = vunpack.c.l.b16 %v3298
        %v3782 = vunpack.c.h.b16 %v3298
        %v3783 = vunpack.c.l.b16 %v3299
        %v3784 = vunpack.c.h.b16 %v3299
        %v3785 = vunpack.c.l.b16 %v3300
        %v3786 = vunpack.c.h.b16 %v3300
        %v3787 = vunpack.c.l.b16 %v3301
        %v3788 = vunpack.c.h.b16 %v3301
        %v3789 = vunpack.c.l.b16 %v3302
        %v3790 = vunpack.c.h.b16 %v3302
        %v3791 = vunpack.c.l.b16 %v3303
        %v3792 = vunpack.c.h.b16 %v3303
        %v3793 = vunpack.c.l.b16 %v3304
        %v3794 = vunpack.c.h.b16 %v3304
        %v3795 = vunpack.c.l.b16 %v3305
        %v3796 = vunpack.c.h.b16 %v3305
        %v3797 = vunpack.c.l.b16 %v3306
        %v3798 = vunpack.c.h.b16 %v3306
        %v3799 = vunpack.c.l.b16 %v3307
        %v3800 = vunpack.c.h.b16 %v3307
        %v3801 = vunpack.c.l.b16 %v3308
        %v3802 = vunpack.c.h.b16 %v3308
        %v3803 = vunpack.c.l.b16 %v3309
        %v3804 = vunpack.c.h.b16 %v3309
        %v3805 = vunpack.c.l.b16 %v3310
        %v3806 = vunpack.c.h.b16 %v3310
        %v3807 = vunpack.c.l.b16 %v3311
        %v3808 = vunpack.c.h.b16 %v3311
        %v3809 = vunpack.c.l.b16 %v3312
        %v3810 = vunpack.c.h.b16 %v3312
        %v3811 = vunpack.c.l.b16 %v3313
        %v3812 = vunpack.c.h.b16 %v3313
        %v3813 = vunpack.c.l.b16 %v3314
        %v3814 = vunpack.c.h.b16 %v3314
        %v3815 = vunpack.c.l.b16 %v3315
        %v3816 = vunpack.c.h.b16 %v3315
        %v3817 = vunpack.c.l.b16 %v3316
        %v3818 = vunpack.c.h.b16 %v3316
        %v3819 = vunpack.c.l.b16 %v3317
        %v3820 = vunpack.c.h.b16 %v3317
        %v3821 = vunpack.c.l.b16 %v3318
        %v3822 = vunpack.c.h.b16 %v3318
        %v3823 = vunpack.c.l.b16 %v3319
        %v3824 = vunpack.c.h.b16 %v3319
        %v3825 = vunpack.c.l.b16 %v3320
        %v3826 = vunpack.c.h.b16 %v3320
        %v3827 = vunpack.c.l.b16 %v3321
        %v3828 = vunpack.c.h.b16 %v3321
        %v3829 = vunpack.c.l.b16 %v3322
        %v3830 = vunpack.c.h.b16 %v3322
        %v3831 = vunpack.c.l.b16 %v3323
        %v3832 = vunpack.c.h.b16 %v3323
        %v3833 = vunpack.c.l.b16 %v3324
        %v3834 = vunpack.c.h.b16 %v3324
        %v3835 = vunpack.c.l.b16 %v3325
        %v3836 = vunpack.c.h.b16 %v3325
        %v3837 = vunpack.c.l.b16 %v3326
        %v3838 = vunpack.c.h.b16 %v3326
        %v3839 = vunpack.c.l.b16 %v3327
        %v3840 = vunpack.c.h.b16 %v3327
        %v3841 = vunpack.c.l.b16 %v3328
        %v3842 = vunpack.c.h.b16 %v3328
        %v3843 = vunpack.c.l.b16 %v3329
        %v3844 = vunpack.c.h.b16 %v3329
        %v3845 = vunpack.c.l.b16 %v3330
        %v3846 = vunpack.c.h.b16 %v3330
        %v3847 = vunpack.c.l.b16 %v3331
        %v3848 = vunpack.c.h.b16 %v3331
        %v3849 = vunpack.c.l.b16 %v3332
        %v3850 = vunpack.c.h.b16 %v3332
        %v3851 = vunpack.c.l.b16 %v3333
        %v3852 = vunpack.c.h.b16 %v3333
        %v3853 = vunpack.c.l.b16 %v3334
        %v3854 = vunpack.c.h.b16 %v3334
        %v3855 = vunpack.c.l.b16 %v3335
        %v3856 = vunpack.c.h.b16 %v3335
        %v3857 = vunpack.c.l.b16 %v3336
        %v3858 = vunpack.c.h.b16 %v3336
        %v3859 = vunpack.c.l.b16 %v3337
        %v3860 = vunpack.c.h.b16 %v3337
        %v3861 = vunpack.c.l.b16 %v3338
        %v3862 = vunpack.c.h.b16 %v3338
        %v3863 = vunpack.c.l.b16 %v3339
        %v3864 = vunpack.c.h.b16 %v3339
        %v3865 = vunpack.c.l.b16 %v3340
        %v3866 = vunpack.c.h.b16 %v3340
        %v3867 = vunpack.c.l.b16 %v3341
        %v3868 = vunpack.c.h.b16 %v3341
        %v3869 = vunpack.c.l.b16 %v3342
        %v3870 = vunpack.c.h.b16 %v3342
        %v3871 = vunpack.c.l.b16 %v3343
        %v3872 = vunpack.c.h.b16 %v3343
        %v3873 = vunpack.c.l.b16 %v3344
        %v3874 = vunpack.c.h.b16 %v3344
        %v3875 = vunpack.c.l.b16 %v3345
        %v3876 = vunpack.c.h.b16 %v3345
        %v3877 = vunpack.c.l.b16 %v3346
        %v3878 = vunpack.c.h.b16 %v3346
        %v3879 = vunpack.c.l.b16 %v3347
        %v3880 = vunpack.c.h.b16 %v3347
        %v3881 = vunpack.c.l.b16 %v3348
        %v3882 = vunpack.c.h.b16 %v3348
        %v3883 = vunpack.c.l.b16 %v3349
        %v3884 = vunpack.c.h.b16 %v3349
        %v3885 = vunpack.c.l.b16 %v3350
        %v3886 = vunpack.c.h.b16 %v3350
        %v3887 = vunpack.c.l.b16 %v3351
        %v3888 = vunpack.c.h.b16 %v3351
        %v3889 = vunpack.c.l.b16 %v3352
        %v3890 = vunpack.c.h.b16 %v3352
        %v3891 = vunpack.c.l.b16 %v3353
        %v3892 = vunpack.c.h.b16 %v3353
        %v3893 = vunpack.c.l.b16 %v3354
        %v3894 = vunpack.c.h.b16 %v3354
        %v3895 = vunpack.c.l.b16 %v3355
        %v3896 = vunpack.c.h.b16 %v3355
        %v3897 = vunpack.c.l.b16 %v3356
        %v3898 = vunpack.c.h.b16 %v3356
        %v3899 = vunpack.c.l.b16 %v3357
        %v3900 = vunpack.c.h.b16 %v3357
        %v3901 = vunpack.c.l.b16 %v3358
        %v3902 = vunpack.c.h.b16 %v3358
        %v3903 = vunpack.c.l.b16 %v3359
        %v3904 = vunpack.c.h.b16 %v3359
        %v3905 = vunpack.c.l.b16 %v3360
        %v3906 = vunpack.c.h.b16 %v3360
        %v3907 = vunpack.c.l.b16 %v3361
        %v3908 = vunpack.c.h.b16 %v3361
        %v3909 = vunpack.c.l.b16 %v3362
        %v3910 = vunpack.c.h.b16 %v3362
        %v3911 = vunpack.c.l.b16 %v3363
        %v3912 = vunpack.c.h.b16 %v3363
        %v3913 = vunpack.c.l.b16 %v3364
        %v3914 = vunpack.c.h.b16 %v3364
        %v3915 = vunpack.c.l.b16 %v3365
        %v3916 = vunpack.c.h.b16 %v3365
        %v3917 = vunpack.c.l.b16 %v3366
        %v3918 = vunpack.c.h.b16 %v3366
        %v3919 = vunpack.c.l.b16 %v3367
        %v3920 = vunpack.c.h.b16 %v3367
        %v3921 = vunpack.c.l.b16 %v3368
        %v3922 = vunpack.c.h.b16 %v3368
        %v3923 = vunpack.c.l.b16 %v3369
        %v3924 = vunpack.c.h.b16 %v3369
        %v3925 = vunpack.c.l.b16 %v3370
        %v3926 = vunpack.c.h.b16 %v3370
        %v3927 = vunpack.c.l.b16 %v3371
        %v3928 = vunpack.c.h.b16 %v3371
        %v3929 = vunpack.c.l.b16 %v3372
        %v3930 = vunpack.c.h.b16 %v3372
        %v3931 = vunpack.c.l.b16 %v3373
        %v3932 = vunpack.c.h.b16 %v3373
        %v3933 = vunpack.c.l.b16 %v3374
        %v3934 = vunpack.c.h.b16 %v3374
        %v3935 = vunpack.c.l.b16 %v3375
        %v3936 = vunpack.c.h.b16 %v3375
        %v3937 = vunpack.c.l.b16 %v3376
        %v3938 = vunpack.c.h.b16 %v3376
        %v3939 = vunpack.c.l.b16 %v3377
        %v3940 = vunpack.c.h.b16 %v3377
        %v3941 = vunpack.c.l.b16 %v3378
        %v3942 = vunpack.c.h.b16 %v3378
        %v3943 = vunpack.c.l.b16 %v3379
        %v3944 = vunpack.c.h.b16 %v3379
        %v3945 = vunpack.c.l.b16 %v3380
        %v3946 = vunpack.c.h.b16 %v3380
        %v3947 = vunpack.c.l.b16 %v3381
        %v3948 = vunpack.c.h.b16 %v3381
        %v3949 = vunpack.c.l.b16 %v3382
        %v3950 = vunpack.c.h.b16 %v3382
        %v3951 = vunpack.c.l.b16 %v3383
        %v3952 = vunpack.c.h.b16 %v3383
        %v3953 = vunpack.c.l.b16 %v3384
        %v3954 = vunpack.c.h.b16 %v3384
        %v3955 = vunpack.c.l.b16 %v3385
        %v3956 = vunpack.c.h.b16 %v3385
        %v3957 = vunpack.c.l.b16 %v3386
        %v3958 = vunpack.c.h.b16 %v3386
        %v3959 = vunpack.c.l.b16 %v3387
        %v3960 = vunpack.c.h.b16 %v3387
        %v3961 = vunpack.c.l.b16 %v3388
        %v3962 = vunpack.c.h.b16 %v3388
        %v3963 = vunpack.c.l.b16 %v3389
        %v3964 = vunpack.c.h.b16 %v3389
        %v3965 = vunpack.c.l.b16 %v3390
        %v3966 = vunpack.c.h.b16 %v3390
        %v3967 = vunpack.c.l.b16 %v3391
        %v3968 = vunpack.c.h.b16 %v3391
        %v3969 = vunpack.c.l.b16 %v3392
        %v3970 = vunpack.c.h.b16 %v3392
        %v3971 = vunpack.c.l.b16 %v3393
        %v3972 = vunpack.c.h.b16 %v3393
        %v3973 = vunpack.c.l.b16 %v3394
        %v3974 = vunpack.c.h.b16 %v3394
        %v3975 = vunpack.c.l.b16 %v3395
        %v3976 = vunpack.c.h.b16 %v3395
        %v3977 = vunpack.c.l.b16 %v3396
        %v3978 = vunpack.c.h.b16 %v3396
        %v3979 = vunpack.c.l.b16 %v3397
        %v3980 = vunpack.c.h.b16 %v3397
        %v3981 = vunpack.c.l.b16 %v3398
        %v3982 = vunpack.c.h.b16 %v3398
        %v3983 = vunpack.c.l.b16 %v3399
        %v3984 = vunpack.c.h.b16 %v3399
        %v3985 = vunpack.c.l.b16 %v3400
        %v3986 = vunpack.c.h.b16 %v3400
        %v3987 = vunpack.c.l.b16 %v3401
        %v3988 = vunpack.c.h.b16 %v3401
        %v3989 = vunpack.c.l.b16 %v3402
        %v3990 = vunpack.c.h.b16 %v3402
        %v3991 = vunpack.c.l.b16 %v3403
        %v3992 = vunpack.c.h.b16 %v3403
        %v3993 = vunpack.c.l.b16 %v3404
        %v3994 = vunpack.c.h.b16 %v3404
        %v3995 = vunpack.c.l.b16 %v3405
        %v3996 = vunpack.c.h.b16 %v3405
        %v3997 = vunpack.c.l.b16 %v3406
        %v3998 = vunpack.c.h.b16 %v3406
        %v3999 = vunpack.c.l.b16 %v3407
        %v4000 = vunpack.c.h.b16 %v3407
        %v4001 = vunpack.c.l.b16 %v3408
        %v4002 = vunpack.c.h.b16 %v3408
        %v4003 = vunpack.c.l.b16 %v3409
        %v4004 = vunpack.c.h.b16 %v3409
        %v4005 = vunpack.c.l.b16 %v3410
        %v4006 = vunpack.c.h.b16 %v3410
        %v4007 = vunpack.c.l.b16 %v3411
        %v4008 = vunpack.c.h.b16 %v3411
        %v4009 = vunpack.c.l.b16 %v3412
        %v4010 = vunpack.c.h.b16 %v3412
        %v4011 = vunpack.c.l.b16 %v3413
        %v4012 = vunpack.c.h.b16 %v3413
        %v4013 = vunpack.c.l.b16 %v3414
        %v4014 = vunpack.c.h.b16 %v3414
        %v4015 = vunpack.c.l.b16 %v3415
        %v4016 = vunpack.c.h.b16 %v3415
        %v4017 = vunpack.c.l.b16 %v3416
        %v4018 = vunpack.c.h.b16 %v3416
        %v4019 = vunpack.c.l.b16 %v3417
        %v4020 = vunpack.c.h.b16 %v3417
        %v4021 = vunpack.c.l.b16 %v3418
        %v4022 = vunpack.c.h.b16 %v3418
        %v4023 = vunpack.c.l.b16 %v3419
        %v4024 = vunpack.c.h.b16 %v3419
        %v4025 = vunpack.c.l.b16 %v3420
        %v4026 = vunpack.c.h.b16 %v3420
        %v4027 = vunpack.c.l.b16 %v3421
        %v4028 = vunpack.c.h.b16 %v3421
        %v4029 = vunpack.c.l.b16 %v3422
        %v4030 = vunpack.c.h.b16 %v3422
        %v4031 = vunpack.c.l.b16 %v3423
        %v4032 = vunpack.c.h.b16 %v3423
        %v4033 = vunpack.c.l.b16 %v3424
        %v4034 = vunpack.c.h.b16 %v3424
        %v4035 = vunpack.c.l.b16 %v3425
        %v4036 = vunpack.c.h.b16 %v3425
        %v4037 = vunpack.c.l.b16 %v3426
        %v4038 = vunpack.c.h.b16 %v3426
        %v4039 = vunpack.c.l.b16 %v3427
        %v4040 = vunpack.c.h.b16 %v3427
        %v4041 = vunpack.c.l.b16 %v3428
        %v4042 = vunpack.c.h.b16 %v3428
        %v4043 = vunpack.c.l.b16 %v3429
        %v4044 = vunpack.c.h.b16 %v3429
        %v4045 = vunpack.c.l.b16 %v3430
        %v4046 = vunpack.c.h.b16 %v3430
        %v4047 = vunpack.c.l.b16 %v3431
        %v4048 = vunpack.c.h.b16 %v3431
        %v4049 = vunpack.c.l.b16 %v3432
        %v4050 = vunpack.c.h.b16 %v3432
        %v4051 = vunpack.c.l.b16 %v3433
        %v4052 = vunpack.c.h.b16 %v3433
        %v4053 = vunpack.c.l.b16 %v3434
        %v4054 = vunpack.c.h.b16 %v3434
        %v4055 = vunpack.c.l.b16 %v3435
        %v4056 = vunpack.c.h.b16 %v3435
        %v4057 = vunpack.c.l.b16 %v3436
        %v4058 = vunpack.c.h.b16 %v3436
        %v4059 = vunpack.c.l.b16 %v3437
        %v4060 = vunpack.c.h.b16 %v3437
        %v4061 = vunpack.c.l.b16 %v3438
        %v4062 = vunpack.c.h.b16 %v3438
        %v4063 = vunpack.c.l.b16 %v3439
        %v4064 = vunpack.c.h.b16 %v3439
        %v4065 = vunpack.c.l.b16 %v3440
        %v4066 = vunpack.c.h.b16 %v3440
        %v4067 = vunpack.c.l.b16 %v3441
        %v4068 = vunpack.c.h.b16 %v3441
        %v4069 = vunpack.c.l.b16 %v3442
        %v4070 = vunpack.c.h.b16 %v3442
        %v4071 = vunpack.c.l.b16 %v3443
        %v4072 = vunpack.c.h.b16 %v3443
        %v4073 = vunpack.c.l.b16 %v3444
        %v4074 = vunpack.c.h.b16 %v3444
        %v4075 = vunpack.c.l.b16 %v3445
        %v4076 = vunpack.c.h.b16 %v3445
        %v4077 = vunpack.c.l.b16 %v3446
        %v4078 = vunpack.c.h.b16 %v3446
        %v4079 = vunpack.c.l.b16 %v3447
        %v4080 = vunpack.c.h.b16 %v3447
        %v4081 = vunpack.c.l.b16 %v3448
        %v4082 = vunpack.c.h.b16 %v3448
        %v4083 = vunpack.c.l.b16 %v3449
        %v4084 = vunpack.c.h.b16 %v3449
        %v4085 = vunpack.c.l.b16 %v3450
        %v4086 = vunpack.c.h.b16 %v3450
        %v4087 = vunpack.c.l.b16 %v3451
        %v4088 = vunpack.c.h.b16 %v3451
        %v4089 = vunpack.c.l.b16 %v3452
        %v4090 = vunpack.c.h.b16 %v3452
        %v4091 = vunpack.c.l.b16 %v3453
        %v4092 = vunpack.c.h.b16 %v3453
        %v4093 = vunpack.c.l.b16 %v3454
        %v4094 = vunpack.c.h.b16 %v3454
        %v4095 = vunpack.c.l.b16 %v3455
        %v4096 = vunpack.c.h.b16 %v3455
        %v4097 = vunpack.c.l.b16 %v3456
        %v4098 = vunpack.c.h.b16 %v3456
        %v4099 = vunpack.c.l.b16 %v3457
        %v4100 = vunpack.c.h.b16 %v3457
        %v4101 = vunpack.c.l.b16 %v3458
        %v4102 = vunpack.c.h.b16 %v3458
        %v4103 = vunpack.c.l.b16 %v3459
        %v4104 = vunpack.c.h.b16 %v3459
        %v4105 = vunpack.c.l.b16 %v3460
        %v4106 = vunpack.c.h.b16 %v3460
        %v4107 = vunpack.c.l.b16 %v3461
        %v4108 = vunpack.c.h.b16 %v3461
        %v4109 = vunpack.c.l.b16 %v3462
        %v4110 = vunpack.c.h.b16 %v3462
        %v4111 = vunpack.c.l.b16 %v3463
        %v4112 = vunpack.c.h.b16 %v3463
        %v4113 = vunpack.c.l.b16 %v3464
        %v4114 = vunpack.c.h.b16 %v3464
        %v4115 = vunpack.c.l.b16 %v3465
        %v4116 = vunpack.c.h.b16 %v3465
        %v4117 = vunpack.c.l.b16 %v3466
        %v4118 = vunpack.c.h.b16 %v3466
        %v4119 = vunpack.c.l.b16 %v3467
        %v4120 = vunpack.c.h.b16 %v3467
        %v4121 = vunpack.c.l.b16 %v3468
        %v4122 = vunpack.c.h.b16 %v3468
        %v4123 = vunpack.c.l.b16 %v3469
        %v4124 = vunpack.c.h.b16 %v3469
        %v4125 = vunpack.c.l.b16 %v3470
        %v4126 = vunpack.c.h.b16 %v3470
        %v4127 = vunpack.c.l.b16 %v3471
        %v4128 = vunpack.c.h.b16 %v3471
        %v4129 = vunpack.c.l.b16 %v3472
        %v4130 = vunpack.c.h.b16 %v3472
        %v4131 = vunpack.c.l.b16 %v3473
        %v4132 = vunpack.c.h.b16 %v3473
        %v4133 = vunpack.c.l.b16 %v3474
        %v4134 = vunpack.c.h.b16 %v3474
        %v4135 = vunpack.c.l.b16 %v3475
        %v4136 = vunpack.c.h.b16 %v3475
        %v4137 = vunpack.c.l.b16 %v3476
        %v4138 = vunpack.c.h.b16 %v3476
        %v4139 = vunpack.c.l.b16 %v3477
        %v4140 = vunpack.c.h.b16 %v3477
        %v4141 = vunpack.c.l.b16 %v3478
        %v4142 = vunpack.c.h.b16 %v3478
        %v4143 = vunpack.c.l.b16 %v3479
        %v4144 = vunpack.c.h.b16 %v3479
        %v4145 = vunpack.c.l.b16 %v3480
        %v4146 = vunpack.c.h.b16 %v3480
        %v4147 = vunpack.c.l.b16 %v3481
        %v4148 = vunpack.c.h.b16 %v3481
        %v4149 = vunpack.c.l.b16 %v3482
        %v4150 = vunpack.c.h.b16 %v3482
        %v4151 = vunpack.c.l.b16 %v3483
        %v4152 = vunpack.c.h.b16 %v3483
        %v4153 = vunpack.c.l.b16 %v3484
        %v4154 = vunpack.c.h.b16 %v3484
        %v4155 = vunpack.c.l.b16 %v3485
        %v4156 = vunpack.c.h.b16 %v3485
        %v4157 = vunpack.c.l.b16 %v3486
        %v4158 = vunpack.c.h.b16 %v3486
        %v4159 = vpack.c.b16 %v3715, %v3711
        %v4160 = vpack.c.b16 %v3716, %v3712
        %v4161 = vpack.c.b16 %v3717, %v3713
        %v4162 = vpack.c.b16 %v3718, %v3714
        %v4163 = vpack.c.b16 %v3723, %v3719
        %v4164 = vpack.c.b16 %v3724, %v3720
        %v4165 = vpack.c.b16 %v3725, %v3721
        %v4166 = vpack.c.b16 %v3726, %v3722
        %v4167 = vpack.c.b16 %v3731, %v3727
        %v4168 = vpack.c.b16 %v3732, %v3728
        %v4169 = vpack.c.b16 %v3733, %v3729
        %v4170 = vpack.c.b16 %v3734, %v3730
        %v4171 = vpack.c.b16 %v3739, %v3735
        %v4172 = vpack.c.b16 %v3740, %v3736
        %v4173 = vpack.c.b16 %v3741, %v3737
        %v4174 = vpack.c.b16 %v3742, %v3738
        %v4175 = vpack.c.b16 %v3747, %v3743
        %v4176 = vpack.c.b16 %v3748, %v3744
        %v4177 = vpack.c.b16 %v3749, %v3745
        %v4178 = vpack.c.b16 %v3750, %v3746
        %v4179 = vpack.c.b16 %v3755, %v3751
        %v4180 = vpack.c.b16 %v3756, %v3752
        %v4181 = vpack.c.b16 %v3757, %v3753
        %v4182 = vpack.c.b16 %v3758, %v3754
        %v4183 = vpack.c.b16 %v3763, %v3759
        %v4184 = vpack.c.b16 %v3764, %v3760
        %v4185 = vpack.c.b16 %v3765, %v3761
        %v4186 = vpack.c.b16 %v3766, %v3762
        %v4187 = vpack.c.b16 %v3771, %v3767
        %v4188 = vpack.c.b16 %v3772, %v3768
        %v4189 = vpack.c.b16 %v3773, %v3769
        %v4190 = vpack.c.b16 %v3774, %v3770
        %v4191 = vpack.c.b16 %v3779, %v3775
        %v4192 = vpack.c.b16 %v3780, %v3776
        %v4193 = vpack.c.b16 %v3781, %v3777
        %v4194 = vpack.c.b16 %v3782, %v3778
        %v4195 = vpack.c.b16 %v3787, %v3783
        %v4196 = vpack.c.b16 %v3788, %v3784
        %v4197 = vpack.c.b16 %v3789, %v3785
        %v4198 = vpack.c.b16 %v3790, %v3786
        %v4199 = vpack.c.b16 %v3795, %v3791
        %v4200 = vpack.c.b16 %v3796, %v3792
        %v4201 = vpack.c.b16 %v3797, %v3793
        %v4202 = vpack.c.b16 %v3798, %v3794
        %v4203 = vpack.c.b16 %v3803, %v3799
        %v4204 = vpack.c.b16 %v3804, %v3800
        %v4205 = vpack.c.b16 %v3805, %v3801
        %v4206 = vpack.c.b16 %v3806, %v3802
        %v4207 = vpack.c.b16 %v3811, %v3807
        %v4208 = vpack.c.b16 %v3812, %v3808
        %v4209 = vpack.c.b16 %v3813, %v3809
        %v4210 = vpack.c.b16 %v3814, %v3810
        %v4211 = vpack.c.b16 %v3819, %v3815
        %v4212 = vpack.c.b16 %v3820, %v3816
        %v4213 = vpack.c.b16 %v3821, %v3817
        %v4214 = vpack.c.b16 %v3822, %v3818
        %v4215 = vpack.c.b16 %v3827, %v3823
        %v4216 = vpack.c.b16 %v3828, %v3824
        %v4217 = vpack.c.b16 %v3829, %v3825
        %v4218 = vpack.c.b16 %v3830, %v3826
        %v4219 = vpack.c.b16 %v3835, %v3831
        %v4220 = vpack.c.b16 %v3836, %v3832
        %v4221 = vpack.c.b16 %v3837, %v3833
        %v4222 = vpack.c.b16 %v3838, %v3834
        %v4223 = vpack.c.b16 %v3843, %v3839
        %v4224 = vpack.c.b16 %v3844, %v3840
        %v4225 = vpack.c.b16 %v3845, %v3841
        %v4226 = vpack.c.b16 %v3846, %v3842
        %v4227 = vpack.c.b16 %v3851, %v3847
        %v4228 = vpack.c.b16 %v3852, %v3848
        %v4229 = vpack.c.b16 %v3853, %v3849
        %v4230 = vpack.c.b16 %v3854, %v3850
        %v4231 = vpack.c.b16 %v3859, %v3855
        %v4232 = vpack.c.b16 %v3860, %v3856
        %v4233 = vpack.c.b16 %v3861, %v3857
        %v4234 = vpack.c.b16 %v3862, %v3858
        %v4235 = vpack.c.b16 %v3867, %v3863
        %v4236 = vpack.c.b16 %v3868, %v3864
        %v4237 = vpack.c.b16 %v3869, %v3865
        %v4238 = vpack.c.b16 %v3870, %v3866
        %v4239 = vpack.c.b16 %v3875, %v3871
        %v4240 = vpack.c.b16 %v3876, %v3872
        %v4241 = vpack.c.b16 %v3877, %v3873
        %v4242 = vpack.c.b16 %v3878, %v3874
        %v4243 = vpack.c.b16 %v3883, %v3879
        %v4244 = vpack.c.b16 %v3884, %v3880
        %v4245 = vpack.c.b16 %v3885, %v3881
        %v4246 = vpack.c.b16 %v3886, %v3882
        %v4247 = vpack.c.b16 %v3891, %v3887
        %v4248 = vpack.c.b16 %v3892, %v3888
        %v4249 = vpack.c.b16 %v3893, %v3889
        %v4250 = vpack.c.b16 %v3894, %v3890
        %v4251 = vpack.c.b16 %v3899, %v3895
        %v4252 = vpack.c.b16 %v3900, %v3896
        %v4253 = vpack.c.b16 %v3901, %v3897
        %v4254 = vpack.c.b16 %v3902, %v3898
        %v4255 = vpack.c.b16 %v3907, %v3903
        %v4256 = vpack.c.b16 %v3908, %v3904
        %v4257 = vpack.c.b16 %v3909, %v3905
        %v4258 = vpack.c.b16 %v3910, %v3906
        %v4259 = vpack.c.b16 %v3915, %v3911
        %v4260 = vpack.c.b16 %v3916, %v3912
        %v4261 = vpack.c.b16 %v3917, %v3913
        %v4262 = vpack.c.b16 %v3918, %v3914
        %v4263 = vpack.c.b16 %v3923, %v3919
        %v4264 = vpack.c.b16 %v3924, %v3920
        %v4265 = vpack.c.b16 %v3925, %v3921
        %v4266 = vpack.c.b16 %v3926, %v3922
        %v4267 = vpack.c.b16 %v3931, %v3927
        %v4268 = vpack.c.b16 %v3932, %v3928
        %v4269 = vpack.c.b16 %v3933, %v3929
        %v4270 = vpack.c.b16 %v3934, %v3930
        %v4271 = vpack.c.b16 %v3939, %v3935
        %v4272 = vpack.c.b16 %v3940, %v3936
        %v4273 = vpack.c.b16 %v3941, %v3937
        %v4274 = vpack.c.b16 %v3942, %v3938
        %v4275 = vpack.c.b16 %v3947, %v3943
        %v4276 = vpack.c.b16 %v3948, %v3944
        %v4277 = vpack.c.b16 %v3949, %v3945
        %v4278 = vpack.c.b16 %v3950, %v3946
        %v4279 = vpack.c.b16 %v3955, %v3951
        %v4280 = vpack.c.b16 %v3956, %v3952
        %v4281 = vpack.c.b16 %v3957, %v3953
        %v4282 = vpack.c.b16 %v3958, %v3954
        %v4283 = vpack.c.b16 %v3963, %v3959
        %v4284 = vpack.c.b16 %v3964, %v3960
        %v4285 = vpack.c.b16 %v3965, %v3961
        %v4286 = vpack.c.b16 %v3966, %v3962
        %v4287 = vpack.c.b16 %v3971, %v3967
        %v4288 = vpack.c.b16 %v3972, %v3968
        %v4289 = vpack.c.b16 %v3973, %v3969
        %v4290 = vpack.c.b16 %v3974, %v3970
        %v4291 = vpack.c.b16 %v3979, %v3975
        %v4292 = vpack.c.b16 %v3980, %v3976
        %v4293 = vpack.c.b16 %v3981, %v3977
        %v4294 = vpack.c.b16 %v3982, %v3978
        %v4295 = vpack.c.b16 %v3987, %v3983
        %v4296 = vpack.c.b16 %v3988, %v3984
        %v4297 = vpack.c.b16 %v3989, %v3985
        %v4298 = vpack.c.b16 %v3990, %v3986
        %v4299 = vpack.c.b16 %v3995, %v3991
        %v4300 = vpack.c.b16 %v3996, %v3992
        %v4301 = vpack.c.b16 %v3997, %v3993
        %v4302 = vpack.c.b16 %v3998, %v3994
        %v4303 = vpack.c.b16 %v4003, %v3999
        %v4304 = vpack.c.b16 %v4004, %v4000
        %v4305 = vpack.c.b16 %v4005, %v4001
        %v4306 = vpack.c.b16 %v4006, %v4002
        %v4307 = vpack.c.b16 %v4011, %v4007
        %v4308 = vpack.c.b16 %v4012, %v4008
        %v4309 = vpack.c.b16 %v4013, %v4009
        %v4310 = vpack.c.b16 %v4014, %v4010
        %v4311 = vpack.c.b16 %v4019, %v4015
        %v4312 = vpack.c.b16 %v4020, %v4016
        %v4313 = vpack.c.b16 %v4021, %v4017
        %v4314 = vpack.c.b16 %v4022, %v4018
        %v4315 = vpack.c.b16 %v4027, %v4023
        %v4316 = vpack.c.b16 %v4028, %v4024
        %v4317 = vpack.c.b16 %v4029, %v4025
        %v4318 = vpack.c.b16 %v4030, %v4026
        %v4319 = vpack.c.b16 %v4035, %v4031
        %v4320 = vpack.c.b16 %v4036, %v4032
        %v4321 = vpack.c.b16 %v4037, %v4033
        %v4322 = vpack.c.b16 %v4038, %v4034
        %v4323 = vpack.c.b16 %v4043, %v4039
        %v4324 = vpack.c.b16 %v4044, %v4040
        %v4325 = vpack.c.b16 %v4045, %v4041
        %v4326 = vpack.c.b16 %v4046, %v4042
        %v4327 = vpack.c.b16 %v4051, %v4047
        %v4328 = vpack.c.b16 %v4052, %v4048
        %v4329 = vpack.c.b16 %v4053, %v4049
        %v4330 = vpack.c.b16 %v4054, %v4050
        %v4331 = vpack.c.b16 %v4059, %v4055
        %v4332 = vpack.c.b16 %v4060, %v4056
        %v4333 = vpack.c.b16 %v4061, %v4057
        %v4334 = vpack.c.b16 %v4062, %v4058
        %v4335 = vpack.c.b16 %v4067, %v4063
        %v4336 = vpack.c.b16 %v4068, %v4064
        %v4337 = vpack.c.b16 %v4069, %v4065
        %v4338 = vpack.c.b16 %v4070, %v4066
        %v4339 = vpack.c.b16 %v4075, %v4071
        %v4340 = vpack.c.b16 %v4076, %v4072
        %v4341 = vpack.c.b16 %v4077, %v4073
        %v4342 = vpack.c.b16 %v4078, %v4074
        %v4343 = vpack.c.b16 %v4083, %v4079
        %v4344 = vpack.c.b16 %v4084, %v4080
        %v4345 = vpack.c.b16 %v4085, %v4081
        %v4346 = vpack.c.b16 %v4086, %v4082
        %v4347 = vpack.c.b16 %v4091, %v4087
        %v4348 = vpack.c.b16 %v4092, %v4088
        %v4349 = vpack.c.b16 %v4093, %v4089
        %v4350 = vpack.c.b16 %v4094, %v4090
        %v4351 = vpack.c.b16 %v4099, %v4095
        %v4352 = vpack.c.b16 %v4100, %v4096
        %v4353 = vpack.c.b16 %v4101, %v4097
        %v4354 = vpack.c.b16 %v4102, %v4098
        %v4355 = vpack.c.b16 %v4107, %v4103
        %v4356 = vpack.c.b16 %v4108, %v4104
        %v4357 = vpack.c.b16 %v4109, %v4105
        %v4358 = vpack.c.b16 %v4110, %v4106
        %v4359 = vpack.c.b16 %v4115, %v4111
        %v4360 = vpack.c.b16 %v4116, %v4112
        %v4361 = vpack.c.b16 %v4117, %v4113
        %v4362 = vpack.c.b16 %v4118, %v4114
        %v4363 = vpack.c.b16 %v4123, %v4119
        %v4364 = vpack.c.b16 %v4124, %v4120
        %v4365 = vpack.c.b16 %v4125, %v4121
        %v4366 = vpack.c.b16 %v4126, %v4122
        %v4367 = vpack.c.b16 %v4131, %v4127
        %v4368 = vpack.c.b16 %v4132, %v4128
        %v4369 = vpack.c.b16 %v4133, %v4129
        %v4370 = vpack.c.b16 %v4134, %v4130
        %v4371 = vpack.c.b16 %v4139, %v4135
        %v4372 = vpack.c.b16 %v4140, %v4136
        %v4373 = vpack.c.b16 %v4141, %v4137
        %v4374 = vpack.c.b16 %v4142, %v4138
        %v4375 = vpack.c.b16 %v4147, %v4143
        %v4376 = vpack.c.b16 %v4148, %v4144
        %v4377 = vpack.c.b16 %v4149, %v4145
        %v4378 = vpack.c.b16 %v4150, %v4146
        %v4379 = vpack.c.b16 %v4155, %v4151
        %v4380 = vpack.c.b16 %v4156, %v4152
        %v4381 = vpack.c.b16 %v4157, %v4153
        %v4382 = vpack.c.b16 %v4158, %v4154
        %4607 = vmatprep.subr.bf16.mxu0 %v4160
        %4608 = vmatpush1.bf16.msra.mxu0 %v4159
        %4609 = vmatprep.subr.bf16.mxu0 %v4164
        %4610 = vmatpush1.bf16.msra.mxu0 %v4163
        %4611 = vmatprep.subr.bf16.mxu0 %v4168
        %4612 = vmatpush1.bf16.msra.mxu0 %v4167
        %4613 = vmatprep.subr.bf16.mxu0 %v4172
        %4614 = vmatpush1.bf16.msra.mxu0 %v4171
        %4615 = vmatprep.subr.bf16.mxu0 %v4176
        %4616 = vmatpush1.bf16.msra.mxu0 %v4175
        %4617 = vmatprep.subr.bf16.mxu0 %v4180
        %4618 = vmatpush1.bf16.msra.mxu0 %v4179
        %4619 = vmatprep.subr.bf16.mxu0 %v4184
        %4620 = vmatpush1.bf16.msra.mxu0 %v4183
        %4621 = vmatprep.subr.bf16.mxu0 %v4188
        %4622 = vmatpush1.bf16.msra.mxu0 %v4187
        %4623 = vmatprep.subr.bf16.mxu0 %v4192
        %4624 = vmatpush1.bf16.msra.mxu0 %v4191
        %4625 = vmatprep.subr.bf16.mxu0 %v4196
        %4626 = vmatpush1.bf16.msra.mxu0 %v4195
        %4627 = vmatprep.subr.bf16.mxu0 %v4200
        %4628 = vmatpush1.bf16.msra.mxu0 %v4199
        %4629 = vmatprep.subr.bf16.mxu0 %v4204
        %4630 = vmatpush1.bf16.msra.mxu0 %v4203
        %4631 = vmatprep.subr.bf16.mxu0 %v4208
        %4632 = vmatpush1.bf16.msra.mxu0 %v4207
        %4633 = vmatprep.subr.bf16.mxu0 %v4212
        %4634 = vmatpush1.bf16.msra.mxu0 %v4211
        %4635 = vmatprep.subr.bf16.mxu0 %v4216
        %4636 = vmatpush1.bf16.msra.mxu0 %v4215
        %4637 = vmatprep.subr.bf16.mxu0 %v4220
        %4638 = vmatpush1.bf16.msra.mxu0 %v4219
        %4639 = vmatprep.mubr.bf16.mxu0 %v3236
        %4640 = vmatmul.mubr.bf16.gmra.mrb[0].mxu0 %v3235
        %v4641 = vpop.f32.mrb[0].mxu0
        %v4642 = vadd.f32 0.0, %v4641
        %v4643 = vpop.f32.mrb[0].mxu0
        %v4644 = vadd.f32 0.0, %v4643
        %v4645 = vpop.f32.mrb[0].mxu0
        %v4646 = vadd.f32 0.0, %v4645
        %v4647 = vpop.f32.mrb[0].mxu0
        %v4648 = vadd.f32 0.0, %v4647
        %4649 = vmatprep.mubr.bf16.mxu0 %v3243
        %4650 = vmatmul.mubr.bf16.gmra.mrb[0].mxu0 %v3242
        %v4651 = vpop.f32.mrb[0].mxu0
        %v4652 = vadd.f32 0.0, %v4651
        %v4653 = vpop.f32.mrb[0].mxu0
        %v4654 = vadd.f32 0.0, %v4653
        %v4655 = vpop.f32.mrb[0].mxu0
        %v4656 = vadd.f32 0.0, %v4655
        %v4657 = vpop.f32.mrb[0].mxu0
        %v4658 = vadd.f32 0.0, %v4657
        %4659 = vmatprep.mubr.bf16.mxu0 %v3250
        %4660 = vmatmul.mubr.bf16.gmra.mrb[0].mxu0 %v3249
        %v4661 = vpop.f32.mrb[0].mxu0
        %v4662 = vadd.f32 0.0, %v4661
        %v4663 = vpop.f32.mrb[0].mxu0
        %v4664 = vadd.f32 0.0, %v4663
        %v4665 = vpop.f32.mrb[0].mxu0
        %v4666 = vadd.f32 0.0, %v4665
        %v4667 = vpop.f32.mrb[0].mxu0
        %v4668 = vadd.f32 0.0, %v4667
        %4669 = vmatprep.mubr.bf16.mxu0 %v3257
        %4670 = vmatmul.mubr.bf16.gmra.mrb[0].mxu0 %v3256
        %v4671 = vpop.f32.mrb[0].mxu0
        %v4672 = vadd.f32 0.0, %v4671
        %v4673 = vpop.f32.mrb[0].mxu0
        %v4674 = vadd.f32 0.0, %v4673
        %v4675 = vpop.f32.mrb[0].mxu0
        %v4676 = vadd.f32 0.0, %v4675
        %v4677 = vpop.f32.mrb[0].mxu0
        %v4678 = vadd.f32 0.0, %v4677
        %4679 = vdwg.mxu0
        %4680 = vmatprep.subr.bf16.mxu0 %v4224
        %4681 = vmatpush1.bf16.msra.mxu0 %v4223
        %4682 = vmatprep.subr.bf16.mxu0 %v4228
        %4683 = vmatpush1.bf16.msra.mxu0 %v4227
        %4684 = vmatprep.subr.bf16.mxu0 %v4232
        %4685 = vmatpush1.bf16.msra.mxu0 %v4231
        %4686 = vmatprep.subr.bf16.mxu0 %v4236
        %4687 = vmatpush1.bf16.msra.mxu0 %v4235
        %4688 = vmatprep.subr.bf16.mxu0 %v4240
        %4689 = vmatpush1.bf16.msra.mxu0 %v4239
        %4690 = vmatprep.subr.bf16.mxu0 %v4244
        %4691 = vmatpush1.bf16.msra.mxu0 %v4243
        %4692 = vmatprep.subr.bf16.mxu0 %v4248
        %4693 = vmatpush1.bf16.msra.mxu0 %v4247
        %4694 = vmatprep.subr.bf16.mxu0 %v4252
        %4695 = vmatpush1.bf16.msra.mxu0 %v4251
        %4696 = vmatprep.subr.bf16.mxu0 %v4256
        %4697 = vmatpush1.bf16.msra.mxu0 %v4255
        %4698 = vmatprep.subr.bf16.mxu0 %v4260
        %4699 = vmatpush1.bf16.msra.mxu0 %v4259
        %4700 = vmatprep.subr.bf16.mxu0 %v4264
        %4701 = vmatpush1.bf16.msra.mxu0 %v4263
        %4702 = vmatprep.subr.bf16.mxu0 %v4268
        %4703 = vmatpush1.bf16.msra.mxu0 %v4267
        %4704 = vmatprep.subr.bf16.mxu0 %v4272
        %4705 = vmatpush1.bf16.msra.mxu0 %v4271
        %4706 = vmatprep.subr.bf16.mxu0 %v4276
        %4707 = vmatpush1.bf16.msra.mxu0 %v4275
        %4708 = vmatprep.subr.bf16.mxu0 %v4280
        %4709 = vmatpush1.bf16.msra.mxu0 %v4279
        %4710 = vmatprep.subr.bf16.mxu0 %v4284
        %4711 = vmatpush1.bf16.msra.mxu0 %v4283
        %4712 = vmatprep.mubr.bf16.mxu0 %v3238
        %4713 = vmatmul.mubr.bf16.gmra.mrb[0].mxu0 %v3237
        %v4714 = vpop.f32.mrb[0].mxu0
        %v4715 = vadd.f32 %v4642, %v4714
        %v4716 = vpop.f32.mrb[0].mxu0
        %v4717 = vadd.f32 %v4644, %v4716
        %v4718 = vpop.f32.mrb[0].mxu0
        %v4719 = vadd.f32 %v4646, %v4718
        %v4720 = vpop.f32.mrb[0].mxu0
        %v4721 = vadd.f32 %v4648, %v4720
        %4722 = vmatprep.mubr.bf16.mxu0 %v3245
        %4723 = vmatmul.mubr.bf16.gmra.mrb[0].mxu0 %v3244
        %v4724 = vpop.f32.mrb[0].mxu0
        %v4725 = vadd.f32 %v4652, %v4724
        %v4726 = vpop.f32.mrb[0].mxu0
        %v4727 = vadd.f32 %v4654, %v4726
        %v4728 = vpop.f32.mrb[0].mxu0
        %v4729 = vadd.f32 %v4656, %v4728
        %v4730 = vpop.f32.mrb[0].mxu0
        %v4731 = vadd.f32 %v4658, %v4730
        %4732 = vmatprep.mubr.bf16.mxu0 %v3252
        %4733 = vmatmul.mubr.bf16.gmra.mrb[0].mxu0 %v3251
        %v4734 = vpop.f32.mrb[0].mxu0
        %v4735 = vadd.f32 %v4662, %v4734
        %v4736 = vpop.f32.mrb[0].mxu0
        %v4737 = vadd.f32 %v4664, %v4736
        %v4738 = vpop.f32.mrb[0].mxu0
        %v4739 = vadd.f32 %v4666, %v4738
        %v4740 = vpop.f32.mrb[0].mxu0
        %v4741 = vadd.f32 %v4668, %v4740
        %4742 = vmatprep.mubr.bf16.mxu0 %v3259
        %4743 = vmatmul.mubr.bf16.gmra.mrb[0].mxu0 %v3258
        %v4744 = vpop.f32.mrb[0].mxu0
        %v4745 = vadd.f32 %v4672, %v4744
        %v4746 = vpop.f32.mrb[0].mxu0
        %v4747 = vadd.f32 %v4674, %v4746
        %v4748 = vpop.f32.mrb[0].mxu0
        %v4749 = vadd.f32 %v4676, %v4748
        %v4750 = vpop.f32.mrb[0].mxu0
        %v4751 = vadd.f32 %v4678, %v4750
        %4752 = vdwg.mxu0
        %4753 = vmatprep.subr.bf16.mxu0 %v4288
        %4754 = vmatpush1.bf16.msra.mxu0 %v4287
        %4755 = vmatprep.subr.bf16.mxu0 %v4292
        %4756 = vmatpush1.bf16.msra.mxu0 %v4291
        %4757 = vmatprep.subr.bf16.mxu0 %v4296
        %4758 = vmatpush1.bf16.msra.mxu0 %v4295
        %4759 = vmatprep.subr.bf16.mxu0 %v4300
        %4760 = vmatpush1.bf16.msra.mxu0 %v4299
        %4761 = vmatprep.subr.bf16.mxu0 %v4304
        %4762 = vmatpush1.bf16.msra.mxu0 %v4303
        %4763 = vmatprep.subr.bf16.mxu0 %v4308
        %4764 = vmatpush1.bf16.msra.mxu0 %v4307
        %4765 = vmatprep.subr.bf16.mxu0 %v4312
        %4766 = vmatpush1.bf16.msra.mxu0 %v4311
        %4767 = vmatprep.subr.bf16.mxu0 %v4316
        %4768 = vmatpush1.bf16.msra.mxu0 %v4315
        %4769 = vmatprep.subr.bf16.mxu0 %v4320
        %4770 = vmatpush1.bf16.msra.mxu0 %v4319
        %4771 = vmatprep.subr.bf16.mxu0 %v4324
        %4772 = vmatpush1.bf16.msra.mxu0 %v4323
        %4773 = vmatprep.subr.bf16.mxu0 %v4328
        %4774 = vmatpush1.bf16.msra.mxu0 %v4327
        %4775 = vmatprep.subr.bf16.mxu0 %v4332
        %4776 = vmatpush1.bf16.msra.mxu0 %v4331
        %4777 = vmatprep.subr.bf16.mxu0 %v4336
        %4778 = vmatpush1.bf16.msra.mxu0 %v4335
        %4779 = vmatprep.subr.bf16.mxu0 %v4340
        %4780 = vmatpush1.bf16.msra.mxu0 %v4339
        %4781 = vmatprep.subr.bf16.mxu0 %v4344
        %4782 = vmatpush1.bf16.msra.mxu0 %v4343
        %4783 = vmatprep.subr.bf16.mxu0 %v4348
        %4784 = vmatpush1.bf16.msra.mxu0 %v4347
        %4785 = vmatprep.mubr.bf16.mxu0 %v3240
        %4786 = vmatmul.mubr.bf16.gmra.mrb[0].mxu0 %v3239
        %v4787 = vpop.f32.mrb[0].mxu0
        %v4788 = vadd.f32 %v4715, %v4787
        %v4789 = vpop.f32.mrb[0].mxu0
        %v4790 = vadd.f32 %v4717, %v4789
        %v4791 = vpop.f32.mrb[0].mxu0
        %v4792 = vadd.f32 %v4719, %v4791
        %v4793 = vpop.f32.mrb[0].mxu0
        %v4794 = vadd.f32 %v4721, %v4793
        %4795 = vmatprep.mubr.bf16.mxu0 %v3247
        %4796 = vmatmul.mubr.bf16.gmra.mrb[0].mxu0 %v3246
        %v4797 = vpop.f32.mrb[0].mxu0
        %v4798 = vadd.f32 %v4725, %v4797
        %v4799 = vpop.f32.mrb[0].mxu0
        %v4800 = vadd.f32 %v4727, %v4799
        %v4801 = vpop.f32.mrb[0].mxu0
        %v4802 = vadd.f32 %v4729, %v4801
        %v4803 = vpop.f32.mrb[0].mxu0
        %v4804 = vadd.f32 %v4731, %v4803
        %4805 = vmatprep.mubr.bf16.mxu0 %v3254
        %4806 = vmatmul.mubr.bf16.gmra.mrb[0].mxu0 %v3253
        %v4807 = vpop.f32.mrb[0].mxu0
        %v4808 = vadd.f32 %v4735, %v4807
        %v4809 = vpop.f32.mrb[0].mxu0
        %v4810 = vadd.f32 %v4737, %v4809
        %v4811 = vpop.f32.mrb[0].mxu0
        %v4812 = vadd.f32 %v4739, %v4811
        %v4813 = vpop.f32.mrb[0].mxu0
        %v4814 = vadd.f32 %v4741, %v4813
        %4815 = vmatprep.mubr.bf16.mxu0 %v3261
        %4816 = vmatmul.mubr.bf16.gmra.mrb[0].mxu0 %v3260
        %v4817 = vpop.f32.mrb[0].mxu0
        %v4818 = vadd.f32 %v4745, %v4817
        %v4819 = vpop.f32.mrb[0].mxu0
        %v4820 = vadd.f32 %v4747, %v4819
        %v4821 = vpop.f32.mrb[0].mxu0
        %v4822 = vadd.f32 %v4749, %v4821
        %v4823 = vpop.f32.mrb[0].mxu0
        %v4824 = vadd.f32 %v4751, %v4823
        %4825 = vdwg.mxu0
        %4826 = vmatprep.subr.bf16.mxu0 %v4352
        %4827 = vmatpush1.bf16.msra.mxu0 %v4351
        %4828 = vmatprep.subr.bf16.mxu0 %v4356
        %4829 = vmatpush1.bf16.msra.mxu0 %v4355
        %4830 = vmatprep.subr.bf16.mxu0 %v4360
        %4831 = vmatpush1.bf16.msra.mxu0 %v4359
        %4832 = vmatprep.subr.bf16.mxu0 %v4364
        %4833 = vmatpush1.bf16.msra.mxu0 %v4363
        %4834 = vmatprep.subr.bf16.mxu0 %v4368
        %4835 = vmatpush1.bf16.msra.mxu0 %v4367
        %4836 = vmatprep.subr.bf16.mxu0 %v4372
        %4837 = vmatpush1.bf16.msra.mxu0 %v4371
        %4838 = vmatprep.subr.bf16.mxu0 %v4376
        %4839 = vmatpush1.bf16.msra.mxu0 %v4375
        %4840 = vmatprep.subr.bf16.mxu0 %v4380
        %4841 = vmatpush1.bf16.msra.mxu0 %v4379
        %4842 = vmatprep.subr.bf16.mxu0 0
        %4843 = vmatpush1.bf16.msra.mxu0 0
        %4844 = vmatprep.subr.bf16.mxu0 0
        %4845 = vmatpush1.bf16.msra.mxu0 0
        %4846 = vmatprep.subr.bf16.mxu0 0
        %4847 = vmatpush1.bf16.msra.mxu0 0
        %4848 = vmatprep.subr.bf16.mxu0 0
        %4849 = vmatpush1.bf16.msra.mxu0 0
        %4850 = vmatprep.subr.bf16.mxu0 0
        %4851 = vmatpush1.bf16.msra.mxu0 0
        %4852 = vmatprep.subr.bf16.mxu0 0
        %4853 = vmatpush1.bf16.msra.mxu0 0
        %4854 = vmatprep.subr.bf16.mxu0 0
        %4855 = vmatpush1.bf16.msra.mxu0 0
        %4856 = vmatprep.subr.bf16.mxu0 0
        %4857 = vmatpush1.bf16.msra.mxu0 0
        %4858 = vmatprep.mubr.bf16.mxu0 0
        %4859 = vmatmul.mubr.bf16.gmra.mrb[0].mxu0 %v3241
        %v4860 = vpop.f32.mrb[0].mxu0
        %v4861 = vadd.f32 %v4788, %v4860
        %v4862 = vpop.f32.mrb[0].mxu0
        %v4863 = vadd.f32 %v4790, %v4862
        %v4864 = vpop.f32.mrb[0].mxu0
        %v4865 = vadd.f32 %v4792, %v4864
        %v4866 = vpop.f32.mrb[0].mxu0
        %v4867 = vadd.f32 %v4794, %v4866
        %4868 = vmatprep.mubr.bf16.mxu0 0
        %4869 = vmatmul.mubr.bf16.gmra.mrb[0].mxu0 %v3248
        %v4870 = vpop.f32.mrb[0].mxu0
        %v4871 = vadd.f32 %v4798, %v4870
        %v4872 = vpop.f32.mrb[0].mxu0
        %v4873 = vadd.f32 %v4800, %v4872
        %v4874 = vpop.f32.mrb[0].mxu0
        %v4875 = vadd.f32 %v4802, %v4874
        %v4876 = vpop.f32.mrb[0].mxu0
        %v4877 = vadd.f32 %v4804, %v4876
        %4878 = vmatprep.mubr.bf16.mxu0 0
        %4879 = vmatmul.mubr.bf16.gmra.mrb[0].mxu0 %v3255
        %v4880 = vpop.f32.mrb[0].mxu0
        %v4881 = vadd.f32 %v4808, %v4880
        %v4882 = vpop.f32.mrb[0].mxu0
        %v4883 = vadd.f32 %v4810, %v4882
        %v4884 = vpop.f32.mrb[0].mxu0
        %v4885 = vadd.f32 %v4812, %v4884
        %v4886 = vpop.f32.mrb[0].mxu0
        %v4887 = vadd.f32 %v4814, %v4886
        %4888 = vmatprep.mubr.bf16.mxu0 0
        %4889 = vmatmul.mubr.bf16.gmra.mrb[0].mxu0 %v3262
        %v4890 = vpop.f32.mrb[0].mxu0
        %v4891 = vadd.f32 %v4818, %v4890
        %v4892 = vpop.f32.mrb[0].mxu0
        %v4893 = vadd.f32 %v4820, %v4892
        %v4894 = vpop.f32.mrb[0].mxu0
        %v4895 = vadd.f32 %v4822, %v4894
        %v4896 = vpop.f32.mrb[0].mxu0
        %v4897 = vadd.f32 %v4824, %v4896
        %4898 = vdwg.mxu0
        %4899 = vmatprep.subr.bf16.mxu0 %v4162
        %4900 = vmatpush1.bf16.msra.mxu0 %v4161
        %4901 = vmatprep.subr.bf16.mxu0 %v4166
        %4902 = vmatpush1.bf16.msra.mxu0 %v4165
        %4903 = vmatprep.subr.bf16.mxu0 %v4170
        %4904 = vmatpush1.bf16.msra.mxu0 %v4169
        %4905 = vmatprep.subr.bf16.mxu0 %v4174
        %4906 = vmatpush1.bf16.msra.mxu0 %v4173
        %4907 = vmatprep.subr.bf16.mxu0 %v4178
        %4908 = vmatpush1.bf16.msra.mxu0 %v4177
        %4909 = vmatprep.subr.bf16.mxu0 %v4182
        %4910 = vmatpush1.bf16.msra.mxu0 %v4181
        %4911 = vmatprep.subr.bf16.mxu0 %v4186
        %4912 = vmatpush1.bf16.msra.mxu0 %v4185
        %4913 = vmatprep.subr.bf16.mxu0 %v4190
        %4914 = vmatpush1.bf16.msra.mxu0 %v4189
        %4915 = vmatprep.subr.bf16.mxu0 %v4194
        %4916 = vmatpush1.bf16.msra.mxu0 %v4193
        %4917 = vmatprep.subr.bf16.mxu0 %v4198
        %4918 = vmatpush1.bf16.msra.mxu0 %v4197
        %4919 = vmatprep.subr.bf16.mxu0 %v4202
        %4920 = vmatpush1.bf16.msra.mxu0 %v4201
        %4921 = vmatprep.subr.bf16.mxu0 %v4206
        %4922 = vmatpush1.bf16.msra.mxu0 %v4205
        %4923 = vmatprep.subr.bf16.mxu0 %v4210
        %4924 = vmatpush1.bf16.msra.mxu0 %v4209
        %4925 = vmatprep.subr.bf16.mxu0 %v4214
        %4926 = vmatpush1.bf16.msra.mxu0 %v4213
        %4927 = vmatprep.subr.bf16.mxu0 %v4218
        %4928 = vmatpush1.bf16.msra.mxu0 %v4217
        %4929 = vmatprep.subr.bf16.mxu0 %v4222
        %4930 = vmatpush1.bf16.msra.mxu0 %v4221
        %4931 = vmatprep.mubr.bf16.mxu0 %v3236
        %4932 = vmatmul.mubr.bf16.gmra.mrb[0].mxu0 %v3235
        %v4933 = vpop.f32.mrb[0].mxu0
        %v4934 = vadd.f32 0.0, %v4933
        %v4935 = vpop.f32.mrb[0].mxu0
        %v4936 = vadd.f32 0.0, %v4935
        %v4937 = vpop.f32.mrb[0].mxu0
        %v4938 = vadd.f32 0.0, %v4937
        %v4939 = vpop.f32.mrb[0].mxu0
        %v4940 = vadd.f32 0.0, %v4939
        %4941 = vmatprep.mubr.bf16.mxu0 %v3243
        %4942 = vmatmul.mubr.bf16.gmra.mrb[0].mxu0 %v3242
        %v4943 = vpop.f32.mrb[0].mxu0
        %v4944 = vadd.f32 0.0, %v4943
        %v4945 = vpop.f32.mrb[0].mxu0
        %v4946 = vadd.f32 0.0, %v4945
        %v4947 = vpop.f32.mrb[0].mxu0
        %v4948 = vadd.f32 0.0, %v4947
        %v4949 = vpop.f32.mrb[0].mxu0
        %v4950 = vadd.f32 0.0, %v4949
        %4951 = vmatprep.mubr.bf16.mxu0 %v3250
        %4952 = vmatmul.mubr.bf16.gmra.mrb[0].mxu0 %v3249
        %v4953 = vpop.f32.mrb[0].mxu0
        %v4954 = vadd.f32 0.0, %v4953
        %v4955 = vpop.f32.mrb[0].mxu0
        %v4956 = vadd.f32 0.0, %v4955
        %v4957 = vpop.f32.mrb[0].mxu0
        %v4958 = vadd.f32 0.0, %v4957
        %v4959 = vpop.f32.mrb[0].mxu0
        %v4960 = vadd.f32 0.0, %v4959
        %4961 = vmatprep.mubr.bf16.mxu0 %v3257
        %4962 = vmatmul.mubr.bf16.gmra.mrb[0].mxu0 %v3256
        %v4963 = vpop.f32.mrb[0].mxu0
        %v4964 = vadd.f32 0.0, %v4963
        %v4965 = vpop.f32.mrb[0].mxu0
        %v4966 = vadd.f32 0.0, %v4965
        %v4967 = vpop.f32.mrb[0].mxu0
        %v4968 = vadd.f32 0.0, %v4967
        %v4969 = vpop.f32.mrb[0].mxu0
        %v4970 = vadd.f32 0.0, %v4969
        %4971 = vdwg.mxu0
        %4972 = vmatprep.subr.bf16.mxu0 %v4226
        %4973 = vmatpush1.bf16.msra.mxu0 %v4225
        %4974 = vmatprep.subr.bf16.mxu0 %v4230
        %4975 = vmatpush1.bf16.msra.mxu0 %v4229
        %4976 = vmatprep.subr.bf16.mxu0 %v4234
        %4977 = vmatpush1.bf16.msra.mxu0 %v4233
        %4978 = vmatprep.subr.bf16.mxu0 %v4238
        %4979 = vmatpush1.bf16.msra.mxu0 %v4237
        %4980 = vmatprep.subr.bf16.mxu0 %v4242
        %4981 = vmatpush1.bf16.msra.mxu0 %v4241
        %4982 = vmatprep.subr.bf16.mxu0 %v4246
        %4983 = vmatpush1.bf16.msra.mxu0 %v4245
        %4984 = vmatprep.subr.bf16.mxu0 %v4250
        %4985 = vmatpush1.bf16.msra.mxu0 %v4249
        %4986 = vmatprep.subr.bf16.mxu0 %v4254
        %4987 = vmatpush1.bf16.msra.mxu0 %v4253
        %4988 = vmatprep.subr.bf16.mxu0 %v4258
        %4989 = vmatpush1.bf16.msra.mxu0 %v4257
        %4990 = vmatprep.subr.bf16.mxu0 %v4262
        %4991 = vmatpush1.bf16.msra.mxu0 %v4261
        %4992 = vmatprep.subr.bf16.mxu0 %v4266
        %4993 = vmatpush1.bf16.msra.mxu0 %v4265
        %4994 = vmatprep.subr.bf16.mxu0 %v4270
        %4995 = vmatpush1.bf16.msra.mxu0 %v4269
        %4996 = vmatprep.subr.bf16.mxu0 %v4274
        %4997 = vmatpush1.bf16.msra.mxu0 %v4273
        %4998 = vmatprep.subr.bf16.mxu0 %v4278
        %4999 = vmatpush1.bf16.msra.mxu0 %v4277
        %5000 = vmatprep.subr.bf16.mxu0 %v4282
        %5001 = vmatpush1.bf16.msra.mxu0 %v4281
        %5002 = vmatprep.subr.bf16.mxu0 %v4286
        %5003 = vmatpush1.bf16.msra.mxu0 %v4285
        %5004 = vmatprep.mubr.bf16.mxu0 %v3238
        %5005 = vmatmul.mubr.bf16.gmra.mrb[0].mxu0 %v3237
        %v5006 = vpop.f32.mrb[0].mxu0
        %v5007 = vadd.f32 %v4934, %v5006
        %v5008 = vpop.f32.mrb[0].mxu0
        %v5009 = vadd.f32 %v4936, %v5008
        %v5010 = vpop.f32.mrb[0].mxu0
        %v5011 = vadd.f32 %v4938, %v5010
        %v5012 = vpop.f32.mrb[0].mxu0
        %v5013 = vadd.f32 %v4940, %v5012
        %5014 = vmatprep.mubr.bf16.mxu0 %v3245
        %5015 = vmatmul.mubr.bf16.gmra.mrb[0].mxu0 %v3244
        %v5016 = vpop.f32.mrb[0].mxu0
        %v5017 = vadd.f32 %v4944, %v5016
        %v5018 = vpop.f32.mrb[0].mxu0
        %v5019 = vadd.f32 %v4946, %v5018
        %v5020 = vpop.f32.mrb[0].mxu0
        %v5021 = vadd.f32 %v4948, %v5020
        %v5022 = vpop.f32.mrb[0].mxu0
        %v5023 = vadd.f32 %v4950, %v5022
        %5024 = vmatprep.mubr.bf16.mxu0 %v3252
        %5025 = vmatmul.mubr.bf16.gmra.mrb[0].mxu0 %v3251
        %v5026 = vpop.f32.mrb[0].mxu0
        %v5027 = vadd.f32 %v4954, %v5026
        %v5028 = vpop.f32.mrb[0].mxu0
        %v5029 = vadd.f32 %v4956, %v5028
        %v5030 = vpop.f32.mrb[0].mxu0
        %v5031 = vadd.f32 %v4958, %v5030
        %v5032 = vpop.f32.mrb[0].mxu0
        %v5033 = vadd.f32 %v4960, %v5032
        %5034 = vmatprep.mubr.bf16.mxu0 %v3259
        %5035 = vmatmul.mubr.bf16.gmra.mrb[0].mxu0 %v3258
        %v5036 = vpop.f32.mrb[0].mxu0
        %v5037 = vadd.f32 %v4964, %v5036
        %v5038 = vpop.f32.mrb[0].mxu0
        %v5039 = vadd.f32 %v4966, %v5038
        %v5040 = vpop.f32.mrb[0].mxu0
        %v5041 = vadd.f32 %v4968, %v5040
        %v5042 = vpop.f32.mrb[0].mxu0
        %v5043 = vadd.f32 %v4970, %v5042
        %5044 = vdwg.mxu0
        %5045 = vmatprep.subr.bf16.mxu0 %v4290
        %5046 = vmatpush1.bf16.msra.mxu0 %v4289
        %5047 = vmatprep.subr.bf16.mxu0 %v4294
        %5048 = vmatpush1.bf16.msra.mxu0 %v4293
        %5049 = vmatprep.subr.bf16.mxu0 %v4298
        %5050 = vmatpush1.bf16.msra.mxu0 %v4297
        %5051 = vmatprep.subr.bf16.mxu0 %v4302
        %5052 = vmatpush1.bf16.msra.mxu0 %v4301
        %5053 = vmatprep.subr.bf16.mxu0 %v4306
        %5054 = vmatpush1.bf16.msra.mxu0 %v4305
        %5055 = vmatprep.subr.bf16.mxu0 %v4310
        %5056 = vmatpush1.bf16.msra.mxu0 %v4309
        %5057 = vmatprep.subr.bf16.mxu0 %v4314
        %5058 = vmatpush1.bf16.msra.mxu0 %v4313
        %5059 = vmatprep.subr.bf16.mxu0 %v4318
        %5060 = vmatpush1.bf16.msra.mxu0 %v4317
        %5061 = vmatprep.subr.bf16.mxu0 %v4322
        %5062 = vmatpush1.bf16.msra.mxu0 %v4321
        %5063 = vmatprep.subr.bf16.mxu0 %v4326
        %5064 = vmatpush1.bf16.msra.mxu0 %v4325
        %5065 = vmatprep.subr.bf16.mxu0 %v4330
        %5066 = vmatpush1.bf16.msra.mxu0 %v4329
        %5067 = vmatprep.subr.bf16.mxu0 %v4334
        %5068 = vmatpush1.bf16.msra.mxu0 %v4333
        %5069 = vmatprep.subr.bf16.mxu0 %v4338
        %5070 = vmatpush1.bf16.msra.mxu0 %v4337
        %5071 = vmatprep.subr.bf16.mxu0 %v4342
        %5072 = vmatpush1.bf16.msra.mxu0 %v4341
        %5073 = vmatprep.subr.bf16.mxu0 %v4346
        %5074 = vmatpush1.bf16.msra.mxu0 %v4345
        %5075 = vmatprep.subr.bf16.mxu0 %v4350
        %5076 = vmatpush1.bf16.msra.mxu0 %v4349
        %5077 = vmatprep.mubr.bf16.mxu0 %v3240
        %5078 = vmatmul.mubr.bf16.gmra.mrb[0].mxu0 %v3239
        %v5079 = vpop.f32.mrb[0].mxu0
        %v5080 = vadd.f32 %v5007, %v5079
        %v5081 = vpop.f32.mrb[0].mxu0
        %v5082 = vadd.f32 %v5009, %v5081
        %v5083 = vpop.f32.mrb[0].mxu0
        %v5084 = vadd.f32 %v5011, %v5083
        %v5085 = vpop.f32.mrb[0].mxu0
        %v5086 = vadd.f32 %v5013, %v5085
        %5087 = vmatprep.mubr.bf16.mxu0 %v3247
        %5088 = vmatmul.mubr.bf16.gmra.mrb[0].mxu0 %v3246
        %v5089 = vpop.f32.mrb[0].mxu0
        %v5090 = vadd.f32 %v5017, %v5089
        %v5091 = vpop.f32.mrb[0].mxu0
        %v5092 = vadd.f32 %v5019, %v5091
        %v5093 = vpop.f32.mrb[0].mxu0
        %v5094 = vadd.f32 %v5021, %v5093
        %v5095 = vpop.f32.mrb[0].mxu0
        %v5096 = vadd.f32 %v5023, %v5095
        %5097 = vmatprep.mubr.bf16.mxu0 %v3254
        %5098 = vmatmul.mubr.bf16.gmra.mrb[0].mxu0 %v3253
        %v5099 = vpop.f32.mrb[0].mxu0
        %v5100 = vadd.f32 %v5027, %v5099
        %v5101 = vpop.f32.mrb[0].mxu0
        %v5102 = vadd.f32 %v5029, %v5101
        %v5103 = vpop.f32.mrb[0].mxu0
        %v5104 = vadd.f32 %v5031, %v5103
        %v5105 = vpop.f32.mrb[0].mxu0
        %v5106 = vadd.f32 %v5033, %v5105
        %5107 = vmatprep.mubr.bf16.mxu0 %v3261
        %5108 = vmatmul.mubr.bf16.gmra.mrb[0].mxu0 %v3260
        %v5109 = vpop.f32.mrb[0].mxu0
        %v5110 = vadd.f32 %v5037, %v5109
        %v5111 = vpop.f32.mrb[0].mxu0
        %v5112 = vadd.f32 %v5039, %v5111
        %v5113 = vpop.f32.mrb[0].mxu0
        %v5114 = vadd.f32 %v5041, %v5113
        %v5115 = vpop.f32.mrb[0].mxu0
        %v5116 = vadd.f32 %v5043, %v5115
        %5117 = vdwg.mxu0
        %5118 = vmatprep.subr.bf16.mxu0 %v4354
        %5119 = vmatpush1.bf16.msra.mxu0 %v4353
        %5120 = vmatprep.subr.bf16.mxu0 %v4358
        %5121 = vmatpush1.bf16.msra.mxu0 %v4357
        %5122 = vmatprep.subr.bf16.mxu0 %v4362
        %5123 = vmatpush1.bf16.msra.mxu0 %v4361
        %5124 = vmatprep.subr.bf16.mxu0 %v4366
        %5125 = vmatpush1.bf16.msra.mxu0 %v4365
        %5126 = vmatprep.subr.bf16.mxu0 %v4370
        %5127 = vmatpush1.bf16.msra.mxu0 %v4369
        %5128 = vmatprep.subr.bf16.mxu0 %v4374
        %5129 = vmatpush1.bf16.msra.mxu0 %v4373
        %5130 = vmatprep.subr.bf16.mxu0 %v4378
        %5131 = vmatpush1.bf16.msra.mxu0 %v4377
        %5132 = vmatprep.subr.bf16.mxu0 %v4382
        %5133 = vmatpush1.bf16.msra.mxu0 %v4381
        %5134 = vmatprep.subr.bf16.mxu0 0
        %5135 = vmatpush1.bf16.msra.mxu0 0
        %5136 = vmatprep.subr.bf16.mxu0 0
        %5137 = vmatpush1.bf16.msra.mxu0 0
        %5138 = vmatprep.subr.bf16.mxu0 0
        %5139 = vmatpush1.bf16.msra.mxu0 0
        %5140 = vmatprep.subr.bf16.mxu0 0
        %5141 = vmatpush1.bf16.msra.mxu0 0
        %5142 = vmatprep.subr.bf16.mxu0 0
        %5143 = vmatpush1.bf16.msra.mxu0 0
        %5144 = vmatprep.subr.bf16.mxu0 0
        %5145 = vmatpush1.bf16.msra.mxu0 0
        %5146 = vmatprep.subr.bf16.mxu0 0
        %5147 = vmatpush1.bf16.msra.mxu0 0
        %5148 = vmatprep.subr.bf16.mxu0 0
        %5149 = vmatpush1.bf16.msra.mxu0 0
        %5150 = vmatprep.mubr.bf16.mxu0 0
        %5151 = vmatmul.mubr.bf16.gmra.mrb[0].mxu0 %v3241
        %v5152 = vpop.f32.mrb[0].mxu0
        %v5153 = vadd.f32 %v5080, %v5152
        %v5154 = vpop.f32.mrb[0].mxu0
        %v5155 = vadd.f32 %v5082, %v5154
        %v5156 = vpop.f32.mrb[0].mxu0
        %v5157 = vadd.f32 %v5084, %v5156
        %v5158 = vpop.f32.mrb[0].mxu0
        %v5159 = vadd.f32 %v5086, %v5158
        %5160 = vmatprep.mubr.bf16.mxu0 0
        %5161 = vmatmul.mubr.bf16.gmra.mrb[0].mxu0 %v3248
        %v5162 = vpop.f32.mrb[0].mxu0
        %v5163 = vadd.f32 %v5090, %v5162
        %v5164 = vpop.f32.mrb[0].mxu0
        %v5165 = vadd.f32 %v5092, %v5164
        %v5166 = vpop.f32.mrb[0].mxu0
        %v5167 = vadd.f32 %v5094, %v5166
        %v5168 = vpop.f32.mrb[0].mxu0
        %v5169 = vadd.f32 %v5096, %v5168
        %5170 = vmatprep.mubr.bf16.mxu0 0
        %5171 = vmatmul.mubr.bf16.gmra.mrb[0].mxu0 %v3255
        %v5172 = vpop.f32.mrb[0].mxu0
        %v5173 = vadd.f32 %v5100, %v5172
        %v5174 = vpop.f32.mrb[0].mxu0
        %v5175 = vadd.f32 %v5102, %v5174
        %v5176 = vpop.f32.mrb[0].mxu0
        %v5177 = vadd.f32 %v5104, %v5176
        %v5178 = vpop.f32.mrb[0].mxu0
        %v5179 = vadd.f32 %v5106, %v5178
        %5180 = vmatprep.mubr.bf16.mxu0 0
        %5181 = vmatmul.mubr.bf16.gmra.mrb[0].mxu0 %v3262
        %v5182 = vpop.f32.mrb[0].mxu0
        %v5183 = vadd.f32 %v5110, %v5182
        %v5184 = vpop.f32.mrb[0].mxu0
        %v5185 = vadd.f32 %v5112, %v5184
        %v5186 = vpop.f32.mrb[0].mxu0
        %v5187 = vadd.f32 %v5114, %v5186
        %v5188 = vpop.f32.mrb[0].mxu0
        %v5189 = vadd.f32 %v5116, %v5188
        %5190 = vdwg.mxu0
        %v5191 = vpack.c.bf16 %v4865, %v4861
        %v5192 = vpack.c.bf16 %v4867, %v4863
        %v5193 = vpack.c.bf16 %v5157, %v5153
        %v5194 = vpack.c.bf16 %v5159, %v5155
        %v5195 = vpack.c.bf16 %v4875, %v4871
        %v5196 = vpack.c.bf16 %v4877, %v4873
        %v5197 = vpack.c.bf16 %v5167, %v5163
        %v5198 = vpack.c.bf16 %v5169, %v5165
        %v5199 = vpack.c.bf16 %v4885, %v4881
        %v5200 = vpack.c.bf16 %v4887, %v4883
        %v5201 = vpack.c.bf16 %v5177, %v5173
        %v5202 = vpack.c.bf16 %v5179, %v5175
        %v5203 = vpack.c.bf16 %v4895, %v4891
        %v5204 = vpack.c.bf16 %v4897, %v4893
        %v5205 = vpack.c.bf16 %v5187, %v5183
        %v5206 = vpack.c.bf16 %v5189, %v5185
        %v5208 = vshrl.u32 %v5191, 16
        %v5210 = vrot.slane %v5208, 7
        %v5211 = vshll.u32 %v5191, 16
        %v5213 = vor.u32 %v5210, %v5211
        %v5215 = vshrl.u32 %v5192, 16
        %v5217 = vrot.slane %v5215, 7
        %v5218 = vshll.u32 %v5192, 16
        %v5220 = vor.u32 %v5217, %v5218
        %v5222 = vshrl.u32 %v5193, 16
        %v5224 = vrot.slane %v5222, 7
        %v5225 = vshll.u32 %v5193, 16
        %v5227 = vor.u32 %v5224, %v5225
        %v5229 = vshrl.u32 %v5194, 16
        %v5231 = vrot.slane %v5229, 7
        %v5232 = vshll.u32 %v5194, 16
        %v5234 = vor.u32 %v5231, %v5232
        %v5236 = vshrl.u32 %v5195, 16
        %v5238 = vrot.slane %v5236, 7
        %v5239 = vshll.u32 %v5195, 16
        %v5241 = vor.u32 %v5238, %v5239
        %v5242 = vsel %vm594, %v5210, %v5241
        %v5244 = vshrl.u32 %v5196, 16
        %v5246 = vrot.slane %v5244, 7
        %v5247 = vshll.u32 %v5196, 16
        %v5249 = vor.u32 %v5246, %v5247
        %v5250 = vsel %vm594, %v5217, %v5249
        %v5252 = vshrl.u32 %v5197, 16
        %v5254 = vrot.slane %v5252, 7
        %v5255 = vshll.u32 %v5197, 16
        %v5257 = vor.u32 %v5254, %v5255
        %v5258 = vsel %vm594, %v5224, %v5257
        %v5260 = vshrl.u32 %v5198, 16
        %v5262 = vrot.slane %v5260, 7
        %v5263 = vshll.u32 %v5198, 16
        %v5265 = vor.u32 %v5262, %v5263
        %v5266 = vsel %vm594, %v5231, %v5265
        %v5268 = vshrl.u32 %v5199, 16
        %v5270 = vrot.slane %v5268, 7
        %v5271 = vshll.u32 %v5199, 16
        %v5273 = vor.u32 %v5270, %v5271
        %v5274 = vsel %vm594, %v5238, %v5273
        %v5276 = vshrl.u32 %v5200, 16
        %v5278 = vrot.slane %v5276, 7
        %v5279 = vshll.u32 %v5200, 16
        %v5281 = vor.u32 %v5278, %v5279
        %v5282 = vsel %vm594, %v5246, %v5281
        %v5284 = vshrl.u32 %v5201, 16
        %v5286 = vrot.slane %v5284, 7
        %v5287 = vshll.u32 %v5201, 16
        %v5289 = vor.u32 %v5286, %v5287
        %v5290 = vsel %vm594, %v5254, %v5289
        %v5292 = vshrl.u32 %v5202, 16
        %v5294 = vrot.slane %v5292, 7
        %v5295 = vshll.u32 %v5202, 16
        %v5297 = vor.u32 %v5294, %v5295
        %v5298 = vsel %vm594, %v5262, %v5297
        %v5300 = vshrl.u32 %v5203, 16
        %v5302 = vrot.slane %v5300, 7
        %v5303 = vshll.u32 %v5203, 16
        %v5305 = vor.u32 %v5302, %v5303
        %v5306 = vsel %vm594, %v5270, %v5305
        %v5308 = vshrl.u32 %v5204, 16
        %v5310 = vrot.slane %v5308, 7
        %v5311 = vshll.u32 %v5204, 16
        %v5313 = vor.u32 %v5310, %v5311
        %v5314 = vsel %vm594, %v5278, %v5313
        %v5316 = vshrl.u32 %v5205, 16
        %v5318 = vrot.slane %v5316, 7
        %v5319 = vshll.u32 %v5205, 16
        %v5321 = vor.u32 %v5318, %v5319
        %v5322 = vsel %vm594, %v5286, %v5321
        %v5324 = vshrl.u32 %v5206, 16
        %v5326 = vrot.slane %v5324, 7
        %v5327 = vshll.u32 %v5206, 16
        %v5329 = vor.u32 %v5326, %v5327
        %v5330 = vsel %vm594, %v5294, %v5329
        %v5344 = vsel %vm660, 0, %v5213
        %v5345 = vsel %vm660, 0, %v5220
        %v5346 = vsel %vm660, 0, %v5227
        %v5347 = vsel %vm660, 0, %v5234
        %v5348 = vrot.slane %v5211, 1
        %v5349 = vor.u32 %v5208, %v5348
        %v5350 = vrot.slane %v5239, 1
        %v5351 = vsel %vm662, %v5349, %v5350
        %v5352 = vrot.slane %v5218, 1
        %v5353 = vor.u32 %v5215, %v5352
        %v5354 = vrot.slane %v5247, 1
        %v5355 = vsel %vm662, %v5353, %v5354
        %v5356 = vrot.slane %v5225, 1
        %v5357 = vor.u32 %v5222, %v5356
        %v5358 = vrot.slane %v5255, 1
        %v5359 = vsel %vm662, %v5357, %v5358
        %v5360 = vrot.slane %v5232, 1
        %v5361 = vor.u32 %v5229, %v5360
        %v5362 = vrot.slane %v5263, 1
        %v5363 = vsel %vm662, %v5361, %v5362
        %v5364 = vor.u32 %v5236, %v5350
        %v5365 = vrot.slane %v5271, 1
        %v5366 = vsel %vm662, %v5364, %v5365
        %v5367 = vor.u32 %v5244, %v5354
        %v5368 = vrot.slane %v5279, 1
        %v5369 = vsel %vm662, %v5367, %v5368
        %v5370 = vor.u32 %v5252, %v5358
        %v5371 = vrot.slane %v5287, 1
        %v5372 = vsel %vm662, %v5370, %v5371
        %v5373 = vor.u32 %v5260, %v5362
        %v5374 = vrot.slane %v5295, 1
        %v5375 = vsel %vm662, %v5373, %v5374
        %v5376 = vor.u32 %v5268, %v5365
        %v5377 = vrot.slane %v5303, 1
        %v5378 = vsel %vm662, %v5376, %v5377
        %v5379 = vor.u32 %v5276, %v5368
        %v5380 = vrot.slane %v5311, 1
        %v5381 = vsel %vm662, %v5379, %v5380
        %v5382 = vor.u32 %v5284, %v5371
        %v5383 = vrot.slane %v5319, 1
        %v5384 = vsel %vm662, %v5382, %v5383
        %v5385 = vor.u32 %v5292, %v5374
        %v5386 = vrot.slane %v5327, 1
        %v5387 = vsel %vm662, %v5385, %v5386
        %v5388 = vor.u32 %v5300, %v5377
        %v5389 = vor.u32 %v5308, %v5380
        %v5390 = vor.u32 %v5316, %v5383
        %v5391 = vor.u32 %v5324, %v5386
        %v5405 = vsel %vm688, %v5388, 0
        %v5406 = vsel %vm688, %v5389, 0
        %v5407 = vsel %vm688, %v5390, 0
        %v5408 = vsel %vm688, %v5391, 0
        %5425 = vrot.lane.b32.xlu0 %v5191, 64
        %v5426 = vpop.permute.xlu0 %5425
        %5427 = vrot.lane.b32.xlu0 %v5192, 64
        %v5428 = vpop.permute.xlu0 %5427
        %5429 = vrot.lane.b32.xlu0 %v5193, 64
        %v5430 = vpop.permute.xlu0 %5429
        %5431 = vrot.lane.b32.xlu0 %v5194, 64
        %v5432 = vpop.permute.xlu0 %5431
        %5433 = vrot.lane.b32.xlu0 %v5195, 64
        %v5434 = vpop.permute.xlu0 %5433
        %5435 = vrot.lane.b32.xlu0 %v5196, 64
        %v5436 = vpop.permute.xlu0 %5435
        %5437 = vrot.lane.b32.xlu0 %v5197, 64
        %v5438 = vpop.permute.xlu0 %5437
        %5439 = vrot.lane.b32.xlu0 %v5198, 64
        %v5440 = vpop.permute.xlu0 %5439
        %5441 = vrot.lane.b32.xlu0 %v5199, 64
        %v5442 = vpop.permute.xlu0 %5441
        %5443 = vrot.lane.b32.xlu0 %v5200, 64
        %v5444 = vpop.permute.xlu0 %5443
        %5445 = vrot.lane.b32.xlu0 %v5201, 64
        %v5446 = vpop.permute.xlu0 %5445
        %5447 = vrot.lane.b32.xlu0 %v5202, 64
        %v5448 = vpop.permute.xlu0 %5447
        %5449 = vrot.lane.b32.xlu0 %v5203, 64
        %v5450 = vpop.permute.xlu0 %5449
        %5451 = vrot.lane.b32.xlu0 %v5204, 64
        %v5452 = vpop.permute.xlu0 %5451
        %5453 = vrot.lane.b32.xlu0 %v5205, 64
        %v5454 = vpop.permute.xlu0 %5453
        %5455 = vrot.lane.b32.xlu0 %v5206, 64
        %v5456 = vpop.permute.xlu0 %5455
        %vm5457 = vcmask 523264
        %v5458 = vsel %vm5457, %v5426, %v5428
        %v5459 = vsel %vm5457, %v5428, %v5430
        %v5460 = vsel %vm5457, %v5430, %v5432
        %v5461 = vsel %vm5457, %v5434, %v5436
        %v5462 = vsel %vm5457, %v5436, %v5438
        %v5463 = vsel %vm5457, %v5438, %v5440
        %v5464 = vsel %vm5457, %v5442, %v5444
        %v5465 = vsel %vm5457, %v5444, %v5446
        %v5466 = vsel %vm5457, %v5446, %v5448
        %v5467 = vsel %vm5457, %v5450, %v5452
        %v5468 = vsel %vm5457, %v5452, %v5454
        %v5469 = vsel %vm5457, %v5454, %v5456
        %v5484 = vsel %vm748, %v5347, %v5426
        %v5488 = vsel %vm748, %v5266, %v5434
        %v5492 = vsel %vm748, %v5298, %v5442
        %v5496 = vsel %vm748, %v5330, %v5450
        %v5498 = vld [vmem:[%s5] sm:$0xff]
        %v5499 = vld [vmem:[%s5 + $0x8] sm:$0xff]
        %v5500 = vld [vmem:[%s5 + $0x10] sm:$0xff]
        %v5501 = vld [vmem:[%s5 + $0x18] sm:$0xff]
        %v5502 = vld [vmem:[%s5 + $0x20] sm:$0xff]
        %v5503 = vld [vmem:[%s5 + $0x28] sm:$0xff]
        %v5504 = vld [vmem:[%s5 + $0x30] sm:$0xff]
        %v5505 = vld [vmem:[%s5 + $0x38] sm:$0xff]
        %v5506 = vld [vmem:[%s5 + $0x40] sm:$0xff]
        %v5507 = vld [vmem:[%s5 + $0x48] sm:$0xff]
        %v5508 = vld [vmem:[%s5 + $0x50] sm:$0xff]
        %v5509 = vld [vmem:[%s5 + $0x58] sm:$0xff]
        %v5510 = vld [vmem:[%s5 + $0x60] sm:$0xff]
        %v5511 = vld [vmem:[%s5 + $0x68] sm:$0xff]
        %v5512 = vld [vmem:[%s5 + $0x70] sm:$0xff]
        %v5513 = vld [vmem:[%s5 + $0x78] sm:$0xff]
        %v5514 = vld [vmem:[%s5 + $0x80] sm:$0xff]
        %v5515 = vld [vmem:[%s5 + $0x88] sm:$0xff]
        %v5516 = vld [vmem:[%s5 + $0x90] sm:$0xff]
        %v5517 = vld [vmem:[%s5 + $0x98] sm:$0xff]
        %v5518 = vld [vmem:[%s5 + $0xa0] sm:$0xff]
        %v5519 = vld [vmem:[%s5 + $0xa8] sm:$0xff]
        %v5520 = vld [vmem:[%s5 + $0xb0] sm:$0xff]
        %v5521 = vld [vmem:[%s5 + $0xb8] sm:$0xff]
        %v5522 = vld [vmem:[%s5 + $0xc0] sm:$0xff]
        %v5523 = vld [vmem:[%s5 + $0xc8] sm:$0xff]
        %v5524 = vld [vmem:[%s5 + $0xd0] sm:$0xff]
        %v5525 = vld [vmem:[%s5 + $0xd8] sm:$0xff]
        %v5526 = vld [vmem:[%s5 + $0xe0] sm:$0xff]
        %v5527 = vld [vmem:[%s5 + $0xe8] sm:$0xff]
        %v5528 = vld [vmem:[%s5 + $0xf0] sm:$0xff]
        %v5529 = vld [vmem:[%s5 + $0xf8] sm:$0xff]
        %v5530 = vld [vmem:[%s5 + $0x100] sm:$0xff]
        %v5531 = vld [vmem:[%s5 + $0x108] sm:$0xff]
        %v5532 = vld [vmem:[%s5 + $0x110] sm:$0xff]
        %v5533 = vld [vmem:[%s5 + $0x118] sm:$0xff]
        %v5534 = vld [vmem:[%s5 + $0x120] sm:$0xff]
        %v5535 = vld [vmem:[%s5 + $0x128] sm:$0xff]
        %v5536 = vld [vmem:[%s5 + $0x130] sm:$0xff]
        %v5537 = vld [vmem:[%s5 + $0x138] sm:$0xff]
        %v5538 = vld [vmem:[%s5 + $0x140] sm:$0xff]
        %v5539 = vld [vmem:[%s5 + $0x148] sm:$0xff]
        %v5540 = vld [vmem:[%s5 + $0x150] sm:$0xff]
        %v5541 = vld [vmem:[%s5 + $0x158] sm:$0xff]
        %v5542 = vld [vmem:[%s5 + $0x160] sm:$0xff]
        %v5543 = vld [vmem:[%s5 + $0x168] sm:$0xff]
        %v5544 = vld [vmem:[%s5 + $0x170] sm:$0xff]
        %v5545 = vld [vmem:[%s5 + $0x178] sm:$0xff]
        %v5546 = vld [vmem:[%s5 + $0x180] sm:$0xff]
        %v5547 = vld [vmem:[%s5 + $0x188] sm:$0xff]
        %v5548 = vld [vmem:[%s5 + $0x190] sm:$0xff]
        %v5549 = vld [vmem:[%s5 + $0x198] sm:$0xff]
        %v5550 = vld [vmem:[%s5 + $0x1a0] sm:$0xff]
        %v5551 = vld [vmem:[%s5 + $0x1a8] sm:$0xff]
        %v5552 = vld [vmem:[%s5 + $0x1b0] sm:$0xff]
        %v5553 = vld [vmem:[%s5 + $0x1b8] sm:$0xff]
        %v5554 = vld [vmem:[%s5 + $0x1c0] sm:$0xff]
        %v5555 = vld [vmem:[%s5 + $0x1c8] sm:$0xff]
        %v5556 = vld [vmem:[%s5 + $0x1d0] sm:$0xff]
        %v5557 = vld [vmem:[%s5 + $0x1d8] sm:$0xff]
        %v5558 = vld [vmem:[%s5 + $0x1e0] sm:$0xff]
        %v5559 = vld [vmem:[%s5 + $0x1e8] sm:$0xff]
        %v5560 = vld [vmem:[%s5 + $0x1f0] sm:$0xff]
        %v5561 = vld [vmem:[%s5 + $0x1f8] sm:$0xff]
        %v5562 = vld [vmem:[%s5 + $0x200] sm:$0xff]
        %v5563 = vld [vmem:[%s5 + $0x208] sm:$0xff]
        %v5564 = vld [vmem:[%s5 + $0x210] sm:$0xff]
        %v5565 = vld [vmem:[%s5 + $0x218] sm:$0xff]
        %v5566 = vld [vmem:[%s5 + $0x220] sm:$0xff]
        %v5567 = vld [vmem:[%s5 + $0x228] sm:$0xff]
        %v5568 = vld [vmem:[%s5 + $0x230] sm:$0xff]
        %v5569 = vld [vmem:[%s5 + $0x238] sm:$0xff]
        %v5570 = vld [vmem:[%s5 + $0x240] sm:$0xff]
        %v5571 = vld [vmem:[%s5 + $0x248] sm:$0xff]
        %v5572 = vld [vmem:[%s5 + $0x250] sm:$0xff]
        %v5573 = vld [vmem:[%s5 + $0x258] sm:$0xff]
        %v5574 = vld [vmem:[%s5 + $0x260] sm:$0xff]
        %v5575 = vld [vmem:[%s5 + $0x268] sm:$0xff]
        %v5576 = vld [vmem:[%s5 + $0x270] sm:$0xff]
        %v5577 = vld [vmem:[%s5 + $0x278] sm:$0xff]
        %v5578 = vld [vmem:[%s5 + $0x280] sm:$0xff]
        %v5579 = vld [vmem:[%s5 + $0x288] sm:$0xff]
        %v5580 = vld [vmem:[%s5 + $0x290] sm:$0xff]
        %v5581 = vld [vmem:[%s5 + $0x298] sm:$0xff]
        %v5582 = vld [vmem:[%s5 + $0x2a0] sm:$0xff]
        %v5583 = vld [vmem:[%s5 + $0x2a8] sm:$0xff]
        %v5584 = vld [vmem:[%s5 + $0x2b0] sm:$0xff]
        %v5585 = vld [vmem:[%s5 + $0x2b8] sm:$0xff]
        %v5586 = vld [vmem:[%s5 + $0x2c0] sm:$0xff]
        %v5587 = vld [vmem:[%s5 + $0x2c8] sm:$0xff]
        %v5588 = vld [vmem:[%s5 + $0x2d0] sm:$0xff]
        %v5589 = vld [vmem:[%s5 + $0x2d8] sm:$0xff]
        %v5590 = vld [vmem:[%s5 + $0x2e0] sm:$0xff]
        %v5591 = vld [vmem:[%s5 + $0x2e8] sm:$0xff]
        %v5592 = vld [vmem:[%s5 + $0x2f0] sm:$0xff]
        %v5593 = vld [vmem:[%s5 + $0x2f8] sm:$0xff]
        %v5594 = vld [vmem:[%s5 + $0x300] sm:$0xff]
        %v5595 = vld [vmem:[%s5 + $0x308] sm:$0xff]
        %v5596 = vld [vmem:[%s5 + $0x310] sm:$0xff]
        %v5597 = vld [vmem:[%s5 + $0x318] sm:$0xff]
        %v5598 = vld [vmem:[%s5 + $0x320] sm:$0xff]
        %v5599 = vld [vmem:[%s5 + $0x328] sm:$0xff]
        %v5600 = vld [vmem:[%s5 + $0x330] sm:$0xff]
        %v5601 = vld [vmem:[%s5 + $0x338] sm:$0xff]
        %v5602 = vld [vmem:[%s5 + $0x340] sm:$0xff]
        %v5603 = vld [vmem:[%s5 + $0x348] sm:$0xff]
        %v5604 = vld [vmem:[%s5 + $0x350] sm:$0xff]
        %v5605 = vld [vmem:[%s5 + $0x358] sm:$0xff]
        %v5606 = vld [vmem:[%s5 + $0x360] sm:$0xff]
        %v5607 = vld [vmem:[%s5 + $0x368] sm:$0xff]
        %v5608 = vld [vmem:[%s5 + $0x370] sm:$0xff]
        %v5609 = vld [vmem:[%s5 + $0x378] sm:$0xff]
        %v5610 = vld [vmem:[%s5 + $0x380] sm:$0xff]
        %v5611 = vld [vmem:[%s5 + $0x388] sm:$0xff]
        %v5612 = vld [vmem:[%s5 + $0x390] sm:$0xff]
        %v5613 = vld [vmem:[%s5 + $0x398] sm:$0xff]
        %v5614 = vld [vmem:[%s5 + $0x3a0] sm:$0xff]
        %v5615 = vld [vmem:[%s5 + $0x3a8] sm:$0xff]
        %v5616 = vld [vmem:[%s5 + $0x3b0] sm:$0xff]
        %v5617 = vld [vmem:[%s5 + $0x3b8] sm:$0xff]
        %v5618 = vld [vmem:[%s5 + $0x3c0] sm:$0xff]
        %v5619 = vld [vmem:[%s5 + $0x3c8] sm:$0xff]
        %v5620 = vld [vmem:[%s5 + $0x3d0] sm:$0xff]
        %v5621 = vld [vmem:[%s5 + $0x3d8] sm:$0xff]
        %v5622 = vld [vmem:[%s5 + $0x3e0] sm:$0xff]
        %v5623 = vld [vmem:[%s5 + $0x3e8] sm:$0xff]
        %v5624 = vld [vmem:[%s5 + $0x3f0] sm:$0xff]
        %v5625 = vld [vmem:[%s5 + $0x3f8] sm:$0xff]
        %v5626 = vld [vmem:[%s5 + $0x400] sm:$0xff]
        %v5627 = vld [vmem:[%s5 + $0x408] sm:$0xff]
        %v5628 = vld [vmem:[%s5 + $0x410] sm:$0xff]
        %v5629 = vld [vmem:[%s5 + $0x418] sm:$0xff]
        %v5630 = vld [vmem:[%s5 + $0x420] sm:$0xff]
        %v5631 = vld [vmem:[%s5 + $0x428] sm:$0xff]
        %v5632 = vld [vmem:[%s5 + $0x430] sm:$0xff]
        %v5633 = vld [vmem:[%s5 + $0x438] sm:$0xff]
        %v5634 = vld [vmem:[%s5 + $0x440] sm:$0xff]
        %v5635 = vld [vmem:[%s5 + $0x448] sm:$0xff]
        %v5636 = vld [vmem:[%s5 + $0x450] sm:$0xff]
        %v5637 = vld [vmem:[%s5 + $0x458] sm:$0xff]
        %v5638 = vld [vmem:[%s5 + $0x460] sm:$0xff]
        %v5639 = vld [vmem:[%s5 + $0x468] sm:$0xff]
        %v5640 = vld [vmem:[%s5 + $0x470] sm:$0xff]
        %v5641 = vld [vmem:[%s5 + $0x478] sm:$0xff]
        %v5642 = vld [vmem:[%s5 + $0x480] sm:$0xff]
        %v5643 = vld [vmem:[%s5 + $0x488] sm:$0xff]
        %v5644 = vld [vmem:[%s5 + $0x490] sm:$0xff]
        %v5645 = vld [vmem:[%s5 + $0x498] sm:$0xff]
        %v5646 = vld [vmem:[%s5 + $0x4a0] sm:$0xff]
        %v5647 = vld [vmem:[%s5 + $0x4a8] sm:$0xff]
        %v5648 = vld [vmem:[%s5 + $0x4b0] sm:$0xff]
        %v5649 = vld [vmem:[%s5 + $0x4b8] sm:$0xff]
        %v5650 = vld [vmem:[%s5 + $0x4c0] sm:$0xff]
        %v5651 = vld [vmem:[%s5 + $0x4c8] sm:$0xff]
        %v5652 = vld [vmem:[%s5 + $0x4d0] sm:$0xff]
        %v5653 = vld [vmem:[%s5 + $0x4d8] sm:$0xff]
        %v5654 = vld [vmem:[%s5 + $0x4e0] sm:$0xff]
        %v5655 = vld [vmem:[%s5 + $0x4e8] sm:$0xff]
        %v5656 = vld [vmem:[%s5 + $0x4f0] sm:$0xff]
        %v5657 = vld [vmem:[%s5 + $0x4f8] sm:$0xff]
        %v5658 = vld [vmem:[%s5 + $0x500] sm:$0xff]
        %v5659 = vld [vmem:[%s5 + $0x508] sm:$0xff]
        %v5660 = vld [vmem:[%s5 + $0x510] sm:$0xff]
        %v5661 = vld [vmem:[%s5 + $0x518] sm:$0xff]
        %v5662 = vld [vmem:[%s5 + $0x520] sm:$0xff]
        %v5663 = vld [vmem:[%s5 + $0x528] sm:$0xff]
        %v5664 = vld [vmem:[%s5 + $0x530] sm:$0xff]
        %v5665 = vld [vmem:[%s5 + $0x538] sm:$0xff]
        %v5666 = vld [vmem:[%s5 + $0x540] sm:$0xff]
        %v5667 = vld [vmem:[%s5 + $0x548] sm:$0xff]
        %v5668 = vld [vmem:[%s5 + $0x550] sm:$0xff]
        %v5669 = vld [vmem:[%s5 + $0x558] sm:$0xff]
        %v5670 = vld [vmem:[%s5 + $0x560] sm:$0xff]
        %v5671 = vld [vmem:[%s5 + $0x568] sm:$0xff]
        %v5672 = vld [vmem:[%s5 + $0x570] sm:$0xff]
        %v5673 = vld [vmem:[%s5 + $0x578] sm:$0xff]
        %v5674 = vld [vmem:[%s5 + $0x580] sm:$0xff]
        %v5675 = vld [vmem:[%s5 + $0x588] sm:$0xff]
        %v5676 = vld [vmem:[%s5 + $0x590] sm:$0xff]
        %v5677 = vld [vmem:[%s5 + $0x598] sm:$0xff]
        %v5678 = vld [vmem:[%s5 + $0x5a0] sm:$0xff]
        %v5679 = vld [vmem:[%s5 + $0x5a8] sm:$0xff]
        %v5680 = vld [vmem:[%s5 + $0x5b0] sm:$0xff]
        %v5681 = vld [vmem:[%s5 + $0x5b8] sm:$0xff]
        %v5682 = vld [vmem:[%s5 + $0x5c0] sm:$0xff]
        %v5683 = vld [vmem:[%s5 + $0x5c8] sm:$0xff]
        %v5684 = vld [vmem:[%s5 + $0x5d0] sm:$0xff]
        %v5685 = vld [vmem:[%s5 + $0x5d8] sm:$0xff]
        %v5686 = vld [vmem:[%s5 + $0x5e0] sm:$0xff]
        %v5687 = vld [vmem:[%s5 + $0x5e8] sm:$0xff]
        %v5688 = vld [vmem:[%s5 + $0x5f0] sm:$0xff]
        %v5689 = vld [vmem:[%s5 + $0x5f8] sm:$0xff]
        %v5690 = vld [vmem:[%s5 + $0x600] sm:$0xff]
        %v5691 = vld [vmem:[%s5 + $0x608] sm:$0xff]
        %v5692 = vld [vmem:[%s5 + $0x610] sm:$0xff]
        %v5693 = vld [vmem:[%s5 + $0x618] sm:$0xff]
        %v5694 = vld [vmem:[%s5 + $0x620] sm:$0xff]
        %v5695 = vld [vmem:[%s5 + $0x628] sm:$0xff]
        %v5696 = vld [vmem:[%s5 + $0x630] sm:$0xff]
        %v5697 = vld [vmem:[%s5 + $0x638] sm:$0xff]
        %v5698 = vld [vmem:[%s5 + $0x640] sm:$0xff]
        %v5699 = vld [vmem:[%s5 + $0x648] sm:$0xff]
        %v5700 = vld [vmem:[%s5 + $0x650] sm:$0xff]
        %v5701 = vld [vmem:[%s5 + $0x658] sm:$0xff]
        %v5702 = vld [vmem:[%s5 + $0x660] sm:$0xff]
        %v5703 = vld [vmem:[%s5 + $0x668] sm:$0xff]
        %v5704 = vld [vmem:[%s5 + $0x670] sm:$0xff]
        %v5705 = vld [vmem:[%s5 + $0x678] sm:$0xff]
        %v5706 = vld [vmem:[%s5 + $0x680] sm:$0xff]
        %v5707 = vld [vmem:[%s5 + $0x688] sm:$0xff]
        %v5708 = vld [vmem:[%s5 + $0x690] sm:$0xff]
        %v5709 = vld [vmem:[%s5 + $0x698] sm:$0xff]
        %v5710 = vld [vmem:[%s5 + $0x6a0] sm:$0xff]
        %v5711 = vld [vmem:[%s5 + $0x6a8] sm:$0xff]
        %v5712 = vld [vmem:[%s5 + $0x6b0] sm:$0xff]
        %v5713 = vld [vmem:[%s5 + $0x6b8] sm:$0xff]
        %v5714 = vld [vmem:[%s5 + $0x6c0] sm:$0xff]
        %v5715 = vld [vmem:[%s5 + $0x6c8] sm:$0xff]
        %v5716 = vld [vmem:[%s5 + $0x6d0] sm:$0xff]
        %v5717 = vld [vmem:[%s5 + $0x6d8] sm:$0xff]
        %v5718 = vld [vmem:[%s5 + $0x6e0] sm:$0xff]
        %v5719 = vld [vmem:[%s5 + $0x6e8] sm:$0xff]
        %v5720 = vld [vmem:[%s5 + $0x6f0] sm:$0xff]
        %v5721 = vld [vmem:[%s5 + $0x6f8] sm:$0xff]
        %v5722 = vld [vmem:[%s5 + $0x700] sm:$0xff]
        %v5723 = vld [vmem:[%s5 + $0x708] sm:$0xff]
        %v5724 = vld [vmem:[%s5 + $0x710] sm:$0xff]
        %v5725 = vld [vmem:[%s5 + $0x718] sm:$0xff]
        %v5726 = vld [vmem:[%s5 + $0x720] sm:$0xff]
        %v5727 = vld [vmem:[%s5 + $0x728] sm:$0xff]
        %v5728 = vld [vmem:[%s5 + $0x730] sm:$0xff]
        %v5729 = vld [vmem:[%s5 + $0x738] sm:$0xff]
        %v5730 = vld [vmem:[%s5 + $0x740] sm:$0xff]
        %v5731 = vld [vmem:[%s5 + $0x748] sm:$0xff]
        %v5732 = vld [vmem:[%s5 + $0x750] sm:$0xff]
        %v5733 = vld [vmem:[%s5 + $0x758] sm:$0xff]
        %v5734 = vld [vmem:[%s5 + $0x760] sm:$0xff]
        %v5735 = vld [vmem:[%s5 + $0x768] sm:$0xff]
        %v5736 = vld [vmem:[%s5 + $0x770] sm:$0xff]
        %v5737 = vld [vmem:[%s5 + $0x778] sm:$0xff]
        %v5738 = vld [vmem:[%s5 + $0x780] sm:$0xff]
        %v5739 = vld [vmem:[%s5 + $0x788] sm:$0xff]
        %v5740 = vld [vmem:[%s5 + $0x790] sm:$0xff]
        %v5741 = vld [vmem:[%s5 + $0x798] sm:$0xff]
        %v5742 = vld [vmem:[%s5 + $0x7a0] sm:$0xff]
        %v5743 = vld [vmem:[%s5 + $0x7a8] sm:$0xff]
        %v5744 = vld [vmem:[%s5 + $0x7b0] sm:$0xff]
        %v5745 = vld [vmem:[%s5 + $0x7b8] sm:$0xff]
        %v5746 = vld [vmem:[%s5 + $0x7c0] sm:$0xff]
        %v5747 = vld [vmem:[%s5 + $0x7c8] sm:$0xff]
        %v5748 = vld [vmem:[%s5 + $0x7d0] sm:$0xff]
        %v5749 = vld [vmem:[%s5 + $0x7d8] sm:$0xff]
        %v5750 = vld [vmem:[%s5 + $0x7e0] sm:$0xff]
        %v5751 = vld [vmem:[%s5 + $0x7e8] sm:$0xff]
        %v5752 = vld [vmem:[%s5 + $0x7f0] sm:$0xff]
        %v5753 = vld [vmem:[%s5 + $0x7f8] sm:$0xff]
        %v5754 = vld [vmem:[%s5 + $0x800] sm:$0xff]
        %v5755 = vld [vmem:[%s5 + $0x808] sm:$0xff]
        %v5756 = vld [vmem:[%s5 + $0x810] sm:$0xff]
        %v5757 = vld [vmem:[%s5 + $0x818] sm:$0xff]
        %v5758 = vld [vmem:[%s5 + $0x820] sm:$0xff]
        %v5759 = vld [vmem:[%s5 + $0x828] sm:$0xff]
        %v5760 = vld [vmem:[%s5 + $0x830] sm:$0xff]
        %v5761 = vld [vmem:[%s5 + $0x838] sm:$0xff]
        %v5762 = vld [vmem:[%s5 + $0x840] sm:$0xff]
        %v5763 = vld [vmem:[%s5 + $0x848] sm:$0xff]
        %v5764 = vld [vmem:[%s5 + $0x850] sm:$0xff]
        %v5765 = vld [vmem:[%s5 + $0x858] sm:$0xff]
        %v5766 = vld [vmem:[%s5 + $0x860] sm:$0xff]
        %v5767 = vld [vmem:[%s5 + $0x868] sm:$0xff]
        %v5768 = vld [vmem:[%s5 + $0x870] sm:$0xff]
        %v5769 = vld [vmem:[%s5 + $0x878] sm:$0xff]
        %v5770 = vld [vmem:[%s5 + $0x880] sm:$0xff]
        %v5771 = vld [vmem:[%s5 + $0x888] sm:$0xff]
        %v5772 = vld [vmem:[%s5 + $0x890] sm:$0xff]
        %v5773 = vld [vmem:[%s5 + $0x898] sm:$0xff]
        %v5774 = vld [vmem:[%s5 + $0x8a0] sm:$0xff]
        %v5775 = vld [vmem:[%s5 + $0x8a8] sm:$0xff]
        %v5776 = vld [vmem:[%s5 + $0x8b0] sm:$0xff]
        %v5777 = vld [vmem:[%s5 + $0x8b8] sm:$0xff]
        %v5778 = vld [vmem:[%s5 + $0x8c0] sm:$0xff]
        %v5779 = vld [vmem:[%s5 + $0x8c8] sm:$0xff]
        %v5780 = vld [vmem:[%s5 + $0x8d0] sm:$0xff]
        %v5781 = vld [vmem:[%s5 + $0x8d8] sm:$0xff]
        %v5782 = vld [vmem:[%s5 + $0x8e0] sm:$0xff]
        %v5783 = vld [vmem:[%s5 + $0x8e8] sm:$0xff]
        %v5784 = vld [vmem:[%s5 + $0x8f0] sm:$0xff]
        %v5785 = vld [vmem:[%s5 + $0x8f8] sm:$0xff]
        %v5786 = vld [vmem:[%s5 + $0x900] sm:$0xff]
        %v5787 = vld [vmem:[%s5 + $0x908] sm:$0xff]
        %v5788 = vld [vmem:[%s5 + $0x910] sm:$0xff]
        %v5789 = vld [vmem:[%s5 + $0x918] sm:$0xff]
        %v5790 = vld [vmem:[%s5 + $0x920] sm:$0xff]
        %v5791 = vld [vmem:[%s5 + $0x928] sm:$0xff]
        %v5792 = vld [vmem:[%s5 + $0x930] sm:$0xff]
        %v5793 = vld [vmem:[%s5 + $0x938] sm:$0xff]
        %v5794 = vld [vmem:[%s5 + $0x940] sm:$0xff]
        %v5795 = vld [vmem:[%s5 + $0x948] sm:$0xff]
        %v5796 = vld [vmem:[%s5 + $0x950] sm:$0xff]
        %v5797 = vld [vmem:[%s5 + $0x958] sm:$0xff]
        %v5798 = vld [vmem:[%s5 + $0x960] sm:$0xff]
        %v5799 = vld [vmem:[%s5 + $0x968] sm:$0xff]
        %v5800 = vld [vmem:[%s5 + $0x970] sm:$0xff]
        %v5801 = vld [vmem:[%s5 + $0x978] sm:$0xff]
        %v5802 = vld [vmem:[%s5 + $0x980] sm:$0xff]
        %v5803 = vld [vmem:[%s5 + $0x988] sm:$0xff]
        %v5804 = vld [vmem:[%s5 + $0x990] sm:$0xff]
        %v5805 = vld [vmem:[%s5 + $0x998] sm:$0xff]
        %v5806 = vld [vmem:[%s5 + $0x9a0] sm:$0xff]
        %v5807 = vld [vmem:[%s5 + $0x9a8] sm:$0xff]
        %v5808 = vld [vmem:[%s5 + $0x9b0] sm:$0xff]
        %v5809 = vld [vmem:[%s5 + $0x9b8] sm:$0xff]
        %v5810 = vld [vmem:[%s5 + $0x9c0] sm:$0xff]
        %v5811 = vld [vmem:[%s5 + $0x9c8] sm:$0xff]
        %v5812 = vld [vmem:[%s5 + $0x9d0] sm:$0xff]
        %v5813 = vld [vmem:[%s5 + $0x9d8] sm:$0xff]
        %v5814 = vld [vmem:[%s5 + $0x9e0] sm:$0xff]
        %v5815 = vld [vmem:[%s5 + $0x9e8] sm:$0xff]
        %v5816 = vld [vmem:[%s5 + $0x9f0] sm:$0xff]
        %v5817 = vld [vmem:[%s5 + $0x9f8] sm:$0xff]
        %v5818 = vld [vmem:[%s5 + $0xa00] sm:$0xff]
        %v5819 = vld [vmem:[%s5 + $0xa08] sm:$0xff]
        %v5820 = vld [vmem:[%s5 + $0xa10] sm:$0xff]
        %v5821 = vld [vmem:[%s5 + $0xa18] sm:$0xff]
        %v5822 = vld [vmem:[%s5 + $0xa20] sm:$0xff]
        %v5823 = vld [vmem:[%s5 + $0xa28] sm:$0xff]
        %v5824 = vld [vmem:[%s5 + $0xa30] sm:$0xff]
        %v5825 = vld [vmem:[%s5 + $0xa38] sm:$0xff]
        %v5826 = vld [vmem:[%s5 + $0xa40] sm:$0xff]
        %v5827 = vld [vmem:[%s5 + $0xa48] sm:$0xff]
        %v5828 = vld [vmem:[%s5 + $0xa50] sm:$0xff]
        %v5829 = vld [vmem:[%s5 + $0xa58] sm:$0xff]
        %v5830 = vld [vmem:[%s5 + $0xa60] sm:$0xff]
        %v5831 = vld [vmem:[%s5 + $0xa68] sm:$0xff]
        %v5832 = vld [vmem:[%s5 + $0xa70] sm:$0xff]
        %v5833 = vld [vmem:[%s5 + $0xa78] sm:$0xff]
        %v5834 = vld [vmem:[%s6] sm:$0xf]
        %v5836 = vlaneseq
        %v5837 = vshrl.u32 %v5836, 7
        %v5838 = vsub.s32 0, %v5837
        %v5839 = vrot.slane %v5834, %v5838
        %v5840 = vlaneseq
        %v5841 = vshrl.u32 %v5840, 7
        %v5842 = vsub.s32 1, %v5841
        %v5843 = vrot.slane %v5834, %v5842
        %v5844 = vlaneseq
        %v5845 = vshrl.u32 %v5844, 7
        %v5846 = vsub.s32 2, %v5845
        %v5847 = vrot.slane %v5834, %v5846
        %v5848 = vlaneseq
        %v5849 = vshrl.u32 %v5848, 7
        %v5850 = vsub.s32 3, %v5849
        %v5851 = vrot.slane %v5834, %v5850
        %v6192 = vunpack.c.l.b16 %v5498
        %v6193 = vunpack.c.h.b16 %v5498
        %v6194 = vunpack.c.l.b16 %v5499
        %v6195 = vunpack.c.h.b16 %v5499
        %v6196 = vunpack.c.l.b16 %v5500
        %v6197 = vunpack.c.h.b16 %v5500
        %v6198 = vunpack.c.l.b16 %v5501
        %v6199 = vunpack.c.h.b16 %v5501
        %v6200 = vunpack.c.l.b16 %v5502
        %v6201 = vunpack.c.h.b16 %v5502
        %v6202 = vunpack.c.l.b16 %v5503
        %v6203 = vunpack.c.h.b16 %v5503
        %v6204 = vunpack.c.l.b16 %v5504
        %v6205 = vunpack.c.h.b16 %v5504
        %v6206 = vunpack.c.l.b16 %v5505
        %v6207 = vunpack.c.h.b16 %v5505
        %v6208 = vunpack.c.l.b16 %v5506
        %v6209 = vunpack.c.h.b16 %v5506
        %v6210 = vunpack.c.l.b16 %v5507
        %v6211 = vunpack.c.h.b16 %v5507
        %v6212 = vunpack.c.l.b16 %v5508
        %v6213 = vunpack.c.h.b16 %v5508
        %v6214 = vunpack.c.l.b16 %v5509
        %v6215 = vunpack.c.h.b16 %v5509
        %v6216 = vunpack.c.l.b16 %v5510
        %v6217 = vunpack.c.h.b16 %v5510
        %v6218 = vunpack.c.l.b16 %v5511
        %v6219 = vunpack.c.h.b16 %v5511
        %v6220 = vunpack.c.l.b16 %v5512
        %v6221 = vunpack.c.h.b16 %v5512
        %v6222 = vunpack.c.l.b16 %v5513
        %v6223 = vunpack.c.h.b16 %v5513
        %v6224 = vunpack.c.l.b16 %v5514
        %v6225 = vunpack.c.h.b16 %v5514
        %v6226 = vunpack.c.l.b16 %v5515
        %v6227 = vunpack.c.h.b16 %v5515
        %v6228 = vunpack.c.l.b16 %v5516
        %v6229 = vunpack.c.h.b16 %v5516
        %v6230 = vunpack.c.l.b16 %v5517
        %v6231 = vunpack.c.h.b16 %v5517
        %v6232 = vunpack.c.l.b16 %v5518
        %v6233 = vunpack.c.h.b16 %v5518
        %v6234 = vunpack.c.l.b16 %v5519
        %v6235 = vunpack.c.h.b16 %v5519
        %v6236 = vunpack.c.l.b16 %v5520
        %v6237 = vunpack.c.h.b16 %v5520
        %v6238 = vunpack.c.l.b16 %v5521
        %v6239 = vunpack.c.h.b16 %v5521
        %v6240 = vunpack.c.l.b16 %v5522
        %v6241 = vunpack.c.h.b16 %v5522
        %v6242 = vunpack.c.l.b16 %v5523
        %v6243 = vunpack.c.h.b16 %v5523
        %v6244 = vunpack.c.l.b16 %v5524
        %v6245 = vunpack.c.h.b16 %v5524
        %v6246 = vunpack.c.l.b16 %v5525
        %v6247 = vunpack.c.h.b16 %v5525
        %v6248 = vunpack.c.l.b16 %v5526
        %v6249 = vunpack.c.h.b16 %v5526
        %v6250 = vunpack.c.l.b16 %v5527
        %v6251 = vunpack.c.h.b16 %v5527
        %v6252 = vunpack.c.l.b16 %v5528
        %v6253 = vunpack.c.h.b16 %v5528
        %v6254 = vunpack.c.l.b16 %v5529
        %v6255 = vunpack.c.h.b16 %v5529
        %v6256 = vunpack.c.l.b16 %v5530
        %v6257 = vunpack.c.h.b16 %v5530
        %v6258 = vunpack.c.l.b16 %v5531
        %v6259 = vunpack.c.h.b16 %v5531
        %v6260 = vunpack.c.l.b16 %v5532
        %v6261 = vunpack.c.h.b16 %v5532
        %v6262 = vunpack.c.l.b16 %v5533
        %v6263 = vunpack.c.h.b16 %v5533
        %v6264 = vunpack.c.l.b16 %v5534
        %v6265 = vunpack.c.h.b16 %v5534
        %v6266 = vunpack.c.l.b16 %v5535
        %v6267 = vunpack.c.h.b16 %v5535
        %v6268 = vunpack.c.l.b16 %v5536
        %v6269 = vunpack.c.h.b16 %v5536
        %v6270 = vunpack.c.l.b16 %v5537
        %v6271 = vunpack.c.h.b16 %v5537
        %v6272 = vunpack.c.l.b16 %v5538
        %v6273 = vunpack.c.h.b16 %v5538
        %v6274 = vunpack.c.l.b16 %v5539
        %v6275 = vunpack.c.h.b16 %v5539
        %v6276 = vunpack.c.l.b16 %v5540
        %v6277 = vunpack.c.h.b16 %v5540
        %v6278 = vunpack.c.l.b16 %v5541
        %v6279 = vunpack.c.h.b16 %v5541
        %v6280 = vunpack.c.l.b16 %v5542
        %v6281 = vunpack.c.h.b16 %v5542
        %v6282 = vunpack.c.l.b16 %v5543
        %v6283 = vunpack.c.h.b16 %v5543
        %v6284 = vunpack.c.l.b16 %v5544
        %v6285 = vunpack.c.h.b16 %v5544
        %v6286 = vunpack.c.l.b16 %v5545
        %v6287 = vunpack.c.h.b16 %v5545
        %v6288 = vunpack.c.l.b16 %v5546
        %v6289 = vunpack.c.h.b16 %v5546
        %v6290 = vunpack.c.l.b16 %v5547
        %v6291 = vunpack.c.h.b16 %v5547
        %v6292 = vunpack.c.l.b16 %v5548
        %v6293 = vunpack.c.h.b16 %v5548
        %v6294 = vunpack.c.l.b16 %v5549
        %v6295 = vunpack.c.h.b16 %v5549
        %v6296 = vunpack.c.l.b16 %v5550
        %v6297 = vunpack.c.h.b16 %v5550
        %v6298 = vunpack.c.l.b16 %v5551
        %v6299 = vunpack.c.h.b16 %v5551
        %v6300 = vunpack.c.l.b16 %v5552
        %v6301 = vunpack.c.h.b16 %v5552
        %v6302 = vunpack.c.l.b16 %v5553
        %v6303 = vunpack.c.h.b16 %v5553
        %v6304 = vunpack.c.l.b16 %v5554
        %v6305 = vunpack.c.h.b16 %v5554
        %v6306 = vunpack.c.l.b16 %v5555
        %v6307 = vunpack.c.h.b16 %v5555
        %v6308 = vunpack.c.l.b16 %v5556
        %v6309 = vunpack.c.h.b16 %v5556
        %v6310 = vunpack.c.l.b16 %v5557
        %v6311 = vunpack.c.h.b16 %v5557
        %v6312 = vunpack.c.l.b16 %v5558
        %v6313 = vunpack.c.h.b16 %v5558
        %v6314 = vunpack.c.l.b16 %v5559
        %v6315 = vunpack.c.h.b16 %v5559
        %v6316 = vunpack.c.l.b16 %v5560
        %v6317 = vunpack.c.h.b16 %v5560
        %v6318 = vunpack.c.l.b16 %v5561
        %v6319 = vunpack.c.h.b16 %v5561
        %v6320 = vunpack.c.l.b16 %v5562
        %v6321 = vunpack.c.h.b16 %v5562
        %v6322 = vunpack.c.l.b16 %v5563
        %v6323 = vunpack.c.h.b16 %v5563
        %v6324 = vunpack.c.l.b16 %v5564
        %v6325 = vunpack.c.h.b16 %v5564
        %v6326 = vunpack.c.l.b16 %v5565
        %v6327 = vunpack.c.h.b16 %v5565
        %v6328 = vunpack.c.l.b16 %v5566
        %v6329 = vunpack.c.h.b16 %v5566
        %v6330 = vunpack.c.l.b16 %v5567
        %v6331 = vunpack.c.h.b16 %v5567
        %v6332 = vunpack.c.l.b16 %v5568
        %v6333 = vunpack.c.h.b16 %v5568
        %v6334 = vunpack.c.l.b16 %v5569
        %v6335 = vunpack.c.h.b16 %v5569
        %v6336 = vunpack.c.l.b16 %v5570
        %v6337 = vunpack.c.h.b16 %v5570
        %v6338 = vunpack.c.l.b16 %v5571
        %v6339 = vunpack.c.h.b16 %v5571
        %v6340 = vunpack.c.l.b16 %v5572
        %v6341 = vunpack.c.h.b16 %v5572
        %v6342 = vunpack.c.l.b16 %v5573
        %v6343 = vunpack.c.h.b16 %v5573
        %v6344 = vunpack.c.l.b16 %v5574
        %v6345 = vunpack.c.h.b16 %v5574
        %v6346 = vunpack.c.l.b16 %v5575
        %v6347 = vunpack.c.h.b16 %v5575
        %v6348 = vunpack.c.l.b16 %v5576
        %v6349 = vunpack.c.h.b16 %v5576
        %v6350 = vunpack.c.l.b16 %v5577
        %v6351 = vunpack.c.h.b16 %v5577
        %v6352 = vunpack.c.l.b16 %v5578
        %v6353 = vunpack.c.h.b16 %v5578
        %v6354 = vunpack.c.l.b16 %v5579
        %v6355 = vunpack.c.h.b16 %v5579
        %v6356 = vunpack.c.l.b16 %v5580
        %v6357 = vunpack.c.h.b16 %v5580
        %v6358 = vunpack.c.l.b16 %v5581
        %v6359 = vunpack.c.h.b16 %v5581
        %v6360 = vunpack.c.l.b16 %v5582
        %v6361 = vunpack.c.h.b16 %v5582
        %v6362 = vunpack.c.l.b16 %v5583
        %v6363 = vunpack.c.h.b16 %v5583
        %v6364 = vunpack.c.l.b16 %v5584
        %v6365 = vunpack.c.h.b16 %v5584
        %v6366 = vunpack.c.l.b16 %v5585
        %v6367 = vunpack.c.h.b16 %v5585
        %v6368 = vunpack.c.l.b16 %v5586
        %v6369 = vunpack.c.h.b16 %v5586
        %v6370 = vunpack.c.l.b16 %v5587
        %v6371 = vunpack.c.h.b16 %v5587
        %v6372 = vunpack.c.l.b16 %v5588
        %v6373 = vunpack.c.h.b16 %v5588
        %v6374 = vunpack.c.l.b16 %v5589
        %v6375 = vunpack.c.h.b16 %v5589
        %v6376 = vunpack.c.l.b16 %v5590
        %v6377 = vunpack.c.h.b16 %v5590
        %v6378 = vunpack.c.l.b16 %v5591
        %v6379 = vunpack.c.h.b16 %v5591
        %v6380 = vunpack.c.l.b16 %v5592
        %v6381 = vunpack.c.h.b16 %v5592
        %v6382 = vunpack.c.l.b16 %v5593
        %v6383 = vunpack.c.h.b16 %v5593
        %v6384 = vunpack.c.l.b16 %v5594
        %v6385 = vunpack.c.h.b16 %v5594
        %v6386 = vunpack.c.l.b16 %v5595
        %v6387 = vunpack.c.h.b16 %v5595
        %v6388 = vunpack.c.l.b16 %v5596
        %v6389 = vunpack.c.h.b16 %v5596
        %v6390 = vunpack.c.l.b16 %v5597
        %v6391 = vunpack.c.h.b16 %v5597
        %v6392 = vunpack.c.l.b16 %v5598
        %v6393 = vunpack.c.h.b16 %v5598
        %v6394 = vunpack.c.l.b16 %v5599
        %v6395 = vunpack.c.h.b16 %v5599
        %v6396 = vunpack.c.l.b16 %v5600
        %v6397 = vunpack.c.h.b16 %v5600
        %v6398 = vunpack.c.l.b16 %v5601
        %v6399 = vunpack.c.h.b16 %v5601
        %v6400 = vunpack.c.l.b16 %v5602
        %v6401 = vunpack.c.h.b16 %v5602
        %v6402 = vunpack.c.l.b16 %v5603
        %v6403 = vunpack.c.h.b16 %v5603
        %v6404 = vunpack.c.l.b16 %v5604
        %v6405 = vunpack.c.h.b16 %v5604
        %v6406 = vunpack.c.l.b16 %v5605
        %v6407 = vunpack.c.h.b16 %v5605
        %v6408 = vunpack.c.l.b16 %v5606
        %v6409 = vunpack.c.h.b16 %v5606
        %v6410 = vunpack.c.l.b16 %v5607
        %v6411 = vunpack.c.h.b16 %v5607
        %v6412 = vunpack.c.l.b16 %v5608
        %v6413 = vunpack.c.h.b16 %v5608
        %v6414 = vunpack.c.l.b16 %v5609
        %v6415 = vunpack.c.h.b16 %v5609
        %v6416 = vunpack.c.l.b16 %v5610
        %v6417 = vunpack.c.h.b16 %v5610
        %v6418 = vunpack.c.l.b16 %v5611
        %v6419 = vunpack.c.h.b16 %v5611
        %v6420 = vunpack.c.l.b16 %v5612
        %v6421 = vunpack.c.h.b16 %v5612
        %v6422 = vunpack.c.l.b16 %v5613
        %v6423 = vunpack.c.h.b16 %v5613
        %v6424 = vunpack.c.l.b16 %v5614
        %v6425 = vunpack.c.h.b16 %v5614
        %v6426 = vunpack.c.l.b16 %v5615
        %v6427 = vunpack.c.h.b16 %v5615
        %v6428 = vunpack.c.l.b16 %v5616
        %v6429 = vunpack.c.h.b16 %v5616
        %v6430 = vunpack.c.l.b16 %v5617
        %v6431 = vunpack.c.h.b16 %v5617
        %v6432 = vunpack.c.l.b16 %v5618
        %v6433 = vunpack.c.h.b16 %v5618
        %v6434 = vunpack.c.l.b16 %v5619
        %v6435 = vunpack.c.h.b16 %v5619
        %v6436 = vunpack.c.l.b16 %v5620
        %v6437 = vunpack.c.h.b16 %v5620
        %v6438 = vunpack.c.l.b16 %v5621
        %v6439 = vunpack.c.h.b16 %v5621
        %v6440 = vunpack.c.l.b16 %v5622
        %v6441 = vunpack.c.h.b16 %v5622
        %v6442 = vunpack.c.l.b16 %v5623
        %v6443 = vunpack.c.h.b16 %v5623
        %v6444 = vunpack.c.l.b16 %v5624
        %v6445 = vunpack.c.h.b16 %v5624
        %v6446 = vunpack.c.l.b16 %v5625
        %v6447 = vunpack.c.h.b16 %v5625
        %v6448 = vunpack.c.l.b16 %v5626
        %v6449 = vunpack.c.h.b16 %v5626
        %v6450 = vunpack.c.l.b16 %v5627
        %v6451 = vunpack.c.h.b16 %v5627
        %v6452 = vunpack.c.l.b16 %v5628
        %v6453 = vunpack.c.h.b16 %v5628
        %v6454 = vunpack.c.l.b16 %v5629
        %v6455 = vunpack.c.h.b16 %v5629
        %v6456 = vunpack.c.l.b16 %v5630
        %v6457 = vunpack.c.h.b16 %v5630
        %v6458 = vunpack.c.l.b16 %v5631
        %v6459 = vunpack.c.h.b16 %v5631
        %v6460 = vunpack.c.l.b16 %v5632
        %v6461 = vunpack.c.h.b16 %v5632
        %v6462 = vunpack.c.l.b16 %v5633
        %v6463 = vunpack.c.h.b16 %v5633
        %v6464 = vunpack.c.l.b16 %v5634
        %v6465 = vunpack.c.h.b16 %v5634
        %v6466 = vunpack.c.l.b16 %v5635
        %v6467 = vunpack.c.h.b16 %v5635
        %v6468 = vunpack.c.l.b16 %v5636
        %v6469 = vunpack.c.h.b16 %v5636
        %v6470 = vunpack.c.l.b16 %v5637
        %v6471 = vunpack.c.h.b16 %v5637
        %v6472 = vunpack.c.l.b16 %v5638
        %v6473 = vunpack.c.h.b16 %v5638
        %v6474 = vunpack.c.l.b16 %v5639
        %v6475 = vunpack.c.h.b16 %v5639
        %v6476 = vunpack.c.l.b16 %v5640
        %v6477 = vunpack.c.h.b16 %v5640
        %v6478 = vunpack.c.l.b16 %v5641
        %v6479 = vunpack.c.h.b16 %v5641
        %v6480 = vunpack.c.l.b16 %v5642
        %v6481 = vunpack.c.h.b16 %v5642
        %v6482 = vunpack.c.l.b16 %v5643
        %v6483 = vunpack.c.h.b16 %v5643
        %v6484 = vunpack.c.l.b16 %v5644
        %v6485 = vunpack.c.h.b16 %v5644
        %v6486 = vunpack.c.l.b16 %v5645
        %v6487 = vunpack.c.h.b16 %v5645
        %v6488 = vunpack.c.l.b16 %v5646
        %v6489 = vunpack.c.h.b16 %v5646
        %v6490 = vunpack.c.l.b16 %v5647
        %v6491 = vunpack.c.h.b16 %v5647
        %v6492 = vunpack.c.l.b16 %v5648
        %v6493 = vunpack.c.h.b16 %v5648
        %v6494 = vunpack.c.l.b16 %v5649
        %v6495 = vunpack.c.h.b16 %v5649
        %v6496 = vunpack.c.l.b16 %v5650
        %v6497 = vunpack.c.h.b16 %v5650
        %v6498 = vunpack.c.l.b16 %v5651
        %v6499 = vunpack.c.h.b16 %v5651
        %v6500 = vunpack.c.l.b16 %v5652
        %v6501 = vunpack.c.h.b16 %v5652
        %v6502 = vunpack.c.l.b16 %v5653
        %v6503 = vunpack.c.h.b16 %v5653
        %v6504 = vunpack.c.l.b16 %v5654
        %v6505 = vunpack.c.h.b16 %v5654
        %v6506 = vunpack.c.l.b16 %v5655
        %v6507 = vunpack.c.h.b16 %v5655
        %v6508 = vunpack.c.l.b16 %v5656
        %v6509 = vunpack.c.h.b16 %v5656
        %v6510 = vunpack.c.l.b16 %v5657
        %v6511 = vunpack.c.h.b16 %v5657
        %v6512 = vunpack.c.l.b16 %v5658
        %v6513 = vunpack.c.h.b16 %v5658
        %v6514 = vunpack.c.l.b16 %v5659
        %v6515 = vunpack.c.h.b16 %v5659
        %v6516 = vunpack.c.l.b16 %v5660
        %v6517 = vunpack.c.h.b16 %v5660
        %v6518 = vunpack.c.l.b16 %v5661
        %v6519 = vunpack.c.h.b16 %v5661
        %v6520 = vunpack.c.l.b16 %v5662
        %v6521 = vunpack.c.h.b16 %v5662
        %v6522 = vunpack.c.l.b16 %v5663
        %v6523 = vunpack.c.h.b16 %v5663
        %v6524 = vunpack.c.l.b16 %v5664
        %v6525 = vunpack.c.h.b16 %v5664
        %v6526 = vunpack.c.l.b16 %v5665
        %v6527 = vunpack.c.h.b16 %v5665
        %v6528 = vunpack.c.l.b16 %v5666
        %v6529 = vunpack.c.h.b16 %v5666
        %v6530 = vunpack.c.l.b16 %v5667
        %v6531 = vunpack.c.h.b16 %v5667
        %v6532 = vunpack.c.l.b16 %v5668
        %v6533 = vunpack.c.h.b16 %v5668
        %v6534 = vunpack.c.l.b16 %v5669
        %v6535 = vunpack.c.h.b16 %v5669
        %v6536 = vunpack.c.l.b16 %v5670
        %v6537 = vunpack.c.h.b16 %v5670
        %v6538 = vunpack.c.l.b16 %v5671
        %v6539 = vunpack.c.h.b16 %v5671
        %v6540 = vunpack.c.l.b16 %v5672
        %v6541 = vunpack.c.h.b16 %v5672
        %v6542 = vunpack.c.l.b16 %v5673
        %v6543 = vunpack.c.h.b16 %v5673
        %v6544 = vunpack.c.l.b16 %v5674
        %v6545 = vunpack.c.h.b16 %v5674
        %v6546 = vunpack.c.l.b16 %v5675
        %v6547 = vunpack.c.h.b16 %v5675
        %v6548 = vunpack.c.l.b16 %v5676
        %v6549 = vunpack.c.h.b16 %v5676
        %v6550 = vunpack.c.l.b16 %v5677
        %v6551 = vunpack.c.h.b16 %v5677
        %v6552 = vunpack.c.l.b16 %v5678
        %v6553 = vunpack.c.h.b16 %v5678
        %v6554 = vunpack.c.l.b16 %v5679
        %v6555 = vunpack.c.h.b16 %v5679
        %v6556 = vunpack.c.l.b16 %v5680
        %v6557 = vunpack.c.h.b16 %v5680
        %v6558 = vunpack.c.l.b16 %v5681
        %v6559 = vunpack.c.h.b16 %v5681
        %v6560 = vunpack.c.l.b16 %v5682
        %v6561 = vunpack.c.h.b16 %v5682
        %v6562 = vunpack.c.l.b16 %v5683
        %v6563 = vunpack.c.h.b16 %v5683
        %v6564 = vunpack.c.l.b16 %v5684
        %v6565 = vunpack.c.h.b16 %v5684
        %v6566 = vunpack.c.l.b16 %v5685
        %v6567 = vunpack.c.h.b16 %v5685
        %v6568 = vunpack.c.l.b16 %v5686
        %v6569 = vunpack.c.h.b16 %v5686
        %v6570 = vunpack.c.l.b16 %v5687
        %v6571 = vunpack.c.h.b16 %v5687
        %v6572 = vunpack.c.l.b16 %v5688
        %v6573 = vunpack.c.h.b16 %v5688
        %v6574 = vunpack.c.l.b16 %v5689
        %v6575 = vunpack.c.h.b16 %v5689
        %v6576 = vunpack.c.l.b16 %v5690
        %v6577 = vunpack.c.h.b16 %v5690
        %v6578 = vunpack.c.l.b16 %v5691
        %v6579 = vunpack.c.h.b16 %v5691
        %v6580 = vunpack.c.l.b16 %v5692
        %v6581 = vunpack.c.h.b16 %v5692
        %v6582 = vunpack.c.l.b16 %v5693
        %v6583 = vunpack.c.h.b16 %v5693
        %v6584 = vunpack.c.l.b16 %v5694
        %v6585 = vunpack.c.h.b16 %v5694
        %v6586 = vunpack.c.l.b16 %v5695
        %v6587 = vunpack.c.h.b16 %v5695
        %v6588 = vunpack.c.l.b16 %v5696
        %v6589 = vunpack.c.h.b16 %v5696
        %v6590 = vunpack.c.l.b16 %v5697
        %v6591 = vunpack.c.h.b16 %v5697
        %v6592 = vunpack.c.l.b16 %v5698
        %v6593 = vunpack.c.h.b16 %v5698
        %v6594 = vunpack.c.l.b16 %v5699
        %v6595 = vunpack.c.h.b16 %v5699
        %v6596 = vunpack.c.l.b16 %v5700
        %v6597 = vunpack.c.h.b16 %v5700
        %v6598 = vunpack.c.l.b16 %v5701
        %v6599 = vunpack.c.h.b16 %v5701
        %v6600 = vunpack.c.l.b16 %v5702
        %v6601 = vunpack.c.h.b16 %v5702
        %v6602 = vunpack.c.l.b16 %v5703
        %v6603 = vunpack.c.h.b16 %v5703
        %v6604 = vunpack.c.l.b16 %v5704
        %v6605 = vunpack.c.h.b16 %v5704
        %v6606 = vunpack.c.l.b16 %v5705
        %v6607 = vunpack.c.h.b16 %v5705
        %v6608 = vunpack.c.l.b16 %v5706
        %v6609 = vunpack.c.h.b16 %v5706
        %v6610 = vunpack.c.l.b16 %v5707
        %v6611 = vunpack.c.h.b16 %v5707
        %v6612 = vunpack.c.l.b16 %v5708
        %v6613 = vunpack.c.h.b16 %v5708
        %v6614 = vunpack.c.l.b16 %v5709
        %v6615 = vunpack.c.h.b16 %v5709
        %v6616 = vunpack.c.l.b16 %v5710
        %v6617 = vunpack.c.h.b16 %v5710
        %v6618 = vunpack.c.l.b16 %v5711
        %v6619 = vunpack.c.h.b16 %v5711
        %v6620 = vunpack.c.l.b16 %v5712
        %v6621 = vunpack.c.h.b16 %v5712
        %v6622 = vunpack.c.l.b16 %v5713
        %v6623 = vunpack.c.h.b16 %v5713
        %v6624 = vunpack.c.l.b16 %v5714
        %v6625 = vunpack.c.h.b16 %v5714
        %v6626 = vunpack.c.l.b16 %v5715
        %v6627 = vunpack.c.h.b16 %v5715
        %v6628 = vunpack.c.l.b16 %v5716
        %v6629 = vunpack.c.h.b16 %v5716
        %v6630 = vunpack.c.l.b16 %v5717
        %v6631 = vunpack.c.h.b16 %v5717
        %v6632 = vunpack.c.l.b16 %v5718
        %v6633 = vunpack.c.h.b16 %v5718
        %v6634 = vunpack.c.l.b16 %v5719
        %v6635 = vunpack.c.h.b16 %v5719
        %v6636 = vunpack.c.l.b16 %v5720
        %v6637 = vunpack.c.h.b16 %v5720
        %v6638 = vunpack.c.l.b16 %v5721
        %v6639 = vunpack.c.h.b16 %v5721
        %v6640 = vunpack.c.l.b16 %v5722
        %v6641 = vunpack.c.h.b16 %v5722
        %v6642 = vunpack.c.l.b16 %v5723
        %v6643 = vunpack.c.h.b16 %v5723
        %v6644 = vunpack.c.l.b16 %v5724
        %v6645 = vunpack.c.h.b16 %v5724
        %v6646 = vunpack.c.l.b16 %v5725
        %v6647 = vunpack.c.h.b16 %v5725
        %v6648 = vunpack.c.l.b16 %v5726
        %v6649 = vunpack.c.h.b16 %v5726
        %v6650 = vunpack.c.l.b16 %v5727
        %v6651 = vunpack.c.h.b16 %v5727
        %v6652 = vunpack.c.l.b16 %v5728
        %v6653 = vunpack.c.h.b16 %v5728
        %v6654 = vunpack.c.l.b16 %v5729
        %v6655 = vunpack.c.h.b16 %v5729
        %v6656 = vunpack.c.l.b16 %v5730
        %v6657 = vunpack.c.h.b16 %v5730
        %v6658 = vunpack.c.l.b16 %v5731
        %v6659 = vunpack.c.h.b16 %v5731
        %v6660 = vunpack.c.l.b16 %v5732
        %v6661 = vunpack.c.h.b16 %v5732
        %v6662 = vunpack.c.l.b16 %v5733
        %v6663 = vunpack.c.h.b16 %v5733
        %v6664 = vunpack.c.l.b16 %v5734
        %v6665 = vunpack.c.h.b16 %v5734
        %v6666 = vunpack.c.l.b16 %v5735
        %v6667 = vunpack.c.h.b16 %v5735
        %v6668 = vunpack.c.l.b16 %v5736
        %v6669 = vunpack.c.h.b16 %v5736
        %v6670 = vunpack.c.l.b16 %v5737
        %v6671 = vunpack.c.h.b16 %v5737
        %v6672 = vunpack.c.l.b16 %v5738
        %v6673 = vunpack.c.h.b16 %v5738
        %v6674 = vunpack.c.l.b16 %v5739
        %v6675 = vunpack.c.h.b16 %v5739
        %v6676 = vunpack.c.l.b16 %v5740
        %v6677 = vunpack.c.h.b16 %v5740
        %v6678 = vunpack.c.l.b16 %v5741
        %v6679 = vunpack.c.h.b16 %v5741
        %v6680 = vunpack.c.l.b16 %v5742
        %v6681 = vunpack.c.h.b16 %v5742
        %v6682 = vunpack.c.l.b16 %v5743
        %v6683 = vunpack.c.h.b16 %v5743
        %v6684 = vunpack.c.l.b16 %v5744
        %v6685 = vunpack.c.h.b16 %v5744
        %v6686 = vunpack.c.l.b16 %v5745
        %v6687 = vunpack.c.h.b16 %v5745
        %v6688 = vunpack.c.l.b16 %v5746
        %v6689 = vunpack.c.h.b16 %v5746
        %v6690 = vunpack.c.l.b16 %v5747
        %v6691 = vunpack.c.h.b16 %v5747
        %v6692 = vunpack.c.l.b16 %v5748
        %v6693 = vunpack.c.h.b16 %v5748
        %v6694 = vunpack.c.l.b16 %v5749
        %v6695 = vunpack.c.h.b16 %v5749
        %v6696 = vunpack.c.l.b16 %v5750
        %v6697 = vunpack.c.h.b16 %v5750
        %v6698 = vunpack.c.l.b16 %v5751
        %v6699 = vunpack.c.h.b16 %v5751
        %v6700 = vunpack.c.l.b16 %v5752
        %v6701 = vunpack.c.h.b16 %v5752
        %v6702 = vunpack.c.l.b16 %v5753
        %v6703 = vunpack.c.h.b16 %v5753
        %v6704 = vunpack.c.l.b16 %v5754
        %v6705 = vunpack.c.h.b16 %v5754
        %v6706 = vunpack.c.l.b16 %v5755
        %v6707 = vunpack.c.h.b16 %v5755
        %v6708 = vunpack.c.l.b16 %v5756
        %v6709 = vunpack.c.h.b16 %v5756
        %v6710 = vunpack.c.l.b16 %v5757
        %v6711 = vunpack.c.h.b16 %v5757
        %v6712 = vunpack.c.l.b16 %v5758
        %v6713 = vunpack.c.h.b16 %v5758
        %v6714 = vunpack.c.l.b16 %v5759
        %v6715 = vunpack.c.h.b16 %v5759
        %v6716 = vunpack.c.l.b16 %v5760
        %v6717 = vunpack.c.h.b16 %v5760
        %v6718 = vunpack.c.l.b16 %v5761
        %v6719 = vunpack.c.h.b16 %v5761
        %v6720 = vunpack.c.l.b16 %v5762
        %v6721 = vunpack.c.h.b16 %v5762
        %v6722 = vunpack.c.l.b16 %v5763
        %v6723 = vunpack.c.h.b16 %v5763
        %v6724 = vunpack.c.l.b16 %v5764
        %v6725 = vunpack.c.h.b16 %v5764
        %v6726 = vunpack.c.l.b16 %v5765
        %v6727 = vunpack.c.h.b16 %v5765
        %v6728 = vunpack.c.l.b16 %v5766
        %v6729 = vunpack.c.h.b16 %v5766
        %v6730 = vunpack.c.l.b16 %v5767
        %v6731 = vunpack.c.h.b16 %v5767
        %v6732 = vunpack.c.l.b16 %v5768
        %v6733 = vunpack.c.h.b16 %v5768
        %v6734 = vunpack.c.l.b16 %v5769
        %v6735 = vunpack.c.h.b16 %v5769
        %v6736 = vunpack.c.l.b16 %v5770
        %v6737 = vunpack.c.h.b16 %v5770
        %v6738 = vunpack.c.l.b16 %v5771
        %v6739 = vunpack.c.h.b16 %v5771
        %v6740 = vunpack.c.l.b16 %v5772
        %v6741 = vunpack.c.h.b16 %v5772
        %v6742 = vunpack.c.l.b16 %v5773
        %v6743 = vunpack.c.h.b16 %v5773
        %v6744 = vunpack.c.l.b16 %v5774
        %v6745 = vunpack.c.h.b16 %v5774
        %v6746 = vunpack.c.l.b16 %v5775
        %v6747 = vunpack.c.h.b16 %v5775
        %v6748 = vunpack.c.l.b16 %v5776
        %v6749 = vunpack.c.h.b16 %v5776
        %v6750 = vunpack.c.l.b16 %v5777
        %v6751 = vunpack.c.h.b16 %v5777
        %v6752 = vunpack.c.l.b16 %v5778
        %v6753 = vunpack.c.h.b16 %v5778
        %v6754 = vunpack.c.l.b16 %v5779
        %v6755 = vunpack.c.h.b16 %v5779
        %v6756 = vunpack.c.l.b16 %v5780
        %v6757 = vunpack.c.h.b16 %v5780
        %v6758 = vunpack.c.l.b16 %v5781
        %v6759 = vunpack.c.h.b16 %v5781
        %v6760 = vunpack.c.l.b16 %v5782
        %v6761 = vunpack.c.h.b16 %v5782
        %v6762 = vunpack.c.l.b16 %v5783
        %v6763 = vunpack.c.h.b16 %v5783
        %v6764 = vunpack.c.l.b16 %v5784
        %v6765 = vunpack.c.h.b16 %v5784
        %v6766 = vunpack.c.l.b16 %v5785
        %v6767 = vunpack.c.h.b16 %v5785
        %v6768 = vunpack.c.l.b16 %v5786
        %v6769 = vunpack.c.h.b16 %v5786
        %v6770 = vunpack.c.l.b16 %v5787
        %v6771 = vunpack.c.h.b16 %v5787
        %v6772 = vunpack.c.l.b16 %v5788
        %v6773 = vunpack.c.h.b16 %v5788
        %v6774 = vunpack.c.l.b16 %v5789
        %v6775 = vunpack.c.h.b16 %v5789
        %v6776 = vunpack.c.l.b16 %v5790
        %v6777 = vunpack.c.h.b16 %v5790
        %v6778 = vunpack.c.l.b16 %v5791
        %v6779 = vunpack.c.h.b16 %v5791
        %v6780 = vunpack.c.l.b16 %v5792
        %v6781 = vunpack.c.h.b16 %v5792
        %v6782 = vunpack.c.l.b16 %v5793
        %v6783 = vunpack.c.h.b16 %v5793
        %v6784 = vunpack.c.l.b16 %v5794
        %v6785 = vunpack.c.h.b16 %v5794
        %v6786 = vunpack.c.l.b16 %v5795
        %v6787 = vunpack.c.h.b16 %v5795
        %v6788 = vunpack.c.l.b16 %v5796
        %v6789 = vunpack.c.h.b16 %v5796
        %v6790 = vunpack.c.l.b16 %v5797
        %v6791 = vunpack.c.h.b16 %v5797
        %v6792 = vunpack.c.l.b16 %v5798
        %v6793 = vunpack.c.h.b16 %v5798
        %v6794 = vunpack.c.l.b16 %v5799
        %v6795 = vunpack.c.h.b16 %v5799
        %v6796 = vunpack.c.l.b16 %v5800
        %v6797 = vunpack.c.h.b16 %v5800
        %v6798 = vunpack.c.l.b16 %v5801
        %v6799 = vunpack.c.h.b16 %v5801
        %v6800 = vunpack.c.l.b16 %v5802
        %v6801 = vunpack.c.h.b16 %v5802
        %v6802 = vunpack.c.l.b16 %v5803
        %v6803 = vunpack.c.h.b16 %v5803
        %v6804 = vunpack.c.l.b16 %v5804
        %v6805 = vunpack.c.h.b16 %v5804
        %v6806 = vunpack.c.l.b16 %v5805
        %v6807 = vunpack.c.h.b16 %v5805
        %v6808 = vunpack.c.l.b16 %v5806
        %v6809 = vunpack.c.h.b16 %v5806
        %v6810 = vunpack.c.l.b16 %v5807
        %v6811 = vunpack.c.h.b16 %v5807
        %v6812 = vunpack.c.l.b16 %v5808
        %v6813 = vunpack.c.h.b16 %v5808
        %v6814 = vunpack.c.l.b16 %v5809
        %v6815 = vunpack.c.h.b16 %v5809
        %v6816 = vunpack.c.l.b16 %v5810
        %v6817 = vunpack.c.h.b16 %v5810
        %v6818 = vunpack.c.l.b16 %v5811
        %v6819 = vunpack.c.h.b16 %v5811
        %v6820 = vunpack.c.l.b16 %v5812
        %v6821 = vunpack.c.h.b16 %v5812
        %v6822 = vunpack.c.l.b16 %v5813
        %v6823 = vunpack.c.h.b16 %v5813
        %v6824 = vunpack.c.l.b16 %v5814
        %v6825 = vunpack.c.h.b16 %v5814
        %v6826 = vunpack.c.l.b16 %v5815
        %v6827 = vunpack.c.h.b16 %v5815
        %v6828 = vunpack.c.l.b16 %v5816
        %v6829 = vunpack.c.h.b16 %v5816
        %v6830 = vunpack.c.l.b16 %v5817
        %v6831 = vunpack.c.h.b16 %v5817
        %v6832 = vunpack.c.l.b16 %v5818
        %v6833 = vunpack.c.h.b16 %v5818
        %v6834 = vunpack.c.l.b16 %v5819
        %v6835 = vunpack.c.h.b16 %v5819
        %v6836 = vunpack.c.l.b16 %v5820
        %v6837 = vunpack.c.h.b16 %v5820
        %v6838 = vunpack.c.l.b16 %v5821
        %v6839 = vunpack.c.h.b16 %v5821
        %v6840 = vunpack.c.l.b16 %v5822
        %v6841 = vunpack.c.h.b16 %v5822
        %v6842 = vunpack.c.l.b16 %v5823
        %v6843 = vunpack.c.h.b16 %v5823
        %v6844 = vunpack.c.l.b16 %v5824
        %v6845 = vunpack.c.h.b16 %v5824
        %v6846 = vunpack.c.l.b16 %v5825
        %v6847 = vunpack.c.h.b16 %v5825
        %v6848 = vunpack.c.l.b16 %v5826
        %v6849 = vunpack.c.h.b16 %v5826
        %v6850 = vunpack.c.l.b16 %v5827
        %v6851 = vunpack.c.h.b16 %v5827
        %v6852 = vunpack.c.l.b16 %v5828
        %v6853 = vunpack.c.h.b16 %v5828
        %v6854 = vunpack.c.l.b16 %v5829
        %v6855 = vunpack.c.h.b16 %v5829
        %v6856 = vunpack.c.l.b16 %v5830
        %v6857 = vunpack.c.h.b16 %v5830
        %v6858 = vunpack.c.l.b16 %v5831
        %v6859 = vunpack.c.h.b16 %v5831
        %v6860 = vunpack.c.l.b16 %v5832
        %v6861 = vunpack.c.h.b16 %v5832
        %v6862 = vunpack.c.l.b16 %v5833
        %v6863 = vunpack.c.h.b16 %v5833
        %v6864 = vpack.c.b16 %v6196, %v6192
        %v6865 = vpack.c.b16 %v6197, %v6193
        %v6866 = vpack.c.b16 %v6198, %v6194
        %v6867 = vpack.c.b16 %v6199, %v6195
        %v6868 = vpack.c.b16 %v6204, %v6200
        %v6869 = vpack.c.b16 %v6205, %v6201
        %v6870 = vpack.c.b16 %v6206, %v6202
        %v6871 = vpack.c.b16 %v6207, %v6203
        %v6872 = vpack.c.b16 %v6212, %v6208
        %v6873 = vpack.c.b16 %v6213, %v6209
        %v6874 = vpack.c.b16 %v6214, %v6210
        %v6875 = vpack.c.b16 %v6215, %v6211
        %v6876 = vpack.c.b16 %v6220, %v6216
        %v6877 = vpack.c.b16 %v6221, %v6217
        %v6878 = vpack.c.b16 %v6222, %v6218
        %v6879 = vpack.c.b16 %v6223, %v6219
        %v6880 = vpack.c.b16 %v6228, %v6224
        %v6881 = vpack.c.b16 %v6229, %v6225
        %v6882 = vpack.c.b16 %v6230, %v6226
        %v6883 = vpack.c.b16 %v6231, %v6227
        %v6884 = vpack.c.b16 %v6236, %v6232
        %v6885 = vpack.c.b16 %v6237, %v6233
        %v6886 = vpack.c.b16 %v6238, %v6234
        %v6887 = vpack.c.b16 %v6239, %v6235
        %v6888 = vpack.c.b16 %v6244, %v6240
        %v6889 = vpack.c.b16 %v6245, %v6241
        %v6890 = vpack.c.b16 %v6246, %v6242
        %v6891 = vpack.c.b16 %v6247, %v6243
        %v6892 = vpack.c.b16 %v6252, %v6248
        %v6893 = vpack.c.b16 %v6253, %v6249
        %v6894 = vpack.c.b16 %v6254, %v6250
        %v6895 = vpack.c.b16 %v6255, %v6251
        %v6896 = vpack.c.b16 %v6260, %v6256
        %v6897 = vpack.c.b16 %v6261, %v6257
        %v6898 = vpack.c.b16 %v6262, %v6258
        %v6899 = vpack.c.b16 %v6263, %v6259
        %v6900 = vpack.c.b16 %v6268, %v6264
        %v6901 = vpack.c.b16 %v6269, %v6265
        %v6902 = vpack.c.b16 %v6270, %v6266
        %v6903 = vpack.c.b16 %v6271, %v6267
        %v6904 = vpack.c.b16 %v6276, %v6272
        %v6905 = vpack.c.b16 %v6277, %v6273
        %v6906 = vpack.c.b16 %v6278, %v6274
        %v6907 = vpack.c.b16 %v6279, %v6275
        %v6908 = vpack.c.b16 %v6284, %v6280
        %v6909 = vpack.c.b16 %v6285, %v6281
        %v6910 = vpack.c.b16 %v6286, %v6282
        %v6911 = vpack.c.b16 %v6287, %v6283
        %v6912 = vpack.c.b16 %v6292, %v6288
        %v6913 = vpack.c.b16 %v6293, %v6289
        %v6914 = vpack.c.b16 %v6294, %v6290
        %v6915 = vpack.c.b16 %v6295, %v6291
        %v6916 = vpack.c.b16 %v6300, %v6296
        %v6917 = vpack.c.b16 %v6301, %v6297
        %v6918 = vpack.c.b16 %v6302, %v6298
        %v6919 = vpack.c.b16 %v6303, %v6299
        %v6920 = vpack.c.b16 %v6308, %v6304
        %v6921 = vpack.c.b16 %v6309, %v6305
        %v6922 = vpack.c.b16 %v6310, %v6306
        %v6923 = vpack.c.b16 %v6311, %v6307
        %v6924 = vpack.c.b16 %v6316, %v6312
        %v6925 = vpack.c.b16 %v6317, %v6313
        %v6926 = vpack.c.b16 %v6318, %v6314
        %v6927 = vpack.c.b16 %v6319, %v6315
        %v6928 = vpack.c.b16 %v6324, %v6320
        %v6929 = vpack.c.b16 %v6325, %v6321
        %v6930 = vpack.c.b16 %v6326, %v6322
        %v6931 = vpack.c.b16 %v6327, %v6323
        %v6932 = vpack.c.b16 %v6332, %v6328
        %v6933 = vpack.c.b16 %v6333, %v6329
        %v6934 = vpack.c.b16 %v6334, %v6330
        %v6935 = vpack.c.b16 %v6335, %v6331
        %v6936 = vpack.c.b16 %v6340, %v6336
        %v6937 = vpack.c.b16 %v6341, %v6337
        %v6938 = vpack.c.b16 %v6342, %v6338
        %v6939 = vpack.c.b16 %v6343, %v6339
        %v6940 = vpack.c.b16 %v6348, %v6344
        %v6941 = vpack.c.b16 %v6349, %v6345
        %v6942 = vpack.c.b16 %v6350, %v6346
        %v6943 = vpack.c.b16 %v6351, %v6347
        %v6944 = vpack.c.b16 %v6356, %v6352
        %v6945 = vpack.c.b16 %v6357, %v6353
        %v6946 = vpack.c.b16 %v6358, %v6354
        %v6947 = vpack.c.b16 %v6359, %v6355
        %v6948 = vpack.c.b16 %v6364, %v6360
        %v6949 = vpack.c.b16 %v6365, %v6361
        %v6950 = vpack.c.b16 %v6366, %v6362
        %v6951 = vpack.c.b16 %v6367, %v6363
        %v6952 = vpack.c.b16 %v6372, %v6368
        %v6953 = vpack.c.b16 %v6373, %v6369
        %v6954 = vpack.c.b16 %v6374, %v6370
        %v6955 = vpack.c.b16 %v6375, %v6371
        %v6956 = vpack.c.b16 %v6380, %v6376
        %v6957 = vpack.c.b16 %v6381, %v6377
        %v6958 = vpack.c.b16 %v6382, %v6378
        %v6959 = vpack.c.b16 %v6383, %v6379
        %v6960 = vpack.c.b16 %v6388, %v6384
        %v6961 = vpack.c.b16 %v6389, %v6385
        %v6962 = vpack.c.b16 %v6390, %v6386
        %v6963 = vpack.c.b16 %v6391, %v6387
        %v6964 = vpack.c.b16 %v6396, %v6392
        %v6965 = vpack.c.b16 %v6397, %v6393
        %v6966 = vpack.c.b16 %v6398, %v6394
        %v6967 = vpack.c.b16 %v6399, %v6395
        %v6968 = vpack.c.b16 %v6404, %v6400
        %v6969 = vpack.c.b16 %v6405, %v6401
        %v6970 = vpack.c.b16 %v6406, %v6402
        %v6971 = vpack.c.b16 %v6407, %v6403
        %v6972 = vpack.c.b16 %v6412, %v6408
        %v6973 = vpack.c.b16 %v6413, %v6409
        %v6974 = vpack.c.b16 %v6414, %v6410
        %v6975 = vpack.c.b16 %v6415, %v6411
        %v6976 = vpack.c.b16 %v6420, %v6416
        %v6977 = vpack.c.b16 %v6421, %v6417
        %v6978 = vpack.c.b16 %v6422, %v6418
        %v6979 = vpack.c.b16 %v6423, %v6419
        %v6980 = vpack.c.b16 %v6428, %v6424
        %v6981 = vpack.c.b16 %v6429, %v6425
        %v6982 = vpack.c.b16 %v6430, %v6426
        %v6983 = vpack.c.b16 %v6431, %v6427
        %v6984 = vpack.c.b16 %v6436, %v6432
        %v6985 = vpack.c.b16 %v6437, %v6433
        %v6986 = vpack.c.b16 %v6438, %v6434
        %v6987 = vpack.c.b16 %v6439, %v6435
        %v6988 = vpack.c.b16 %v6444, %v6440
        %v6989 = vpack.c.b16 %v6445, %v6441
        %v6990 = vpack.c.b16 %v6446, %v6442
        %v6991 = vpack.c.b16 %v6447, %v6443
        %v6992 = vpack.c.b16 %v6452, %v6448
        %v6993 = vpack.c.b16 %v6453, %v6449
        %v6994 = vpack.c.b16 %v6454, %v6450
        %v6995 = vpack.c.b16 %v6455, %v6451
        %v6996 = vpack.c.b16 %v6460, %v6456
        %v6997 = vpack.c.b16 %v6461, %v6457
        %v6998 = vpack.c.b16 %v6462, %v6458
        %v6999 = vpack.c.b16 %v6463, %v6459
        %v7000 = vpack.c.b16 %v6468, %v6464
        %v7001 = vpack.c.b16 %v6469, %v6465
        %v7002 = vpack.c.b16 %v6470, %v6466
        %v7003 = vpack.c.b16 %v6471, %v6467
        %v7004 = vpack.c.b16 %v6476, %v6472
        %v7005 = vpack.c.b16 %v6477, %v6473
        %v7006 = vpack.c.b16 %v6478, %v6474
        %v7007 = vpack.c.b16 %v6479, %v6475
        %v7008 = vpack.c.b16 %v6484, %v6480
        %v7009 = vpack.c.b16 %v6485, %v6481
        %v7010 = vpack.c.b16 %v6486, %v6482
        %v7011 = vpack.c.b16 %v6487, %v6483
        %v7012 = vpack.c.b16 %v6492, %v6488
        %v7013 = vpack.c.b16 %v6493, %v6489
        %v7014 = vpack.c.b16 %v6494, %v6490
        %v7015 = vpack.c.b16 %v6495, %v6491
        %v7016 = vpack.c.b16 %v6500, %v6496
        %v7017 = vpack.c.b16 %v6501, %v6497
        %v7018 = vpack.c.b16 %v6502, %v6498
        %v7019 = vpack.c.b16 %v6503, %v6499
        %v7020 = vpack.c.b16 %v6508, %v6504
        %v7021 = vpack.c.b16 %v6509, %v6505
        %v7022 = vpack.c.b16 %v6510, %v6506
        %v7023 = vpack.c.b16 %v6511, %v6507
        %v7024 = vpack.c.b16 %v6516, %v6512
        %v7025 = vpack.c.b16 %v6517, %v6513
        %v7026 = vpack.c.b16 %v6518, %v6514
        %v7027 = vpack.c.b16 %v6519, %v6515
        %v7028 = vpack.c.b16 %v6524, %v6520
        %v7029 = vpack.c.b16 %v6525, %v6521
        %v7030 = vpack.c.b16 %v6526, %v6522
        %v7031 = vpack.c.b16 %v6527, %v6523
        %v7032 = vpack.c.b16 %v6532, %v6528
        %v7033 = vpack.c.b16 %v6533, %v6529
        %v7034 = vpack.c.b16 %v6534, %v6530
        %v7035 = vpack.c.b16 %v6535, %v6531
        %v7036 = vpack.c.b16 %v6540, %v6536
        %v7037 = vpack.c.b16 %v6541, %v6537
        %v7038 = vpack.c.b16 %v6542, %v6538
        %v7039 = vpack.c.b16 %v6543, %v6539
        %v7040 = vpack.c.b16 %v6548, %v6544
        %v7041 = vpack.c.b16 %v6549, %v6545
        %v7042 = vpack.c.b16 %v6550, %v6546
        %v7043 = vpack.c.b16 %v6551, %v6547
        %v7044 = vpack.c.b16 %v6556, %v6552
        %v7045 = vpack.c.b16 %v6557, %v6553
        %v7046 = vpack.c.b16 %v6558, %v6554
        %v7047 = vpack.c.b16 %v6559, %v6555
        %v7048 = vpack.c.b16 %v6564, %v6560
        %v7049 = vpack.c.b16 %v6565, %v6561
        %v7050 = vpack.c.b16 %v6566, %v6562
        %v7051 = vpack.c.b16 %v6567, %v6563
        %v7052 = vpack.c.b16 %v6572, %v6568
        %v7053 = vpack.c.b16 %v6573, %v6569
        %v7054 = vpack.c.b16 %v6574, %v6570
        %v7055 = vpack.c.b16 %v6575, %v6571
        %v7056 = vpack.c.b16 %v6580, %v6576
        %v7057 = vpack.c.b16 %v6581, %v6577
        %v7058 = vpack.c.b16 %v6582, %v6578
        %v7059 = vpack.c.b16 %v6583, %v6579
        %v7060 = vpack.c.b16 %v6588, %v6584
        %v7061 = vpack.c.b16 %v6589, %v6585
        %v7062 = vpack.c.b16 %v6590, %v6586
        %v7063 = vpack.c.b16 %v6591, %v6587
        %v7064 = vpack.c.b16 %v6596, %v6592
        %v7065 = vpack.c.b16 %v6597, %v6593
        %v7066 = vpack.c.b16 %v6598, %v6594
        %v7067 = vpack.c.b16 %v6599, %v6595
        %v7068 = vpack.c.b16 %v6604, %v6600
        %v7069 = vpack.c.b16 %v6605, %v6601
        %v7070 = vpack.c.b16 %v6606, %v6602
        %v7071 = vpack.c.b16 %v6607, %v6603
        %v7072 = vpack.c.b16 %v6612, %v6608
        %v7073 = vpack.c.b16 %v6613, %v6609
        %v7074 = vpack.c.b16 %v6614, %v6610
        %v7075 = vpack.c.b16 %v6615, %v6611
        %v7076 = vpack.c.b16 %v6620, %v6616
        %v7077 = vpack.c.b16 %v6621, %v6617
        %v7078 = vpack.c.b16 %v6622, %v6618
        %v7079 = vpack.c.b16 %v6623, %v6619
        %v7080 = vpack.c.b16 %v6628, %v6624
        %v7081 = vpack.c.b16 %v6629, %v6625
        %v7082 = vpack.c.b16 %v6630, %v6626
        %v7083 = vpack.c.b16 %v6631, %v6627
        %v7084 = vpack.c.b16 %v6636, %v6632
        %v7085 = vpack.c.b16 %v6637, %v6633
        %v7086 = vpack.c.b16 %v6638, %v6634
        %v7087 = vpack.c.b16 %v6639, %v6635
        %v7088 = vpack.c.b16 %v6644, %v6640
        %v7089 = vpack.c.b16 %v6645, %v6641
        %v7090 = vpack.c.b16 %v6646, %v6642
        %v7091 = vpack.c.b16 %v6647, %v6643
        %v7092 = vpack.c.b16 %v6652, %v6648
        %v7093 = vpack.c.b16 %v6653, %v6649
        %v7094 = vpack.c.b16 %v6654, %v6650
        %v7095 = vpack.c.b16 %v6655, %v6651
        %v7096 = vpack.c.b16 %v6660, %v6656
        %v7097 = vpack.c.b16 %v6661, %v6657
        %v7098 = vpack.c.b16 %v6662, %v6658
        %v7099 = vpack.c.b16 %v6663, %v6659
        %v7100 = vpack.c.b16 %v6668, %v6664
        %v7101 = vpack.c.b16 %v6669, %v6665
        %v7102 = vpack.c.b16 %v6670, %v6666
        %v7103 = vpack.c.b16 %v6671, %v6667
        %v7104 = vpack.c.b16 %v6676, %v6672
        %v7105 = vpack.c.b16 %v6677, %v6673
        %v7106 = vpack.c.b16 %v6678, %v6674
        %v7107 = vpack.c.b16 %v6679, %v6675
        %v7108 = vpack.c.b16 %v6684, %v6680
        %v7109 = vpack.c.b16 %v6685, %v6681
        %v7110 = vpack.c.b16 %v6686, %v6682
        %v7111 = vpack.c.b16 %v6687, %v6683
        %v7112 = vpack.c.b16 %v6692, %v6688
        %v7113 = vpack.c.b16 %v6693, %v6689
        %v7114 = vpack.c.b16 %v6694, %v6690
        %v7115 = vpack.c.b16 %v6695, %v6691
        %v7116 = vpack.c.b16 %v6700, %v6696
        %v7117 = vpack.c.b16 %v6701, %v6697
        %v7118 = vpack.c.b16 %v6702, %v6698
        %v7119 = vpack.c.b16 %v6703, %v6699
        %v7120 = vpack.c.b16 %v6708, %v6704
        %v7121 = vpack.c.b16 %v6709, %v6705
        %v7122 = vpack.c.b16 %v6710, %v6706
        %v7123 = vpack.c.b16 %v6711, %v6707
        %v7124 = vpack.c.b16 %v6716, %v6712
        %v7125 = vpack.c.b16 %v6717, %v6713
        %v7126 = vpack.c.b16 %v6718, %v6714
        %v7127 = vpack.c.b16 %v6719, %v6715
        %v7128 = vpack.c.b16 %v6724, %v6720
        %v7129 = vpack.c.b16 %v6725, %v6721
        %v7130 = vpack.c.b16 %v6726, %v6722
        %v7131 = vpack.c.b16 %v6727, %v6723
        %v7132 = vpack.c.b16 %v6732, %v6728
        %v7133 = vpack.c.b16 %v6733, %v6729
        %v7134 = vpack.c.b16 %v6734, %v6730
        %v7135 = vpack.c.b16 %v6735, %v6731
        %v7136 = vpack.c.b16 %v6740, %v6736
        %v7137 = vpack.c.b16 %v6741, %v6737
        %v7138 = vpack.c.b16 %v6742, %v6738
        %v7139 = vpack.c.b16 %v6743, %v6739
        %v7140 = vpack.c.b16 %v6748, %v6744
        %v7141 = vpack.c.b16 %v6749, %v6745
        %v7142 = vpack.c.b16 %v6750, %v6746
        %v7143 = vpack.c.b16 %v6751, %v6747
        %v7144 = vpack.c.b16 %v6756, %v6752
        %v7145 = vpack.c.b16 %v6757, %v6753
        %v7146 = vpack.c.b16 %v6758, %v6754
        %v7147 = vpack.c.b16 %v6759, %v6755
        %v7148 = vpack.c.b16 %v6764, %v6760
        %v7149 = vpack.c.b16 %v6765, %v6761
        %v7150 = vpack.c.b16 %v6766, %v6762
        %v7151 = vpack.c.b16 %v6767, %v6763
        %v7152 = vpack.c.b16 %v6772, %v6768
        %v7153 = vpack.c.b16 %v6773, %v6769
        %v7154 = vpack.c.b16 %v6774, %v6770
        %v7155 = vpack.c.b16 %v6775, %v6771
        %v7156 = vpack.c.b16 %v6780, %v6776
        %v7157 = vpack.c.b16 %v6781, %v6777
        %v7158 = vpack.c.b16 %v6782, %v6778
        %v7159 = vpack.c.b16 %v6783, %v6779
        %v7160 = vpack.c.b16 %v6788, %v6784
        %v7161 = vpack.c.b16 %v6789, %v6785
        %v7162 = vpack.c.b16 %v6790, %v6786
        %v7163 = vpack.c.b16 %v6791, %v6787
        %v7164 = vpack.c.b16 %v6796, %v6792
        %v7165 = vpack.c.b16 %v6797, %v6793
        %v7166 = vpack.c.b16 %v6798, %v6794
        %v7167 = vpack.c.b16 %v6799, %v6795
        %v7168 = vpack.c.b16 %v6804, %v6800
        %v7169 = vpack.c.b16 %v6805, %v6801
        %v7170 = vpack.c.b16 %v6806, %v6802
        %v7171 = vpack.c.b16 %v6807, %v6803
        %v7172 = vpack.c.b16 %v6812, %v6808
        %v7173 = vpack.c.b16 %v6813, %v6809
        %v7174 = vpack.c.b16 %v6814, %v6810
        %v7175 = vpack.c.b16 %v6815, %v6811
        %v7176 = vpack.c.b16 %v6820, %v6816
        %v7177 = vpack.c.b16 %v6821, %v6817
        %v7178 = vpack.c.b16 %v6822, %v6818
        %v7179 = vpack.c.b16 %v6823, %v6819
        %v7180 = vpack.c.b16 %v6828, %v6824
        %v7181 = vpack.c.b16 %v6829, %v6825
        %v7182 = vpack.c.b16 %v6830, %v6826
        %v7183 = vpack.c.b16 %v6831, %v6827
        %v7184 = vpack.c.b16 %v6836, %v6832
        %v7185 = vpack.c.b16 %v6837, %v6833
        %v7186 = vpack.c.b16 %v6838, %v6834
        %v7187 = vpack.c.b16 %v6839, %v6835
        %v7188 = vpack.c.b16 %v6844, %v6840
        %v7189 = vpack.c.b16 %v6845, %v6841
        %v7190 = vpack.c.b16 %v6846, %v6842
        %v7191 = vpack.c.b16 %v6847, %v6843
        %v7192 = vpack.c.b16 %v6852, %v6848
        %v7193 = vpack.c.b16 %v6853, %v6849
        %v7194 = vpack.c.b16 %v6854, %v6850
        %v7195 = vpack.c.b16 %v6855, %v6851
        %v7196 = vpack.c.b16 %v6860, %v6856
        %v7197 = vpack.c.b16 %v6861, %v6857
        %v7198 = vpack.c.b16 %v6862, %v6858
        %v7199 = vpack.c.b16 %v6863, %v6859
        %v7537 = vsel %vm748, %v5363, 0
        %v7540 = vsel %vm748, %v5375, 0
        %v7543 = vsel %vm748, %v5387, 0
        %v7546 = vsel %vm748, %v5408, 0
        %7548 = vmatprep.subr.bf16.mxu0 %v6865
        %7549 = vmatpush1.bf16.msra.mxu0 %v6864
        %7550 = vmatprep.subr.bf16.mxu0 %v6869
        %7551 = vmatpush1.bf16.msra.mxu0 %v6868
        %7552 = vmatprep.subr.bf16.mxu0 %v6873
        %7553 = vmatpush1.bf16.msra.mxu0 %v6872
        %7554 = vmatprep.subr.bf16.mxu0 %v6877
        %7555 = vmatpush1.bf16.msra.mxu0 %v6876
        %7556 = vmatprep.subr.bf16.mxu0 %v6881
        %7557 = vmatpush1.bf16.msra.mxu0 %v6880
        %7558 = vmatprep.subr.bf16.mxu0 %v6885
        %7559 = vmatpush1.bf16.msra.mxu0 %v6884
        %7560 = vmatprep.subr.bf16.mxu0 %v6889
        %7561 = vmatpush1.bf16.msra.mxu0 %v6888
        %7562 = vmatprep.subr.bf16.mxu0 %v6893
        %7563 = vmatpush1.bf16.msra.mxu0 %v6892
        %7564 = vmatprep.subr.bf16.mxu0 %v6897
        %7565 = vmatpush1.bf16.msra.mxu0 %v6896
        %7566 = vmatprep.subr.bf16.mxu0 %v6901
        %7567 = vmatpush1.bf16.msra.mxu0 %v6900
        %7568 = vmatprep.subr.bf16.mxu0 %v6905
        %7569 = vmatpush1.bf16.msra.mxu0 %v6904
        %7570 = vmatprep.subr.bf16.mxu0 %v6909
        %7571 = vmatpush1.bf16.msra.mxu0 %v6908
        %7572 = vmatprep.subr.bf16.mxu0 %v6913
        %7573 = vmatpush1.bf16.msra.mxu0 %v6912
        %7574 = vmatprep.subr.bf16.mxu0 %v6917
        %7575 = vmatpush1.bf16.msra.mxu0 %v6916
        %7576 = vmatprep.subr.bf16.mxu0 %v6921
        %7577 = vmatpush1.bf16.msra.mxu0 %v6920
        %7578 = vmatprep.subr.bf16.mxu0 %v6925
        %7579 = vmatpush1.bf16.msra.mxu0 %v6924
        %7580 = vmatprep.mubr.bf16.mxu0 %v5345
        %7581 = vmatmul.mubr.bf16.gmra.mrb[0].mxu0 %v5344
        %v7582 = vpop.f32.mrb[0].mxu0
        %v7583 = vadd.f32 %v5839, %v7582
        %v7584 = vpop.f32.mrb[0].mxu0
        %v7585 = vadd.f32 %v5843, %v7584
        %v7586 = vpop.f32.mrb[0].mxu0
        %v7587 = vadd.f32 %v5839, %v7586
        %v7588 = vpop.f32.mrb[0].mxu0
        %v7589 = vadd.f32 %v5843, %v7588
        %7590 = vmatprep.mubr.bf16.mxu0 %v5250
        %7591 = vmatmul.mubr.bf16.gmra.mrb[0].mxu0 %v5242
        %v7592 = vpop.f32.mrb[0].mxu0
        %v7593 = vadd.f32 %v5839, %v7592
        %v7594 = vpop.f32.mrb[0].mxu0
        %v7595 = vadd.f32 %v5843, %v7594
        %v7596 = vpop.f32.mrb[0].mxu0
        %v7597 = vadd.f32 %v5839, %v7596
        %v7598 = vpop.f32.mrb[0].mxu0
        %v7599 = vadd.f32 %v5843, %v7598
        %7600 = vmatprep.mubr.bf16.mxu0 %v5282
        %7601 = vmatmul.mubr.bf16.gmra.mrb[0].mxu0 %v5274
        %v7602 = vpop.f32.mrb[0].mxu0
        %v7603 = vadd.f32 %v5839, %v7602
        %v7604 = vpop.f32.mrb[0].mxu0
        %v7605 = vadd.f32 %v5843, %v7604
        %v7606 = vpop.f32.mrb[0].mxu0
        %v7607 = vadd.f32 %v5839, %v7606
        %v7608 = vpop.f32.mrb[0].mxu0
        %v7609 = vadd.f32 %v5843, %v7608
        %7610 = vmatprep.mubr.bf16.mxu0 %v5314
        %7611 = vmatmul.mubr.bf16.gmra.mrb[0].mxu0 %v5306
        %v7612 = vpop.f32.mrb[0].mxu0
        %v7613 = vadd.f32 %v5839, %v7612
        %v7614 = vpop.f32.mrb[0].mxu0
        %v7615 = vadd.f32 %v5843, %v7614
        %v7616 = vpop.f32.mrb[0].mxu0
        %v7617 = vadd.f32 %v5839, %v7616
        %v7618 = vpop.f32.mrb[0].mxu0
        %v7619 = vadd.f32 %v5843, %v7618
        %7620 = vdwg.mxu0
        %7621 = vmatprep.subr.bf16.mxu0 %v6929
        %7622 = vmatpush1.bf16.msra.mxu0 %v6928
        %7623 = vmatprep.subr.bf16.mxu0 %v6933
        %7624 = vmatpush1.bf16.msra.mxu0 %v6932
        %7625 = vmatprep.subr.bf16.mxu0 %v6937
        %7626 = vmatpush1.bf16.msra.mxu0 %v6936
        %7627 = vmatprep.subr.bf16.mxu0 %v6941
        %7628 = vmatpush1.bf16.msra.mxu0 %v6940
        %7629 = vmatprep.subr.bf16.mxu0 %v6945
        %7630 = vmatpush1.bf16.msra.mxu0 %v6944
        %7631 = vmatprep.subr.bf16.mxu0 %v6949
        %7632 = vmatpush1.bf16.msra.mxu0 %v6948
        %7633 = vmatprep.subr.bf16.mxu0 %v6953
        %7634 = vmatpush1.bf16.msra.mxu0 %v6952
        %7635 = vmatprep.subr.bf16.mxu0 %v6957
        %7636 = vmatpush1.bf16.msra.mxu0 %v6956
        %7637 = vmatprep.subr.bf16.mxu0 %v6961
        %7638 = vmatpush1.bf16.msra.mxu0 %v6960
        %7639 = vmatprep.subr.bf16.mxu0 %v6965
        %7640 = vmatpush1.bf16.msra.mxu0 %v6964
        %7641 = vmatprep.subr.bf16.mxu0 %v6969
        %7642 = vmatpush1.bf16.msra.mxu0 %v6968
        %7643 = vmatprep.subr.bf16.mxu0 %v6973
        %7644 = vmatpush1.bf16.msra.mxu0 %v6972
        %7645 = vmatprep.subr.bf16.mxu0 %v6977
        %7646 = vmatpush1.bf16.msra.mxu0 %v6976
        %7647 = vmatprep.subr.bf16.mxu0 %v6981
        %7648 = vmatpush1.bf16.msra.mxu0 %v6980
        %7649 = vmatprep.subr.bf16.mxu0 %v6985
        %7650 = vmatpush1.bf16.msra.mxu0 %v6984
        %7651 = vmatprep.subr.bf16.mxu0 %v6989
        %7652 = vmatpush1.bf16.msra.mxu0 %v6988
        %7653 = vmatprep.mubr.bf16.mxu0 %v5484
        %7654 = vmatmul.mubr.bf16.gmra.mrb[0].mxu0 %v5346
        %v7655 = vpop.f32.mrb[0].mxu0
        %v7656 = vadd.f32 %v7583, %v7655
        %v7657 = vpop.f32.mrb[0].mxu0
        %v7658 = vadd.f32 %v7585, %v7657
        %v7659 = vpop.f32.mrb[0].mxu0
        %v7660 = vadd.f32 %v7587, %v7659
        %v7661 = vpop.f32.mrb[0].mxu0
        %v7662 = vadd.f32 %v7589, %v7661
        %7663 = vmatprep.mubr.bf16.mxu0 %v5488
        %7664 = vmatmul.mubr.bf16.gmra.mrb[0].mxu0 %v5258
        %v7665 = vpop.f32.mrb[0].mxu0
        %v7666 = vadd.f32 %v7593, %v7665
        %v7667 = vpop.f32.mrb[0].mxu0
        %v7668 = vadd.f32 %v7595, %v7667
        %v7669 = vpop.f32.mrb[0].mxu0
        %v7670 = vadd.f32 %v7597, %v7669
        %v7671 = vpop.f32.mrb[0].mxu0
        %v7672 = vadd.f32 %v7599, %v7671
        %7673 = vmatprep.mubr.bf16.mxu0 %v5492
        %7674 = vmatmul.mubr.bf16.gmra.mrb[0].mxu0 %v5290
        %v7675 = vpop.f32.mrb[0].mxu0
        %v7676 = vadd.f32 %v7603, %v7675
        %v7677 = vpop.f32.mrb[0].mxu0
        %v7678 = vadd.f32 %v7605, %v7677
        %v7679 = vpop.f32.mrb[0].mxu0
        %v7680 = vadd.f32 %v7607, %v7679
        %v7681 = vpop.f32.mrb[0].mxu0
        %v7682 = vadd.f32 %v7609, %v7681
        %7683 = vmatprep.mubr.bf16.mxu0 %v5496
        %7684 = vmatmul.mubr.bf16.gmra.mrb[0].mxu0 %v5322
        %v7685 = vpop.f32.mrb[0].mxu0
        %v7686 = vadd.f32 %v7613, %v7685
        %v7687 = vpop.f32.mrb[0].mxu0
        %v7688 = vadd.f32 %v7615, %v7687
        %v7689 = vpop.f32.mrb[0].mxu0
        %v7690 = vadd.f32 %v7617, %v7689
        %v7691 = vpop.f32.mrb[0].mxu0
        %v7692 = vadd.f32 %v7619, %v7691
        %7693 = vdwg.mxu0
        %7694 = vmatprep.subr.bf16.mxu0 %v6993
        %7695 = vmatpush1.bf16.msra.mxu0 %v6992
        %7696 = vmatprep.subr.bf16.mxu0 %v6997
        %7697 = vmatpush1.bf16.msra.mxu0 %v6996
        %7698 = vmatprep.subr.bf16.mxu0 %v7001
        %7699 = vmatpush1.bf16.msra.mxu0 %v7000
        %7700 = vmatprep.subr.bf16.mxu0 %v7005
        %7701 = vmatpush1.bf16.msra.mxu0 %v7004
        %7702 = vmatprep.subr.bf16.mxu0 %v7009
        %7703 = vmatpush1.bf16.msra.mxu0 %v7008
        %7704 = vmatprep.subr.bf16.mxu0 %v7013
        %7705 = vmatpush1.bf16.msra.mxu0 %v7012
        %7706 = vmatprep.subr.bf16.mxu0 %v7017
        %7707 = vmatpush1.bf16.msra.mxu0 %v7016
        %7708 = vmatprep.subr.bf16.mxu0 %v7021
        %7709 = vmatpush1.bf16.msra.mxu0 %v7020
        %7710 = vmatprep.subr.bf16.mxu0 %v7025
        %7711 = vmatpush1.bf16.msra.mxu0 %v7024
        %7712 = vmatprep.subr.bf16.mxu0 %v7029
        %7713 = vmatpush1.bf16.msra.mxu0 %v7028
        %7714 = vmatprep.subr.bf16.mxu0 %v7033
        %7715 = vmatpush1.bf16.msra.mxu0 %v7032
        %7716 = vmatprep.subr.bf16.mxu0 %v7037
        %7717 = vmatpush1.bf16.msra.mxu0 %v7036
        %7718 = vmatprep.subr.bf16.mxu0 %v7041
        %7719 = vmatpush1.bf16.msra.mxu0 %v7040
        %7720 = vmatprep.subr.bf16.mxu0 %v7045
        %7721 = vmatpush1.bf16.msra.mxu0 %v7044
        %7722 = vmatprep.subr.bf16.mxu0 %v7049
        %7723 = vmatpush1.bf16.msra.mxu0 %v7048
        %7724 = vmatprep.subr.bf16.mxu0 %v7053
        %7725 = vmatpush1.bf16.msra.mxu0 %v7052
        %7726 = vmatprep.mubr.bf16.mxu0 %v5459
        %7727 = vmatmul.mubr.bf16.gmra.mrb[0].mxu0 %v5458
        %v7728 = vpop.f32.mrb[0].mxu0
        %v7729 = vadd.f32 %v7656, %v7728
        %v7730 = vpop.f32.mrb[0].mxu0
        %v7731 = vadd.f32 %v7658, %v7730
        %v7732 = vpop.f32.mrb[0].mxu0
        %v7733 = vadd.f32 %v7660, %v7732
        %v7734 = vpop.f32.mrb[0].mxu0
        %v7735 = vadd.f32 %v7662, %v7734
        %7736 = vmatprep.mubr.bf16.mxu0 %v5462
        %7737 = vmatmul.mubr.bf16.gmra.mrb[0].mxu0 %v5461
        %v7738 = vpop.f32.mrb[0].mxu0
        %v7739 = vadd.f32 %v7666, %v7738
        %v7740 = vpop.f32.mrb[0].mxu0
        %v7741 = vadd.f32 %v7668, %v7740
        %v7742 = vpop.f32.mrb[0].mxu0
        %v7743 = vadd.f32 %v7670, %v7742
        %v7744 = vpop.f32.mrb[0].mxu0
        %v7745 = vadd.f32 %v7672, %v7744
        %7746 = vmatprep.mubr.bf16.mxu0 %v5465
        %7747 = vmatmul.mubr.bf16.gmra.mrb[0].mxu0 %v5464
        %v7748 = vpop.f32.mrb[0].mxu0
        %v7749 = vadd.f32 %v7676, %v7748
        %v7750 = vpop.f32.mrb[0].mxu0
        %v7751 = vadd.f32 %v7678, %v7750
        %v7752 = vpop.f32.mrb[0].mxu0
        %v7753 = vadd.f32 %v7680, %v7752
        %v7754 = vpop.f32.mrb[0].mxu0
        %v7755 = vadd.f32 %v7682, %v7754
        %7756 = vmatprep.mubr.bf16.mxu0 %v5468
        %7757 = vmatmul.mubr.bf16.gmra.mrb[0].mxu0 %v5467
        %v7758 = vpop.f32.mrb[0].mxu0
        %v7759 = vadd.f32 %v7686, %v7758
        %v7760 = vpop.f32.mrb[0].mxu0
        %v7761 = vadd.f32 %v7688, %v7760
        %v7762 = vpop.f32.mrb[0].mxu0
        %v7763 = vadd.f32 %v7690, %v7762
        %v7764 = vpop.f32.mrb[0].mxu0
        %v7765 = vadd.f32 %v7692, %v7764
        %7766 = vdwg.mxu0
        %7767 = vmatprep.subr.bf16.mxu0 %v7057
        %7768 = vmatpush1.bf16.msra.mxu0 %v7056
        %7769 = vmatprep.subr.bf16.mxu0 %v7061
        %7770 = vmatpush1.bf16.msra.mxu0 %v7060
        %7771 = vmatprep.subr.bf16.mxu0 %v7065
        %7772 = vmatpush1.bf16.msra.mxu0 %v7064
        %7773 = vmatprep.subr.bf16.mxu0 %v7069
        %7774 = vmatpush1.bf16.msra.mxu0 %v7068
        %7775 = vmatprep.subr.bf16.mxu0 %v7073
        %7776 = vmatpush1.bf16.msra.mxu0 %v7072
        %7777 = vmatprep.subr.bf16.mxu0 %v7077
        %7778 = vmatpush1.bf16.msra.mxu0 %v7076
        %7779 = vmatprep.subr.bf16.mxu0 %v7081
        %7780 = vmatpush1.bf16.msra.mxu0 %v7080
        %7781 = vmatprep.subr.bf16.mxu0 %v7085
        %7782 = vmatpush1.bf16.msra.mxu0 %v7084
        %7783 = vmatprep.subr.bf16.mxu0 %v7089
        %7784 = vmatpush1.bf16.msra.mxu0 %v7088
        %7785 = vmatprep.subr.bf16.mxu0 %v7093
        %7786 = vmatpush1.bf16.msra.mxu0 %v7092
        %7787 = vmatprep.subr.bf16.mxu0 %v7097
        %7788 = vmatpush1.bf16.msra.mxu0 %v7096
        %7789 = vmatprep.subr.bf16.mxu0 %v7101
        %7790 = vmatpush1.bf16.msra.mxu0 %v7100
        %7791 = vmatprep.subr.bf16.mxu0 %v7105
        %7792 = vmatpush1.bf16.msra.mxu0 %v7104
        %7793 = vmatprep.subr.bf16.mxu0 %v7109
        %7794 = vmatpush1.bf16.msra.mxu0 %v7108
        %7795 = vmatprep.subr.bf16.mxu0 %v7113
        %7796 = vmatpush1.bf16.msra.mxu0 %v7112
        %7797 = vmatprep.subr.bf16.mxu0 %v7117
        %7798 = vmatpush1.bf16.msra.mxu0 %v7116
        %7799 = vmatprep.mubr.bf16.mxu0 %v5351
        %7800 = vmatmul.mubr.bf16.gmra.mrb[0].mxu0 %v5460
        %v7801 = vpop.f32.mrb[0].mxu0
        %v7802 = vadd.f32 %v7729, %v7801
        %v7803 = vpop.f32.mrb[0].mxu0
        %v7804 = vadd.f32 %v7731, %v7803
        %v7805 = vpop.f32.mrb[0].mxu0
        %v7806 = vadd.f32 %v7733, %v7805
        %v7807 = vpop.f32.mrb[0].mxu0
        %v7808 = vadd.f32 %v7735, %v7807
        %7809 = vmatprep.mubr.bf16.mxu0 %v5366
        %7810 = vmatmul.mubr.bf16.gmra.mrb[0].mxu0 %v5463
        %v7811 = vpop.f32.mrb[0].mxu0
        %v7812 = vadd.f32 %v7739, %v7811
        %v7813 = vpop.f32.mrb[0].mxu0
        %v7814 = vadd.f32 %v7741, %v7813
        %v7815 = vpop.f32.mrb[0].mxu0
        %v7816 = vadd.f32 %v7743, %v7815
        %v7817 = vpop.f32.mrb[0].mxu0
        %v7818 = vadd.f32 %v7745, %v7817
        %7819 = vmatprep.mubr.bf16.mxu0 %v5378
        %7820 = vmatmul.mubr.bf16.gmra.mrb[0].mxu0 %v5466
        %v7821 = vpop.f32.mrb[0].mxu0
        %v7822 = vadd.f32 %v7749, %v7821
        %v7823 = vpop.f32.mrb[0].mxu0
        %v7824 = vadd.f32 %v7751, %v7823
        %v7825 = vpop.f32.mrb[0].mxu0
        %v7826 = vadd.f32 %v7753, %v7825
        %v7827 = vpop.f32.mrb[0].mxu0
        %v7828 = vadd.f32 %v7755, %v7827
        %7829 = vmatprep.mubr.bf16.mxu0 %v5405
        %7830 = vmatmul.mubr.bf16.gmra.mrb[0].mxu0 %v5469
        %v7831 = vpop.f32.mrb[0].mxu0
        %v7832 = vadd.f32 %v7759, %v7831
        %v7833 = vpop.f32.mrb[0].mxu0
        %v7834 = vadd.f32 %v7761, %v7833
        %v7835 = vpop.f32.mrb[0].mxu0
        %v7836 = vadd.f32 %v7763, %v7835
        %v7837 = vpop.f32.mrb[0].mxu0
        %v7838 = vadd.f32 %v7765, %v7837
        %7839 = vdwg.mxu0
        %7840 = vmatprep.subr.bf16.mxu0 %v7121
        %7841 = vmatpush1.bf16.msra.mxu0 %v7120
        %7842 = vmatprep.subr.bf16.mxu0 %v7125
        %7843 = vmatpush1.bf16.msra.mxu0 %v7124
        %7844 = vmatprep.subr.bf16.mxu0 %v7129
        %7845 = vmatpush1.bf16.msra.mxu0 %v7128
        %7846 = vmatprep.subr.bf16.mxu0 %v7133
        %7847 = vmatpush1.bf16.msra.mxu0 %v7132
        %7848 = vmatprep.subr.bf16.mxu0 %v7137
        %7849 = vmatpush1.bf16.msra.mxu0 %v7136
        %7850 = vmatprep.subr.bf16.mxu0 %v7141
        %7851 = vmatpush1.bf16.msra.mxu0 %v7140
        %7852 = vmatprep.subr.bf16.mxu0 %v7145
        %7853 = vmatpush1.bf16.msra.mxu0 %v7144
        %7854 = vmatprep.subr.bf16.mxu0 %v7149
        %7855 = vmatpush1.bf16.msra.mxu0 %v7148
        %7856 = vmatprep.subr.bf16.mxu0 %v7153
        %7857 = vmatpush1.bf16.msra.mxu0 %v7152
        %7858 = vmatprep.subr.bf16.mxu0 %v7157
        %7859 = vmatpush1.bf16.msra.mxu0 %v7156
        %7860 = vmatprep.subr.bf16.mxu0 %v7161
        %7861 = vmatpush1.bf16.msra.mxu0 %v7160
        %7862 = vmatprep.subr.bf16.mxu0 %v7165
        %7863 = vmatpush1.bf16.msra.mxu0 %v7164
        %7864 = vmatprep.subr.bf16.mxu0 %v7169
        %7865 = vmatpush1.bf16.msra.mxu0 %v7168
        %7866 = vmatprep.subr.bf16.mxu0 %v7173
        %7867 = vmatpush1.bf16.msra.mxu0 %v7172
        %7868 = vmatprep.subr.bf16.mxu0 %v7177
        %7869 = vmatpush1.bf16.msra.mxu0 %v7176
        %7870 = vmatprep.subr.bf16.mxu0 %v7181
        %7871 = vmatpush1.bf16.msra.mxu0 %v7180
        %7872 = vmatprep.mubr.bf16.mxu0 %v5359
        %7873 = vmatmul.mubr.bf16.gmra.mrb[0].mxu0 %v5355
        %v7874 = vpop.f32.mrb[0].mxu0
        %v7875 = vadd.f32 %v7802, %v7874
        %v7876 = vpop.f32.mrb[0].mxu0
        %v7877 = vadd.f32 %v7804, %v7876
        %v7878 = vpop.f32.mrb[0].mxu0
        %v7879 = vadd.f32 %v7806, %v7878
        %v7880 = vpop.f32.mrb[0].mxu0
        %v7881 = vadd.f32 %v7808, %v7880
        %7882 = vmatprep.mubr.bf16.mxu0 %v5372
        %7883 = vmatmul.mubr.bf16.gmra.mrb[0].mxu0 %v5369
        %v7884 = vpop.f32.mrb[0].mxu0
        %v7885 = vadd.f32 %v7812, %v7884
        %v7886 = vpop.f32.mrb[0].mxu0
        %v7887 = vadd.f32 %v7814, %v7886
        %v7888 = vpop.f32.mrb[0].mxu0
        %v7889 = vadd.f32 %v7816, %v7888
        %v7890 = vpop.f32.mrb[0].mxu0
        %v7891 = vadd.f32 %v7818, %v7890
        %7892 = vmatprep.mubr.bf16.mxu0 %v5384
        %7893 = vmatmul.mubr.bf16.gmra.mrb[0].mxu0 %v5381
        %v7894 = vpop.f32.mrb[0].mxu0
        %v7895 = vadd.f32 %v7822, %v7894
        %v7896 = vpop.f32.mrb[0].mxu0
        %v7897 = vadd.f32 %v7824, %v7896
        %v7898 = vpop.f32.mrb[0].mxu0
        %v7899 = vadd.f32 %v7826, %v7898
        %v7900 = vpop.f32.mrb[0].mxu0
        %v7901 = vadd.f32 %v7828, %v7900
        %7902 = vmatprep.mubr.bf16.mxu0 %v5407
        %7903 = vmatmul.mubr.bf16.gmra.mrb[0].mxu0 %v5406
        %v7904 = vpop.f32.mrb[0].mxu0
        %v7905 = vadd.f32 %v7832, %v7904
        %v7906 = vpop.f32.mrb[0].mxu0
        %v7907 = vadd.f32 %v7834, %v7906
        %v7908 = vpop.f32.mrb[0].mxu0
        %v7909 = vadd.f32 %v7836, %v7908
        %v7910 = vpop.f32.mrb[0].mxu0
        %v7911 = vadd.f32 %v7838, %v7910
        %7912 = vdwg.mxu0
        %7913 = vmatprep.subr.bf16.mxu0 %v7185
        %7914 = vmatpush1.bf16.msra.mxu0 %v7184
        %7915 = vmatprep.subr.bf16.mxu0 %v7189
        %7916 = vmatpush1.bf16.msra.mxu0 %v7188
        %7917 = vmatprep.subr.bf16.mxu0 %v7193
        %7918 = vmatpush1.bf16.msra.mxu0 %v7192
        %7919 = vmatprep.subr.bf16.mxu0 %v7197
        %7920 = vmatpush1.bf16.msra.mxu0 %v7196
        %7921 = vmatprep.subr.bf16.mxu0 0
        %7922 = vmatpush1.bf16.msra.mxu0 0
        %7923 = vmatprep.subr.bf16.mxu0 0
        %7924 = vmatpush1.bf16.msra.mxu0 0
        %7925 = vmatprep.subr.bf16.mxu0 0
        %7926 = vmatpush1.bf16.msra.mxu0 0
        %7927 = vmatprep.subr.bf16.mxu0 0
        %7928 = vmatpush1.bf16.msra.mxu0 0
        %7929 = vmatprep.subr.bf16.mxu0 0
        %7930 = vmatpush1.bf16.msra.mxu0 0
        %7931 = vmatprep.subr.bf16.mxu0 0
        %7932 = vmatpush1.bf16.msra.mxu0 0
        %7933 = vmatprep.subr.bf16.mxu0 0
        %7934 = vmatpush1.bf16.msra.mxu0 0
        %7935 = vmatprep.subr.bf16.mxu0 0
        %7936 = vmatpush1.bf16.msra.mxu0 0
        %7937 = vmatprep.subr.bf16.mxu0 0
        %7938 = vmatpush1.bf16.msra.mxu0 0
        %7939 = vmatprep.subr.bf16.mxu0 0
        %7940 = vmatpush1.bf16.msra.mxu0 0
        %7941 = vmatprep.subr.bf16.mxu0 0
        %7942 = vmatpush1.bf16.msra.mxu0 0
        %7943 = vmatprep.subr.bf16.mxu0 0
        %7944 = vmatpush1.bf16.msra.mxu0 0
        %7945 = vmatprep.mubr.bf16.mxu0 0
        %7946 = vmatmul.mubr.bf16.gmra.mrb[0].mxu0 %v7537
        %v7947 = vpop.f32.mrb[0].mxu0
        %v7948 = vadd.f32 %v7875, %v7947
        %v7949 = vpop.f32.mrb[0].mxu0
        %v7950 = vadd.f32 %v7877, %v7949
        %v7951 = vpop.f32.mrb[0].mxu0
        %v7952 = vadd.f32 %v7879, %v7951
        %v7953 = vpop.f32.mrb[0].mxu0
        %v7954 = vadd.f32 %v7881, %v7953
        %7955 = vmatprep.mubr.bf16.mxu0 0
        %7956 = vmatmul.mubr.bf16.gmra.mrb[0].mxu0 %v7540
        %v7957 = vpop.f32.mrb[0].mxu0
        %v7958 = vadd.f32 %v7885, %v7957
        %v7959 = vpop.f32.mrb[0].mxu0
        %v7960 = vadd.f32 %v7887, %v7959
        %v7961 = vpop.f32.mrb[0].mxu0
        %v7962 = vadd.f32 %v7889, %v7961
        %v7963 = vpop.f32.mrb[0].mxu0
        %v7964 = vadd.f32 %v7891, %v7963
        %7965 = vmatprep.mubr.bf16.mxu0 0
        %7966 = vmatmul.mubr.bf16.gmra.mrb[0].mxu0 %v7543
        %v7967 = vpop.f32.mrb[0].mxu0
        %v7968 = vadd.f32 %v7895, %v7967
        %v7969 = vpop.f32.mrb[0].mxu0
        %v7970 = vadd.f32 %v7897, %v7969
        %v7971 = vpop.f32.mrb[0].mxu0
        %v7972 = vadd.f32 %v7899, %v7971
        %v7973 = vpop.f32.mrb[0].mxu0
        %v7974 = vadd.f32 %v7901, %v7973
        %7975 = vmatprep.mubr.bf16.mxu0 0
        %7976 = vmatmul.mubr.bf16.gmra.mrb[0].mxu0 %v7546
        %v7977 = vpop.f32.mrb[0].mxu0
        %v7978 = vadd.f32 %v7905, %v7977
        %v7979 = vpop.f32.mrb[0].mxu0
        %v7980 = vadd.f32 %v7907, %v7979
        %v7981 = vpop.f32.mrb[0].mxu0
        %v7982 = vadd.f32 %v7909, %v7981
        %v7983 = vpop.f32.mrb[0].mxu0
        %v7984 = vadd.f32 %v7911, %v7983
        %7985 = vdwg.mxu0
        %7986 = vmatprep.subr.bf16.mxu0 %v6867
        %7987 = vmatpush1.bf16.msra.mxu0 %v6866
        %7988 = vmatprep.subr.bf16.mxu0 %v6871
        %7989 = vmatpush1.bf16.msra.mxu0 %v6870
        %7990 = vmatprep.subr.bf16.mxu0 %v6875
        %7991 = vmatpush1.bf16.msra.mxu0 %v6874
        %7992 = vmatprep.subr.bf16.mxu0 %v6879
        %7993 = vmatpush1.bf16.msra.mxu0 %v6878
        %7994 = vmatprep.subr.bf16.mxu0 %v6883
        %7995 = vmatpush1.bf16.msra.mxu0 %v6882
        %7996 = vmatprep.subr.bf16.mxu0 %v6887
        %7997 = vmatpush1.bf16.msra.mxu0 %v6886
        %7998 = vmatprep.subr.bf16.mxu0 %v6891
        %7999 = vmatpush1.bf16.msra.mxu0 %v6890
        %8000 = vmatprep.subr.bf16.mxu0 %v6895
        %8001 = vmatpush1.bf16.msra.mxu0 %v6894
        %8002 = vmatprep.subr.bf16.mxu0 %v6899
        %8003 = vmatpush1.bf16.msra.mxu0 %v6898
        %8004 = vmatprep.subr.bf16.mxu0 %v6903
        %8005 = vmatpush1.bf16.msra.mxu0 %v6902
        %8006 = vmatprep.subr.bf16.mxu0 %v6907
        %8007 = vmatpush1.bf16.msra.mxu0 %v6906
        %8008 = vmatprep.subr.bf16.mxu0 %v6911
        %8009 = vmatpush1.bf16.msra.mxu0 %v6910
        %8010 = vmatprep.subr.bf16.mxu0 %v6915
        %8011 = vmatpush1.bf16.msra.mxu0 %v6914
        %8012 = vmatprep.subr.bf16.mxu0 %v6919
        %8013 = vmatpush1.bf16.msra.mxu0 %v6918
        %8014 = vmatprep.subr.bf16.mxu0 %v6923
        %8015 = vmatpush1.bf16.msra.mxu0 %v6922
        %8016 = vmatprep.subr.bf16.mxu0 %v6927
        %8017 = vmatpush1.bf16.msra.mxu0 %v6926
        %8018 = vmatprep.mubr.bf16.mxu0 %v5345
        %8019 = vmatmul.mubr.bf16.gmra.mrb[0].mxu0 %v5344
        %v8020 = vpop.f32.mrb[0].mxu0
        %v8021 = vadd.f32 %v5847, %v8020
        %v8022 = vpop.f32.mrb[0].mxu0
        %v8023 = vadd.f32 %v5851, %v8022
        %v8024 = vpop.f32.mrb[0].mxu0
        %v8025 = vadd.f32 %v5847, %v8024
        %v8026 = vpop.f32.mrb[0].mxu0
        %v8027 = vadd.f32 %v5851, %v8026
        %8028 = vmatprep.mubr.bf16.mxu0 %v5250
        %8029 = vmatmul.mubr.bf16.gmra.mrb[0].mxu0 %v5242
        %v8030 = vpop.f32.mrb[0].mxu0
        %v8031 = vadd.f32 %v5847, %v8030
        %v8032 = vpop.f32.mrb[0].mxu0
        %v8033 = vadd.f32 %v5851, %v8032
        %v8034 = vpop.f32.mrb[0].mxu0
        %v8035 = vadd.f32 %v5847, %v8034
        %v8036 = vpop.f32.mrb[0].mxu0
        %v8037 = vadd.f32 %v5851, %v8036
        %8038 = vmatprep.mubr.bf16.mxu0 %v5282
        %8039 = vmatmul.mubr.bf16.gmra.mrb[0].mxu0 %v5274
        %v8040 = vpop.f32.mrb[0].mxu0
        %v8041 = vadd.f32 %v5847, %v8040
        %v8042 = vpop.f32.mrb[0].mxu0
        %v8043 = vadd.f32 %v5851, %v8042
        %v8044 = vpop.f32.mrb[0].mxu0
        %v8045 = vadd.f32 %v5847, %v8044
        %v8046 = vpop.f32.mrb[0].mxu0
        %v8047 = vadd.f32 %v5851, %v8046
        %8048 = vmatprep.mubr.bf16.mxu0 %v5314
        %8049 = vmatmul.mubr.bf16.gmra.mrb[0].mxu0 %v5306
        %v8050 = vpop.f32.mrb[0].mxu0
        %v8051 = vadd.f32 %v5847, %v8050
        %v8052 = vpop.f32.mrb[0].mxu0
        %v8053 = vadd.f32 %v5851, %v8052
        %v8054 = vpop.f32.mrb[0].mxu0
        %v8055 = vadd.f32 %v5847, %v8054
        %v8056 = vpop.f32.mrb[0].mxu0
        %v8057 = vadd.f32 %v5851, %v8056
        %8058 = vdwg.mxu0
        %8059 = vmatprep.subr.bf16.mxu0 %v6931
        %8060 = vmatpush1.bf16.msra.mxu0 %v6930
        %8061 = vmatprep.subr.bf16.mxu0 %v6935
        %8062 = vmatpush1.bf16.msra.mxu0 %v6934
        %8063 = vmatprep.subr.bf16.mxu0 %v6939
        %8064 = vmatpush1.bf16.msra.mxu0 %v6938
        %8065 = vmatprep.subr.bf16.mxu0 %v6943
        %8066 = vmatpush1.bf16.msra.mxu0 %v6942
        %8067 = vmatprep.subr.bf16.mxu0 %v6947
        %8068 = vmatpush1.bf16.msra.mxu0 %v6946
        %8069 = vmatprep.subr.bf16.mxu0 %v6951
        %8070 = vmatpush1.bf16.msra.mxu0 %v6950
        %8071 = vmatprep.subr.bf16.mxu0 %v6955
        %8072 = vmatpush1.bf16.msra.mxu0 %v6954
        %8073 = vmatprep.subr.bf16.mxu0 %v6959
        %8074 = vmatpush1.bf16.msra.mxu0 %v6958
        %8075 = vmatprep.subr.bf16.mxu0 %v6963
        %8076 = vmatpush1.bf16.msra.mxu0 %v6962
        %8077 = vmatprep.subr.bf16.mxu0 %v6967
        %8078 = vmatpush1.bf16.msra.mxu0 %v6966
        %8079 = vmatprep.subr.bf16.mxu0 %v6971
        %8080 = vmatpush1.bf16.msra.mxu0 %v6970
        %8081 = vmatprep.subr.bf16.mxu0 %v6975
        %8082 = vmatpush1.bf16.msra.mxu0 %v6974
        %8083 = vmatprep.subr.bf16.mxu0 %v6979
        %8084 = vmatpush1.bf16.msra.mxu0 %v6978
        %8085 = vmatprep.subr.bf16.mxu0 %v6983
        %8086 = vmatpush1.bf16.msra.mxu0 %v6982
        %8087 = vmatprep.subr.bf16.mxu0 %v6987
        %8088 = vmatpush1.bf16.msra.mxu0 %v6986
        %8089 = vmatprep.subr.bf16.mxu0 %v6991
        %8090 = vmatpush1.bf16.msra.mxu0 %v6990
        %8091 = vmatprep.mubr.bf16.mxu0 %v5484
        %8092 = vmatmul.mubr.bf16.gmra.mrb[0].mxu0 %v5346
        %v8093 = vpop.f32.mrb[0].mxu0
        %v8094 = vadd.f32 %v8021, %v8093
        %v8095 = vpop.f32.mrb[0].mxu0
        %v8096 = vadd.f32 %v8023, %v8095
        %v8097 = vpop.f32.mrb[0].mxu0
        %v8098 = vadd.f32 %v8025, %v8097
        %v8099 = vpop.f32.mrb[0].mxu0
        %v8100 = vadd.f32 %v8027, %v8099
        %8101 = vmatprep.mubr.bf16.mxu0 %v5488
        %8102 = vmatmul.mubr.bf16.gmra.mrb[0].mxu0 %v5258
        %v8103 = vpop.f32.mrb[0].mxu0
        %v8104 = vadd.f32 %v8031, %v8103
        %v8105 = vpop.f32.mrb[0].mxu0
        %v8106 = vadd.f32 %v8033, %v8105
        %v8107 = vpop.f32.mrb[0].mxu0
        %v8108 = vadd.f32 %v8035, %v8107
        %v8109 = vpop.f32.mrb[0].mxu0
        %v8110 = vadd.f32 %v8037, %v8109
        %8111 = vmatprep.mubr.bf16.mxu0 %v5492
        %8112 = vmatmul.mubr.bf16.gmra.mrb[0].mxu0 %v5290
        %v8113 = vpop.f32.mrb[0].mxu0
        %v8114 = vadd.f32 %v8041, %v8113
        %v8115 = vpop.f32.mrb[0].mxu0
        %v8116 = vadd.f32 %v8043, %v8115
        %v8117 = vpop.f32.mrb[0].mxu0
        %v8118 = vadd.f32 %v8045, %v8117
        %v8119 = vpop.f32.mrb[0].mxu0
        %v8120 = vadd.f32 %v8047, %v8119
        %8121 = vmatprep.mubr.bf16.mxu0 %v5496
        %8122 = vmatmul.mubr.bf16.gmra.mrb[0].mxu0 %v5322
        %v8123 = vpop.f32.mrb[0].mxu0
        %v8124 = vadd.f32 %v8051, %v8123
        %v8125 = vpop.f32.mrb[0].mxu0
        %v8126 = vadd.f32 %v8053, %v8125
        %v8127 = vpop.f32.mrb[0].mxu0
        %v8128 = vadd.f32 %v8055, %v8127
        %v8129 = vpop.f32.mrb[0].mxu0
        %v8130 = vadd.f32 %v8057, %v8129
        %8131 = vdwg.mxu0
        %8132 = vmatprep.subr.bf16.mxu0 %v6995
        %8133 = vmatpush1.bf16.msra.mxu0 %v6994
        %8134 = vmatprep.subr.bf16.mxu0 %v6999
        %8135 = vmatpush1.bf16.msra.mxu0 %v6998
        %8136 = vmatprep.subr.bf16.mxu0 %v7003
        %8137 = vmatpush1.bf16.msra.mxu0 %v7002
        %8138 = vmatprep.subr.bf16.mxu0 %v7007
        %8139 = vmatpush1.bf16.msra.mxu0 %v7006
        %8140 = vmatprep.subr.bf16.mxu0 %v7011
        %8141 = vmatpush1.bf16.msra.mxu0 %v7010
        %8142 = vmatprep.subr.bf16.mxu0 %v7015
        %8143 = vmatpush1.bf16.msra.mxu0 %v7014
        %8144 = vmatprep.subr.bf16.mxu0 %v7019
        %8145 = vmatpush1.bf16.msra.mxu0 %v7018
        %8146 = vmatprep.subr.bf16.mxu0 %v7023
        %8147 = vmatpush1.bf16.msra.mxu0 %v7022
        %8148 = vmatprep.subr.bf16.mxu0 %v7027
        %8149 = vmatpush1.bf16.msra.mxu0 %v7026
        %8150 = vmatprep.subr.bf16.mxu0 %v7031
        %8151 = vmatpush1.bf16.msra.mxu0 %v7030
        %8152 = vmatprep.subr.bf16.mxu0 %v7035
        %8153 = vmatpush1.bf16.msra.mxu0 %v7034
        %8154 = vmatprep.subr.bf16.mxu0 %v7039
        %8155 = vmatpush1.bf16.msra.mxu0 %v7038
        %8156 = vmatprep.subr.bf16.mxu0 %v7043
        %8157 = vmatpush1.bf16.msra.mxu0 %v7042
        %8158 = vmatprep.subr.bf16.mxu0 %v7047
        %8159 = vmatpush1.bf16.msra.mxu0 %v7046
        %8160 = vmatprep.subr.bf16.mxu0 %v7051
        %8161 = vmatpush1.bf16.msra.mxu0 %v7050
        %8162 = vmatprep.subr.bf16.mxu0 %v7055
        %8163 = vmatpush1.bf16.msra.mxu0 %v7054
        %8164 = vmatprep.mubr.bf16.mxu0 %v5459
        %8165 = vmatmul.mubr.bf16.gmra.mrb[0].mxu0 %v5458
        %v8166 = vpop.f32.mrb[0].mxu0
        %v8167 = vadd.f32 %v8094, %v8166
        %v8168 = vpop.f32.mrb[0].mxu0
        %v8169 = vadd.f32 %v8096, %v8168
        %v8170 = vpop.f32.mrb[0].mxu0
        %v8171 = vadd.f32 %v8098, %v8170
        %v8172 = vpop.f32.mrb[0].mxu0
        %v8173 = vadd.f32 %v8100, %v8172
        %8174 = vmatprep.mubr.bf16.mxu0 %v5462
        %8175 = vmatmul.mubr.bf16.gmra.mrb[0].mxu0 %v5461
        %v8176 = vpop.f32.mrb[0].mxu0
        %v8177 = vadd.f32 %v8104, %v8176
        %v8178 = vpop.f32.mrb[0].mxu0
        %v8179 = vadd.f32 %v8106, %v8178
        %v8180 = vpop.f32.mrb[0].mxu0
        %v8181 = vadd.f32 %v8108, %v8180
        %v8182 = vpop.f32.mrb[0].mxu0
        %v8183 = vadd.f32 %v8110, %v8182
        %8184 = vmatprep.mubr.bf16.mxu0 %v5465
        %8185 = vmatmul.mubr.bf16.gmra.mrb[0].mxu0 %v5464
        %v8186 = vpop.f32.mrb[0].mxu0
        %v8187 = vadd.f32 %v8114, %v8186
        %v8188 = vpop.f32.mrb[0].mxu0
        %v8189 = vadd.f32 %v8116, %v8188
        %v8190 = vpop.f32.mrb[0].mxu0
        %v8191 = vadd.f32 %v8118, %v8190
        %v8192 = vpop.f32.mrb[0].mxu0
        %v8193 = vadd.f32 %v8120, %v8192
        %8194 = vmatprep.mubr.bf16.mxu0 %v5468
        %8195 = vmatmul.mubr.bf16.gmra.mrb[0].mxu0 %v5467
        %v8196 = vpop.f32.mrb[0].mxu0
        %v8197 = vadd.f32 %v8124, %v8196
        %v8198 = vpop.f32.mrb[0].mxu0
        %v8199 = vadd.f32 %v8126, %v8198
        %v8200 = vpop.f32.mrb[0].mxu0
        %v8201 = vadd.f32 %v8128, %v8200
        %v8202 = vpop.f32.mrb[0].mxu0
        %v8203 = vadd.f32 %v8130, %v8202
        %8204 = vdwg.mxu0
        %8205 = vmatprep.subr.bf16.mxu0 %v7059
        %8206 = vmatpush1.bf16.msra.mxu0 %v7058
        %8207 = vmatprep.subr.bf16.mxu0 %v7063
        %8208 = vmatpush1.bf16.msra.mxu0 %v7062
        %8209 = vmatprep.subr.bf16.mxu0 %v7067
        %8210 = vmatpush1.bf16.msra.mxu0 %v7066
        %8211 = vmatprep.subr.bf16.mxu0 %v7071
        %8212 = vmatpush1.bf16.msra.mxu0 %v7070
        %8213 = vmatprep.subr.bf16.mxu0 %v7075
        %8214 = vmatpush1.bf16.msra.mxu0 %v7074
        %8215 = vmatprep.subr.bf16.mxu0 %v7079
        %8216 = vmatpush1.bf16.msra.mxu0 %v7078
        %8217 = vmatprep.subr.bf16.mxu0 %v7083
        %8218 = vmatpush1.bf16.msra.mxu0 %v7082
        %8219 = vmatprep.subr.bf16.mxu0 %v7087
        %8220 = vmatpush1.bf16.msra.mxu0 %v7086
        %8221 = vmatprep.subr.bf16.mxu0 %v7091
        %8222 = vmatpush1.bf16.msra.mxu0 %v7090
        %8223 = vmatprep.subr.bf16.mxu0 %v7095
        %8224 = vmatpush1.bf16.msra.mxu0 %v7094
        %8225 = vmatprep.subr.bf16.mxu0 %v7099
        %8226 = vmatpush1.bf16.msra.mxu0 %v7098
        %8227 = vmatprep.subr.bf16.mxu0 %v7103
        %8228 = vmatpush1.bf16.msra.mxu0 %v7102
        %8229 = vmatprep.subr.bf16.mxu0 %v7107
        %8230 = vmatpush1.bf16.msra.mxu0 %v7106
        %8231 = vmatprep.subr.bf16.mxu0 %v7111
        %8232 = vmatpush1.bf16.msra.mxu0 %v7110
        %8233 = vmatprep.subr.bf16.mxu0 %v7115
        %8234 = vmatpush1.bf16.msra.mxu0 %v7114
        %8235 = vmatprep.subr.bf16.mxu0 %v7119
        %8236 = vmatpush1.bf16.msra.mxu0 %v7118
        %8237 = vmatprep.mubr.bf16.mxu0 %v5351
        %8238 = vmatmul.mubr.bf16.gmra.mrb[0].mxu0 %v5460
        %v8239 = vpop.f32.mrb[0].mxu0
        %v8240 = vadd.f32 %v8167, %v8239
        %v8241 = vpop.f32.mrb[0].mxu0
        %v8242 = vadd.f32 %v8169, %v8241
        %v8243 = vpop.f32.mrb[0].mxu0
        %v8244 = vadd.f32 %v8171, %v8243
        %v8245 = vpop.f32.mrb[0].mxu0
        %v8246 = vadd.f32 %v8173, %v8245
        %8247 = vmatprep.mubr.bf16.mxu0 %v5366
        %8248 = vmatmul.mubr.bf16.gmra.mrb[0].mxu0 %v5463
        %v8249 = vpop.f32.mrb[0].mxu0
        %v8250 = vadd.f32 %v8177, %v8249
        %v8251 = vpop.f32.mrb[0].mxu0
        %v8252 = vadd.f32 %v8179, %v8251
        %v8253 = vpop.f32.mrb[0].mxu0
        %v8254 = vadd.f32 %v8181, %v8253
        %v8255 = vpop.f32.mrb[0].mxu0
        %v8256 = vadd.f32 %v8183, %v8255
        %8257 = vmatprep.mubr.bf16.mxu0 %v5378
        %8258 = vmatmul.mubr.bf16.gmra.mrb[0].mxu0 %v5466
        %v8259 = vpop.f32.mrb[0].mxu0
        %v8260 = vadd.f32 %v8187, %v8259
        %v8261 = vpop.f32.mrb[0].mxu0
        %v8262 = vadd.f32 %v8189, %v8261
        %v8263 = vpop.f32.mrb[0].mxu0
        %v8264 = vadd.f32 %v8191, %v8263
        %v8265 = vpop.f32.mrb[0].mxu0
        %v8266 = vadd.f32 %v8193, %v8265
        %8267 = vmatprep.mubr.bf16.mxu0 %v5405
        %8268 = vmatmul.mubr.bf16.gmra.mrb[0].mxu0 %v5469
        %v8269 = vpop.f32.mrb[0].mxu0
        %v8270 = vadd.f32 %v8197, %v8269
        %v8271 = vpop.f32.mrb[0].mxu0
        %v8272 = vadd.f32 %v8199, %v8271
        %v8273 = vpop.f32.mrb[0].mxu0
        %v8274 = vadd.f32 %v8201, %v8273
        %v8275 = vpop.f32.mrb[0].mxu0
        %v8276 = vadd.f32 %v8203, %v8275
        %8277 = vdwg.mxu0
        %8278 = vmatprep.subr.bf16.mxu0 %v7123
        %8279 = vmatpush1.bf16.msra.mxu0 %v7122
        %8280 = vmatprep.subr.bf16.mxu0 %v7127
        %8281 = vmatpush1.bf16.msra.mxu0 %v7126
        %8282 = vmatprep.subr.bf16.mxu0 %v7131
        %8283 = vmatpush1.bf16.msra.mxu0 %v7130
        %8284 = vmatprep.subr.bf16.mxu0 %v7135
        %8285 = vmatpush1.bf16.msra.mxu0 %v7134
        %8286 = vmatprep.subr.bf16.mxu0 %v7139
        %8287 = vmatpush1.bf16.msra.mxu0 %v7138
        %8288 = vmatprep.subr.bf16.mxu0 %v7143
        %8289 = vmatpush1.bf16.msra.mxu0 %v7142
        %8290 = vmatprep.subr.bf16.mxu0 %v7147
        %8291 = vmatpush1.bf16.msra.mxu0 %v7146
        %8292 = vmatprep.subr.bf16.mxu0 %v7151
        %8293 = vmatpush1.bf16.msra.mxu0 %v7150
        %8294 = vmatprep.subr.bf16.mxu0 %v7155
        %8295 = vmatpush1.bf16.msra.mxu0 %v7154
        %8296 = vmatprep.subr.bf16.mxu0 %v7159
        %8297 = vmatpush1.bf16.msra.mxu0 %v7158
        %8298 = vmatprep.subr.bf16.mxu0 %v7163
        %8299 = vmatpush1.bf16.msra.mxu0 %v7162
        %8300 = vmatprep.subr.bf16.mxu0 %v7167
        %8301 = vmatpush1.bf16.msra.mxu0 %v7166
        %8302 = vmatprep.subr.bf16.mxu0 %v7171
        %8303 = vmatpush1.bf16.msra.mxu0 %v7170
        %8304 = vmatprep.subr.bf16.mxu0 %v7175
        %8305 = vmatpush1.bf16.msra.mxu0 %v7174
        %8306 = vmatprep.subr.bf16.mxu0 %v7179
        %8307 = vmatpush1.bf16.msra.mxu0 %v7178
        %8308 = vmatprep.subr.bf16.mxu0 %v7183
        %8309 = vmatpush1.bf16.msra.mxu0 %v7182
        %8310 = vmatprep.mubr.bf16.mxu0 %v5359
        %8311 = vmatmul.mubr.bf16.gmra.mrb[0].mxu0 %v5355
        %v8312 = vpop.f32.mrb[0].mxu0
        %v8313 = vadd.f32 %v8240, %v8312
        %v8314 = vpop.f32.mrb[0].mxu0
        %v8315 = vadd.f32 %v8242, %v8314
        %v8316 = vpop.f32.mrb[0].mxu0
        %v8317 = vadd.f32 %v8244, %v8316
        %v8318 = vpop.f32.mrb[0].mxu0
        %v8319 = vadd.f32 %v8246, %v8318
        %8320 = vmatprep.mubr.bf16.mxu0 %v5372
        %8321 = vmatmul.mubr.bf16.gmra.mrb[0].mxu0 %v5369
        %v8322 = vpop.f32.mrb[0].mxu0
        %v8323 = vadd.f32 %v8250, %v8322
        %v8324 = vpop.f32.mrb[0].mxu0
        %v8325 = vadd.f32 %v8252, %v8324
        %v8326 = vpop.f32.mrb[0].mxu0
        %v8327 = vadd.f32 %v8254, %v8326
        %v8328 = vpop.f32.mrb[0].mxu0
        %v8329 = vadd.f32 %v8256, %v8328
        %8330 = vmatprep.mubr.bf16.mxu0 %v5384
        %8331 = vmatmul.mubr.bf16.gmra.mrb[0].mxu0 %v5381
        %v8332 = vpop.f32.mrb[0].mxu0
        %v8333 = vadd.f32 %v8260, %v8332
        %v8334 = vpop.f32.mrb[0].mxu0
        %v8335 = vadd.f32 %v8262, %v8334
        %v8336 = vpop.f32.mrb[0].mxu0
        %v8337 = vadd.f32 %v8264, %v8336
        %v8338 = vpop.f32.mrb[0].mxu0
        %v8339 = vadd.f32 %v8266, %v8338
        %8340 = vmatprep.mubr.bf16.mxu0 %v5407
        %8341 = vmatmul.mubr.bf16.gmra.mrb[0].mxu0 %v5406
        %v8342 = vpop.f32.mrb[0].mxu0
        %v8343 = vadd.f32 %v8270, %v8342
        %v8344 = vpop.f32.mrb[0].mxu0
        %v8345 = vadd.f32 %v8272, %v8344
        %v8346 = vpop.f32.mrb[0].mxu0
        %v8347 = vadd.f32 %v8274, %v8346
        %v8348 = vpop.f32.mrb[0].mxu0
        %v8349 = vadd.f32 %v8276, %v8348
        %8350 = vdwg.mxu0
        %8351 = vmatprep.subr.bf16.mxu0 %v7187
        %8352 = vmatpush1.bf16.msra.mxu0 %v7186
        %8353 = vmatprep.subr.bf16.mxu0 %v7191
        %8354 = vmatpush1.bf16.msra.mxu0 %v7190
        %8355 = vmatprep.subr.bf16.mxu0 %v7195
        %8356 = vmatpush1.bf16.msra.mxu0 %v7194
        %8357 = vmatprep.subr.bf16.mxu0 %v7199
        %8358 = vmatpush1.bf16.msra.mxu0 %v7198
        %8359 = vmatprep.subr.bf16.mxu0 0
        %8360 = vmatpush1.bf16.msra.mxu0 0
        %8361 = vmatprep.subr.bf16.mxu0 0
        %8362 = vmatpush1.bf16.msra.mxu0 0
        %8363 = vmatprep.subr.bf16.mxu0 0
        %8364 = vmatpush1.bf16.msra.mxu0 0
        %8365 = vmatprep.subr.bf16.mxu0 0
        %8366 = vmatpush1.bf16.msra.mxu0 0
        %8367 = vmatprep.subr.bf16.mxu0 0
        %8368 = vmatpush1.bf16.msra.mxu0 0
        %8369 = vmatprep.subr.bf16.mxu0 0
        %8370 = vmatpush1.bf16.msra.mxu0 0
        %8371 = vmatprep.subr.bf16.mxu0 0
        %8372 = vmatpush1.bf16.msra.mxu0 0
        %8373 = vmatprep.subr.bf16.mxu0 0
        %8374 = vmatpush1.bf16.msra.mxu0 0
        %8375 = vmatprep.subr.bf16.mxu0 0
        %8376 = vmatpush1.bf16.msra.mxu0 0
        %8377 = vmatprep.subr.bf16.mxu0 0
        %8378 = vmatpush1.bf16.msra.mxu0 0
        %8379 = vmatprep.subr.bf16.mxu0 0
        %8380 = vmatpush1.bf16.msra.mxu0 0
        %8381 = vmatprep.subr.bf16.mxu0 0
        %8382 = vmatpush1.bf16.msra.mxu0 0
        %8383 = vmatprep.mubr.bf16.mxu0 0
        %8384 = vmatmul.mubr.bf16.gmra.mrb[0].mxu0 %v7537
        %v8385 = vpop.f32.mrb[0].mxu0
        %v8386 = vadd.f32 %v8313, %v8385
        %v8387 = vpop.f32.mrb[0].mxu0
        %v8388 = vadd.f32 %v8315, %v8387
        %v8389 = vpop.f32.mrb[0].mxu0
        %v8390 = vadd.f32 %v8317, %v8389
        %v8391 = vpop.f32.mrb[0].mxu0
        %v8392 = vadd.f32 %v8319, %v8391
        %8393 = vmatprep.mubr.bf16.mxu0 0
        %8394 = vmatmul.mubr.bf16.gmra.mrb[0].mxu0 %v7540
        %v8395 = vpop.f32.mrb[0].mxu0
        %v8396 = vadd.f32 %v8323, %v8395
        %v8397 = vpop.f32.mrb[0].mxu0
        %v8398 = vadd.f32 %v8325, %v8397
        %v8399 = vpop.f32.mrb[0].mxu0
        %v8400 = vadd.f32 %v8327, %v8399
        %v8401 = vpop.f32.mrb[0].mxu0
        %v8402 = vadd.f32 %v8329, %v8401
        %8403 = vmatprep.mubr.bf16.mxu0 0
        %8404 = vmatmul.mubr.bf16.gmra.mrb[0].mxu0 %v7543
        %v8405 = vpop.f32.mrb[0].mxu0
        %v8406 = vadd.f32 %v8333, %v8405
        %v8407 = vpop.f32.mrb[0].mxu0
        %v8408 = vadd.f32 %v8335, %v8407
        %v8409 = vpop.f32.mrb[0].mxu0
        %v8410 = vadd.f32 %v8337, %v8409
        %v8411 = vpop.f32.mrb[0].mxu0
        %v8412 = vadd.f32 %v8339, %v8411
        %8413 = vmatprep.mubr.bf16.mxu0 0
        %8414 = vmatmul.mubr.bf16.gmra.mrb[0].mxu0 %v7546
        %v8415 = vpop.f32.mrb[0].mxu0
        %v8416 = vadd.f32 %v8343, %v8415
        %v8417 = vpop.f32.mrb[0].mxu0
        %v8418 = vadd.f32 %v8345, %v8417
        %v8419 = vpop.f32.mrb[0].mxu0
        %v8420 = vadd.f32 %v8347, %v8419
        %v8421 = vpop.f32.mrb[0].mxu0
        %v8422 = vadd.f32 %v8349, %v8421
        %8423 = vdwg.mxu0
        %v8424 = vld [vmem:[#allocation3] sm:$0xff]
        %v8425 = vld [vmem:[#allocation3 + $0x8] sm:$0xff]
        %v8426 = vld [vmem:[#allocation3 + $0x10] sm:$0xff]
        %v8427 = vld [vmem:[#allocation3 + $0x18] sm:$0xff]
        %v8428 = vld [vmem:[#allocation3 + $0x20] sm:$0xff]
        %v8429 = vld [vmem:[#allocation3 + $0x28] sm:$0xff]
        %v8430 = vld [vmem:[#allocation3 + $0x30] sm:$0xff]
        %v8431 = vld [vmem:[#allocation3 + $0x38] sm:$0xff]
        %v8432 = vld [vmem:[#allocation3 + $0x40] sm:$0xff]
        %v8433 = vld [vmem:[#allocation3 + $0x48] sm:$0xff]
        %v8434 = vld [vmem:[#allocation3 + $0x50] sm:$0xff]
        %v8435 = vld [vmem:[#allocation3 + $0x58] sm:$0xff]
        %v8436 = vld [vmem:[#allocation3 + $0x60] sm:$0xff]
        %v8437 = vld [vmem:[#allocation3 + $0x68] sm:$0xff]
        %v8438 = vld [vmem:[#allocation3 + $0x70] sm:$0xff]
        %v8439 = vld [vmem:[#allocation3 + $0x78] sm:$0xff]
        %v8440 = vld [vmem:[#allocation3 + $0x80] sm:$0xff]
        %v8441 = vld [vmem:[#allocation3 + $0x88] sm:$0xff]
        %v8442 = vld [vmem:[#allocation3 + $0x90] sm:$0xff]
        %v8443 = vld [vmem:[#allocation3 + $0x98] sm:$0xff]
        %v8444 = vld [vmem:[#allocation3 + $0xa0] sm:$0xff]
        %v8445 = vld [vmem:[#allocation3 + $0xa8] sm:$0xff]
        %v8446 = vld [vmem:[#allocation3 + $0xb0] sm:$0xff]
        %v8447 = vld [vmem:[#allocation3 + $0xb8] sm:$0xff]
        %v8448 = vld [vmem:[#allocation3 + $0xc0] sm:$0xff]
        %v8449 = vld [vmem:[#allocation3 + $0xc8] sm:$0xff]
        %v8450 = vld [vmem:[#allocation3 + $0xd0] sm:$0xff]
        %v8451 = vld [vmem:[#allocation3 + $0xd8] sm:$0xff]
        %v8452 = vld [vmem:[#allocation3 + $0xe0] sm:$0xff]
        %v8453 = vld [vmem:[#allocation3 + $0xe8] sm:$0xff]
        %v8454 = vld [vmem:[#allocation3 + $0xf0] sm:$0xff]
        %v8455 = vld [vmem:[#allocation3 + $0xf8] sm:$0xff]
        %vm8456 = vcmp.gt.f32.partialorder %v8424, 0.3
        %vm8457 = vcmp.gt.f32.partialorder %v8425, 0.3
        %vm8458 = vcmp.gt.f32.partialorder %v8426, 0.3
        %vm8459 = vcmp.gt.f32.partialorder %v8427, 0.3
        %vm8460 = vcmp.gt.f32.partialorder %v8428, 0.3
        %vm8461 = vcmp.gt.f32.partialorder %v8429, 0.3
        %vm8462 = vcmp.gt.f32.partialorder %v8430, 0.3
        %vm8463 = vcmp.gt.f32.partialorder %v8431, 0.3
        %vm8464 = vcmp.gt.f32.partialorder %v8432, 0.3
        %vm8465 = vcmp.gt.f32.partialorder %v8433, 0.3
        %vm8466 = vcmp.gt.f32.partialorder %v8434, 0.3
        %vm8467 = vcmp.gt.f32.partialorder %v8435, 0.3
        %vm8468 = vcmp.gt.f32.partialorder %v8436, 0.3
        %vm8469 = vcmp.gt.f32.partialorder %v8437, 0.3
        %vm8470 = vcmp.gt.f32.partialorder %v8438, 0.3
        %vm8471 = vcmp.gt.f32.partialorder %v8439, 0.3
        %vm8472 = vcmp.gt.f32.partialorder %v8440, 0.3
        %vm8473 = vcmp.gt.f32.partialorder %v8441, 0.3
        %vm8474 = vcmp.gt.f32.partialorder %v8442, 0.3
        %vm8475 = vcmp.gt.f32.partialorder %v8443, 0.3
        %vm8476 = vcmp.gt.f32.partialorder %v8444, 0.3
        %vm8477 = vcmp.gt.f32.partialorder %v8445, 0.3
        %vm8478 = vcmp.gt.f32.partialorder %v8446, 0.3
        %vm8479 = vcmp.gt.f32.partialorder %v8447, 0.3
        %vm8480 = vcmp.gt.f32.partialorder %v8448, 0.3
        %vm8481 = vcmp.gt.f32.partialorder %v8449, 0.3
        %vm8482 = vcmp.gt.f32.partialorder %v8450, 0.3
        %vm8483 = vcmp.gt.f32.partialorder %v8451, 0.3
        %vm8484 = vcmp.gt.f32.partialorder %v8452, 0.3
        %vm8485 = vcmp.gt.f32.partialorder %v8453, 0.3
        %vm8486 = vcmp.gt.f32.partialorder %v8454, 0.3
        %vm8487 = vcmp.gt.f32.partialorder %v8455, 0.3
        %v8488 = vsel %vm8456, 1, 0
        %v8489 = vsel %vm8457, 1, 0
        %v8490 = vsel %vm8458, 1, 0
        %v8491 = vsel %vm8459, 1, 0
        %v8492 = vsel %vm8460, 1, 0
        %v8493 = vsel %vm8461, 1, 0
        %v8494 = vsel %vm8462, 1, 0
        %v8495 = vsel %vm8463, 1, 0
        %v8496 = vsel %vm8464, 1, 0
        %v8497 = vsel %vm8465, 1, 0
        %v8498 = vsel %vm8466, 1, 0
        %v8499 = vsel %vm8467, 1, 0
        %v8500 = vsel %vm8468, 1, 0
        %v8501 = vsel %vm8469, 1, 0
        %v8502 = vsel %vm8470, 1, 0
        %v8503 = vsel %vm8471, 1, 0
        %v8504 = vsel %vm8472, 1, 0
        %v8505 = vsel %vm8473, 1, 0
        %v8506 = vsel %vm8474, 1, 0
        %v8507 = vsel %vm8475, 1, 0
        %v8508 = vsel %vm8476, 1, 0
        %v8509 = vsel %vm8477, 1, 0
        %v8510 = vsel %vm8478, 1, 0
        %v8511 = vsel %vm8479, 1, 0
        %v8512 = vsel %vm8480, 1, 0
        %v8513 = vsel %vm8481, 1, 0
        %v8514 = vsel %vm8482, 1, 0
        %v8515 = vsel %vm8483, 1, 0
        %v8516 = vsel %vm8484, 1, 0
        %v8517 = vsel %vm8485, 1, 0
        %v8518 = vsel %vm8486, 1, 0
        %v8519 = vsel %vm8487, 1, 0
        %v8520 = vcvt.s32.f32 %v8488
        %v8521 = vcvt.s32.f32 %v8489
        %v8522 = vcvt.s32.f32 %v8490
        %v8523 = vcvt.s32.f32 %v8491
        %v8524 = vcvt.s32.f32 %v8492
        %v8525 = vcvt.s32.f32 %v8493
        %v8526 = vcvt.s32.f32 %v8494
        %v8527 = vcvt.s32.f32 %v8495
        %v8528 = vcvt.s32.f32 %v8496
        %v8529 = vcvt.s32.f32 %v8497
        %v8530 = vcvt.s32.f32 %v8498
        %v8531 = vcvt.s32.f32 %v8499
        %v8532 = vcvt.s32.f32 %v8500
        %v8533 = vcvt.s32.f32 %v8501
        %v8534 = vcvt.s32.f32 %v8502
        %v8535 = vcvt.s32.f32 %v8503
        %v8536 = vcvt.s32.f32 %v8504
        %v8537 = vcvt.s32.f32 %v8505
        %v8538 = vcvt.s32.f32 %v8506
        %v8539 = vcvt.s32.f32 %v8507
        %v8540 = vcvt.s32.f32 %v8508
        %v8541 = vcvt.s32.f32 %v8509
        %v8542 = vcvt.s32.f32 %v8510
        %v8543 = vcvt.s32.f32 %v8511
        %v8544 = vcvt.s32.f32 %v8512
        %v8545 = vcvt.s32.f32 %v8513
        %v8546 = vcvt.s32.f32 %v8514
        %v8547 = vcvt.s32.f32 %v8515
        %v8548 = vcvt.s32.f32 %v8516
        %v8549 = vcvt.s32.f32 %v8517
        %v8550 = vcvt.s32.f32 %v8518
        %v8551 = vcvt.s32.f32 %v8519
        %v8552 = vsub.f32 1.0, %v8520
        %v8553 = vsub.f32 1.0, %v8521
        %v8554 = vsub.f32 1.0, %v8522
        %v8555 = vsub.f32 1.0, %v8523
        %v8556 = vsub.f32 1.0, %v8524
        %v8557 = vsub.f32 1.0, %v8525
        %v8558 = vsub.f32 1.0, %v8526
        %v8559 = vsub.f32 1.0, %v8527
        %v8560 = vsub.f32 1.0, %v8528
        %v8561 = vsub.f32 1.0, %v8529
        %v8562 = vsub.f32 1.0, %v8530
        %v8563 = vsub.f32 1.0, %v8531
        %v8564 = vsub.f32 1.0, %v8532
        %v8565 = vsub.f32 1.0, %v8533
        %v8566 = vsub.f32 1.0, %v8534
        %v8567 = vsub.f32 1.0, %v8535
        %v8568 = vsub.f32 1.0, %v8536
        %v8569 = vsub.f32 1.0, %v8537
        %v8570 = vsub.f32 1.0, %v8538
        %v8571 = vsub.f32 1.0, %v8539
        %v8572 = vsub.f32 1.0, %v8540
        %v8573 = vsub.f32 1.0, %v8541
        %v8574 = vsub.f32 1.0, %v8542
        %v8575 = vsub.f32 1.0, %v8543
        %v8576 = vsub.f32 1.0, %v8544
        %v8577 = vsub.f32 1.0, %v8545
        %v8578 = vsub.f32 1.0, %v8546
        %v8579 = vsub.f32 1.0, %v8547
        %v8580 = vsub.f32 1.0, %v8548
        %v8581 = vsub.f32 1.0, %v8549
        %v8582 = vsub.f32 1.0, %v8550
        %v8583 = vsub.f32 1.0, %v8551
        %v8584 = vmul.f32 %v8552, 0.2
        %v8585 = vmul.f32 %v8553, 0.2
        %v8586 = vmul.f32 %v8554, 0.2
        %v8587 = vmul.f32 %v8555, 0.2
        %v8588 = vmul.f32 %v8556, 0.2
        %v8589 = vmul.f32 %v8557, 0.2
        %v8590 = vmul.f32 %v8558, 0.2
        %v8591 = vmul.f32 %v8559, 0.2
        %v8592 = vmul.f32 %v8560, 0.2
        %v8593 = vmul.f32 %v8561, 0.2
        %v8594 = vmul.f32 %v8562, 0.2
        %v8595 = vmul.f32 %v8563, 0.2
        %v8596 = vmul.f32 %v8564, 0.2
        %v8597 = vmul.f32 %v8565, 0.2
        %v8598 = vmul.f32 %v8566, 0.2
        %v8599 = vmul.f32 %v8567, 0.2
        %v8600 = vmul.f32 %v8568, 0.2
        %v8601 = vmul.f32 %v8569, 0.2
        %v8602 = vmul.f32 %v8570, 0.2
        %v8603 = vmul.f32 %v8571, 0.2
        %v8604 = vmul.f32 %v8572, 0.2
        %v8605 = vmul.f32 %v8573, 0.2
        %v8606 = vmul.f32 %v8574, 0.2
        %v8607 = vmul.f32 %v8575, 0.2
        %v8608 = vmul.f32 %v8576, 0.2
        %v8609 = vmul.f32 %v8577, 0.2
        %v8610 = vmul.f32 %v8578, 0.2
        %v8611 = vmul.f32 %v8579, 0.2
        %v8612 = vmul.f32 %v8580, 0.2
        %v8613 = vmul.f32 %v8581, 0.2
        %v8614 = vmul.f32 %v8582, 0.2
        %v8615 = vmul.f32 %v8583, 0.2
        %v8616 = vmul.f32 %v8424, %v8584
        %v8617 = vmul.f32 %v8425, %v8585
        %v8618 = vmul.f32 %v8426, %v8586
        %v8619 = vmul.f32 %v8427, %v8587
        %v8620 = vmul.f32 %v8428, %v8588
        %v8621 = vmul.f32 %v8429, %v8589
        %v8622 = vmul.f32 %v8430, %v8590
        %v8623 = vmul.f32 %v8431, %v8591
        %v8624 = vmul.f32 %v8432, %v8592
        %v8625 = vmul.f32 %v8433, %v8593
        %v8626 = vmul.f32 %v8434, %v8594
        %v8627 = vmul.f32 %v8435, %v8595
        %v8628 = vmul.f32 %v8436, %v8596
        %v8629 = vmul.f32 %v8437, %v8597
        %v8630 = vmul.f32 %v8438, %v8598
        %v8631 = vmul.f32 %v8439, %v8599
        %v8632 = vmul.f32 %v8440, %v8600
        %v8633 = vmul.f32 %v8441, %v8601
        %v8634 = vmul.f32 %v8442, %v8602
        %v8635 = vmul.f32 %v8443, %v8603
        %v8636 = vmul.f32 %v8444, %v8604
        %v8637 = vmul.f32 %v8445, %v8605
        %v8638 = vmul.f32 %v8446, %v8606
        %v8639 = vmul.f32 %v8447, %v8607
        %v8640 = vmul.f32 %v8448, %v8608
        %v8641 = vmul.f32 %v8449, %v8609
        %v8642 = vmul.f32 %v8450, %v8610
        %v8643 = vmul.f32 %v8451, %v8611
        %v8644 = vmul.f32 %v8452, %v8612
        %v8645 = vmul.f32 %v8453, %v8613
        %v8646 = vmul.f32 %v8454, %v8614
        %v8647 = vmul.f32 %v8455, %v8615
        %v8648 = vadd.f32 %v8616, %v7948
        %v8649 = vadd.f32 %v8617, %v7950
        %v8650 = vadd.f32 %v8618, %v8386
        %v8651 = vadd.f32 %v8619, %v8388
        %v8652 = vadd.f32 %v8620, %v7952
        %v8653 = vadd.f32 %v8621, %v7954
        %v8654 = vadd.f32 %v8622, %v8390
        %v8655 = vadd.f32 %v8623, %v8392
        %v8656 = vadd.f32 %v8624, %v7958
        %v8657 = vadd.f32 %v8625, %v7960
        %v8658 = vadd.f32 %v8626, %v8396
        %v8659 = vadd.f32 %v8627, %v8398
        %v8660 = vadd.f32 %v8628, %v7962
        %v8661 = vadd.f32 %v8629, %v7964
        %v8662 = vadd.f32 %v8630, %v8400
        %v8663 = vadd.f32 %v8631, %v8402
        %v8664 = vadd.f32 %v8632, %v7968
        %v8665 = vadd.f32 %v8633, %v7970
        %v8666 = vadd.f32 %v8634, %v8406
        %v8667 = vadd.f32 %v8635, %v8408
        %v8668 = vadd.f32 %v8636, %v7972
        %v8669 = vadd.f32 %v8637, %v7974
        %v8670 = vadd.f32 %v8638, %v8410
        %v8671 = vadd.f32 %v8639, %v8412
        %v8672 = vadd.f32 %v8640, %v7978
        %v8673 = vadd.f32 %v8641, %v7980
        %v8674 = vadd.f32 %v8642, %v8416
        %v8675 = vadd.f32 %v8643, %v8418
        %v8676 = vadd.f32 %v8644, %v7982
        %v8677 = vadd.f32 %v8645, %v7984
        %v8678 = vadd.f32 %v8646, %v8420
        %v8679 = vadd.f32 %v8647, %v8422
        %8680 = vst [vmem:[#allocation3] sm:$0xff] %v8648
        %8681 = vst [vmem:[#allocation3 + $0x8] sm:$0xff] %v8649
        %8682 = vst [vmem:[#allocation3 + $0x10] sm:$0xff] %v8650
        %8683 = vst.msk [vmem:[#allocation3 + $0x18] sm:$0xff] %vm748, %v8651
        %8684 = vst [vmem:[#allocation3 + $0x20] sm:$0xff] %v8652
        %8685 = vst [vmem:[#allocation3 + $0x28] sm:$0xff] %v8653
        %8686 = vst [vmem:[#allocation3 + $0x30] sm:$0xff] %v8654
        %8687 = vst.msk [vmem:[#allocation3 + $0x38] sm:$0xff] %vm748, %v8655
        %8688 = vst [vmem:[#allocation3 + $0x40] sm:$0xff] %v8656
        %8689 = vst [vmem:[#allocation3 + $0x48] sm:$0xff] %v8657
        %8690 = vst [vmem:[#allocation3 + $0x50] sm:$0xff] %v8658
        %8691 = vst.msk [vmem:[#allocation3 + $0x58] sm:$0xff] %vm748, %v8659
        %8692 = vst [vmem:[#allocation3 + $0x60] sm:$0xff] %v8660
        %8693 = vst [vmem:[#allocation3 + $0x68] sm:$0xff] %v8661
        %8694 = vst [vmem:[#allocation3 + $0x70] sm:$0xff] %v8662
        %8695 = vst.msk [vmem:[#allocation3 + $0x78] sm:$0xff] %vm748, %v8663
        %8696 = vst [vmem:[#allocation3 + $0x80] sm:$0xff] %v8664
        %8697 = vst [vmem:[#allocation3 + $0x88] sm:$0xff] %v8665
        %8698 = vst [vmem:[#allocation3 + $0x90] sm:$0xff] %v8666
        %8699 = vst.msk [vmem:[#allocation3 + $0x98] sm:$0xff] %vm748, %v8667
        %8700 = vst [vmem:[#allocation3 + $0xa0] sm:$0xff] %v8668
        %8701 = vst [vmem:[#allocation3 + $0xa8] sm:$0xff] %v8669
        %8702 = vst [vmem:[#allocation3 + $0xb0] sm:$0xff] %v8670
        %8703 = vst.msk [vmem:[#allocation3 + $0xb8] sm:$0xff] %vm748, %v8671
        %8704 = vst [vmem:[#allocation3 + $0xc0] sm:$0xff] %v8672
        %8705 = vst [vmem:[#allocation3 + $0xc8] sm:$0xff] %v8673
        %8706 = vst [vmem:[#allocation3 + $0xd0] sm:$0xff] %v8674
        %8707 = vst.msk [vmem:[#allocation3 + $0xd8] sm:$0xff] %vm748, %v8675
        %8708 = vst [vmem:[#allocation3 + $0xe0] sm:$0xff] %v8676
        %8709 = vst [vmem:[#allocation3 + $0xe8] sm:$0xff] %v8677
        %8710 = vst [vmem:[#allocation3 + $0xf0] sm:$0xff] %v8678
        %8711 = vst.msk [vmem:[#allocation3 + $0xf8] sm:$0xff] %vm748, %v8679
        %vm8712 = vcmp.gt.f32.partialorder %v8648, 0.3
        %vm8713 = vcmp.gt.f32.partialorder %v8649, 0.3
        %vm8714 = vcmp.gt.f32.partialorder %v8650, 0.3
        %vm8715 = vcmp.gt.f32.partialorder %v8651, 0.3
        %vm8716 = vcmp.gt.f32.partialorder %v8652, 0.3
        %vm8717 = vcmp.gt.f32.partialorder %v8653, 0.3
        %vm8718 = vcmp.gt.f32.partialorder %v8654, 0.3
        %vm8719 = vcmp.gt.f32.partialorder %v8655, 0.3
        %vm8720 = vcmp.gt.f32.partialorder %v8656, 0.3
        %vm8721 = vcmp.gt.f32.partialorder %v8657, 0.3
        %vm8722 = vcmp.gt.f32.partialorder %v8658, 0.3
        %vm8723 = vcmp.gt.f32.partialorder %v8659, 0.3
        %vm8724 = vcmp.gt.f32.partialorder %v8660, 0.3
        %vm8725 = vcmp.gt.f32.partialorder %v8661, 0.3
        %vm8726 = vcmp.gt.f32.partialorder %v8662, 0.3
        %vm8727 = vcmp.gt.f32.partialorder %v8663, 0.3
        %vm8728 = vcmp.gt.f32.partialorder %v8664, 0.3
        %vm8729 = vcmp.gt.f32.partialorder %v8665, 0.3
        %vm8730 = vcmp.gt.f32.partialorder %v8666, 0.3
        %vm8731 = vcmp.gt.f32.partialorder %v8667, 0.3
        %vm8732 = vcmp.gt.f32.partialorder %v8668, 0.3
        %vm8733 = vcmp.gt.f32.partialorder %v8669, 0.3
        %vm8734 = vcmp.gt.f32.partialorder %v8670, 0.3
        %vm8735 = vcmp.gt.f32.partialorder %v8671, 0.3
        %vm8736 = vcmp.gt.f32.partialorder %v8672, 0.3
        %vm8737 = vcmp.gt.f32.partialorder %v8673, 0.3
        %vm8738 = vcmp.gt.f32.partialorder %v8674, 0.3
        %vm8739 = vcmp.gt.f32.partialorder %v8675, 0.3
        %vm8740 = vcmp.gt.f32.partialorder %v8676, 0.3
        %vm8741 = vcmp.gt.f32.partialorder %v8677, 0.3
        %vm8742 = vcmp.gt.f32.partialorder %v8678, 0.3
        %vm8743 = vcmp.gt.f32.partialorder %v8679, 0.3
        %v8744 = vsel %vm8712, 1, 0
        %v8745 = vsel %vm8713, 1, 0
        %v8746 = vsel %vm8714, 1, 0
        %v8747 = vsel %vm8715, 1, 0
        %v8748 = vsel %vm8716, 1, 0
        %v8749 = vsel %vm8717, 1, 0
        %v8750 = vsel %vm8718, 1, 0
        %v8751 = vsel %vm8719, 1, 0
        %v8752 = vsel %vm8720, 1, 0
        %v8753 = vsel %vm8721, 1, 0
        %v8754 = vsel %vm8722, 1, 0
        %v8755 = vsel %vm8723, 1, 0
        %v8756 = vsel %vm8724, 1, 0
        %v8757 = vsel %vm8725, 1, 0
        %v8758 = vsel %vm8726, 1, 0
        %v8759 = vsel %vm8727, 1, 0
        %v8760 = vsel %vm8728, 1, 0
        %v8761 = vsel %vm8729, 1, 0
        %v8762 = vsel %vm8730, 1, 0
        %v8763 = vsel %vm8731, 1, 0
        %v8764 = vsel %vm8732, 1, 0
        %v8765 = vsel %vm8733, 1, 0
        %v8766 = vsel %vm8734, 1, 0
        %v8767 = vsel %vm8735, 1, 0
        %v8768 = vsel %vm8736, 1, 0
        %v8769 = vsel %vm8737, 1, 0
        %v8770 = vsel %vm8738, 1, 0
        %v8771 = vsel %vm8739, 1, 0
        %v8772 = vsel %vm8740, 1, 0
        %v8773 = vsel %vm8741, 1, 0
        %v8774 = vsel %vm8742, 1, 0
        %v8775 = vsel %vm8743, 1, 0
        %v8776 = vcvt.s32.f32 %v8744
        %v8777 = vcvt.s32.f32 %v8745
        %v8778 = vcvt.s32.f32 %v8746
        %v8779 = vcvt.s32.f32 %v8747
        %v8780 = vcvt.s32.f32 %v8748
        %v8781 = vcvt.s32.f32 %v8749
        %v8782 = vcvt.s32.f32 %v8750
        %v8783 = vcvt.s32.f32 %v8751
        %v8784 = vcvt.s32.f32 %v8752
        %v8785 = vcvt.s32.f32 %v8753
        %v8786 = vcvt.s32.f32 %v8754
        %v8787 = vcvt.s32.f32 %v8755
        %v8788 = vcvt.s32.f32 %v8756
        %v8789 = vcvt.s32.f32 %v8757
        %v8790 = vcvt.s32.f32 %v8758
        %v8791 = vcvt.s32.f32 %v8759
        %v8792 = vcvt.s32.f32 %v8760
        %v8793 = vcvt.s32.f32 %v8761
        %v8794 = vcvt.s32.f32 %v8762
        %v8795 = vcvt.s32.f32 %v8763
        %v8796 = vcvt.s32.f32 %v8764
        %v8797 = vcvt.s32.f32 %v8765
        %v8798 = vcvt.s32.f32 %v8766
        %v8799 = vcvt.s32.f32 %v8767
        %v8800 = vcvt.s32.f32 %v8768
        %v8801 = vcvt.s32.f32 %v8769
        %v8802 = vcvt.s32.f32 %v8770
        %v8803 = vcvt.s32.f32 %v8771
        %v8804 = vcvt.s32.f32 %v8772
        %v8805 = vcvt.s32.f32 %v8773
        %v8806 = vcvt.s32.f32 %v8774
        %v8807 = vcvt.s32.f32 %v8775
        %v8808 = vpack.c.bf16 %v8780, %v8776
        %v8809 = vpack.c.bf16 %v8781, %v8777
        %v8810 = vpack.c.bf16 %v8782, %v8778
        %v8811 = vpack.c.bf16 %v8783, %v8779
        %v8812 = vpack.c.bf16 %v8788, %v8784
        %v8813 = vpack.c.bf16 %v8789, %v8785
        %v8814 = vpack.c.bf16 %v8790, %v8786
        %v8815 = vpack.c.bf16 %v8791, %v8787
        %v8816 = vpack.c.bf16 %v8796, %v8792
        %v8817 = vpack.c.bf16 %v8797, %v8793
        %v8818 = vpack.c.bf16 %v8798, %v8794
        %v8819 = vpack.c.bf16 %v8799, %v8795
        %v8820 = vpack.c.bf16 %v8804, %v8800
        %v8821 = vpack.c.bf16 %v8805, %v8801
        %v8822 = vpack.c.bf16 %v8806, %v8802
        %v8823 = vpack.c.bf16 %v8807, %v8803
        %v8824 = vld [vmem:[%s7] sm:$0xf]
        %v8825 = vld [vmem:[%s7 + $0x4] sm:$0xf]
        %v8826 = vld [vmem:[%s7 + $0x8] sm:$0xf]
        %v8827 = vld [vmem:[%s7 + $0xc] sm:$0x3]
        %v8832 = vunpack.c.l.b16 %v8824
        %v8833 = vunpack.c.l.b16 %v8825
        %v8834 = vunpack.c.l.b16 %v8826
        %v8835 = vunpack.c.l.b16 %v8827
        %v8836 = vpack.c.b16 %v8833, %v8832
        %v8837 = vpack.c.b16 %v8835, %v8834
        %v8839 = vsel %vm748, %v8836, 0
        %v8842 = vsel %vm748, %v8837, 0
        %8844 = vmatprep.subr.bf16.mxu0 %v8809
        %8845 = vmatpush1.bf16.msra.mxu0 %v8808
        %8846 = vmatprep.subr.bf16.mxu0 %v8813
        %8847 = vmatpush1.bf16.msra.mxu0 %v8812
        %8848 = vmatprep.subr.bf16.mxu0 %v8817
        %8849 = vmatpush1.bf16.msra.mxu0 %v8816
        %8850 = vmatprep.subr.bf16.mxu0 %v8821
        %8851 = vmatpush1.bf16.msra.mxu0 %v8820
        %8852 = vmatprep.subr.bf16.mxu0 0
        %8853 = vmatpush1.bf16.msra.mxu0 0
        %8854 = vmatprep.subr.bf16.mxu0 0
        %8855 = vmatpush1.bf16.msra.mxu0 0
        %8856 = vmatprep.subr.bf16.mxu0 0
        %8857 = vmatpush1.bf16.msra.mxu0 0
        %8858 = vmatprep.subr.bf16.mxu0 0
        %8859 = vmatpush1.bf16.msra.mxu0 0
        %8860 = vmatprep.subr.bf16.mxu0 0
        %8861 = vmatpush1.bf16.msra.mxu0 0
        %8862 = vmatprep.subr.bf16.mxu0 0
        %8863 = vmatpush1.bf16.msra.mxu0 0
        %8864 = vmatprep.subr.bf16.mxu0 0
        %8865 = vmatpush1.bf16.msra.mxu0 0
        %8866 = vmatprep.subr.bf16.mxu0 0
        %8867 = vmatpush1.bf16.msra.mxu0 0
        %8868 = vmatprep.subr.bf16.mxu0 0
        %8869 = vmatpush1.bf16.msra.mxu0 0
        %8870 = vmatprep.subr.bf16.mxu0 0
        %8871 = vmatpush1.bf16.msra.mxu0 0
        %8872 = vmatprep.subr.bf16.mxu0 0
        %8873 = vmatpush1.bf16.msra.mxu0 0
        %8874 = vmatprep.subr.bf16.mxu0 0
        %8875 = vmatpush1.bf16.msra.mxu0 0
        %8876 = vmatprep.mubr.bf16.mxu0 0
        %8877 = vmatmul.mubr.bf16.gmra.mrb[0].mxu0 %v8839
        %v8878 = vpop.f32.mrb[0].mxu0
        %v8879 = vadd.f32 0.0, %v8878
        %v8880 = vpop.f32.mrb[0].mxu0
        %v8881 = vadd.f32 0.0, %v8880
        %v8882 = vpop.f32.mrb[0].mxu0
        %v8883 = vadd.f32 0.0, %v8882
        %v8884 = vpop.f32.mrb[0].mxu0
        %v8885 = vadd.f32 0.0, %v8884
        %8886 = vmatprep.mubr.bf16.mxu0 0
        %8887 = vmatmul.mubr.bf16.gmra.mrb[0].mxu0 %v8842
        %v8888 = vpop.f32.mrb[0].mxu0
        %v8889 = vadd.f32 0.0, %v8888
        %v8890 = vpop.f32.mrb[0].mxu0
        %v8891 = vadd.f32 0.0, %v8890
        %v8892 = vpop.f32.mrb[0].mxu0
        %v8893 = vadd.f32 0.0, %v8892
        %v8894 = vpop.f32.mrb[0].mxu0
        %v8895 = vadd.f32 0.0, %v8894
        %8896 = vdwg.mxu0
        %8897 = vmatprep.subr.bf16.mxu0 %v8811
        %8898 = vmatpush1.bf16.msra.mxu0 %v8810
        %8899 = vmatprep.subr.bf16.mxu0 %v8815
        %8900 = vmatpush1.bf16.msra.mxu0 %v8814
        %8901 = vmatprep.subr.bf16.mxu0 %v8819
        %8902 = vmatpush1.bf16.msra.mxu0 %v8818
        %8903 = vmatprep.subr.bf16.mxu0 %v8823
        %8904 = vmatpush1.bf16.msra.mxu0 %v8822
        %8905 = vmatprep.subr.bf16.mxu0 0
        %8906 = vmatpush1.bf16.msra.mxu0 0
        %8907 = vmatprep.subr.bf16.mxu0 0
        %8908 = vmatpush1.bf16.msra.mxu0 0
        %8909 = vmatprep.subr.bf16.mxu0 0
        %8910 = vmatpush1.bf16.msra.mxu0 0
        %8911 = vmatprep.subr.bf16.mxu0 0
        %8912 = vmatpush1.bf16.msra.mxu0 0
        %8913 = vmatprep.subr.bf16.mxu0 0
        %8914 = vmatpush1.bf16.msra.mxu0 0
        %8915 = vmatprep.subr.bf16.mxu0 0
        %8916 = vmatpush1.bf16.msra.mxu0 0
        %8917 = vmatprep.subr.bf16.mxu0 0
        %8918 = vmatpush1.bf16.msra.mxu0 0
        %8919 = vmatprep.subr.bf16.mxu0 0
        %8920 = vmatpush1.bf16.msra.mxu0 0
        %8921 = vmatprep.subr.bf16.mxu0 0
        %8922 = vmatpush1.bf16.msra.mxu0 0
        %8923 = vmatprep.subr.bf16.mxu0 0
        %8924 = vmatpush1.bf16.msra.mxu0 0
        %8925 = vmatprep.subr.bf16.mxu0 0
        %8926 = vmatpush1.bf16.msra.mxu0 0
        %8927 = vmatprep.subr.bf16.mxu0 0
        %8928 = vmatpush1.bf16.msra.mxu0 0
        %8929 = vmatprep.mubr.bf16.mxu0 0
        %8930 = vmatmul.mubr.bf16.gmra.mrb[0].mxu0 %v8839
        %v8931 = vpop.f32.mrb[0].mxu0
        %v8932 = vadd.f32 0.0, %v8931
        %v8933 = vpop.f32.mrb[0].mxu0
        %v8934 = vadd.f32 0.0, %v8933
        %v8935 = vpop.f32.mrb[0].mxu0
        %v8936 = vadd.f32 0.0, %v8935
        %v8937 = vpop.f32.mrb[0].mxu0
        %v8938 = vadd.f32 0.0, %v8937
        %8939 = vmatprep.mubr.bf16.mxu0 0
        %8940 = vmatmul.mubr.bf16.gmra.mrb[0].mxu0 %v8842
        %v8941 = vpop.f32.mrb[0].mxu0
        %v8942 = vadd.f32 0.0, %v8941
        %v8943 = vpop.f32.mrb[0].mxu0
        %v8944 = vadd.f32 0.0, %v8943
        %v8945 = vpop.f32.mrb[0].mxu0
        %v8946 = vadd.f32 0.0, %v8945
        %v8947 = vpop.f32.mrb[0].mxu0
        %v8948 = vadd.f32 0.0, %v8947
        %8949 = vdwg.mxu0
        %v8950 = vpack.c.bf16 %v8883, %v8879
        %v8951 = vpack.c.bf16 %v8885, %v8881
        %v8952 = vpack.c.bf16 %v8936, %v8932
        %v8953 = vpack.c.bf16 %v8938, %v8934
        %v8954 = vpack.c.bf16 %v8893, %v8889
        %v8955 = vpack.c.bf16 %v8895, %v8891
        %v8956 = vpack.c.bf16 %v8946, %v8942
        %v8957 = vpack.c.bf16 %v8948, %v8944
        %v8958 = vld [vmem:[%s9] sm:$0x1]
        %v8959 = vld [vmem:[%s8] sm:$0xf]
        %v8960 = vld [vmem:[%s8 + $0x4] sm:$0xf]
        %v8961 = vld [vmem:[%s8 + $0x8] sm:$0xf]
        %v8962 = vld [vmem:[%s8 + $0xc] sm:$0xf]
        %v8963 = vld [vmem:[%s8 + $0x10] sm:$0xf]
        %v8964 = vld [vmem:[%s8 + $0x14] sm:$0xf]
        %v8965 = vld [vmem:[%s8 + $0x18] sm:$0xf]
        %v8966 = vld [vmem:[%s8 + $0x1c] sm:$0xf]
        %v8967 = vld [vmem:[%s8 + $0x20] sm:$0xf]
        %v8968 = vld [vmem:[%s8 + $0x24] sm:$0xf]
        %v8969 = vld [vmem:[%s8 + $0x28] sm:$0xf]
        %v8970 = vld [vmem:[%s8 + $0x2c] sm:$0xf]
        %v8971 = vld [vmem:[%s8 + $0x30] sm:$0xf]
        %v8972 = vld [vmem:[%s8 + $0x34] sm:$0xf]
        %v8973 = vld [vmem:[%s8 + $0x38] sm:$0xf]
        %v8974 = vld [vmem:[%s8 + $0x3c] sm:$0xf]
        %v8975 = vld [vmem:[%s8 + $0x40] sm:$0xf]
        %v8976 = vld [vmem:[%s8 + $0x44] sm:$0xf]
        %v8977 = vld [vmem:[%s8 + $0x48] sm:$0xf]
        %v8978 = vld [vmem:[%s8 + $0x4c] sm:$0xf]
        %v8979 = vld [vmem:[%s8 + $0x50] sm:$0xf]
        %v8980 = vld [vmem:[%s8 + $0x54] sm:$0xf]
        %v8981 = vld [vmem:[%s8 + $0x58] sm:$0xf]
        %v8982 = vld [vmem:[%s8 + $0x5c] sm:$0xf]
        %v8983 = vld [vmem:[%s8 + $0x60] sm:$0xf]
        %v8984 = vld [vmem:[%s8 + $0x64] sm:$0xf]
        %v8985 = vld [vmem:[%s8 + $0x68] sm:$0xf]
        %v8986 = vld [vmem:[%s8 + $0x6c] sm:$0xf]
        %v8987 = vld [vmem:[%s8 + $0x70] sm:$0xf]
        %v8988 = vld [vmem:[%s8 + $0x74] sm:$0xf]
        %v8989 = vld [vmem:[%s8 + $0x78] sm:$0xf]
        %v8990 = vld [vmem:[%s8 + $0x7c] sm:$0xf]
        %v8991 = vld [vmem:[%s8 + $0x80] sm:$0xf]
        %v8992 = vld [vmem:[%s8 + $0x84] sm:$0xf]
        %v8993 = vld [vmem:[%s8 + $0x88] sm:$0xf]
        %v8994 = vld [vmem:[%s8 + $0x8c] sm:$0xf]
        %v8995 = vld [vmem:[%s8 + $0x90] sm:$0xf]
        %v8996 = vld [vmem:[%s8 + $0x94] sm:$0xf]
        %v8997 = vld [vmem:[%s8 + $0x98] sm:$0xf]
        %v8998 = vld [vmem:[%s8 + $0x9c] sm:$0xf]
        %v8999 = vld [vmem:[%s8 + $0xa0] sm:$0xf]
        %v9000 = vld [vmem:[%s8 + $0xa4] sm:$0xf]
        %v9001 = vld [vmem:[%s8 + $0xa8] sm:$0xf]
        %v9002 = vld [vmem:[%s8 + $0xac] sm:$0xf]
        %v9003 = vld [vmem:[%s8 + $0xb0] sm:$0xf]
        %v9004 = vld [vmem:[%s8 + $0xb4] sm:$0xf]
        %v9005 = vld [vmem:[%s8 + $0xb8] sm:$0xf]
        %v9006 = vld [vmem:[%s8 + $0xbc] sm:$0xf]
        %v9007 = vld [vmem:[%s8 + $0xc0] sm:$0xf]
        %v9008 = vld [vmem:[%s8 + $0xc4] sm:$0xf]
        %v9009 = vld [vmem:[%s8 + $0xc8] sm:$0xf]
        %v9010 = vld [vmem:[%s8 + $0xcc] sm:$0xf]
        %v9011 = vld [vmem:[%s8 + $0xd0] sm:$0xf]
        %v9012 = vld [vmem:[%s8 + $0xd4] sm:$0xf]
        %v9013 = vld [vmem:[%s8 + $0xd8] sm:$0xf]
        %v9014 = vld [vmem:[%s8 + $0xdc] sm:$0xf]
        %v9071 = vunpack.c.l.b16 %v8959
        %v9072 = vunpack.c.l.b16 %v8960
        %v9073 = vunpack.c.l.b16 %v8961
        %v9074 = vunpack.c.l.b16 %v8962
        %v9075 = vunpack.c.l.b16 %v8963
        %v9076 = vunpack.c.l.b16 %v8964
        %v9077 = vunpack.c.l.b16 %v8965
        %v9078 = vunpack.c.l.b16 %v8966
        %v9079 = vunpack.c.l.b16 %v8967
        %v9080 = vunpack.c.l.b16 %v8968
        %v9081 = vunpack.c.l.b16 %v8969
        %v9082 = vunpack.c.l.b16 %v8970
        %v9083 = vunpack.c.l.b16 %v8971
        %v9084 = vunpack.c.l.b16 %v8972
        %v9085 = vunpack.c.l.b16 %v8973
        %v9086 = vunpack.c.l.b16 %v8974
        %v9087 = vunpack.c.l.b16 %v8975
        %v9088 = vunpack.c.l.b16 %v8976
        %v9089 = vunpack.c.l.b16 %v8977
        %v9090 = vunpack.c.l.b16 %v8978
        %v9091 = vunpack.c.l.b16 %v8979
        %v9092 = vunpack.c.l.b16 %v8980
        %v9093 = vunpack.c.l.b16 %v8981
        %v9094 = vunpack.c.l.b16 %v8982
        %v9095 = vunpack.c.l.b16 %v8983
        %v9096 = vunpack.c.l.b16 %v8984
        %v9097 = vunpack.c.l.b16 %v8985
        %v9098 = vunpack.c.l.b16 %v8986
        %v9099 = vunpack.c.l.b16 %v8987
        %v9100 = vunpack.c.l.b16 %v8988
        %v9101 = vunpack.c.l.b16 %v8989
        %v9102 = vunpack.c.l.b16 %v8990
        %v9103 = vunpack.c.l.b16 %v8991
        %v9104 = vunpack.c.l.b16 %v8992
        %v9105 = vunpack.c.l.b16 %v8993
        %v9106 = vunpack.c.l.b16 %v8994
        %v9107 = vunpack.c.l.b16 %v8995
        %v9108 = vunpack.c.l.b16 %v8996
        %v9109 = vunpack.c.l.b16 %v8997
        %v9110 = vunpack.c.l.b16 %v8998
        %v9111 = vunpack.c.l.b16 %v8999
        %v9112 = vunpack.c.l.b16 %v9000
        %v9113 = vunpack.c.l.b16 %v9001
        %v9114 = vunpack.c.l.b16 %v9002
        %v9115 = vunpack.c.l.b16 %v9003
        %v9116 = vunpack.c.l.b16 %v9004
        %v9117 = vunpack.c.l.b16 %v9005
        %v9118 = vunpack.c.l.b16 %v9006
        %v9119 = vunpack.c.l.b16 %v9007
        %v9120 = vunpack.c.l.b16 %v9008
        %v9121 = vunpack.c.l.b16 %v9009
        %v9122 = vunpack.c.l.b16 %v9010
        %v9123 = vunpack.c.l.b16 %v9011
        %v9124 = vunpack.c.l.b16 %v9012
        %v9125 = vunpack.c.l.b16 %v9013
        %v9126 = vunpack.c.l.b16 %v9014
        %v9127 = vpack.c.b16 %v9072, %v9071
        %v9128 = vpack.c.b16 %v9074, %v9073
        %v9129 = vpack.c.b16 %v9076, %v9075
        %v9130 = vpack.c.b16 %v9078, %v9077
        %v9131 = vpack.c.b16 %v9080, %v9079
        %v9132 = vpack.c.b16 %v9082, %v9081
        %v9133 = vpack.c.b16 %v9084, %v9083
        %v9134 = vpack.c.b16 %v9086, %v9085
        %v9135 = vpack.c.b16 %v9088, %v9087
        %v9136 = vpack.c.b16 %v9090, %v9089
        %v9137 = vpack.c.b16 %v9092, %v9091
        %v9138 = vpack.c.b16 %v9094, %v9093
        %v9139 = vpack.c.b16 %v9096, %v9095
        %v9140 = vpack.c.b16 %v9098, %v9097
        %v9141 = vpack.c.b16 %v9100, %v9099
        %v9142 = vpack.c.b16 %v9102, %v9101
        %v9143 = vpack.c.b16 %v9104, %v9103
        %v9144 = vpack.c.b16 %v9106, %v9105
        %v9145 = vpack.c.b16 %v9108, %v9107
        %v9146 = vpack.c.b16 %v9110, %v9109
        %v9147 = vpack.c.b16 %v9112, %v9111
        %v9148 = vpack.c.b16 %v9114, %v9113
        %v9149 = vpack.c.b16 %v9116, %v9115
        %v9150 = vpack.c.b16 %v9118, %v9117
        %v9151 = vpack.c.b16 %v9120, %v9119
        %v9152 = vpack.c.b16 %v9122, %v9121
        %v9153 = vpack.c.b16 %v9124, %v9123
        %v9154 = vpack.c.b16 %v9126, %v9125
        %v9184 = vsel %vm748, %v8953, 0
        %9186 = vmatprep.subr.bf16.mxu0 0
        %9187 = vmatpush1.bf16.msra.mxu0 %v9127
        %9188 = vmatprep.subr.bf16.mxu0 0
        %9189 = vmatpush1.bf16.msra.mxu0 %v9128
        %9190 = vmatprep.subr.bf16.mxu0 0
        %9191 = vmatpush1.bf16.msra.mxu0 %v9129
        %9192 = vmatprep.subr.bf16.mxu0 0
        %9193 = vmatpush1.bf16.msra.mxu0 %v9130
        %9194 = vmatprep.subr.bf16.mxu0 0
        %9195 = vmatpush1.bf16.msra.mxu0 %v9131
        %9196 = vmatprep.subr.bf16.mxu0 0
        %9197 = vmatpush1.bf16.msra.mxu0 %v9132
        %9198 = vmatprep.subr.bf16.mxu0 0
        %9199 = vmatpush1.bf16.msra.mxu0 %v9133
        %9200 = vmatprep.subr.bf16.mxu0 0
        %9201 = vmatpush1.bf16.msra.mxu0 %v9134
        %9202 = vmatprep.subr.bf16.mxu0 0
        %9203 = vmatpush1.bf16.msra.mxu0 %v9135
        %9204 = vmatprep.subr.bf16.mxu0 0
        %9205 = vmatpush1.bf16.msra.mxu0 %v9136
        %9206 = vmatprep.subr.bf16.mxu0 0
        %9207 = vmatpush1.bf16.msra.mxu0 %v9137
        %9208 = vmatprep.subr.bf16.mxu0 0
        %9209 = vmatpush1.bf16.msra.mxu0 %v9138
        %9210 = vmatprep.subr.bf16.mxu0 0
        %9211 = vmatpush1.bf16.msra.mxu0 %v9139
        %9212 = vmatprep.subr.bf16.mxu0 0
        %9213 = vmatpush1.bf16.msra.mxu0 %v9140
        %9214 = vmatprep.subr.bf16.mxu0 0
        %9215 = vmatpush1.bf16.msra.mxu0 %v9141
        %9216 = vmatprep.subr.bf16.mxu0 0
        %9217 = vmatpush1.bf16.msra.mxu0 %v9142
        %9218 = vmatprep.mubr.bf16.mxu0 %v8951
        %9219 = vmatmul.mubr.bf16.gmra.mrb[0].mxu0 %v8950
        %v9220 = vpop.f32.mrb[0].mxu0
        %v9221 = vadd.f32 0.0, %v9220
        %v9222 = vpop.f32.mrb[0].mxu0
        %v9223 = vpop.f32.mrb[0].mxu0
        %v9224 = vpop.f32.mrb[0].mxu0
        %9225 = vdwg.mxu0
        %9226 = vmatprep.subr.bf16.mxu0 0
        %9227 = vmatpush1.bf16.msra.mxu0 %v9143
        %9228 = vmatprep.subr.bf16.mxu0 0
        %9229 = vmatpush1.bf16.msra.mxu0 %v9144
        %9230 = vmatprep.subr.bf16.mxu0 0
        %9231 = vmatpush1.bf16.msra.mxu0 %v9145
        %9232 = vmatprep.subr.bf16.mxu0 0
        %9233 = vmatpush1.bf16.msra.mxu0 %v9146
        %9234 = vmatprep.subr.bf16.mxu0 0
        %9235 = vmatpush1.bf16.msra.mxu0 %v9147
        %9236 = vmatprep.subr.bf16.mxu0 0
        %9237 = vmatpush1.bf16.msra.mxu0 %v9148
        %9238 = vmatprep.subr.bf16.mxu0 0
        %9239 = vmatpush1.bf16.msra.mxu0 %v9149
        %9240 = vmatprep.subr.bf16.mxu0 0
        %9241 = vmatpush1.bf16.msra.mxu0 %v9150
        %9242 = vmatprep.subr.bf16.mxu0 0
        %9243 = vmatpush1.bf16.msra.mxu0 %v9151
        %9244 = vmatprep.subr.bf16.mxu0 0
        %9245 = vmatpush1.bf16.msra.mxu0 %v9152
        %9246 = vmatprep.subr.bf16.mxu0 0
        %9247 = vmatpush1.bf16.msra.mxu0 %v9153
        %9248 = vmatprep.subr.bf16.mxu0 0
        %9249 = vmatpush1.bf16.msra.mxu0 %v9154
        %9250 = vmatprep.subr.bf16.mxu0 0
        %9251 = vmatpush1.bf16.msra.mxu0 0
        %9252 = vmatprep.subr.bf16.mxu0 0
        %9253 = vmatpush1.bf16.msra.mxu0 0
        %9254 = vmatprep.subr.bf16.mxu0 0
        %9255 = vmatpush1.bf16.msra.mxu0 0
        %9256 = vmatprep.subr.bf16.mxu0 0
        %9257 = vmatpush1.bf16.msra.mxu0 0
        %9258 = vmatprep.mubr.bf16.mxu0 %v9184
        %9259 = vmatmul.mubr.bf16.gmra.mrb[0].mxu0 %v8952
        %v9260 = vpop.f32.mrb[0].mxu0
        %v9261 = vadd.f32 %v9221, %v9260
        %v9262 = vpop.f32.mrb[0].mxu0
        %v9263 = vpop.f32.mrb[0].mxu0
        %v9264 = vpop.f32.mrb[0].mxu0
        %9265 = vdwg.mxu0
        %v9267 = vlaneseq
        %v9268 = vshrl.u32 %v9267, 7
        %v9269 = vsub.s32 0, %v9268
        %v9270 = vrot.slane %v8958, %v9269
        %v9272 = vadd.f32 %v9270, %v9261
        %s9273 = scalar_lea.vmem %s8, 224
        %v9274 = vld [vmem:[%s9273] sm:$0xf]
        %v9275 = vld [vmem:[%s9273 + $0x4] sm:$0xf]
        %v9276 = vld [vmem:[%s9273 + $0x8] sm:$0xf]
        %v9277 = vld [vmem:[%s9273 + $0xc] sm:$0xf]
        %v9278 = vld [vmem:[%s9273 + $0x10] sm:$0xf]
        %v9279 = vld [vmem:[%s9273 + $0x14] sm:$0xf]
        %v9280 = vld [vmem:[%s9273 + $0x18] sm:$0xf]
        %v9281 = vld [vmem:[%s9273 + $0x1c] sm:$0xf]
        %v9282 = vld [vmem:[%s9273 + $0x20] sm:$0xf]
        %v9283 = vld [vmem:[%s9273 + $0x24] sm:$0xf]
        %v9284 = vld [vmem:[%s9273 + $0x28] sm:$0xf]
        %v9285 = vld [vmem:[%s9273 + $0x2c] sm:$0xf]
        %v9286 = vld [vmem:[%s9273 + $0x30] sm:$0xf]
        %v9287 = vld [vmem:[%s9273 + $0x34] sm:$0xf]
        %v9288 = vld [vmem:[%s9273 + $0x38] sm:$0xf]
        %v9289 = vld [vmem:[%s9273 + $0x3c] sm:$0xf]
        %v9290 = vld [vmem:[%s9273 + $0x40] sm:$0xf]
        %v9291 = vld [vmem:[%s9273 + $0x44] sm:$0xf]
        %v9292 = vld [vmem:[%s9273 + $0x48] sm:$0xf]
        %v9293 = vld [vmem:[%s9273 + $0x4c] sm:$0xf]
        %v9294 = vld [vmem:[%s9273 + $0x50] sm:$0xf]
        %v9295 = vld [vmem:[%s9273 + $0x54] sm:$0xf]
        %v9296 = vld [vmem:[%s9273 + $0x58] sm:$0xf]
        %v9297 = vld [vmem:[%s9273 + $0x5c] sm:$0xf]
        %v9298 = vld [vmem:[%s9273 + $0x60] sm:$0xf]
        %v9299 = vld [vmem:[%s9273 + $0x64] sm:$0xf]
        %v9300 = vld [vmem:[%s9273 + $0x68] sm:$0xf]
        %v9301 = vld [vmem:[%s9273 + $0x6c] sm:$0xf]
        %v9302 = vld [vmem:[%s9273 + $0x70] sm:$0xf]
        %v9303 = vld [vmem:[%s9273 + $0x74] sm:$0xf]
        %v9304 = vld [vmem:[%s9273 + $0x78] sm:$0xf]
        %v9305 = vld [vmem:[%s9273 + $0x7c] sm:$0xf]
        %v9306 = vld [vmem:[%s9273 + $0x80] sm:$0xf]
        %v9307 = vld [vmem:[%s9273 + $0x84] sm:$0xf]
        %v9308 = vld [vmem:[%s9273 + $0x88] sm:$0xf]
        %v9309 = vld [vmem:[%s9273 + $0x8c] sm:$0xf]
        %v9310 = vld [vmem:[%s9273 + $0x90] sm:$0xf]
        %v9311 = vld [vmem:[%s9273 + $0x94] sm:$0xf]
        %v9312 = vld [vmem:[%s9273 + $0x98] sm:$0xf]
        %v9313 = vld [vmem:[%s9273 + $0x9c] sm:$0xf]
        %v9314 = vld [vmem:[%s9273 + $0xa0] sm:$0xf]
        %v9315 = vld [vmem:[%s9273 + $0xa4] sm:$0xf]
        %v9316 = vld [vmem:[%s9273 + $0xa8] sm:$0xf]
        %v9317 = vld [vmem:[%s9273 + $0xac] sm:$0xf]
        %v9318 = vld [vmem:[%s9273 + $0xb0] sm:$0xf]
        %v9319 = vld [vmem:[%s9273 + $0xb4] sm:$0xf]
        %v9320 = vld [vmem:[%s9273 + $0xb8] sm:$0xf]
        %v9321 = vld [vmem:[%s9273 + $0xbc] sm:$0xf]
        %v9322 = vld [vmem:[%s9273 + $0xc0] sm:$0xf]
        %v9323 = vld [vmem:[%s9273 + $0xc4] sm:$0xf]
        %v9324 = vld [vmem:[%s9273 + $0xc8] sm:$0xf]
        %v9325 = vld [vmem:[%s9273 + $0xcc] sm:$0xf]
        %v9326 = vld [vmem:[%s9273 + $0xd0] sm:$0xf]
        %v9327 = vld [vmem:[%s9273 + $0xd4] sm:$0xf]
        %v9328 = vld [vmem:[%s9273 + $0xd8] sm:$0xf]
        %v9329 = vld [vmem:[%s9273 + $0xdc] sm:$0xf]
        %v9334 = vrot.slane %v8950, 2
        %v9335 = vrot.slane %v8951, 2
        %v9336 = vrot.slane %v8952, 2
        %v9337 = vrot.slane %v8953, 2
        %v9397 = vunpack.c.l.b16 %v9274
        %v9398 = vunpack.c.l.b16 %v9275
        %v9399 = vunpack.c.l.b16 %v9276
        %v9400 = vunpack.c.l.b16 %v9277
        %v9401 = vunpack.c.l.b16 %v9278
        %v9402 = vunpack.c.l.b16 %v9279
        %v9403 = vunpack.c.l.b16 %v9280
        %v9404 = vunpack.c.l.b16 %v9281
        %v9405 = vunpack.c.l.b16 %v9282
        %v9406 = vunpack.c.l.b16 %v9283
        %v9407 = vunpack.c.l.b16 %v9284
        %v9408 = vunpack.c.l.b16 %v9285
        %v9409 = vunpack.c.l.b16 %v9286
        %v9410 = vunpack.c.l.b16 %v9287
        %v9411 = vunpack.c.l.b16 %v9288
        %v9412 = vunpack.c.l.b16 %v9289
        %v9413 = vunpack.c.l.b16 %v9290
        %v9414 = vunpack.c.l.b16 %v9291
        %v9415 = vunpack.c.l.b16 %v9292
        %v9416 = vunpack.c.l.b16 %v9293
        %v9417 = vunpack.c.l.b16 %v9294
        %v9418 = vunpack.c.l.b16 %v9295
        %v9419 = vunpack.c.l.b16 %v9296
        %v9420 = vunpack.c.l.b16 %v9297
        %v9421 = vunpack.c.l.b16 %v9298
        %v9422 = vunpack.c.l.b16 %v9299
        %v9423 = vunpack.c.l.b16 %v9300
        %v9424 = vunpack.c.l.b16 %v9301
        %v9425 = vunpack.c.l.b16 %v9302
        %v9426 = vunpack.c.l.b16 %v9303
        %v9427 = vunpack.c.l.b16 %v9304
        %v9428 = vunpack.c.l.b16 %v9305
        %v9429 = vunpack.c.l.b16 %v9306
        %v9430 = vunpack.c.l.b16 %v9307
        %v9431 = vunpack.c.l.b16 %v9308
        %v9432 = vunpack.c.l.b16 %v9309
        %v9433 = vunpack.c.l.b16 %v9310
        %v9434 = vunpack.c.l.b16 %v9311
        %v9435 = vunpack.c.l.b16 %v9312
        %v9436 = vunpack.c.l.b16 %v9313
        %v9437 = vunpack.c.l.b16 %v9314
        %v9438 = vunpack.c.l.b16 %v9315
        %v9439 = vunpack.c.l.b16 %v9316
        %v9440 = vunpack.c.l.b16 %v9317
        %v9441 = vunpack.c.l.b16 %v9318
        %v9442 = vunpack.c.l.b16 %v9319
        %v9443 = vunpack.c.l.b16 %v9320
        %v9444 = vunpack.c.l.b16 %v9321
        %v9445 = vunpack.c.l.b16 %v9322
        %v9446 = vunpack.c.l.b16 %v9323
        %v9447 = vunpack.c.l.b16 %v9324
        %v9448 = vunpack.c.l.b16 %v9325
        %v9449 = vunpack.c.l.b16 %v9326
        %v9450 = vunpack.c.l.b16 %v9327
        %v9451 = vunpack.c.l.b16 %v9328
        %v9452 = vunpack.c.l.b16 %v9329
        %v9453 = vpack.c.b16 %v9398, %v9397
        %v9454 = vpack.c.b16 %v9400, %v9399
        %v9455 = vpack.c.b16 %v9402, %v9401
        %v9456 = vpack.c.b16 %v9404, %v9403
        %v9457 = vpack.c.b16 %v9406, %v9405
        %v9458 = vpack.c.b16 %v9408, %v9407
        %v9459 = vpack.c.b16 %v9410, %v9409
        %v9460 = vpack.c.b16 %v9412, %v9411
        %v9461 = vpack.c.b16 %v9414, %v9413
        %v9462 = vpack.c.b16 %v9416, %v9415
        %v9463 = vpack.c.b16 %v9418, %v9417
        %v9464 = vpack.c.b16 %v9420, %v9419
        %v9465 = vpack.c.b16 %v9422, %v9421
        %v9466 = vpack.c.b16 %v9424, %v9423
        %v9467 = vpack.c.b16 %v9426, %v9425
        %v9468 = vpack.c.b16 %v9428, %v9427
        %v9469 = vpack.c.b16 %v9430, %v9429
        %v9470 = vpack.c.b16 %v9432, %v9431
        %v9471 = vpack.c.b16 %v9434, %v9433
        %v9472 = vpack.c.b16 %v9436, %v9435
        %v9473 = vpack.c.b16 %v9438, %v9437
        %v9474 = vpack.c.b16 %v9440, %v9439
        %v9475 = vpack.c.b16 %v9442, %v9441
        %v9476 = vpack.c.b16 %v9444, %v9443
        %v9477 = vpack.c.b16 %v9446, %v9445
        %v9478 = vpack.c.b16 %v9448, %v9447
        %v9479 = vpack.c.b16 %v9450, %v9449
        %v9480 = vpack.c.b16 %v9452, %v9451
        %v9510 = vsel %vm748, %v9337, 0
        %9512 = vmatprep.subr.bf16.mxu0 0
        %9513 = vmatpush1.bf16.msra.mxu0 %v9453
        %9514 = vmatprep.subr.bf16.mxu0 0
        %9515 = vmatpush1.bf16.msra.mxu0 %v9454
        %9516 = vmatprep.subr.bf16.mxu0 0
        %9517 = vmatpush1.bf16.msra.mxu0 %v9455
        %9518 = vmatprep.subr.bf16.mxu0 0
        %9519 = vmatpush1.bf16.msra.mxu0 %v9456
        %9520 = vmatprep.subr.bf16.mxu0 0
        %9521 = vmatpush1.bf16.msra.mxu0 %v9457
        %9522 = vmatprep.subr.bf16.mxu0 0
        %9523 = vmatpush1.bf16.msra.mxu0 %v9458
        %9524 = vmatprep.subr.bf16.mxu0 0
        %9525 = vmatpush1.bf16.msra.mxu0 %v9459
        %9526 = vmatprep.subr.bf16.mxu0 0
        %9527 = vmatpush1.bf16.msra.mxu0 %v9460
        %9528 = vmatprep.subr.bf16.mxu0 0
        %9529 = vmatpush1.bf16.msra.mxu0 %v9461
        %9530 = vmatprep.subr.bf16.mxu0 0
        %9531 = vmatpush1.bf16.msra.mxu0 %v9462
        %9532 = vmatprep.subr.bf16.mxu0 0
        %9533 = vmatpush1.bf16.msra.mxu0 %v9463
        %9534 = vmatprep.subr.bf16.mxu0 0
        %9535 = vmatpush1.bf16.msra.mxu0 %v9464
        %9536 = vmatprep.subr.bf16.mxu0 0
        %9537 = vmatpush1.bf16.msra.mxu0 %v9465
        %9538 = vmatprep.subr.bf16.mxu0 0
        %9539 = vmatpush1.bf16.msra.mxu0 %v9466
        %9540 = vmatprep.subr.bf16.mxu0 0
        %9541 = vmatpush1.bf16.msra.mxu0 %v9467
        %9542 = vmatprep.subr.bf16.mxu0 0
        %9543 = vmatpush1.bf16.msra.mxu0 %v9468
        %9544 = vmatprep.mubr.bf16.mxu0 %v9335
        %9545 = vmatmul.mubr.bf16.gmra.mrb[0].mxu0 %v9334
        %v9546 = vpop.f32.mrb[0].mxu0
        %v9547 = vadd.f32 0.0, %v9546
        %v9548 = vpop.f32.mrb[0].mxu0
        %v9549 = vpop.f32.mrb[0].mxu0
        %v9550 = vpop.f32.mrb[0].mxu0
        %9551 = vdwg.mxu0
        %9552 = vmatprep.subr.bf16.mxu0 0
        %9553 = vmatpush1.bf16.msra.mxu0 %v9469
        %9554 = vmatprep.subr.bf16.mxu0 0
        %9555 = vmatpush1.bf16.msra.mxu0 %v9470
        %9556 = vmatprep.subr.bf16.mxu0 0
        %9557 = vmatpush1.bf16.msra.mxu0 %v9471
        %9558 = vmatprep.subr.bf16.mxu0 0
        %9559 = vmatpush1.bf16.msra.mxu0 %v9472
        %9560 = vmatprep.subr.bf16.mxu0 0
        %9561 = vmatpush1.bf16.msra.mxu0 %v9473
        %9562 = vmatprep.subr.bf16.mxu0 0
        %9563 = vmatpush1.bf16.msra.mxu0 %v9474
        %9564 = vmatprep.subr.bf16.mxu0 0
        %9565 = vmatpush1.bf16.msra.mxu0 %v9475
        %9566 = vmatprep.subr.bf16.mxu0 0
        %9567 = vmatpush1.bf16.msra.mxu0 %v9476
        %9568 = vmatprep.subr.bf16.mxu0 0
        %9569 = vmatpush1.bf16.msra.mxu0 %v9477
        %9570 = vmatprep.subr.bf16.mxu0 0
        %9571 = vmatpush1.bf16.msra.mxu0 %v9478
        %9572 = vmatprep.subr.bf16.mxu0 0
        %9573 = vmatpush1.bf16.msra.mxu0 %v9479
        %9574 = vmatprep.subr.bf16.mxu0 0
        %9575 = vmatpush1.bf16.msra.mxu0 %v9480
        %9576 = vmatprep.subr.bf16.mxu0 0
        %9577 = vmatpush1.bf16.msra.mxu0 0
        %9578 = vmatprep.subr.bf16.mxu0 0
        %9579 = vmatpush1.bf16.msra.mxu0 0
        %9580 = vmatprep.subr.bf16.mxu0 0
        %9581 = vmatpush1.bf16.msra.mxu0 0
        %9582 = vmatprep.subr.bf16.mxu0 0
        %9583 = vmatpush1.bf16.msra.mxu0 0
        %9584 = vmatprep.mubr.bf16.mxu0 %v9510
        %9585 = vmatmul.mubr.bf16.gmra.mrb[0].mxu0 %v9336
        %v9586 = vpop.f32.mrb[0].mxu0
        %v9587 = vadd.f32 %v9547, %v9586
        %v9588 = vpop.f32.mrb[0].mxu0
        %v9589 = vpop.f32.mrb[0].mxu0
        %v9590 = vpop.f32.mrb[0].mxu0
        %9591 = vdwg.mxu0
        %v9592 = vadd.f32 %v9272, %v9587
        %s9593 = scalar_lea.vmem %s8, 448
        %v9594 = vld [vmem:[%s9593] sm:$0xf]
        %v9595 = vld [vmem:[%s9593 + $0x4] sm:$0xf]
        %v9596 = vld [vmem:[%s9593 + $0x8] sm:$0xf]
        %v9597 = vld [vmem:[%s9593 + $0xc] sm:$0xf]
        %v9598 = vld [vmem:[%s9593 + $0x10] sm:$0xf]
        %v9599 = vld [vmem:[%s9593 + $0x14] sm:$0xf]
        %v9600 = vld [vmem:[%s9593 + $0x18] sm:$0xf]
        %v9601 = vld [vmem:[%s9593 + $0x1c] sm:$0xf]
        %v9602 = vld [vmem:[%s9593 + $0x20] sm:$0xf]
        %v9603 = vld [vmem:[%s9593 + $0x24] sm:$0xf]
        %v9604 = vld [vmem:[%s9593 + $0x28] sm:$0xf]
        %v9605 = vld [vmem:[%s9593 + $0x2c] sm:$0xf]
        %v9606 = vld [vmem:[%s9593 + $0x30] sm:$0xf]
        %v9607 = vld [vmem:[%s9593 + $0x34] sm:$0xf]
        %v9608 = vld [vmem:[%s9593 + $0x38] sm:$0xf]
        %v9609 = vld [vmem:[%s9593 + $0x3c] sm:$0xf]
        %v9610 = vld [vmem:[%s9593 + $0x40] sm:$0xf]
        %v9611 = vld [vmem:[%s9593 + $0x44] sm:$0xf]
        %v9612 = vld [vmem:[%s9593 + $0x48] sm:$0xf]
        %v9613 = vld [vmem:[%s9593 + $0x4c] sm:$0xf]
        %v9614 = vld [vmem:[%s9593 + $0x50] sm:$0xf]
        %v9615 = vld [vmem:[%s9593 + $0x54] sm:$0xf]
        %v9616 = vld [vmem:[%s9593 + $0x58] sm:$0xf]
        %v9617 = vld [vmem:[%s9593 + $0x5c] sm:$0xf]
        %v9618 = vld [vmem:[%s9593 + $0x60] sm:$0xf]
        %v9619 = vld [vmem:[%s9593 + $0x64] sm:$0xf]
        %v9620 = vld [vmem:[%s9593 + $0x68] sm:$0xf]
        %v9621 = vld [vmem:[%s9593 + $0x6c] sm:$0xf]
        %v9622 = vld [vmem:[%s9593 + $0x70] sm:$0xf]
        %v9623 = vld [vmem:[%s9593 + $0x74] sm:$0xf]
        %v9624 = vld [vmem:[%s9593 + $0x78] sm:$0xf]
        %v9625 = vld [vmem:[%s9593 + $0x7c] sm:$0xf]
        %v9626 = vld [vmem:[%s9593 + $0x80] sm:$0xf]
        %v9627 = vld [vmem:[%s9593 + $0x84] sm:$0xf]
        %v9628 = vld [vmem:[%s9593 + $0x88] sm:$0xf]
        %v9629 = vld [vmem:[%s9593 + $0x8c] sm:$0xf]
        %v9630 = vld [vmem:[%s9593 + $0x90] sm:$0xf]
        %v9631 = vld [vmem:[%s9593 + $0x94] sm:$0xf]
        %v9632 = vld [vmem:[%s9593 + $0x98] sm:$0xf]
        %v9633 = vld [vmem:[%s9593 + $0x9c] sm:$0xf]
        %v9634 = vld [vmem:[%s9593 + $0xa0] sm:$0xf]
        %v9635 = vld [vmem:[%s9593 + $0xa4] sm:$0xf]
        %v9636 = vld [vmem:[%s9593 + $0xa8] sm:$0xf]
        %v9637 = vld [vmem:[%s9593 + $0xac] sm:$0xf]
        %v9638 = vld [vmem:[%s9593 + $0xb0] sm:$0xf]
        %v9639 = vld [vmem:[%s9593 + $0xb4] sm:$0xf]
        %v9640 = vld [vmem:[%s9593 + $0xb8] sm:$0xf]
        %v9641 = vld [vmem:[%s9593 + $0xbc] sm:$0xf]
        %v9642 = vld [vmem:[%s9593 + $0xc0] sm:$0xf]
        %v9643 = vld [vmem:[%s9593 + $0xc4] sm:$0xf]
        %v9644 = vld [vmem:[%s9593 + $0xc8] sm:$0xf]
        %v9645 = vld [vmem:[%s9593 + $0xcc] sm:$0xf]
        %v9646 = vld [vmem:[%s9593 + $0xd0] sm:$0xf]
        %v9647 = vld [vmem:[%s9593 + $0xd4] sm:$0xf]
        %v9648 = vld [vmem:[%s9593 + $0xd8] sm:$0xf]
        %v9649 = vld [vmem:[%s9593 + $0xdc] sm:$0xf]
        %v9650 = vrot.slane %v8950, 4
        %v9651 = vrot.slane %v8951, 4
        %v9652 = vrot.slane %v8952, 4
        %v9653 = vrot.slane %v8953, 4
        %v9713 = vunpack.c.l.b16 %v9594
        %v9714 = vunpack.c.l.b16 %v9595
        %v9715 = vunpack.c.l.b16 %v9596
        %v9716 = vunpack.c.l.b16 %v9597
        %v9717 = vunpack.c.l.b16 %v9598
        %v9718 = vunpack.c.l.b16 %v9599
        %v9719 = vunpack.c.l.b16 %v9600
        %v9720 = vunpack.c.l.b16 %v9601
        %v9721 = vunpack.c.l.b16 %v9602
        %v9722 = vunpack.c.l.b16 %v9603
        %v9723 = vunpack.c.l.b16 %v9604
        %v9724 = vunpack.c.l.b16 %v9605
        %v9725 = vunpack.c.l.b16 %v9606
        %v9726 = vunpack.c.l.b16 %v9607
        %v9727 = vunpack.c.l.b16 %v9608
        %v9728 = vunpack.c.l.b16 %v9609
        %v9729 = vunpack.c.l.b16 %v9610
        %v9730 = vunpack.c.l.b16 %v9611
        %v9731 = vunpack.c.l.b16 %v9612
        %v9732 = vunpack.c.l.b16 %v9613
        %v9733 = vunpack.c.l.b16 %v9614
        %v9734 = vunpack.c.l.b16 %v9615
        %v9735 = vunpack.c.l.b16 %v9616
        %v9736 = vunpack.c.l.b16 %v9617
        %v9737 = vunpack.c.l.b16 %v9618
        %v9738 = vunpack.c.l.b16 %v9619
        %v9739 = vunpack.c.l.b16 %v9620
        %v9740 = vunpack.c.l.b16 %v9621
        %v9741 = vunpack.c.l.b16 %v9622
        %v9742 = vunpack.c.l.b16 %v9623
        %v9743 = vunpack.c.l.b16 %v9624
        %v9744 = vunpack.c.l.b16 %v9625
        %v9745 = vunpack.c.l.b16 %v9626
        %v9746 = vunpack.c.l.b16 %v9627
        %v9747 = vunpack.c.l.b16 %v9628
        %v9748 = vunpack.c.l.b16 %v9629
        %v9749 = vunpack.c.l.b16 %v9630
        %v9750 = vunpack.c.l.b16 %v9631
        %v9751 = vunpack.c.l.b16 %v9632
        %v9752 = vunpack.c.l.b16 %v9633
        %v9753 = vunpack.c.l.b16 %v9634
        %v9754 = vunpack.c.l.b16 %v9635
        %v9755 = vunpack.c.l.b16 %v9636
        %v9756 = vunpack.c.l.b16 %v9637
        %v9757 = vunpack.c.l.b16 %v9638
        %v9758 = vunpack.c.l.b16 %v9639
        %v9759 = vunpack.c.l.b16 %v9640
        %v9760 = vunpack.c.l.b16 %v9641
        %v9761 = vunpack.c.l.b16 %v9642
        %v9762 = vunpack.c.l.b16 %v9643
        %v9763 = vunpack.c.l.b16 %v9644
        %v9764 = vunpack.c.l.b16 %v9645
        %v9765 = vunpack.c.l.b16 %v9646
        %v9766 = vunpack.c.l.b16 %v9647
        %v9767 = vunpack.c.l.b16 %v9648
        %v9768 = vunpack.c.l.b16 %v9649
        %v9769 = vpack.c.b16 %v9714, %v9713
        %v9770 = vpack.c.b16 %v9716, %v9715
        %v9771 = vpack.c.b16 %v9718, %v9717
        %v9772 = vpack.c.b16 %v9720, %v9719
        %v9773 = vpack.c.b16 %v9722, %v9721
        %v9774 = vpack.c.b16 %v9724, %v9723
        %v9775 = vpack.c.b16 %v9726, %v9725
        %v9776 = vpack.c.b16 %v9728, %v9727
        %v9777 = vpack.c.b16 %v9730, %v9729
        %v9778 = vpack.c.b16 %v9732, %v9731
        %v9779 = vpack.c.b16 %v9734, %v9733
        %v9780 = vpack.c.b16 %v9736, %v9735
        %v9781 = vpack.c.b16 %v9738, %v9737
        %v9782 = vpack.c.b16 %v9740, %v9739
        %v9783 = vpack.c.b16 %v9742, %v9741
        %v9784 = vpack.c.b16 %v9744, %v9743
        %v9785 = vpack.c.b16 %v9746, %v9745
        %v9786 = vpack.c.b16 %v9748, %v9747
        %v9787 = vpack.c.b16 %v9750, %v9749
        %v9788 = vpack.c.b16 %v9752, %v9751
        %v9789 = vpack.c.b16 %v9754, %v9753
        %v9790 = vpack.c.b16 %v9756, %v9755
        %v9791 = vpack.c.b16 %v9758, %v9757
        %v9792 = vpack.c.b16 %v9760, %v9759
        %v9793 = vpack.c.b16 %v9762, %v9761
        %v9794 = vpack.c.b16 %v9764, %v9763
        %v9795 = vpack.c.b16 %v9766, %v9765
        %v9796 = vpack.c.b16 %v9768, %v9767
        %v9826 = vsel %vm748, %v9653, 0
        %9828 = vmatprep.subr.bf16.mxu0 0
        %9829 = vmatpush1.bf16.msra.mxu0 %v9769
        %9830 = vmatprep.subr.bf16.mxu0 0
        %9831 = vmatpush1.bf16.msra.mxu0 %v9770
        %9832 = vmatprep.subr.bf16.mxu0 0
        %9833 = vmatpush1.bf16.msra.mxu0 %v9771
        %9834 = vmatprep.subr.bf16.mxu0 0
        %9835 = vmatpush1.bf16.msra.mxu0 %v9772
        %9836 = vmatprep.subr.bf16.mxu0 0
        %9837 = vmatpush1.bf16.msra.mxu0 %v9773
        %9838 = vmatprep.subr.bf16.mxu0 0
        %9839 = vmatpush1.bf16.msra.mxu0 %v9774
        %9840 = vmatprep.subr.bf16.mxu0 0
        %9841 = vmatpush1.bf16.msra.mxu0 %v9775
        %9842 = vmatprep.subr.bf16.mxu0 0
        %9843 = vmatpush1.bf16.msra.mxu0 %v9776
        %9844 = vmatprep.subr.bf16.mxu0 0
        %9845 = vmatpush1.bf16.msra.mxu0 %v9777
        %9846 = vmatprep.subr.bf16.mxu0 0
        %9847 = vmatpush1.bf16.msra.mxu0 %v9778
        %9848 = vmatprep.subr.bf16.mxu0 0
        %9849 = vmatpush1.bf16.msra.mxu0 %v9779
        %9850 = vmatprep.subr.bf16.mxu0 0
        %9851 = vmatpush1.bf16.msra.mxu0 %v9780
        %9852 = vmatprep.subr.bf16.mxu0 0
        %9853 = vmatpush1.bf16.msra.mxu0 %v9781
        %9854 = vmatprep.subr.bf16.mxu0 0
        %9855 = vmatpush1.bf16.msra.mxu0 %v9782
        %9856 = vmatprep.subr.bf16.mxu0 0
        %9857 = vmatpush1.bf16.msra.mxu0 %v9783
        %9858 = vmatprep.subr.bf16.mxu0 0
        %9859 = vmatpush1.bf16.msra.mxu0 %v9784
        %9860 = vmatprep.mubr.bf16.mxu0 %v9651
        %9861 = vmatmul.mubr.bf16.gmra.mrb[0].mxu0 %v9650
        %v9862 = vpop.f32.mrb[0].mxu0
        %v9863 = vadd.f32 0.0, %v9862
        %v9864 = vpop.f32.mrb[0].mxu0
        %v9865 = vpop.f32.mrb[0].mxu0
        %v9866 = vpop.f32.mrb[0].mxu0
        %9867 = vdwg.mxu0
        %9868 = vmatprep.subr.bf16.mxu0 0
        %9869 = vmatpush1.bf16.msra.mxu0 %v9785
        %9870 = vmatprep.subr.bf16.mxu0 0
        %9871 = vmatpush1.bf16.msra.mxu0 %v9786
        %9872 = vmatprep.subr.bf16.mxu0 0
        %9873 = vmatpush1.bf16.msra.mxu0 %v9787
        %9874 = vmatprep.subr.bf16.mxu0 0
        %9875 = vmatpush1.bf16.msra.mxu0 %v9788
        %9876 = vmatprep.subr.bf16.mxu0 0
        %9877 = vmatpush1.bf16.msra.mxu0 %v9789
        %9878 = vmatprep.subr.bf16.mxu0 0
        %9879 = vmatpush1.bf16.msra.mxu0 %v9790
        %9880 = vmatprep.subr.bf16.mxu0 0
        %9881 = vmatpush1.bf16.msra.mxu0 %v9791
        %9882 = vmatprep.subr.bf16.mxu0 0
        %9883 = vmatpush1.bf16.msra.mxu0 %v9792
        %9884 = vmatprep.subr.bf16.mxu0 0
        %9885 = vmatpush1.bf16.msra.mxu0 %v9793
        %9886 = vmatprep.subr.bf16.mxu0 0
        %9887 = vmatpush1.bf16.msra.mxu0 %v9794
        %9888 = vmatprep.subr.bf16.mxu0 0
        %9889 = vmatpush1.bf16.msra.mxu0 %v9795
        %9890 = vmatprep.subr.bf16.mxu0 0
        %9891 = vmatpush1.bf16.msra.mxu0 %v9796
        %9892 = vmatprep.subr.bf16.mxu0 0
        %9893 = vmatpush1.bf16.msra.mxu0 0
        %9894 = vmatprep.subr.bf16.mxu0 0
        %9895 = vmatpush1.bf16.msra.mxu0 0
        %9896 = vmatprep.subr.bf16.mxu0 0
        %9897 = vmatpush1.bf16.msra.mxu0 0
        %9898 = vmatprep.subr.bf16.mxu0 0
        %9899 = vmatpush1.bf16.msra.mxu0 0
        %9900 = vmatprep.mubr.bf16.mxu0 %v9826
        %9901 = vmatmul.mubr.bf16.gmra.mrb[0].mxu0 %v9652
        %v9902 = vpop.f32.mrb[0].mxu0
        %v9903 = vadd.f32 %v9863, %v9902
        %v9904 = vpop.f32.mrb[0].mxu0
        %v9905 = vpop.f32.mrb[0].mxu0
        %v9906 = vpop.f32.mrb[0].mxu0
        %9907 = vdwg.mxu0
        %v9908 = vadd.f32 %v9592, %v9903
        %s9909 = scalar_lea.vmem %s8, 672
        %v9910 = vld [vmem:[%s9909] sm:$0xf]
        %v9911 = vld [vmem:[%s9909 + $0x4] sm:$0xf]
        %v9912 = vld [vmem:[%s9909 + $0x8] sm:$0xf]
        %v9913 = vld [vmem:[%s9909 + $0xc] sm:$0xf]
        %v9914 = vld [vmem:[%s9909 + $0x10] sm:$0xf]
        %v9915 = vld [vmem:[%s9909 + $0x14] sm:$0xf]
        %v9916 = vld [vmem:[%s9909 + $0x18] sm:$0xf]
        %v9917 = vld [vmem:[%s9909 + $0x1c] sm:$0xf]
        %v9918 = vld [vmem:[%s9909 + $0x20] sm:$0xf]
        %v9919 = vld [vmem:[%s9909 + $0x24] sm:$0xf]
        %v9920 = vld [vmem:[%s9909 + $0x28] sm:$0xf]
        %v9921 = vld [vmem:[%s9909 + $0x2c] sm:$0xf]
        %v9922 = vld [vmem:[%s9909 + $0x30] sm:$0xf]
        %v9923 = vld [vmem:[%s9909 + $0x34] sm:$0xf]
        %v9924 = vld [vmem:[%s9909 + $0x38] sm:$0xf]
        %v9925 = vld [vmem:[%s9909 + $0x3c] sm:$0xf]
        %v9926 = vld [vmem:[%s9909 + $0x40] sm:$0xf]
        %v9927 = vld [vmem:[%s9909 + $0x44] sm:$0xf]
        %v9928 = vld [vmem:[%s9909 + $0x48] sm:$0xf]
        %v9929 = vld [vmem:[%s9909 + $0x4c] sm:$0xf]
        %v9930 = vld [vmem:[%s9909 + $0x50] sm:$0xf]
        %v9931 = vld [vmem:[%s9909 + $0x54] sm:$0xf]
        %v9932 = vld [vmem:[%s9909 + $0x58] sm:$0xf]
        %v9933 = vld [vmem:[%s9909 + $0x5c] sm:$0xf]
        %v9934 = vld [vmem:[%s9909 + $0x60] sm:$0xf]
        %v9935 = vld [vmem:[%s9909 + $0x64] sm:$0xf]
        %v9936 = vld [vmem:[%s9909 + $0x68] sm:$0xf]
        %v9937 = vld [vmem:[%s9909 + $0x6c] sm:$0xf]
        %v9938 = vld [vmem:[%s9909 + $0x70] sm:$0xf]
        %v9939 = vld [vmem:[%s9909 + $0x74] sm:$0xf]
        %v9940 = vld [vmem:[%s9909 + $0x78] sm:$0xf]
        %v9941 = vld [vmem:[%s9909 + $0x7c] sm:$0xf]
        %v9942 = vld [vmem:[%s9909 + $0x80] sm:$0xf]
        %v9943 = vld [vmem:[%s9909 + $0x84] sm:$0xf]
        %v9944 = vld [vmem:[%s9909 + $0x88] sm:$0xf]
        %v9945 = vld [vmem:[%s9909 + $0x8c] sm:$0xf]
        %v9946 = vld [vmem:[%s9909 + $0x90] sm:$0xf]
        %v9947 = vld [vmem:[%s9909 + $0x94] sm:$0xf]
        %v9948 = vld [vmem:[%s9909 + $0x98] sm:$0xf]
        %v9949 = vld [vmem:[%s9909 + $0x9c] sm:$0xf]
        %v9950 = vld [vmem:[%s9909 + $0xa0] sm:$0xf]
        %v9951 = vld [vmem:[%s9909 + $0xa4] sm:$0xf]
        %v9952 = vld [vmem:[%s9909 + $0xa8] sm:$0xf]
        %v9953 = vld [vmem:[%s9909 + $0xac] sm:$0xf]
        %v9954 = vld [vmem:[%s9909 + $0xb0] sm:$0xf]
        %v9955 = vld [vmem:[%s9909 + $0xb4] sm:$0xf]
        %v9956 = vld [vmem:[%s9909 + $0xb8] sm:$0xf]
        %v9957 = vld [vmem:[%s9909 + $0xbc] sm:$0xf]
        %v9958 = vld [vmem:[%s9909 + $0xc0] sm:$0xf]
        %v9959 = vld [vmem:[%s9909 + $0xc4] sm:$0xf]
        %v9960 = vld [vmem:[%s9909 + $0xc8] sm:$0xf]
        %v9961 = vld [vmem:[%s9909 + $0xcc] sm:$0xf]
        %v9962 = vld [vmem:[%s9909 + $0xd0] sm:$0xf]
        %v9963 = vld [vmem:[%s9909 + $0xd4] sm:$0xf]
        %v9964 = vld [vmem:[%s9909 + $0xd8] sm:$0xf]
        %v9965 = vld [vmem:[%s9909 + $0xdc] sm:$0xf]
        %v9966 = vrot.slane %v8950, 6
        %v9967 = vrot.slane %v8951, 6
        %v9968 = vrot.slane %v8952, 6
        %v9969 = vrot.slane %v8953, 6
        %v10029 = vunpack.c.l.b16 %v9910
        %v10030 = vunpack.c.l.b16 %v9911
        %v10031 = vunpack.c.l.b16 %v9912
        %v10032 = vunpack.c.l.b16 %v9913
        %v10033 = vunpack.c.l.b16 %v9914
        %v10034 = vunpack.c.l.b16 %v9915
        %v10035 = vunpack.c.l.b16 %v9916
        %v10036 = vunpack.c.l.b16 %v9917
        %v10037 = vunpack.c.l.b16 %v9918
        %v10038 = vunpack.c.l.b16 %v9919
        %v10039 = vunpack.c.l.b16 %v9920
        %v10040 = vunpack.c.l.b16 %v9921
        %v10041 = vunpack.c.l.b16 %v9922
        %v10042 = vunpack.c.l.b16 %v9923
        %v10043 = vunpack.c.l.b16 %v9924
        %v10044 = vunpack.c.l.b16 %v9925
        %v10045 = vunpack.c.l.b16 %v9926
        %v10046 = vunpack.c.l.b16 %v9927
        %v10047 = vunpack.c.l.b16 %v9928
        %v10048 = vunpack.c.l.b16 %v9929
        %v10049 = vunpack.c.l.b16 %v9930
        %v10050 = vunpack.c.l.b16 %v9931
        %v10051 = vunpack.c.l.b16 %v9932
        %v10052 = vunpack.c.l.b16 %v9933
        %v10053 = vunpack.c.l.b16 %v9934
        %v10054 = vunpack.c.l.b16 %v9935
        %v10055 = vunpack.c.l.b16 %v9936
        %v10056 = vunpack.c.l.b16 %v9937
        %v10057 = vunpack.c.l.b16 %v9938
        %v10058 = vunpack.c.l.b16 %v9939
        %v10059 = vunpack.c.l.b16 %v9940
        %v10060 = vunpack.c.l.b16 %v9941
        %v10061 = vunpack.c.l.b16 %v9942
        %v10062 = vunpack.c.l.b16 %v9943
        %v10063 = vunpack.c.l.b16 %v9944
        %v10064 = vunpack.c.l.b16 %v9945
        %v10065 = vunpack.c.l.b16 %v9946
        %v10066 = vunpack.c.l.b16 %v9947
        %v10067 = vunpack.c.l.b16 %v9948
        %v10068 = vunpack.c.l.b16 %v9949
        %v10069 = vunpack.c.l.b16 %v9950
        %v10070 = vunpack.c.l.b16 %v9951
        %v10071 = vunpack.c.l.b16 %v9952
        %v10072 = vunpack.c.l.b16 %v9953
        %v10073 = vunpack.c.l.b16 %v9954
        %v10074 = vunpack.c.l.b16 %v9955
        %v10075 = vunpack.c.l.b16 %v9956
        %v10076 = vunpack.c.l.b16 %v9957
        %v10077 = vunpack.c.l.b16 %v9958
        %v10078 = vunpack.c.l.b16 %v9959
        %v10079 = vunpack.c.l.b16 %v9960
        %v10080 = vunpack.c.l.b16 %v9961
        %v10081 = vunpack.c.l.b16 %v9962
        %v10082 = vunpack.c.l.b16 %v9963
        %v10083 = vunpack.c.l.b16 %v9964
        %v10084 = vunpack.c.l.b16 %v9965
        %v10085 = vpack.c.b16 %v10030, %v10029
        %v10086 = vpack.c.b16 %v10032, %v10031
        %v10087 = vpack.c.b16 %v10034, %v10033
        %v10088 = vpack.c.b16 %v10036, %v10035
        %v10089 = vpack.c.b16 %v10038, %v10037
        %v10090 = vpack.c.b16 %v10040, %v10039
        %v10091 = vpack.c.b16 %v10042, %v10041
        %v10092 = vpack.c.b16 %v10044, %v10043
        %v10093 = vpack.c.b16 %v10046, %v10045
        %v10094 = vpack.c.b16 %v10048, %v10047
        %v10095 = vpack.c.b16 %v10050, %v10049
        %v10096 = vpack.c.b16 %v10052, %v10051
        %v10097 = vpack.c.b16 %v10054, %v10053
        %v10098 = vpack.c.b16 %v10056, %v10055
        %v10099 = vpack.c.b16 %v10058, %v10057
        %v10100 = vpack.c.b16 %v10060, %v10059
        %v10101 = vpack.c.b16 %v10062, %v10061
        %v10102 = vpack.c.b16 %v10064, %v10063
        %v10103 = vpack.c.b16 %v10066, %v10065
        %v10104 = vpack.c.b16 %v10068, %v10067
        %v10105 = vpack.c.b16 %v10070, %v10069
        %v10106 = vpack.c.b16 %v10072, %v10071
        %v10107 = vpack.c.b16 %v10074, %v10073
        %v10108 = vpack.c.b16 %v10076, %v10075
        %v10109 = vpack.c.b16 %v10078, %v10077
        %v10110 = vpack.c.b16 %v10080, %v10079
        %v10111 = vpack.c.b16 %v10082, %v10081
        %v10112 = vpack.c.b16 %v10084, %v10083
        %v10142 = vsel %vm748, %v9969, 0
        %10144 = vmatprep.subr.bf16.mxu0 0
        %10145 = vmatpush1.bf16.msra.mxu0 %v10085
        %10146 = vmatprep.subr.bf16.mxu0 0
        %10147 = vmatpush1.bf16.msra.mxu0 %v10086
        %10148 = vmatprep.subr.bf16.mxu0 0
        %10149 = vmatpush1.bf16.msra.mxu0 %v10087
        %10150 = vmatprep.subr.bf16.mxu0 0
        %10151 = vmatpush1.bf16.msra.mxu0 %v10088
        %10152 = vmatprep.subr.bf16.mxu0 0
        %10153 = vmatpush1.bf16.msra.mxu0 %v10089
        %10154 = vmatprep.subr.bf16.mxu0 0
        %10155 = vmatpush1.bf16.msra.mxu0 %v10090
        %10156 = vmatprep.subr.bf16.mxu0 0
        %10157 = vmatpush1.bf16.msra.mxu0 %v10091
        %10158 = vmatprep.subr.bf16.mxu0 0
        %10159 = vmatpush1.bf16.msra.mxu0 %v10092
        %10160 = vmatprep.subr.bf16.mxu0 0
        %10161 = vmatpush1.bf16.msra.mxu0 %v10093
        %10162 = vmatprep.subr.bf16.mxu0 0
        %10163 = vmatpush1.bf16.msra.mxu0 %v10094
        %10164 = vmatprep.subr.bf16.mxu0 0
        %10165 = vmatpush1.bf16.msra.mxu0 %v10095
        %10166 = vmatprep.subr.bf16.mxu0 0
        %10167 = vmatpush1.bf16.msra.mxu0 %v10096
        %10168 = vmatprep.subr.bf16.mxu0 0
        %10169 = vmatpush1.bf16.msra.mxu0 %v10097
        %10170 = vmatprep.subr.bf16.mxu0 0
        %10171 = vmatpush1.bf16.msra.mxu0 %v10098
        %10172 = vmatprep.subr.bf16.mxu0 0
        %10173 = vmatpush1.bf16.msra.mxu0 %v10099
        %10174 = vmatprep.subr.bf16.mxu0 0
        %10175 = vmatpush1.bf16.msra.mxu0 %v10100
        %10176 = vmatprep.mubr.bf16.mxu0 %v9967
        %10177 = vmatmul.mubr.bf16.gmra.mrb[0].mxu0 %v9966
        %v10178 = vpop.f32.mrb[0].mxu0
        %v10179 = vadd.f32 0.0, %v10178
        %v10180 = vpop.f32.mrb[0].mxu0
        %v10181 = vpop.f32.mrb[0].mxu0
        %v10182 = vpop.f32.mrb[0].mxu0
        %10183 = vdwg.mxu0
        %10184 = vmatprep.subr.bf16.mxu0 0
        %10185 = vmatpush1.bf16.msra.mxu0 %v10101
        %10186 = vmatprep.subr.bf16.mxu0 0
        %10187 = vmatpush1.bf16.msra.mxu0 %v10102
        %10188 = vmatprep.subr.bf16.mxu0 0
        %10189 = vmatpush1.bf16.msra.mxu0 %v10103
        %10190 = vmatprep.subr.bf16.mxu0 0
        %10191 = vmatpush1.bf16.msra.mxu0 %v10104
        %10192 = vmatprep.subr.bf16.mxu0 0
        %10193 = vmatpush1.bf16.msra.mxu0 %v10105
        %10194 = vmatprep.subr.bf16.mxu0 0
        %10195 = vmatpush1.bf16.msra.mxu0 %v10106
        %10196 = vmatprep.subr.bf16.mxu0 0
        %10197 = vmatpush1.bf16.msra.mxu0 %v10107
        %10198 = vmatprep.subr.bf16.mxu0 0
        %10199 = vmatpush1.bf16.msra.mxu0 %v10108
        %10200 = vmatprep.subr.bf16.mxu0 0
        %10201 = vmatpush1.bf16.msra.mxu0 %v10109
        %10202 = vmatprep.subr.bf16.mxu0 0
        %10203 = vmatpush1.bf16.msra.mxu0 %v10110
        %10204 = vmatprep.subr.bf16.mxu0 0
        %10205 = vmatpush1.bf16.msra.mxu0 %v10111
        %10206 = vmatprep.subr.bf16.mxu0 0
        %10207 = vmatpush1.bf16.msra.mxu0 %v10112
        %10208 = vmatprep.subr.bf16.mxu0 0
        %10209 = vmatpush1.bf16.msra.mxu0 0
        %10210 = vmatprep.subr.bf16.mxu0 0
        %10211 = vmatpush1.bf16.msra.mxu0 0
        %10212 = vmatprep.subr.bf16.mxu0 0
        %10213 = vmatpush1.bf16.msra.mxu0 0
        %10214 = vmatprep.subr.bf16.mxu0 0
        %10215 = vmatpush1.bf16.msra.mxu0 0
        %10216 = vmatprep.mubr.bf16.mxu0 %v10142
        %10217 = vmatmul.mubr.bf16.gmra.mrb[0].mxu0 %v9968
        %v10218 = vpop.f32.mrb[0].mxu0
        %v10219 = vadd.f32 %v10179, %v10218
        %v10220 = vpop.f32.mrb[0].mxu0
        %v10221 = vpop.f32.mrb[0].mxu0
        %v10222 = vpop.f32.mrb[0].mxu0
        %10223 = vdwg.mxu0
        %v10224 = vadd.f32 %v9908, %v10219
        %s10225 = scalar_lea.vmem %s8, 896
        %v10226 = vld [vmem:[%s10225] sm:$0xf]
        %v10227 = vld [vmem:[%s10225 + $0x4] sm:$0xf]
        %v10228 = vld [vmem:[%s10225 + $0x8] sm:$0xf]
        %v10229 = vld [vmem:[%s10225 + $0xc] sm:$0xf]
        %v10230 = vld [vmem:[%s10225 + $0x10] sm:$0xf]
        %v10231 = vld [vmem:[%s10225 + $0x14] sm:$0xf]
        %v10232 = vld [vmem:[%s10225 + $0x18] sm:$0xf]
        %v10233 = vld [vmem:[%s10225 + $0x1c] sm:$0xf]
        %v10234 = vld [vmem:[%s10225 + $0x20] sm:$0xf]
        %v10235 = vld [vmem:[%s10225 + $0x24] sm:$0xf]
        %v10236 = vld [vmem:[%s10225 + $0x28] sm:$0xf]
        %v10237 = vld [vmem:[%s10225 + $0x2c] sm:$0xf]
        %v10238 = vld [vmem:[%s10225 + $0x30] sm:$0xf]
        %v10239 = vld [vmem:[%s10225 + $0x34] sm:$0xf]
        %v10240 = vld [vmem:[%s10225 + $0x38] sm:$0xf]
        %v10241 = vld [vmem:[%s10225 + $0x3c] sm:$0xf]
        %v10242 = vld [vmem:[%s10225 + $0x40] sm:$0xf]
        %v10243 = vld [vmem:[%s10225 + $0x44] sm:$0xf]
        %v10244 = vld [vmem:[%s10225 + $0x48] sm:$0xf]
        %v10245 = vld [vmem:[%s10225 + $0x4c] sm:$0xf]
        %v10246 = vld [vmem:[%s10225 + $0x50] sm:$0xf]
        %v10247 = vld [vmem:[%s10225 + $0x54] sm:$0xf]
        %v10248 = vld [vmem:[%s10225 + $0x58] sm:$0xf]
        %v10249 = vld [vmem:[%s10225 + $0x5c] sm:$0xf]
        %v10250 = vld [vmem:[%s10225 + $0x60] sm:$0xf]
        %v10251 = vld [vmem:[%s10225 + $0x64] sm:$0xf]
        %v10252 = vld [vmem:[%s10225 + $0x68] sm:$0xf]
        %v10253 = vld [vmem:[%s10225 + $0x6c] sm:$0xf]
        %v10254 = vld [vmem:[%s10225 + $0x70] sm:$0xf]
        %v10255 = vld [vmem:[%s10225 + $0x74] sm:$0xf]
        %v10256 = vld [vmem:[%s10225 + $0x78] sm:$0xf]
        %v10257 = vld [vmem:[%s10225 + $0x7c] sm:$0xf]
        %v10258 = vld [vmem:[%s10225 + $0x80] sm:$0xf]
        %v10259 = vld [vmem:[%s10225 + $0x84] sm:$0xf]
        %v10260 = vld [vmem:[%s10225 + $0x88] sm:$0xf]
        %v10261 = vld [vmem:[%s10225 + $0x8c] sm:$0xf]
        %v10262 = vld [vmem:[%s10225 + $0x90] sm:$0xf]
        %v10263 = vld [vmem:[%s10225 + $0x94] sm:$0xf]
        %v10264 = vld [vmem:[%s10225 + $0x98] sm:$0xf]
        %v10265 = vld [vmem:[%s10225 + $0x9c] sm:$0xf]
        %v10266 = vld [vmem:[%s10225 + $0xa0] sm:$0xf]
        %v10267 = vld [vmem:[%s10225 + $0xa4] sm:$0xf]
        %v10268 = vld [vmem:[%s10225 + $0xa8] sm:$0xf]
        %v10269 = vld [vmem:[%s10225 + $0xac] sm:$0xf]
        %v10270 = vld [vmem:[%s10225 + $0xb0] sm:$0xf]
        %v10271 = vld [vmem:[%s10225 + $0xb4] sm:$0xf]
        %v10272 = vld [vmem:[%s10225 + $0xb8] sm:$0xf]
        %v10273 = vld [vmem:[%s10225 + $0xbc] sm:$0xf]
        %v10274 = vld [vmem:[%s10225 + $0xc0] sm:$0xf]
        %v10275 = vld [vmem:[%s10225 + $0xc4] sm:$0xf]
        %v10276 = vld [vmem:[%s10225 + $0xc8] sm:$0xf]
        %v10277 = vld [vmem:[%s10225 + $0xcc] sm:$0xf]
        %v10278 = vld [vmem:[%s10225 + $0xd0] sm:$0xf]
        %v10279 = vld [vmem:[%s10225 + $0xd4] sm:$0xf]
        %v10280 = vld [vmem:[%s10225 + $0xd8] sm:$0xf]
        %v10281 = vld [vmem:[%s10225 + $0xdc] sm:$0xf]
        %v10338 = vunpack.c.l.b16 %v10226
        %v10339 = vunpack.c.l.b16 %v10227
        %v10340 = vunpack.c.l.b16 %v10228
        %v10341 = vunpack.c.l.b16 %v10229
        %v10342 = vunpack.c.l.b16 %v10230
        %v10343 = vunpack.c.l.b16 %v10231
        %v10344 = vunpack.c.l.b16 %v10232
        %v10345 = vunpack.c.l.b16 %v10233
        %v10346 = vunpack.c.l.b16 %v10234
        %v10347 = vunpack.c.l.b16 %v10235
        %v10348 = vunpack.c.l.b16 %v10236
        %v10349 = vunpack.c.l.b16 %v10237
        %v10350 = vunpack.c.l.b16 %v10238
        %v10351 = vunpack.c.l.b16 %v10239
        %v10352 = vunpack.c.l.b16 %v10240
        %v10353 = vunpack.c.l.b16 %v10241
        %v10354 = vunpack.c.l.b16 %v10242
        %v10355 = vunpack.c.l.b16 %v10243
        %v10356 = vunpack.c.l.b16 %v10244
        %v10357 = vunpack.c.l.b16 %v10245
        %v10358 = vunpack.c.l.b16 %v10246
        %v10359 = vunpack.c.l.b16 %v10247
        %v10360 = vunpack.c.l.b16 %v10248
        %v10361 = vunpack.c.l.b16 %v10249
        %v10362 = vunpack.c.l.b16 %v10250
        %v10363 = vunpack.c.l.b16 %v10251
        %v10364 = vunpack.c.l.b16 %v10252
        %v10365 = vunpack.c.l.b16 %v10253
        %v10366 = vunpack.c.l.b16 %v10254
        %v10367 = vunpack.c.l.b16 %v10255
        %v10368 = vunpack.c.l.b16 %v10256
        %v10369 = vunpack.c.l.b16 %v10257
        %v10370 = vunpack.c.l.b16 %v10258
        %v10371 = vunpack.c.l.b16 %v10259
        %v10372 = vunpack.c.l.b16 %v10260
        %v10373 = vunpack.c.l.b16 %v10261
        %v10374 = vunpack.c.l.b16 %v10262
        %v10375 = vunpack.c.l.b16 %v10263
        %v10376 = vunpack.c.l.b16 %v10264
        %v10377 = vunpack.c.l.b16 %v10265
        %v10378 = vunpack.c.l.b16 %v10266
        %v10379 = vunpack.c.l.b16 %v10267
        %v10380 = vunpack.c.l.b16 %v10268
        %v10381 = vunpack.c.l.b16 %v10269
        %v10382 = vunpack.c.l.b16 %v10270
        %v10383 = vunpack.c.l.b16 %v10271
        %v10384 = vunpack.c.l.b16 %v10272
        %v10385 = vunpack.c.l.b16 %v10273
        %v10386 = vunpack.c.l.b16 %v10274
        %v10387 = vunpack.c.l.b16 %v10275
        %v10388 = vunpack.c.l.b16 %v10276
        %v10389 = vunpack.c.l.b16 %v10277
        %v10390 = vunpack.c.l.b16 %v10278
        %v10391 = vunpack.c.l.b16 %v10279
        %v10392 = vunpack.c.l.b16 %v10280
        %v10393 = vunpack.c.l.b16 %v10281
        %v10394 = vpack.c.b16 %v10339, %v10338
        %v10395 = vpack.c.b16 %v10341, %v10340
        %v10396 = vpack.c.b16 %v10343, %v10342
        %v10397 = vpack.c.b16 %v10345, %v10344
        %v10398 = vpack.c.b16 %v10347, %v10346
        %v10399 = vpack.c.b16 %v10349, %v10348
        %v10400 = vpack.c.b16 %v10351, %v10350
        %v10401 = vpack.c.b16 %v10353, %v10352
        %v10402 = vpack.c.b16 %v10355, %v10354
        %v10403 = vpack.c.b16 %v10357, %v10356
        %v10404 = vpack.c.b16 %v10359, %v10358
        %v10405 = vpack.c.b16 %v10361, %v10360
        %v10406 = vpack.c.b16 %v10363, %v10362
        %v10407 = vpack.c.b16 %v10365, %v10364
        %v10408 = vpack.c.b16 %v10367, %v10366
        %v10409 = vpack.c.b16 %v10369, %v10368
        %v10410 = vpack.c.b16 %v10371, %v10370
        %v10411 = vpack.c.b16 %v10373, %v10372
        %v10412 = vpack.c.b16 %v10375, %v10374
        %v10413 = vpack.c.b16 %v10377, %v10376
        %v10414 = vpack.c.b16 %v10379, %v10378
        %v10415 = vpack.c.b16 %v10381, %v10380
        %v10416 = vpack.c.b16 %v10383, %v10382
        %v10417 = vpack.c.b16 %v10385, %v10384
        %v10418 = vpack.c.b16 %v10387, %v10386
        %v10419 = vpack.c.b16 %v10389, %v10388
        %v10420 = vpack.c.b16 %v10391, %v10390
        %v10421 = vpack.c.b16 %v10393, %v10392
        %v10451 = vsel %vm748, %v8957, 0
        %10453 = vmatprep.subr.bf16.mxu0 0
        %10454 = vmatpush1.bf16.msra.mxu0 %v10394
        %10455 = vmatprep.subr.bf16.mxu0 0
        %10456 = vmatpush1.bf16.msra.mxu0 %v10395
        %10457 = vmatprep.subr.bf16.mxu0 0
        %10458 = vmatpush1.bf16.msra.mxu0 %v10396
        %10459 = vmatprep.subr.bf16.mxu0 0
        %10460 = vmatpush1.bf16.msra.mxu0 %v10397
        %10461 = vmatprep.subr.bf16.mxu0 0
        %10462 = vmatpush1.bf16.msra.mxu0 %v10398
        %10463 = vmatprep.subr.bf16.mxu0 0
        %10464 = vmatpush1.bf16.msra.mxu0 %v10399
        %10465 = vmatprep.subr.bf16.mxu0 0
        %10466 = vmatpush1.bf16.msra.mxu0 %v10400
        %10467 = vmatprep.subr.bf16.mxu0 0
        %10468 = vmatpush1.bf16.msra.mxu0 %v10401
        %10469 = vmatprep.subr.bf16.mxu0 0
        %10470 = vmatpush1.bf16.msra.mxu0 %v10402
        %10471 = vmatprep.subr.bf16.mxu0 0
        %10472 = vmatpush1.bf16.msra.mxu0 %v10403
        %10473 = vmatprep.subr.bf16.mxu0 0
        %10474 = vmatpush1.bf16.msra.mxu0 %v10404
        %10475 = vmatprep.subr.bf16.mxu0 0
        %10476 = vmatpush1.bf16.msra.mxu0 %v10405
        %10477 = vmatprep.subr.bf16.mxu0 0
        %10478 = vmatpush1.bf16.msra.mxu0 %v10406
        %10479 = vmatprep.subr.bf16.mxu0 0
        %10480 = vmatpush1.bf16.msra.mxu0 %v10407
        %10481 = vmatprep.subr.bf16.mxu0 0
        %10482 = vmatpush1.bf16.msra.mxu0 %v10408
        %10483 = vmatprep.subr.bf16.mxu0 0
        %10484 = vmatpush1.bf16.msra.mxu0 %v10409
        %10485 = vmatprep.mubr.bf16.mxu0 %v8955
        %10486 = vmatmul.mubr.bf16.gmra.mrb[0].mxu0 %v8954
        %v10487 = vpop.f32.mrb[0].mxu0
        %v10488 = vadd.f32 0.0, %v10487
        %v10489 = vpop.f32.mrb[0].mxu0
        %v10490 = vpop.f32.mrb[0].mxu0
        %v10491 = vpop.f32.mrb[0].mxu0
        %10492 = vdwg.mxu0
        %10493 = vmatprep.subr.bf16.mxu0 0
        %10494 = vmatpush1.bf16.msra.mxu0 %v10410
        %10495 = vmatprep.subr.bf16.mxu0 0
        %10496 = vmatpush1.bf16.msra.mxu0 %v10411
        %10497 = vmatprep.subr.bf16.mxu0 0
        %10498 = vmatpush1.bf16.msra.mxu0 %v10412
        %10499 = vmatprep.subr.bf16.mxu0 0
        %10500 = vmatpush1.bf16.msra.mxu0 %v10413
        %10501 = vmatprep.subr.bf16.mxu0 0
        %10502 = vmatpush1.bf16.msra.mxu0 %v10414
        %10503 = vmatprep.subr.bf16.mxu0 0
        %10504 = vmatpush1.bf16.msra.mxu0 %v10415
        %10505 = vmatprep.subr.bf16.mxu0 0
        %10506 = vmatpush1.bf16.msra.mxu0 %v10416
        %10507 = vmatprep.subr.bf16.mxu0 0
        %10508 = vmatpush1.bf16.msra.mxu0 %v10417
        %10509 = vmatprep.subr.bf16.mxu0 0
        %10510 = vmatpush1.bf16.msra.mxu0 %v10418
        %10511 = vmatprep.subr.bf16.mxu0 0
        %10512 = vmatpush1.bf16.msra.mxu0 %v10419
        %10513 = vmatprep.subr.bf16.mxu0 0
        %10514 = vmatpush1.bf16.msra.mxu0 %v10420
        %10515 = vmatprep.subr.bf16.mxu0 0
        %10516 = vmatpush1.bf16.msra.mxu0 %v10421
        %10517 = vmatprep.subr.bf16.mxu0 0
        %10518 = vmatpush1.bf16.msra.mxu0 0
        %10519 = vmatprep.subr.bf16.mxu0 0
        %10520 = vmatpush1.bf16.msra.mxu0 0
        %10521 = vmatprep.subr.bf16.mxu0 0
        %10522 = vmatpush1.bf16.msra.mxu0 0
        %10523 = vmatprep.subr.bf16.mxu0 0
        %10524 = vmatpush1.bf16.msra.mxu0 0
        %10525 = vmatprep.mubr.bf16.mxu0 %v10451
        %10526 = vmatmul.mubr.bf16.gmra.mrb[0].mxu0 %v8956
        %v10527 = vpop.f32.mrb[0].mxu0
        %v10528 = vadd.f32 %v10488, %v10527
        %v10529 = vpop.f32.mrb[0].mxu0
        %v10530 = vpop.f32.mrb[0].mxu0
        %v10531 = vpop.f32.mrb[0].mxu0
        %10532 = vdwg.mxu0
        %v10533 = vadd.f32 %v10224, %v10528
        %s10534 = scalar_lea.vmem %s8, 1120
        %v10535 = vld [vmem:[%s10534] sm:$0xf]
        %v10536 = vld [vmem:[%s10534 + $0x4] sm:$0xf]
        %v10537 = vld [vmem:[%s10534 + $0x8] sm:$0xf]
        %v10538 = vld [vmem:[%s10534 + $0xc] sm:$0xf]
        %v10539 = vld [vmem:[%s10534 + $0x10] sm:$0xf]
        %v10540 = vld [vmem:[%s10534 + $0x14] sm:$0xf]
        %v10541 = vld [vmem:[%s10534 + $0x18] sm:$0xf]
        %v10542 = vld [vmem:[%s10534 + $0x1c] sm:$0xf]
        %v10543 = vld [vmem:[%s10534 + $0x20] sm:$0xf]
        %v10544 = vld [vmem:[%s10534 + $0x24] sm:$0xf]
        %v10545 = vld [vmem:[%s10534 + $0x28] sm:$0xf]
        %v10546 = vld [vmem:[%s10534 + $0x2c] sm:$0xf]
        %v10547 = vld [vmem:[%s10534 + $0x30] sm:$0xf]
        %v10548 = vld [vmem:[%s10534 + $0x34] sm:$0xf]
        %v10549 = vld [vmem:[%s10534 + $0x38] sm:$0xf]
        %v10550 = vld [vmem:[%s10534 + $0x3c] sm:$0xf]
        %v10551 = vld [vmem:[%s10534 + $0x40] sm:$0xf]
        %v10552 = vld [vmem:[%s10534 + $0x44] sm:$0xf]
        %v10553 = vld [vmem:[%s10534 + $0x48] sm:$0xf]
        %v10554 = vld [vmem:[%s10534 + $0x4c] sm:$0xf]
        %v10555 = vld [vmem:[%s10534 + $0x50] sm:$0xf]
        %v10556 = vld [vmem:[%s10534 + $0x54] sm:$0xf]
        %v10557 = vld [vmem:[%s10534 + $0x58] sm:$0xf]
        %v10558 = vld [vmem:[%s10534 + $0x5c] sm:$0xf]
        %v10559 = vld [vmem:[%s10534 + $0x60] sm:$0xf]
        %v10560 = vld [vmem:[%s10534 + $0x64] sm:$0xf]
        %v10561 = vld [vmem:[%s10534 + $0x68] sm:$0xf]
        %v10562 = vld [vmem:[%s10534 + $0x6c] sm:$0xf]
        %v10563 = vld [vmem:[%s10534 + $0x70] sm:$0xf]
        %v10564 = vld [vmem:[%s10534 + $0x74] sm:$0xf]
        %v10565 = vld [vmem:[%s10534 + $0x78] sm:$0xf]
        %v10566 = vld [vmem:[%s10534 + $0x7c] sm:$0xf]
        %v10567 = vld [vmem:[%s10534 + $0x80] sm:$0xf]
        %v10568 = vld [vmem:[%s10534 + $0x84] sm:$0xf]
        %v10569 = vld [vmem:[%s10534 + $0x88] sm:$0xf]
        %v10570 = vld [vmem:[%s10534 + $0x8c] sm:$0xf]
        %v10571 = vld [vmem:[%s10534 + $0x90] sm:$0xf]
        %v10572 = vld [vmem:[%s10534 + $0x94] sm:$0xf]
        %v10573 = vld [vmem:[%s10534 + $0x98] sm:$0xf]
        %v10574 = vld [vmem:[%s10534 + $0x9c] sm:$0xf]
        %v10575 = vld [vmem:[%s10534 + $0xa0] sm:$0xf]
        %v10576 = vld [vmem:[%s10534 + $0xa4] sm:$0xf]
        %v10577 = vld [vmem:[%s10534 + $0xa8] sm:$0xf]
        %v10578 = vld [vmem:[%s10534 + $0xac] sm:$0xf]
        %v10579 = vld [vmem:[%s10534 + $0xb0] sm:$0xf]
        %v10580 = vld [vmem:[%s10534 + $0xb4] sm:$0xf]
        %v10581 = vld [vmem:[%s10534 + $0xb8] sm:$0xf]
        %v10582 = vld [vmem:[%s10534 + $0xbc] sm:$0xf]
        %v10583 = vld [vmem:[%s10534 + $0xc0] sm:$0xf]
        %v10584 = vld [vmem:[%s10534 + $0xc4] sm:$0xf]
        %v10585 = vld [vmem:[%s10534 + $0xc8] sm:$0xf]
        %v10586 = vld [vmem:[%s10534 + $0xcc] sm:$0xf]
        %v10587 = vld [vmem:[%s10534 + $0xd0] sm:$0xf]
        %v10588 = vld [vmem:[%s10534 + $0xd4] sm:$0xf]
        %v10589 = vld [vmem:[%s10534 + $0xd8] sm:$0xf]
        %v10590 = vld [vmem:[%s10534 + $0xdc] sm:$0xf]
        %v10595 = vrot.slane %v8954, 2
        %v10596 = vrot.slane %v8955, 2
        %v10597 = vrot.slane %v8956, 2
        %v10598 = vrot.slane %v8957, 2
        %v10658 = vunpack.c.l.b16 %v10535
        %v10659 = vunpack.c.l.b16 %v10536
        %v10660 = vunpack.c.l.b16 %v10537
        %v10661 = vunpack.c.l.b16 %v10538
        %v10662 = vunpack.c.l.b16 %v10539
        %v10663 = vunpack.c.l.b16 %v10540
        %v10664 = vunpack.c.l.b16 %v10541
        %v10665 = vunpack.c.l.b16 %v10542
        %v10666 = vunpack.c.l.b16 %v10543
        %v10667 = vunpack.c.l.b16 %v10544
        %v10668 = vunpack.c.l.b16 %v10545
        %v10669 = vunpack.c.l.b16 %v10546
        %v10670 = vunpack.c.l.b16 %v10547
        %v10671 = vunpack.c.l.b16 %v10548
        %v10672 = vunpack.c.l.b16 %v10549
        %v10673 = vunpack.c.l.b16 %v10550
        %v10674 = vunpack.c.l.b16 %v10551
        %v10675 = vunpack.c.l.b16 %v10552
        %v10676 = vunpack.c.l.b16 %v10553
        %v10677 = vunpack.c.l.b16 %v10554
        %v10678 = vunpack.c.l.b16 %v10555
        %v10679 = vunpack.c.l.b16 %v10556
        %v10680 = vunpack.c.l.b16 %v10557
        %v10681 = vunpack.c.l.b16 %v10558
        %v10682 = vunpack.c.l.b16 %v10559
        %v10683 = vunpack.c.l.b16 %v10560
        %v10684 = vunpack.c.l.b16 %v10561
        %v10685 = vunpack.c.l.b16 %v10562
        %v10686 = vunpack.c.l.b16 %v10563
        %v10687 = vunpack.c.l.b16 %v10564
        %v10688 = vunpack.c.l.b16 %v10565
        %v10689 = vunpack.c.l.b16 %v10566
        %v10690 = vunpack.c.l.b16 %v10567
        %v10691 = vunpack.c.l.b16 %v10568
        %v10692 = vunpack.c.l.b16 %v10569
        %v10693 = vunpack.c.l.b16 %v10570
        %v10694 = vunpack.c.l.b16 %v10571
        %v10695 = vunpack.c.l.b16 %v10572
        %v10696 = vunpack.c.l.b16 %v10573
        %v10697 = vunpack.c.l.b16 %v10574
        %v10698 = vunpack.c.l.b16 %v10575
        %v10699 = vunpack.c.l.b16 %v10576
        %v10700 = vunpack.c.l.b16 %v10577
        %v10701 = vunpack.c.l.b16 %v10578
        %v10702 = vunpack.c.l.b16 %v10579
        %v10703 = vunpack.c.l.b16 %v10580
        %v10704 = vunpack.c.l.b16 %v10581
        %v10705 = vunpack.c.l.b16 %v10582
        %v10706 = vunpack.c.l.b16 %v10583
        %v10707 = vunpack.c.l.b16 %v10584
        %v10708 = vunpack.c.l.b16 %v10585
        %v10709 = vunpack.c.l.b16 %v10586
        %v10710 = vunpack.c.l.b16 %v10587
        %v10711 = vunpack.c.l.b16 %v10588
        %v10712 = vunpack.c.l.b16 %v10589
        %v10713 = vunpack.c.l.b16 %v10590
        %v10714 = vpack.c.b16 %v10659, %v10658
        %v10715 = vpack.c.b16 %v10661, %v10660
        %v10716 = vpack.c.b16 %v10663, %v10662
        %v10717 = vpack.c.b16 %v10665, %v10664
        %v10718 = vpack.c.b16 %v10667, %v10666
        %v10719 = vpack.c.b16 %v10669, %v10668
        %v10720 = vpack.c.b16 %v10671, %v10670
        %v10721 = vpack.c.b16 %v10673, %v10672
        %v10722 = vpack.c.b16 %v10675, %v10674
        %v10723 = vpack.c.b16 %v10677, %v10676
        %v10724 = vpack.c.b16 %v10679, %v10678
        %v10725 = vpack.c.b16 %v10681, %v10680
        %v10726 = vpack.c.b16 %v10683, %v10682
        %v10727 = vpack.c.b16 %v10685, %v10684
        %v10728 = vpack.c.b16 %v10687, %v10686
        %v10729 = vpack.c.b16 %v10689, %v10688
        %v10730 = vpack.c.b16 %v10691, %v10690
        %v10731 = vpack.c.b16 %v10693, %v10692
        %v10732 = vpack.c.b16 %v10695, %v10694
        %v10733 = vpack.c.b16 %v10697, %v10696
        %v10734 = vpack.c.b16 %v10699, %v10698
        %v10735 = vpack.c.b16 %v10701, %v10700
        %v10736 = vpack.c.b16 %v10703, %v10702
        %v10737 = vpack.c.b16 %v10705, %v10704
        %v10738 = vpack.c.b16 %v10707, %v10706
        %v10739 = vpack.c.b16 %v10709, %v10708
        %v10740 = vpack.c.b16 %v10711, %v10710
        %v10741 = vpack.c.b16 %v10713, %v10712
        %v10771 = vsel %vm748, %v10598, 0
        %10773 = vmatprep.subr.bf16.mxu0 0
        %10774 = vmatpush1.bf16.msra.mxu0 %v10714
        %10775 = vmatprep.subr.bf16.mxu0 0
        %10776 = vmatpush1.bf16.msra.mxu0 %v10715
        %10777 = vmatprep.subr.bf16.mxu0 0
        %10778 = vmatpush1.bf16.msra.mxu0 %v10716
        %10779 = vmatprep.subr.bf16.mxu0 0
        %10780 = vmatpush1.bf16.msra.mxu0 %v10717
        %10781 = vmatprep.subr.bf16.mxu0 0
        %10782 = vmatpush1.bf16.msra.mxu0 %v10718
        %10783 = vmatprep.subr.bf16.mxu0 0
        %10784 = vmatpush1.bf16.msra.mxu0 %v10719
        %10785 = vmatprep.subr.bf16.mxu0 0
        %10786 = vmatpush1.bf16.msra.mxu0 %v10720
        %10787 = vmatprep.subr.bf16.mxu0 0
        %10788 = vmatpush1.bf16.msra.mxu0 %v10721
        %10789 = vmatprep.subr.bf16.mxu0 0
        %10790 = vmatpush1.bf16.msra.mxu0 %v10722
        %10791 = vmatprep.subr.bf16.mxu0 0
        %10792 = vmatpush1.bf16.msra.mxu0 %v10723
        %10793 = vmatprep.subr.bf16.mxu0 0
        %10794 = vmatpush1.bf16.msra.mxu0 %v10724
        %10795 = vmatprep.subr.bf16.mxu0 0
        %10796 = vmatpush1.bf16.msra.mxu0 %v10725
        %10797 = vmatprep.subr.bf16.mxu0 0
        %10798 = vmatpush1.bf16.msra.mxu0 %v10726
        %10799 = vmatprep.subr.bf16.mxu0 0
        %10800 = vmatpush1.bf16.msra.mxu0 %v10727
        %10801 = vmatprep.subr.bf16.mxu0 0
        %10802 = vmatpush1.bf16.msra.mxu0 %v10728
        %10803 = vmatprep.subr.bf16.mxu0 0
        %10804 = vmatpush1.bf16.msra.mxu0 %v10729
        %10805 = vmatprep.mubr.bf16.mxu0 %v10596
        %10806 = vmatmul.mubr.bf16.gmra.mrb[0].mxu0 %v10595
        %v10807 = vpop.f32.mrb[0].mxu0
        %v10808 = vadd.f32 0.0, %v10807
        %v10809 = vpop.f32.mrb[0].mxu0
        %v10810 = vpop.f32.mrb[0].mxu0
        %v10811 = vpop.f32.mrb[0].mxu0
        %10812 = vdwg.mxu0
        %10813 = vmatprep.subr.bf16.mxu0 0
        %10814 = vmatpush1.bf16.msra.mxu0 %v10730
        %10815 = vmatprep.subr.bf16.mxu0 0
        %10816 = vmatpush1.bf16.msra.mxu0 %v10731
        %10817 = vmatprep.subr.bf16.mxu0 0
        %10818 = vmatpush1.bf16.msra.mxu0 %v10732
        %10819 = vmatprep.subr.bf16.mxu0 0
        %10820 = vmatpush1.bf16.msra.mxu0 %v10733
        %10821 = vmatprep.subr.bf16.mxu0 0
        %10822 = vmatpush1.bf16.msra.mxu0 %v10734
        %10823 = vmatprep.subr.bf16.mxu0 0
        %10824 = vmatpush1.bf16.msra.mxu0 %v10735
        %10825 = vmatprep.subr.bf16.mxu0 0
        %10826 = vmatpush1.bf16.msra.mxu0 %v10736
        %10827 = vmatprep.subr.bf16.mxu0 0
        %10828 = vmatpush1.bf16.msra.mxu0 %v10737
        %10829 = vmatprep.subr.bf16.mxu0 0
        %10830 = vmatpush1.bf16.msra.mxu0 %v10738
        %10831 = vmatprep.subr.bf16.mxu0 0
        %10832 = vmatpush1.bf16.msra.mxu0 %v10739
        %10833 = vmatprep.subr.bf16.mxu0 0
        %10834 = vmatpush1.bf16.msra.mxu0 %v10740
        %10835 = vmatprep.subr.bf16.mxu0 0
        %10836 = vmatpush1.bf16.msra.mxu0 %v10741
        %10837 = vmatprep.subr.bf16.mxu0 0
        %10838 = vmatpush1.bf16.msra.mxu0 0
        %10839 = vmatprep.subr.bf16.mxu0 0
        %10840 = vmatpush1.bf16.msra.mxu0 0
        %10841 = vmatprep.subr.bf16.mxu0 0
        %10842 = vmatpush1.bf16.msra.mxu0 0
        %10843 = vmatprep.subr.bf16.mxu0 0
        %10844 = vmatpush1.bf16.msra.mxu0 0
        %10845 = vmatprep.mubr.bf16.mxu0 %v10771
        %10846 = vmatmul.mubr.bf16.gmra.mrb[0].mxu0 %v10597
        %v10847 = vpop.f32.mrb[0].mxu0
        %v10848 = vadd.f32 %v10808, %v10847
        %v10849 = vpop.f32.mrb[0].mxu0
        %v10850 = vpop.f32.mrb[0].mxu0
        %v10851 = vpop.f32.mrb[0].mxu0
        %10852 = vdwg.mxu0
        %v10853 = vadd.f32 %v10533, %v10848
        %s10854 = scalar_lea.vmem %s8, 1344
        %v10855 = vld [vmem:[%s10854] sm:$0xf]
        %v10856 = vld [vmem:[%s10854 + $0x4] sm:$0xf]
        %v10857 = vld [vmem:[%s10854 + $0x8] sm:$0xf]
        %v10858 = vld [vmem:[%s10854 + $0xc] sm:$0xf]
        %v10859 = vld [vmem:[%s10854 + $0x10] sm:$0xf]
        %v10860 = vld [vmem:[%s10854 + $0x14] sm:$0xf]
        %v10861 = vld [vmem:[%s10854 + $0x18] sm:$0xf]
        %v10862 = vld [vmem:[%s10854 + $0x1c] sm:$0xf]
        %v10863 = vld [vmem:[%s10854 + $0x20] sm:$0xf]
        %v10864 = vld [vmem:[%s10854 + $0x24] sm:$0xf]
        %v10865 = vld [vmem:[%s10854 + $0x28] sm:$0xf]
        %v10866 = vld [vmem:[%s10854 + $0x2c] sm:$0xf]
        %v10867 = vld [vmem:[%s10854 + $0x30] sm:$0xf]
        %v10868 = vld [vmem:[%s10854 + $0x34] sm:$0xf]
        %v10869 = vld [vmem:[%s10854 + $0x38] sm:$0xf]
        %v10870 = vld [vmem:[%s10854 + $0x3c] sm:$0xf]
        %v10871 = vld [vmem:[%s10854 + $0x40] sm:$0xf]
        %v10872 = vld [vmem:[%s10854 + $0x44] sm:$0xf]
        %v10873 = vld [vmem:[%s10854 + $0x48] sm:$0xf]
        %v10874 = vld [vmem:[%s10854 + $0x4c] sm:$0xf]
        %v10875 = vld [vmem:[%s10854 + $0x50] sm:$0xf]
        %v10876 = vld [vmem:[%s10854 + $0x54] sm:$0xf]
        %v10877 = vld [vmem:[%s10854 + $0x58] sm:$0xf]
        %v10878 = vld [vmem:[%s10854 + $0x5c] sm:$0xf]
        %v10879 = vld [vmem:[%s10854 + $0x60] sm:$0xf]
        %v10880 = vld [vmem:[%s10854 + $0x64] sm:$0xf]
        %v10881 = vld [vmem:[%s10854 + $0x68] sm:$0xf]
        %v10882 = vld [vmem:[%s10854 + $0x6c] sm:$0xf]
        %v10883 = vld [vmem:[%s10854 + $0x70] sm:$0xf]
        %v10884 = vld [vmem:[%s10854 + $0x74] sm:$0xf]
        %v10885 = vld [vmem:[%s10854 + $0x78] sm:$0xf]
        %v10886 = vld [vmem:[%s10854 + $0x7c] sm:$0xf]
        %v10887 = vld [vmem:[%s10854 + $0x80] sm:$0xf]
        %v10888 = vld [vmem:[%s10854 + $0x84] sm:$0xf]
        %v10889 = vld [vmem:[%s10854 + $0x88] sm:$0xf]
        %v10890 = vld [vmem:[%s10854 + $0x8c] sm:$0xf]
        %v10891 = vld [vmem:[%s10854 + $0x90] sm:$0xf]
        %v10892 = vld [vmem:[%s10854 + $0x94] sm:$0xf]
        %v10893 = vld [vmem:[%s10854 + $0x98] sm:$0xf]
        %v10894 = vld [vmem:[%s10854 + $0x9c] sm:$0xf]
        %v10895 = vld [vmem:[%s10854 + $0xa0] sm:$0xf]
        %v10896 = vld [vmem:[%s10854 + $0xa4] sm:$0xf]
        %v10897 = vld [vmem:[%s10854 + $0xa8] sm:$0xf]
        %v10898 = vld [vmem:[%s10854 + $0xac] sm:$0xf]
        %v10899 = vld [vmem:[%s10854 + $0xb0] sm:$0xf]
        %v10900 = vld [vmem:[%s10854 + $0xb4] sm:$0xf]
        %v10901 = vld [vmem:[%s10854 + $0xb8] sm:$0xf]
        %v10902 = vld [vmem:[%s10854 + $0xbc] sm:$0xf]
        %v10903 = vld [vmem:[%s10854 + $0xc0] sm:$0xf]
        %v10904 = vld [vmem:[%s10854 + $0xc4] sm:$0xf]
        %v10905 = vld [vmem:[%s10854 + $0xc8] sm:$0xf]
        %v10906 = vld [vmem:[%s10854 + $0xcc] sm:$0xf]
        %v10907 = vld [vmem:[%s10854 + $0xd0] sm:$0xf]
        %v10908 = vld [vmem:[%s10854 + $0xd4] sm:$0xf]
        %v10909 = vld [vmem:[%s10854 + $0xd8] sm:$0xf]
        %v10910 = vld [vmem:[%s10854 + $0xdc] sm:$0xf]
        %v10911 = vrot.slane %v8954, 4
        %v10912 = vrot.slane %v8955, 4
        %v10913 = vrot.slane %v8956, 4
        %v10914 = vrot.slane %v8957, 4
        %v10974 = vunpack.c.l.b16 %v10855
        %v10975 = vunpack.c.l.b16 %v10856
        %v10976 = vunpack.c.l.b16 %v10857
        %v10977 = vunpack.c.l.b16 %v10858
        %v10978 = vunpack.c.l.b16 %v10859
        %v10979 = vunpack.c.l.b16 %v10860
        %v10980 = vunpack.c.l.b16 %v10861
        %v10981 = vunpack.c.l.b16 %v10862
        %v10982 = vunpack.c.l.b16 %v10863
        %v10983 = vunpack.c.l.b16 %v10864
        %v10984 = vunpack.c.l.b16 %v10865
        %v10985 = vunpack.c.l.b16 %v10866
        %v10986 = vunpack.c.l.b16 %v10867
        %v10987 = vunpack.c.l.b16 %v10868
        %v10988 = vunpack.c.l.b16 %v10869
        %v10989 = vunpack.c.l.b16 %v10870
        %v10990 = vunpack.c.l.b16 %v10871
        %v10991 = vunpack.c.l.b16 %v10872
        %v10992 = vunpack.c.l.b16 %v10873
        %v10993 = vunpack.c.l.b16 %v10874
        %v10994 = vunpack.c.l.b16 %v10875
        %v10995 = vunpack.c.l.b16 %v10876
        %v10996 = vunpack.c.l.b16 %v10877
        %v10997 = vunpack.c.l.b16 %v10878
        %v10998 = vunpack.c.l.b16 %v10879
        %v10999 = vunpack.c.l.b16 %v10880
        %v11000 = vunpack.c.l.b16 %v10881
        %v11001 = vunpack.c.l.b16 %v10882
        %v11002 = vunpack.c.l.b16 %v10883
        %v11003 = vunpack.c.l.b16 %v10884
        %v11004 = vunpack.c.l.b16 %v10885
        %v11005 = vunpack.c.l.b16 %v10886
        %v11006 = vunpack.c.l.b16 %v10887
        %v11007 = vunpack.c.l.b16 %v10888
        %v11008 = vunpack.c.l.b16 %v10889
        %v11009 = vunpack.c.l.b16 %v10890
        %v11010 = vunpack.c.l.b16 %v10891
        %v11011 = vunpack.c.l.b16 %v10892
        %v11012 = vunpack.c.l.b16 %v10893
        %v11013 = vunpack.c.l.b16 %v10894
        %v11014 = vunpack.c.l.b16 %v10895
        %v11015 = vunpack.c.l.b16 %v10896
        %v11016 = vunpack.c.l.b16 %v10897
        %v11017 = vunpack.c.l.b16 %v10898
        %v11018 = vunpack.c.l.b16 %v10899
        %v11019 = vunpack.c.l.b16 %v10900
        %v11020 = vunpack.c.l.b16 %v10901
        %v11021 = vunpack.c.l.b16 %v10902
        %v11022 = vunpack.c.l.b16 %v10903
        %v11023 = vunpack.c.l.b16 %v10904
        %v11024 = vunpack.c.l.b16 %v10905
        %v11025 = vunpack.c.l.b16 %v10906
        %v11026 = vunpack.c.l.b16 %v10907
        %v11027 = vunpack.c.l.b16 %v10908
        %v11028 = vunpack.c.l.b16 %v10909
        %v11029 = vunpack.c.l.b16 %v10910
        %v11030 = vpack.c.b16 %v10975, %v10974
        %v11031 = vpack.c.b16 %v10977, %v10976
        %v11032 = vpack.c.b16 %v10979, %v10978
        %v11033 = vpack.c.b16 %v10981, %v10980
        %v11034 = vpack.c.b16 %v10983, %v10982
        %v11035 = vpack.c.b16 %v10985, %v10984
        %v11036 = vpack.c.b16 %v10987, %v10986
        %v11037 = vpack.c.b16 %v10989, %v10988
        %v11038 = vpack.c.b16 %v10991, %v10990
        %v11039 = vpack.c.b16 %v10993, %v10992
        %v11040 = vpack.c.b16 %v10995, %v10994
        %v11041 = vpack.c.b16 %v10997, %v10996
        %v11042 = vpack.c.b16 %v10999, %v10998
        %v11043 = vpack.c.b16 %v11001, %v11000
        %v11044 = vpack.c.b16 %v11003, %v11002
        %v11045 = vpack.c.b16 %v11005, %v11004
        %v11046 = vpack.c.b16 %v11007, %v11006
        %v11047 = vpack.c.b16 %v11009, %v11008
        %v11048 = vpack.c.b16 %v11011, %v11010
        %v11049 = vpack.c.b16 %v11013, %v11012
        %v11050 = vpack.c.b16 %v11015, %v11014
        %v11051 = vpack.c.b16 %v11017, %v11016
        %v11052 = vpack.c.b16 %v11019, %v11018
        %v11053 = vpack.c.b16 %v11021, %v11020
        %v11054 = vpack.c.b16 %v11023, %v11022
        %v11055 = vpack.c.b16 %v11025, %v11024
        %v11056 = vpack.c.b16 %v11027, %v11026
        %v11057 = vpack.c.b16 %v11029, %v11028
        %v11087 = vsel %vm748, %v10914, 0
        %11089 = vmatprep.subr.bf16.mxu0 0
        %11090 = vmatpush1.bf16.msra.mxu0 %v11030
        %11091 = vmatprep.subr.bf16.mxu0 0
        %11092 = vmatpush1.bf16.msra.mxu0 %v11031
        %11093 = vmatprep.subr.bf16.mxu0 0
        %11094 = vmatpush1.bf16.msra.mxu0 %v11032
        %11095 = vmatprep.subr.bf16.mxu0 0
        %11096 = vmatpush1.bf16.msra.mxu0 %v11033
        %11097 = vmatprep.subr.bf16.mxu0 0
        %11098 = vmatpush1.bf16.msra.mxu0 %v11034
        %11099 = vmatprep.subr.bf16.mxu0 0
        %11100 = vmatpush1.bf16.msra.mxu0 %v11035
        %11101 = vmatprep.subr.bf16.mxu0 0
        %11102 = vmatpush1.bf16.msra.mxu0 %v11036
        %11103 = vmatprep.subr.bf16.mxu0 0
        %11104 = vmatpush1.bf16.msra.mxu0 %v11037
        %11105 = vmatprep.subr.bf16.mxu0 0
        %11106 = vmatpush1.bf16.msra.mxu0 %v11038
        %11107 = vmatprep.subr.bf16.mxu0 0
        %11108 = vmatpush1.bf16.msra.mxu0 %v11039
        %11109 = vmatprep.subr.bf16.mxu0 0
        %11110 = vmatpush1.bf16.msra.mxu0 %v11040
        %11111 = vmatprep.subr.bf16.mxu0 0
        %11112 = vmatpush1.bf16.msra.mxu0 %v11041
        %11113 = vmatprep.subr.bf16.mxu0 0
        %11114 = vmatpush1.bf16.msra.mxu0 %v11042
        %11115 = vmatprep.subr.bf16.mxu0 0
        %11116 = vmatpush1.bf16.msra.mxu0 %v11043
        %11117 = vmatprep.subr.bf16.mxu0 0
        %11118 = vmatpush1.bf16.msra.mxu0 %v11044
        %11119 = vmatprep.subr.bf16.mxu0 0
        %11120 = vmatpush1.bf16.msra.mxu0 %v11045
        %11121 = vmatprep.mubr.bf16.mxu0 %v10912
        %11122 = vmatmul.mubr.bf16.gmra.mrb[0].mxu0 %v10911
        %v11123 = vpop.f32.mrb[0].mxu0
        %v11124 = vadd.f32 0.0, %v11123
        %v11125 = vpop.f32.mrb[0].mxu0
        %v11126 = vpop.f32.mrb[0].mxu0
        %v11127 = vpop.f32.mrb[0].mxu0
        %11128 = vdwg.mxu0
        %11129 = vmatprep.subr.bf16.mxu0 0
        %11130 = vmatpush1.bf16.msra.mxu0 %v11046
        %11131 = vmatprep.subr.bf16.mxu0 0
        %11132 = vmatpush1.bf16.msra.mxu0 %v11047
        %11133 = vmatprep.subr.bf16.mxu0 0
        %11134 = vmatpush1.bf16.msra.mxu0 %v11048
        %11135 = vmatprep.subr.bf16.mxu0 0
        %11136 = vmatpush1.bf16.msra.mxu0 %v11049
        %11137 = vmatprep.subr.bf16.mxu0 0
        %11138 = vmatpush1.bf16.msra.mxu0 %v11050
        %11139 = vmatprep.subr.bf16.mxu0 0
        %11140 = vmatpush1.bf16.msra.mxu0 %v11051
        %11141 = vmatprep.subr.bf16.mxu0 0
        %11142 = vmatpush1.bf16.msra.mxu0 %v11052
        %11143 = vmatprep.subr.bf16.mxu0 0
        %11144 = vmatpush1.bf16.msra.mxu0 %v11053
        %11145 = vmatprep.subr.bf16.mxu0 0
        %11146 = vmatpush1.bf16.msra.mxu0 %v11054
        %11147 = vmatprep.subr.bf16.mxu0 0
        %11148 = vmatpush1.bf16.msra.mxu0 %v11055
        %11149 = vmatprep.subr.bf16.mxu0 0
        %11150 = vmatpush1.bf16.msra.mxu0 %v11056
        %11151 = vmatprep.subr.bf16.mxu0 0
        %11152 = vmatpush1.bf16.msra.mxu0 %v11057
        %11153 = vmatprep.subr.bf16.mxu0 0
        %11154 = vmatpush1.bf16.msra.mxu0 0
        %11155 = vmatprep.subr.bf16.mxu0 0
        %11156 = vmatpush1.bf16.msra.mxu0 0
        %11157 = vmatprep.subr.bf16.mxu0 0
        %11158 = vmatpush1.bf16.msra.mxu0 0
        %11159 = vmatprep.subr.bf16.mxu0 0
        %11160 = vmatpush1.bf16.msra.mxu0 0
        %11161 = vmatprep.mubr.bf16.mxu0 %v11087
        %11162 = vmatmul.mubr.bf16.gmra.mrb[0].mxu0 %v10913
        %v11163 = vpop.f32.mrb[0].mxu0
        %v11164 = vadd.f32 %v11124, %v11163
        %v11165 = vpop.f32.mrb[0].mxu0
        %v11166 = vpop.f32.mrb[0].mxu0
        %v11167 = vpop.f32.mrb[0].mxu0
        %11168 = vdwg.mxu0
        %v11169 = vadd.f32 %v10853, %v11164
        %v11170 = vld [vmem:[#allocation4] sm:$0xf]
        %vm11171 = vcmp.gt.f32.partialorder %v11170, 0.3
        %v11172 = vsel %vm11171, 1, 0
        %v11173 = vcvt.s32.f32 %v11172
        %v11174 = vsub.f32 1.0, %v11173
        %v11175 = vmul.f32 %v11174, 0.2
        %v11176 = vmul.f32 %v11170, %v11175
        %v11177 = vadd.f32 %v11176, %v11169
        %11178 = vst [vmem:[#allocation4] sm:$0xf] %v11177
        %v11179 = vld [vmem:[%s375] sm:$0xf]
        %vm11180 = vcmp.gt.f32.partialorder %v11177, 0.3
        %v11181 = vsel %vm11180, 1, 0
        %v11182 = vcvt.s32.f32 %v11181
        %v11183 = vadd.f32 %v11179, %v11182
        %11184 = vst [vmem:[%s375] sm:$0xf] %v11183
        %p11185 = scmp.eq.s32.totalorder %s29, 19
        // Predicated region
        $region65: #{_forward_jit.1} parent=59 // pred_check
          %p11186 = pneg %p11185
        $region66: #{_forward_jit.1} parent=59 // pred_check_branch
          %11188 = sbr.rel (%p11186) target = $region68
        $region67: #{_forward_jit.1} parent=59 // pred_region
          %v11189 = vld [vmem:[%s375] sm:$0xf]
          %v11190 = vmul.f32 %v11189, 0.05
          %v11191 = vmul.f32 %v11190, %v11190
          %vm11192 = vcmask 1043456
          %v11193 = vsel %vm11192, %v11191, 0.0
          %11194 = vadd.xlane.f32.xlu0 %v11193
          %v11195 = vpop.xlane.xlu0 %11194
          %v11196 = vmax.f32 %v11195, 1e-24
          %v11197 = vrsqrt.pop %v11196
          %v11198 = vmul.f32 %v11190, %v11197
          %11199 = vst [vmem:[%s375] sm:$0xf] %v11198
        $region68: #{_forward_jit.1} parent=59 // pred_fallthru
          _
        %s11200 = sand.u32 %s261, 1
        %s11201 = scalar_lea.sflag [#allocation6], %s11200
        %s11202 = sand.u32 %s261, 1
        %s11203 = smul.addr %s11202, 4
        %s11204 = scalar_lea.vmem [#allocation5], %s11203
        // Predicated region
        $region69: #{_forward_jit.1} parent=59 // pred_check
          %p11205 = pneg %p271
        $region70: #{_forward_jit.1} parent=59 // pred_check_branch
          %11207 = sbr.rel (%p11205) target = $region72
        $region71: #{_forward_jit.1} parent=59 // pred_region
          %s11209 = ssub.s32 64, 64
          %11210 = vsyncadd %s11201, %s11209
          %s11211 = smul.addr %s28, 64
          %s11212 = scalar_lea.hbm %s10, %s11211
          %s11214 = sshll.u32 %s11204, 4
          %s11215 = int_to_ptr.vmem [resolvable:$true] %s11214
          %11217 = dma.vmem_to_hbm [thread:$0]  %s11215, 64, %s11212, %s11201
        $region72: #{_forward_jit.1} parent=59 // pred_fallthru
          _
      $region60: #{_forward_jit.1} parent=5 // pred_fallthru
        _
      %p11218 = scmp.le.s32.totalorder 2, %s19
      // Predicated region
      $region73: #{_forward_jit.1} parent=5 // pred_check
        %p11219 = pneg %p11218
      $region74: #{_forward_jit.1} parent=5 // pred_check_branch
        %11221 = sbr.rel (%p11219) target = $region76
      $region75: #{_forward_jit.1} parent=5 // pred_region
        %s11222 = ssub.s32 %s19, 2
        // Predicated region
        $region77: #{_forward_jit.1} parent=75 // pred_check
          %p11223 = pneg %p277
        $region78: #{_forward_jit.1} parent=75 // pred_check_branch
          %11225 = sbr.rel (%p11223) target = $region80
        $region79: #{_forward_jit.1} parent=75 // pred_region
          %s11226 = sand.u32 %s262, 1
          %s11227 = scalar_lea.sflag [#allocation6], %s11226
          %s11228 = sand.u32 %s262, 1
          %s11229 = smul.addr %s11228, 4
          %s11230 = scalar_lea.vmem [#allocation5], %s11229
          %11231 = dma.done %s11227, 64
        $region80: #{_forward_jit.1} parent=75 // pred_fallthru
          _
      $region76: #{_forward_jit.1} parent=5 // pred_fallthru
        _
    $region6: #{_forward_jit.1} parent=1 // loop_footer
      %s23 = sadd.s32 1, %s19
    $region7: #{_forward_jit.1} parent=1 // loop_footer_branch
      %18 = sbr.rel target = $region3
    $region8: #{_forward_jit.1} parent=1 // loop_exit
      _
    %11232 = vsyncpa [#allocation6], 1
    %s11233 = scalar_lea.sflag [#allocation6], 1
    %11234 = vsyncpa %s11233, 1

</llo_original>
